<compile_context>
chip_gen: v7x
topology: tpu7x:2x2x1
jax: 0.10.0
libtpu: 0.0.40
codegen_flags: <defaults>
</compile_context>

<pallas_src>
import jax
import jax.numpy as jnp
from jax.experimental import pallas as pl
from jax.experimental.pallas import tpu as pltpu

T = 100          # sequence length (the "100" in .view(-1, 100, 2, 256))
T_PAD = 104      # time padded to a multiple of 8 (sublane-aligned rolls)
C_IN = 80        # input mel channels
C_PAD = 128      # channel padding target (lane width)
C_HALF = 256     # mu / log_var width (512 conv4 channels split in two)

_HI = jax.lax.Precision.HIGHEST


def _conv1d_same(h, w_ref, b_ref, valid, mask_output=True):
    """Conv1d, kernel=3, padding='same', stride=1, channels-last, batch-folded rows.

    h:      (R, Cin) f32 with every sample's pad rows (t >= T) exactly zero
    w_ref:  (3, Cin, Cout) bf16 ref   (tap 0 = x[t-1], 1 = x[t], 2 = x[t+1])
    b_ref:  (1, Cout) f32 ref
    valid:  (R, 1) bool mask, True on real time rows

    Rolling the zero pad rows into position provides the conv zero padding (also at
    sample boundaries, since the rolled-in rows are pad rows of the neighbouring
    sample), so the three taps are plain bf16 MXU matmuls with f32 accumulation.
    """
    rows = h.shape[0]
    h_prev = pltpu.roll(h, shift=1, axis=0)          # row r <- h[r-1]; wraps into pad rows
    h_next = pltpu.roll(h, shift=rows - 1, axis=0)   # row r <- h[r+1]; wraps into pad rows
    y = jnp.dot(h_prev.astype(jnp.bfloat16), w_ref[0], preferred_element_type=jnp.float32)
    y = y + jnp.dot(h.astype(jnp.bfloat16), w_ref[1], preferred_element_type=jnp.float32)
    y = y + jnp.dot(h_next.astype(jnp.bfloat16), w_ref[2], preferred_element_type=jnp.float32)
    y = y + b_ref[...]
    if mask_output:
        y = jnp.where(valid, y, 0.0)                 # keep pad rows at exactly zero
    return y


def audio_encoder_kernel(x_ref, w1_ref, b1_ref, w2_ref, b2_ref,
                         w3_ref, b3_ref, w4_ref, b4_ref, eps_ref, o_ref):
    nb = o_ref.shape[0]                  # samples folded into this grid step (static)
    rows = nb * T_PAD

    # (R,1) mask of real time rows (built with simple compares/ORs; no mod/div needed)
    row = jax.lax.broadcasted_iota(jnp.int32, (rows, 1), 0)
    valid = row < T
    for s in range(1, nb):
        valid = jnp.logical_or(
            valid, jnp.logical_and(row >= s * T_PAD, row < s * T_PAD + T))

    h = x_ref[...]                                            # (R, 128) f32, pad rows zero
    h = _conv1d_same(h, w1_ref, b1_ref, valid)                # (R, 128)  (100 real channels)
    h = _conv1d_same(h, w2_ref, b2_ref, valid)                # (R, 128)  (100 real channels)
    h = _conv1d_same(h, w3_ref, b3_ref, valid)                # (R, 256)
    h = _conv1d_same(h, w4_ref, b4_ref, valid, mask_output=False)   # (R, 512), no roll follows

    # transpose(1,2) + view(-1, 100, 2, 256): in channels-last this is just a
    # lane-aligned split of the 512 channels into [mu | log_var].
    mu = h[:, :C_HALF]
    log_var = h[:, C_HALF:]

    # reparameterize
    sample = mu + eps_ref[...] * jnp.exp(0.5 * log_var)       # (R, 256)

    # per-sample min/max normalization; only real time rows participate
    valid_seg = jax.lax.broadcasted_iota(jnp.int32, (T_PAD, 1), 0) < T
    for s in range(nb):
        blk = sample[s * T_PAD:(s + 1) * T_PAD, :]            # aligned (T_PAD, 256) view
        mn = jnp.min(jnp.where(valid_seg, blk, 1e30))
        d = blk - mn
        mx = jnp.max(jnp.where(valid_seg, d, -1e30))
        o_ref[s] = (d * (1.0 / mx))[:T, :]                    # drop time-padding rows


def audio_encoder_forward(x_ncw, params, eps):
    """x_ncw: (B, 80, T) PyTorch NCW layout; eps: (B, T, 256) reparameterization noise.
    params: 4 tuples (w, b) with torch shapes w: (Cout, Cin, 3), b: (Cout,)."""
    B = x_ncw.shape[0]
    assert x_ncw.shape == (B, C_IN, T)
    assert eps.shape == (B, T, C_HALF)

    # batch tile: fold NB samples into the row dimension of one grid step
    NB = next(n for n in (8, 4, 2, 1) if B % n == 0)
    R = NB * T_PAD

    # channels-last + zero-pad time (100 -> 104) and input channels (80 -> 128),
    # then fold batch into rows: (B, T_PAD, C) -> (B*T_PAD, C)
    x_btc = jnp.transpose(x_ncw, (0, 2, 1)).astype(jnp.float32)
    x_btc = jnp.pad(x_btc, ((0, 0), (0, T_PAD - T), (0, C_PAD - C_IN)))
    x_2d = x_btc.reshape(B * T_PAD, C_PAD)

    eps_p = jnp.pad(eps.astype(jnp.float32), ((0, 0), (0, T_PAD - T), (0, 0)))
    eps_2d = eps_p.reshape(B * T_PAD, C_HALF)

    kern_args = [x_2d]
    in_specs = [pl.BlockSpec((R, C_PAD), lambda i: (i, 0))]

    # pad Cin / Cout of the small layers up to 128 (zero rows/cols -> identical math)
    cin_targets = (C_PAD, C_PAD, C_PAD, 256)
    cout_targets = (C_PAD, C_PAD, 256, 512)
    for (w, b), cin_t, cout_t in zip(params, cin_targets, cout_targets):
        cout, cin, _k = w.shape
        wk = jnp.transpose(w, (2, 1, 0)).astype(jnp.float32)          # (3, Cin, Cout)
        wk = jnp.pad(wk, ((0, 0), (0, cin_t - cin), (0, cout_t - cout)))
        bk = jnp.pad(b.reshape(1, cout).astype(jnp.float32), ((0, 0), (0, cout_t - cout)))
        kern_args += [wk.astype(jnp.bfloat16), bk]
        in_specs += [
            pl.BlockSpec((3, cin_t, cout_t), lambda i: (0, 0, 0)),    # weights stay resident
            pl.BlockSpec((1, cout_t), lambda i: (0, 0)),
        ]
    kern_args.append(eps_2d)
    in_specs.append(pl.BlockSpec((R, C_HALF), lambda i: (i, 0)))

    return pl.pallas_call(
        audio_encoder_kernel,
        out_shape=jax.ShapeDtypeStruct((B, T, C_HALF), jnp.float32),
        grid_spec=pltpu.PrefetchScalarGridSpec(
            num_scalar_prefetch=0,
            grid=(B // NB,),
            in_specs=in_specs,
            out_specs=pl.BlockSpec((NB, T, C_HALF), lambda i: (i, 0, 0)),
        ),
        compiler_params=pltpu.CompilerParams(
            dimension_semantics=("parallel",),
        ),
    )(*kern_args)


def ref_forward(x_ncw, params, eps, bf16_matmul=False):
    """Pure-JAX reference of the PyTorch forward (same eps).
    bf16_matmul=True reproduces the kernel's numerics (bf16 operands, f32 acc)."""
    h = jnp.transpose(x_ncw, (0, 2, 1)).astype(jnp.float32)           # (B, T, Cin)
    for w, b in params:
        wk = jnp.transpose(w, (2, 1, 0)).astype(jnp.float32)          # (3, Cin, Cout)
        tl = h.shape[1]
        hp = jnp.pad(h, ((0, 0), (1, 1), (0, 0)))
        taps = []
        for i in range(3):
            lhs, rhs = hp[:, i:tl + i], wk[i]
            if bf16_matmul:
                taps.append(jnp.matmul(lhs.astype(jnp.bfloat16), rhs.astype(jnp.bfloat16),
                                       preferred_element_type=jnp.float32))
            else:
                taps.append(jnp.matmul(lhs, rhs, precision=_HI))
        h = taps[0] + taps[1] + taps[2] + b.astype(jnp.float32)
    mu, log_var = h[..., :C_HALF], h[..., C_HALF:]
    sample = mu + eps * jnp.exp(0.5 * log_var)
    d = sample.reshape(sample.shape[0], -1)
    d = d - d.min(axis=1, keepdims=True)
    d = d / d.max(axis=1, keepdims=True)
    return d.reshape(sample.shape)


if __name__ == "__main__":
    key = jax.random.PRNGKey(0)
    ks = jax.random.split(key, 10)
    B = 2

    # deterministic synthetic parameters (PyTorch Conv1d weight/bias shapes,
    # scale ~ PyTorch's default 1/sqrt(fan_in*k) init)
    def conv_params(kw, kb, cout, cin):
        w = jax.random.normal(kw, (cout, cin, 3), jnp.float32) * 0.03
        b = jax.random.normal(kb, (cout,), jnp.float32) * 0.03
        return w, b

    p1 = conv_params(ks[1], ks[2], 100, 80)
    p2 = conv_params(ks[3], ks[4], 100, 100)
    p3 = conv_params(ks[5], ks[6], 256, 100)
    p4 = conv_params(ks[7], ks[8], 512, 256)
    params = (p1, p2, p3, p4)

    # input in PyTorch NCW layout, plus the reparameterization noise
    # TODO(synk): torch.randn_like inside the module has no deterministic
    # in-kernel equivalent; eps is generated host-side and passed as an input.
    x = jax.random.normal(ks[0], (B, C_IN, T), jnp.float32)
    eps = jax.random.normal(ks[9], (B, T, C_HALF), jnp.float32)

    out = jax.block_until_ready(audio_encoder_forward(x, params, eps))

    ref_match = ref_forward(x, params, eps, bf16_matmul=True)    # numerics-matched reference
    ref_f32 = ref_forward(x, params, eps, bf16_matmul=False)     # PyTorch-style f32 reference

    assert out.shape == (B, T, C_HALF), out.shape
    assert bool(jnp.all(jnp.isfinite(out)))
    assert jnp.allclose(out, ref_match, atol=5e-4, rtol=5e-4), \
        float(jnp.max(jnp.abs(out - ref_match)))
    assert jnp.allclose(out, ref_f32, atol=1e-2, rtol=1e-2), \
        float(jnp.max(jnp.abs(out - ref_f32)))

    print("KERNEL_OK")
</pallas_src>

<mosaic_0001>
module attributes {stable_mosaic.version = 11 : i64} {
  func.func @audio_encoder_kernel(%arg0: i32, %arg1: memref<208x128xf32, #tpu.memory_space<vmem>>, %arg2: memref<3x128x128xbf16, #tpu.memory_space<vmem>>, %arg3: memref<1x128xf32, #tpu.memory_space<vmem>>, %arg4: memref<3x128x128xbf16, #tpu.memory_space<vmem>>, %arg5: memref<1x128xf32, #tpu.memory_space<vmem>>, %arg6: memref<3x128x256xbf16, #tpu.memory_space<vmem>>, %arg7: memref<1x256xf32, #tpu.memory_space<vmem>>, %arg8: memref<3x256x512xbf16, #tpu.memory_space<vmem>>, %arg9: memref<1x512xf32, #tpu.memory_space<vmem>>, %arg10: memref<208x256xf32, #tpu.memory_space<vmem>>, %arg11: memref<2x100x256xf32, #tpu.memory_space<vmem>>) attributes {dimension_semantics = [#tpu.dimension_semantics<parallel>], iteration_bounds = array<i64: 1>, scalar_prefetch = 0 : i64, scratch_operands = 0 : i64, tpu.core_type = #tpu.core_type<tc>, window_params = [{transform_indices = @transform_0, window_bounds = array<i64: 208, 128>}, {pipeline_mode = #tpu.pipeline_mode<synchronous>, transform_indices = @transform_1, window_bounds = array<i64: 3, 128, 128>}, {pipeline_mode = #tpu.pipeline_mode<synchronous>, transform_indices = @transform_2, window_bounds = array<i64: 1, 128>}, {pipeline_mode = #tpu.pipeline_mode<synchronous>, transform_indices = @transform_3, window_bounds = array<i64: 3, 128, 128>}, {pipeline_mode = #tpu.pipeline_mode<synchronous>, transform_indices = @transform_4, window_bounds = array<i64: 1, 128>}, {pipeline_mode = #tpu.pipeline_mode<synchronous>, transform_indices = @transform_5, window_bounds = array<i64: 3, 128, 256>}, {pipeline_mode = #tpu.pipeline_mode<synchronous>, transform_indices = @transform_6, window_bounds = array<i64: 1, 256>}, {pipeline_mode = #tpu.pipeline_mode<synchronous>, transform_indices = @transform_7, window_bounds = array<i64: 3, 256, 512>}, {pipeline_mode = #tpu.pipeline_mode<synchronous>, transform_indices = @transform_8, window_bounds = array<i64: 1, 512>}, {transform_indices = @transform_9, window_bounds = array<i64: 208, 256>}, {transform_indices = @transform_10, window_bounds = array<i64: 2, 100, 256>}]} {
    %0 = tpu.iota {dimensions = array<i32: 0>} : vector<208x1xi32>
    %c100_i32 = arith.constant 100 : i32
    %1 = vector.broadcast %c100_i32 : i32 to vector<208x1xi32>
    %2 = arith.cmpi slt, %0, %1 : vector<208x1xi32>
    %c104_i32 = arith.constant 104 : i32
    %3 = vector.broadcast %c104_i32 : i32 to vector<208x1xi32>
    %4 = arith.cmpi sge, %0, %3 : vector<208x1xi32>
    %c204_i32 = arith.constant 204 : i32
    %5 = vector.broadcast %c204_i32 : i32 to vector<208x1xi32>
    %6 = arith.cmpi slt, %0, %5 : vector<208x1xi32>
    %7 = arith.andi %4, %6 : vector<208x1xi1>
    %8 = arith.ori %2, %7 : vector<208x1xi1>
    %c0 = arith.constant 0 : index
    %c0_0 = arith.constant 0 : index
    %9 = vector.load %arg1[%c0, %c0_0] : memref<208x128xf32, #tpu.memory_space<vmem>>, vector<208x128xf32>
    %c1_i32 = arith.constant 1 : i32
    %10 = tpu.dynamic_rotate %9 by %c1_i32 dim 0 : vector<208x128xf32>, i32 -> vector<208x128xf32>
    %c207_i32 = arith.constant 207 : i32
    %11 = tpu.dynamic_rotate %9 by %c207_i32 dim 0 : vector<208x128xf32>, i32 -> vector<208x128xf32>
    %12 = arith.truncf %10 : vector<208x128xf32> to vector<208x128xbf16>
    %c0_1 = arith.constant 0 : index
    %c0_2 = arith.constant 0 : index
    %c0_3 = arith.constant 0 : index
    %13 = vector.load %arg2[%c0_1, %c0_2, %c0_3] : memref<3x128x128xbf16, #tpu.memory_space<vmem>>, vector<1x128x128xbf16>
    %14 = vector.shape_cast %13 : vector<1x128x128xbf16> to vector<128x128xbf16>
    %cst = arith.constant dense<0.000000e+00> : vector<208x128xf32>
    %15 = tpu.matmul %12, %14, %cst {dimension_numbers = #tpu.dot_dimension_numbers<[1], [0], [0], [1], [0, 0, 1, 1], [], []>} : vector<208x128xbf16>, vector<128x128xbf16>, vector<208x128xf32> -> vector<208x128xf32>
    %16 = arith.truncf %9 : vector<208x128xf32> to vector<208x128xbf16>
    %c1 = arith.constant 1 : index
    %c0_4 = arith.constant 0 : index
    %c0_5 = arith.constant 0 : index
    %17 = vector.load %arg2[%c1, %c0_4, %c0_5] : memref<3x128x128xbf16, #tpu.memory_space<vmem>>, vector<1x128x128xbf16>
    %18 = vector.shape_cast %17 : vector<1x128x128xbf16> to vector<128x128xbf16>
    %cst_6 = arith.constant dense<0.000000e+00> : vector<208x128xf32>
    %19 = tpu.matmul %16, %18, %cst_6 {dimension_numbers = #tpu.dot_dimension_numbers<[1], [0], [0], [1], [0, 0, 1, 1], [], []>} : vector<208x128xbf16>, vector<128x128xbf16>, vector<208x128xf32> -> vector<208x128xf32>
    %20 = arith.addf %15, %19 : vector<208x128xf32>
    %21 = arith.truncf %11 : vector<208x128xf32> to vector<208x128xbf16>
    %c2 = arith.constant 2 : index
    %c0_7 = arith.constant 0 : index
    %c0_8 = arith.constant 0 : index
    %22 = vector.load %arg2[%c2, %c0_7, %c0_8] : memref<3x128x128xbf16, #tpu.memory_space<vmem>>, vector<1x128x128xbf16>
    %23 = vector.shape_cast %22 : vector<1x128x128xbf16> to vector<128x128xbf16>
    %cst_9 = arith.constant dense<0.000000e+00> : vector<208x128xf32>
    %24 = tpu.matmul %21, %23, %cst_9 {dimension_numbers = #tpu.dot_dimension_numbers<[1], [0], [0], [1], [0, 0, 1, 1], [], []>} : vector<208x128xbf16>, vector<128x128xbf16>, vector<208x128xf32> -> vector<208x128xf32>
    %25 = arith.addf %20, %24 : vector<208x128xf32>
    %c0_10 = arith.constant 0 : index
    %c0_11 = arith.constant 0 : index
    %26 = vector.load %arg3[%c0_10, %c0_11] : memref<1x128xf32, #tpu.memory_space<vmem>>, vector<1x128xf32>
    %27 = vector.broadcast %26 : vector<1x128xf32> to vector<208x128xf32>
    %28 = arith.addf %25, %27 : vector<208x128xf32>
    %cst_12 = arith.constant 0.000000e+00 : f32
    %29 = vector.shape_cast %8 : vector<208x1xi1> to vector<208x1xi1>
    %30 = vector.broadcast %29 : vector<208x1xi1> to vector<208x128xi1>
    %31 = vector.broadcast %cst_12 : f32 to vector<208x128xf32>
    %32 = arith.select %30, %28, %31 : vector<208x128xi1>, vector<208x128xf32>
    %c1_i32_13 = arith.constant 1 : i32
    %33 = tpu.dynamic_rotate %32 by %c1_i32_13 dim 0 : vector<208x128xf32>, i32 -> vector<208x128xf32>
    %c207_i32_14 = arith.constant 207 : i32
    %34 = tpu.dynamic_rotate %32 by %c207_i32_14 dim 0 : vector<208x128xf32>, i32 -> vector<208x128xf32>
    %35 = arith.truncf %33 : vector<208x128xf32> to vector<208x128xbf16>
    %c0_15 = arith.constant 0 : index
    %c0_16 = arith.constant 0 : index
    %c0_17 = arith.constant 0 : index
    %36 = vector.load %arg4[%c0_15, %c0_16, %c0_17] : memref<3x128x128xbf16, #tpu.memory_space<vmem>>, vector<1x128x128xbf16>
    %37 = vector.shape_cast %36 : vector<1x128x128xbf16> to vector<128x128xbf16>
    %cst_18 = arith.constant dense<0.000000e+00> : vector<208x128xf32>
    %38 = tpu.matmul %35, %37, %cst_18 {dimension_numbers = #tpu.dot_dimension_numbers<[1], [0], [0], [1], [0, 0, 1, 1], [], []>} : vector<208x128xbf16>, vector<128x128xbf16>, vector<208x128xf32> -> vector<208x128xf32>
    %39 = arith.truncf %32 : vector<208x128xf32> to vector<208x128xbf16>
    %c1_19 = arith.constant 1 : index
    %c0_20 = arith.constant 0 : index
    %c0_21 = arith.constant 0 : index
    %40 = vector.load %arg4[%c1_19, %c0_20, %c0_21] : memref<3x128x128xbf16, #tpu.memory_space<vmem>>, vector<1x128x128xbf16>
    %41 = vector.shape_cast %40 : vector<1x128x128xbf16> to vector<128x128xbf16>
    %cst_22 = arith.constant dense<0.000000e+00> : vector<208x128xf32>
    %42 = tpu.matmul %39, %41, %cst_22 {dimension_numbers = #tpu.dot_dimension_numbers<[1], [0], [0], [1], [0, 0, 1, 1], [], []>} : vector<208x128xbf16>, vector<128x128xbf16>, vector<208x128xf32> -> vector<208x128xf32>
    %43 = arith.addf %38, %42 : vector<208x128xf32>
    %44 = arith.truncf %34 : vector<208x128xf32> to vector<208x128xbf16>
    %c2_23 = arith.constant 2 : index
    %c0_24 = arith.constant 0 : index
    %c0_25 = arith.constant 0 : index
    %45 = vector.load %arg4[%c2_23, %c0_24, %c0_25] : memref<3x128x128xbf16, #tpu.memory_space<vmem>>, vector<1x128x128xbf16>
    %46 = vector.shape_cast %45 : vector<1x128x128xbf16> to vector<128x128xbf16>
    %cst_26 = arith.constant dense<0.000000e+00> : vector<208x128xf32>
    %47 = tpu.matmul %44, %46, %cst_26 {dimension_numbers = #tpu.dot_dimension_numbers<[1], [0], [0], [1], [0, 0, 1, 1], [], []>} : vector<208x128xbf16>, vector<128x128xbf16>, vector<208x128xf32> -> vector<208x128xf32>
    %48 = arith.addf %43, %47 : vector<208x128xf32>
    %c0_27 = arith.constant 0 : index
    %c0_28 = arith.constant 0 : index
    %49 = vector.load %arg5[%c0_27, %c0_28] : memref<1x128xf32, #tpu.memory_space<vmem>>, vector<1x128xf32>
    %50 = vector.broadcast %49 : vector<1x128xf32> to vector<208x128xf32>
    %51 = arith.addf %48, %50 : vector<208x128xf32>
    %cst_29 = arith.constant 0.000000e+00 : f32
    %52 = vector.shape_cast %8 : vector<208x1xi1> to vector<208x1xi1>
    %53 = vector.broadcast %52 : vector<208x1xi1> to vector<208x128xi1>
    %54 = vector.broadcast %cst_29 : f32 to vector<208x128xf32>
    %55 = arith.select %53, %51, %54 : vector<208x128xi1>, vector<208x128xf32>
    %c1_i32_30 = arith.constant 1 : i32
    %56 = tpu.dynamic_rotate %55 by %c1_i32_30 dim 0 : vector<208x128xf32>, i32 -> vector<208x128xf32>
    %c207_i32_31 = arith.constant 207 : i32
    %57 = tpu.dynamic_rotate %55 by %c207_i32_31 dim 0 : vector<208x128xf32>, i32 -> vector<208x128xf32>
    %58 = arith.truncf %56 : vector<208x128xf32> to vector<208x128xbf16>
    %c0_32 = arith.constant 0 : index
    %c0_33 = arith.constant 0 : index
    %c0_34 = arith.constant 0 : index
    %59 = vector.load %arg6[%c0_32, %c0_33, %c0_34] : memref<3x128x256xbf16, #tpu.memory_space<vmem>>, vector<1x128x256xbf16>
    %60 = vector.shape_cast %59 : vector<1x128x256xbf16> to vector<128x256xbf16>
    %cst_35 = arith.constant dense<0.000000e+00> : vector<208x256xf32>
    %61 = tpu.matmul %58, %60, %cst_35 {dimension_numbers = #tpu.dot_dimension_numbers<[1], [0], [0], [1], [0, 0, 1, 1], [], []>} : vector<208x128xbf16>, vector<128x256xbf16>, vector<208x256xf32> -> vector<208x256xf32>
    %62 = arith.truncf %55 : vector<208x128xf32> to vector<208x128xbf16>
    %c1_36 = arith.constant 1 : index
    %c0_37 = arith.constant 0 : index
    %c0_38 = arith.constant 0 : index
    %63 = vector.load %arg6[%c1_36, %c0_37, %c0_38] : memref<3x128x256xbf16, #tpu.memory_space<vmem>>, vector<1x128x256xbf16>
    %64 = vector.shape_cast %63 : vector<1x128x256xbf16> to vector<128x256xbf16>
    %cst_39 = arith.constant dense<0.000000e+00> : vector<208x256xf32>
    %65 = tpu.matmul %62, %64, %cst_39 {dimension_numbers = #tpu.dot_dimension_numbers<[1], [0], [0], [1], [0, 0, 1, 1], [], []>} : vector<208x128xbf16>, vector<128x256xbf16>, vector<208x256xf32> -> vector<208x256xf32>
    %66 = arith.addf %61, %65 : vector<208x256xf32>
    %67 = arith.truncf %57 : vector<208x128xf32> to vector<208x128xbf16>
    %c2_40 = arith.constant 2 : index
    %c0_41 = arith.constant 0 : index
    %c0_42 = arith.constant 0 : index
    %68 = vector.load %arg6[%c2_40, %c0_41, %c0_42] : memref<3x128x256xbf16, #tpu.memory_space<vmem>>, vector<1x128x256xbf16>
    %69 = vector.shape_cast %68 : vector<1x128x256xbf16> to vector<128x256xbf16>
    %cst_43 = arith.constant dense<0.000000e+00> : vector<208x256xf32>
    %70 = tpu.matmul %67, %69, %cst_43 {dimension_numbers = #tpu.dot_dimension_numbers<[1], [0], [0], [1], [0, 0, 1, 1], [], []>} : vector<208x128xbf16>, vector<128x256xbf16>, vector<208x256xf32> -> vector<208x256xf32>
    %71 = arith.addf %66, %70 : vector<208x256xf32>
    %c0_44 = arith.constant 0 : index
    %c0_45 = arith.constant 0 : index
    %72 = vector.load %arg7[%c0_44, %c0_45] : memref<1x256xf32, #tpu.memory_space<vmem>>, vector<1x256xf32>
    %73 = vector.broadcast %72 : vector<1x256xf32> to vector<208x256xf32>
    %74 = arith.addf %71, %73 : vector<208x256xf32>
    %cst_46 = arith.constant 0.000000e+00 : f32
    %75 = vector.shape_cast %8 : vector<208x1xi1> to vector<208x1xi1>
    %76 = vector.broadcast %75 : vector<208x1xi1> to vector<208x256xi1>
    %77 = vector.broadcast %cst_46 : f32 to vector<208x256xf32>
    %78 = arith.select %76, %74, %77 : vector<208x256xi1>, vector<208x256xf32>
    %c1_i32_47 = arith.constant 1 : i32
    %79 = tpu.dynamic_rotate %78 by %c1_i32_47 dim 0 : vector<208x256xf32>, i32 -> vector<208x256xf32>
    %c207_i32_48 = arith.constant 207 : i32
    %80 = tpu.dynamic_rotate %78 by %c207_i32_48 dim 0 : vector<208x256xf32>, i32 -> vector<208x256xf32>
    %81 = arith.truncf %79 : vector<208x256xf32> to vector<208x256xbf16>
    %c0_49 = arith.constant 0 : index
    %c0_50 = arith.constant 0 : index
    %c0_51 = arith.constant 0 : index
    %82 = vector.load %arg8[%c0_49, %c0_50, %c0_51] : memref<3x256x512xbf16, #tpu.memory_space<vmem>>, vector<1x256x512xbf16>
    %83 = vector.shape_cast %82 : vector<1x256x512xbf16> to vector<256x512xbf16>
    %cst_52 = arith.constant dense<0.000000e+00> : vector<208x512xf32>
    %84 = tpu.matmul %81, %83, %cst_52 {dimension_numbers = #tpu.dot_dimension_numbers<[1], [0], [0], [1], [0, 0, 1, 1], [], []>} : vector<208x256xbf16>, vector<256x512xbf16>, vector<208x512xf32> -> vector<208x512xf32>
    %85 = arith.truncf %78 : vector<208x256xf32> to vector<208x256xbf16>
    %c1_53 = arith.constant 1 : index
    %c0_54 = arith.constant 0 : index
    %c0_55 = arith.constant 0 : index
    %86 = vector.load %arg8[%c1_53, %c0_54, %c0_55] : memref<3x256x512xbf16, #tpu.memory_space<vmem>>, vector<1x256x512xbf16>
    %87 = vector.shape_cast %86 : vector<1x256x512xbf16> to vector<256x512xbf16>
    %cst_56 = arith.constant dense<0.000000e+00> : vector<208x512xf32>
    %88 = tpu.matmul %85, %87, %cst_56 {dimension_numbers = #tpu.dot_dimension_numbers<[1], [0], [0], [1], [0, 0, 1, 1], [], []>} : vector<208x256xbf16>, vector<256x512xbf16>, vector<208x512xf32> -> vector<208x512xf32>
    %89 = arith.addf %84, %88 : vector<208x512xf32>
    %90 = arith.truncf %80 : vector<208x256xf32> to vector<208x256xbf16>
    %c2_57 = arith.constant 2 : index
    %c0_58 = arith.constant 0 : index
    %c0_59 = arith.constant 0 : index
    %91 = vector.load %arg8[%c2_57, %c0_58, %c0_59] : memref<3x256x512xbf16, #tpu.memory_space<vmem>>, vector<1x256x512xbf16>
    %92 = vector.shape_cast %91 : vector<1x256x512xbf16> to vector<256x512xbf16>
    %cst_60 = arith.constant dense<0.000000e+00> : vector<208x512xf32>
    %93 = tpu.matmul %90, %92, %cst_60 {dimension_numbers = #tpu.dot_dimension_numbers<[1], [0], [0], [1], [0, 0, 1, 1], [], []>} : vector<208x256xbf16>, vector<256x512xbf16>, vector<208x512xf32> -> vector<208x512xf32>
    %94 = arith.addf %89, %93 : vector<208x512xf32>
    %c0_61 = arith.constant 0 : index
    %c0_62 = arith.constant 0 : index
    %95 = vector.load %arg9[%c0_61, %c0_62] : memref<1x512xf32, #tpu.memory_space<vmem>>, vector<1x512xf32>
    %96 = vector.broadcast %95 : vector<1x512xf32> to vector<208x512xf32>
    %97 = arith.addf %94, %96 : vector<208x512xf32>
    %98 = vector.extract_strided_slice %97 {offsets = [0, 0], sizes = [208, 256], strides = [1, 1]} : vector<208x512xf32> to vector<208x256xf32>
    %99 = vector.extract_strided_slice %97 {offsets = [0, 256], sizes = [208, 256], strides = [1, 1]} : vector<208x512xf32> to vector<208x256xf32>
    %c0_63 = arith.constant 0 : index
    %c0_64 = arith.constant 0 : index
    %100 = vector.load %arg10[%c0_63, %c0_64] : memref<208x256xf32, #tpu.memory_space<vmem>>, vector<208x256xf32>
    %cst_65 = arith.constant 5.000000e-01 : f32
    %101 = vector.broadcast %cst_65 : f32 to vector<208x256xf32>
    %102 = arith.mulf %101, %99 : vector<208x256xf32>
    %103 = math.exp %102 : vector<208x256xf32>
    %104 = arith.mulf %100, %103 : vector<208x256xf32>
    %105 = arith.addf %98, %104 : vector<208x256xf32>
    %106 = tpu.iota {dimensions = array<i32: 0>} : vector<104x1xi32>
    %c100_i32_66 = arith.constant 100 : i32
    %107 = vector.broadcast %c100_i32_66 : i32 to vector<104x1xi32>
    %108 = arith.cmpi slt, %106, %107 : vector<104x1xi32>
    %109 = vector.extract_strided_slice %105 {offsets = [0, 0], sizes = [104, 256], strides = [1, 1]} : vector<208x256xf32> to vector<104x256xf32>
    %cst_67 = arith.constant 1.000000e+30 : f32
    %110 = vector.shape_cast %108 : vector<104x1xi1> to vector<104x1xi1>
    %111 = vector.broadcast %110 : vector<104x1xi1> to vector<104x256xi1>
    %112 = vector.broadcast %cst_67 : f32 to vector<104x256xf32>
    %113 = arith.select %111, %109, %112 : vector<104x256xi1>, vector<104x256xf32>
    %114 = vector.shape_cast %113 : vector<104x256xf32> to vector<1x104x256xf32>
    %cst_68 = arith.constant dense<0x7F800000> : vector<1xf32>
    %115 = vector.multi_reduction <minimumf>, %114, %cst_68 [1, 2] : vector<1x104x256xf32> to vector<1xf32>
    %116 = vector.shape_cast %115 : vector<1xf32> to vector<1x1x1xf32>
    %117 = vector.extract %116[0, 0, 0] : f32 from vector<1x1x1xf32>
    %118 = vector.broadcast %117 : f32 to vector<104x256xf32>
    %119 = arith.subf %109, %118 : vector<104x256xf32>
    %cst_69 = arith.constant -1.000000e+30 : f32
    %120 = vector.shape_cast %108 : vector<104x1xi1> to vector<104x1xi1>
    %121 = vector.broadcast %120 : vector<104x1xi1> to vector<104x256xi1>
    %122 = vector.broadcast %cst_69 : f32 to vector<104x256xf32>
    %123 = arith.select %121, %119, %122 : vector<104x256xi1>, vector<104x256xf32>
    %124 = vector.shape_cast %123 : vector<104x256xf32> to vector<1x104x256xf32>
    %cst_70 = arith.constant dense<0xFF800000> : vector<1xf32>
    %125 = vector.multi_reduction <maximumf>, %124, %cst_70 [1, 2] : vector<1x104x256xf32> to vector<1xf32>
    %126 = vector.shape_cast %125 : vector<1xf32> to vector<1x1x1xf32>
    %127 = vector.extract %126[0, 0, 0] : f32 from vector<1x1x1xf32>
    %cst_71 = arith.constant 1.000000e+00 : f32
    %128 = arith.divf %cst_71, %127 : f32
    %129 = vector.broadcast %128 : f32 to vector<104x256xf32>
    %130 = arith.mulf %119, %129 : vector<104x256xf32>
    %131 = vector.extract_strided_slice %130 {offsets = [0, 0], sizes = [100, 256], strides = [1, 1]} : vector<104x256xf32> to vector<100x256xf32>
    %c0_72 = arith.constant 0 : index
    %c0_73 = arith.constant 0 : index
    %c0_74 = arith.constant 0 : index
    %132 = vector.load %arg11[%c0_72, %c0_73, %c0_74] : memref<2x100x256xf32, #tpu.memory_space<vmem>>, vector<1x100x256xf32>
    %133 = vector.shape_cast %132 : vector<1x100x256xf32> to vector<100x256xf32>
    %134 = vector.shape_cast %131 : vector<100x256xf32> to vector<1x100x256xf32>
    tpu.vector_store %arg11[%c0_72, %c0_73, %c0_74], %134 {strides = array<i32>} : memref<2x100x256xf32, #tpu.memory_space<vmem>>, vector<1x100x256xf32>,
    %135 = vector.extract_strided_slice %105 {offsets = [104, 0], sizes = [104, 256], strides = [1, 1]} : vector<208x256xf32> to vector<104x256xf32>
    %cst_75 = arith.constant 1.000000e+30 : f32
    %136 = vector.shape_cast %108 : vector<104x1xi1> to vector<104x1xi1>
    %137 = vector.broadcast %136 : vector<104x1xi1> to vector<104x256xi1>
    %138 = vector.broadcast %cst_75 : f32 to vector<104x256xf32>
    %139 = arith.select %137, %135, %138 : vector<104x256xi1>, vector<104x256xf32>
    %140 = vector.shape_cast %139 : vector<104x256xf32> to vector<1x104x256xf32>
    %cst_76 = arith.constant dense<0x7F800000> : vector<1xf32>
    %141 = vector.multi_reduction <minimumf>, %140, %cst_76 [1, 2] : vector<1x104x256xf32> to vector<1xf32>
    %142 = vector.shape_cast %141 : vector<1xf32> to vector<1x1x1xf32>
    %143 = vector.extract %142[0, 0, 0] : f32 from vector<1x1x1xf32>
    %144 = vector.broadcast %143 : f32 to vector<104x256xf32>
    %145 = arith.subf %135, %144 : vector<104x256xf32>
    %cst_77 = arith.constant -1.000000e+30 : f32
    %146 = vector.shape_cast %108 : vector<104x1xi1> to vector<104x1xi1>
    %147 = vector.broadcast %146 : vector<104x1xi1> to vector<104x256xi1>
    %148 = vector.broadcast %cst_77 : f32 to vector<104x256xf32>
    %149 = arith.select %147, %145, %148 : vector<104x256xi1>, vector<104x256xf32>
    %150 = vector.shape_cast %149 : vector<104x256xf32> to vector<1x104x256xf32>
    %cst_78 = arith.constant dense<0xFF800000> : vector<1xf32>
    %151 = vector.multi_reduction <maximumf>, %150, %cst_78 [1, 2] : vector<1x104x256xf32> to vector<1xf32>
    %152 = vector.shape_cast %151 : vector<1xf32> to vector<1x1x1xf32>
    %153 = vector.extract %152[0, 0, 0] : f32 from vector<1x1x1xf32>
    %cst_79 = arith.constant 1.000000e+00 : f32
    %154 = arith.divf %cst_79, %153 : f32
    %155 = vector.broadcast %154 : f32 to vector<104x256xf32>
    %156 = arith.mulf %145, %155 : vector<104x256xf32>
    %157 = vector.extract_strided_slice %156 {offsets = [0, 0], sizes = [100, 256], strides = [1, 1]} : vector<104x256xf32> to vector<100x256xf32>
    %c1_80 = arith.constant 1 : index
    %c0_81 = arith.constant 0 : index
    %c0_82 = arith.constant 0 : index
    %158 = vector.load %arg11[%c1_80, %c0_81, %c0_82] : memref<2x100x256xf32, #tpu.memory_space<vmem>>, vector<1x100x256xf32>
    %159 = vector.shape_cast %158 : vector<1x100x256xf32> to vector<100x256xf32>
    %160 = vector.shape_cast %157 : vector<100x256xf32> to vector<1x100x256xf32>
    tpu.vector_store %arg11[%c1_80, %c0_81, %c0_82], %160 {strides = array<i32>} : memref<2x100x256xf32, #tpu.memory_space<vmem>>, vector<1x100x256xf32>,
    return
  }
  func.func @transform_0(%arg0: i32) -> (i32, i32) {
    %c0_i32 = arith.constant 0 : i32
    %c0_i32_0 = arith.constant 0 : i32
    return %arg0, %c0_i32 : i32, i32
  }
  func.func @transform_1(%arg0: i32) -> (i32, i32, i32) {
    %c0_i32 = arith.constant 0 : i32
    %c0_i32_0 = arith.constant 0 : i32
    %c0_i32_1 = arith.constant 0 : i32
    %c0_i32_2 = arith.constant 0 : i32
    return %c0_i32, %c0_i32_0, %c0_i32_1 : i32, i32, i32
  }
  func.func @transform_2(%arg0: i32) -> (i32, i32) {
    %c0_i32 = arith.constant 0 : i32
    %c0_i32_0 = arith.constant 0 : i32
    %c0_i32_1 = arith.constant 0 : i32
    return %c0_i32, %c0_i32_0 : i32, i32
  }
  func.func @transform_3(%arg0: i32) -> (i32, i32, i32) {
    %c0_i32 = arith.constant 0 : i32
    %c0_i32_0 = arith.constant 0 : i32
    %c0_i32_1 = arith.constant 0 : i32
    %c0_i32_2 = arith.constant 0 : i32
    return %c0_i32, %c0_i32_0, %c0_i32_1 : i32, i32, i32
  }
  func.func @transform_4(%arg0: i32) -> (i32, i32) {
    %c0_i32 = arith.constant 0 : i32
    %c0_i32_0 = arith.constant 0 : i32
    %c0_i32_1 = arith.constant 0 : i32
    return %c0_i32, %c0_i32_0 : i32, i32
  }
  func.func @transform_5(%arg0: i32) -> (i32, i32, i32) {
    %c0_i32 = arith.constant 0 : i32
    %c0_i32_0 = arith.constant 0 : i32
    %c0_i32_1 = arith.constant 0 : i32
    %c0_i32_2 = arith.constant 0 : i32
    return %c0_i32, %c0_i32_0, %c0_i32_1 : i32, i32, i32
  }
  func.func @transform_6(%arg0: i32) -> (i32, i32) {
    %c0_i32 = arith.constant 0 : i32
    %c0_i32_0 = arith.constant 0 : i32
    %c0_i32_1 = arith.constant 0 : i32
    return %c0_i32, %c0_i32_0 : i32, i32
  }
  func.func @transform_7(%arg0: i32) -> (i32, i32, i32) {
    %c0_i32 = arith.constant 0 : i32
    %c0_i32_0 = arith.constant 0 : i32
    %c0_i32_1 = arith.constant 0 : i32
    %c0_i32_2 = arith.constant 0 : i32
    return %c0_i32, %c0_i32_0, %c0_i32_1 : i32, i32, i32
  }
  func.func @transform_8(%arg0: i32) -> (i32, i32) {
    %c0_i32 = arith.constant 0 : i32
    %c0_i32_0 = arith.constant 0 : i32
    %c0_i32_1 = arith.constant 0 : i32
    return %c0_i32, %c0_i32_0 : i32, i32
  }
  func.func @transform_9(%arg0: i32) -> (i32, i32) {
    %c0_i32 = arith.constant 0 : i32
    %c0_i32_0 = arith.constant 0 : i32
    return %arg0, %c0_i32 : i32, i32
  }
  func.func @transform_10(%arg0: i32) -> (i32, i32, i32) {
    %c0_i32 = arith.constant 0 : i32
    %c0_i32_0 = arith.constant 0 : i32
    %c0_i32_1 = arith.constant 0 : i32
    return %arg0, %c0_i32, %c0_i32_0 : i32, i32, i32
  }
}

</mosaic_0001>

<llo_original>
// kernel: tpu_custom_call.1
$region0: #{tpu_custom_call.1}
  #allocation0 [shape = 'u32[]', space=smem, size = 0x4, offset = 0x4, fixed_abs, tag = 'smem constant byte address 0x4 - core index']
  #allocation1 [shape = 'u32[144,128]{1,0:T(1,128)}', space=vmem, size = 0x12000, scoped, tag = 'internal scratch']
  %s0 = inlined_call_operand.hbm [shape: f32[208,128], index: 0, kind: input, shape index: {}]
  %s1 = inlined_call_operand.hbm [shape: bf16[3,128,128], index: 1, kind: input, shape index: {}]
  %s2 = inlined_call_operand.vmem [shape: f32[1,128], index: 2, kind: input, shape index: {}]
  %s3 = inlined_call_operand.hbm [shape: bf16[3,128,128], index: 3, kind: input, shape index: {}]
  %s4 = inlined_call_operand.vmem [shape: f32[1,128], index: 4, kind: input, shape index: {}]
  %s5 = inlined_call_operand.hbm [shape: bf16[3,128,256], index: 5, kind: input, shape index: {}]
  %s6 = inlined_call_operand.vmem [shape: f32[1,256], index: 6, kind: input, shape index: {}]
  %s7 = inlined_call_operand.hbm [shape: bf16[3,256,512], index: 7, kind: input, shape index: {}]
  %s8 = inlined_call_operand.vmem [shape: f32[1,512], index: 8, kind: input, shape index: {}]
  %s9 = inlined_call_operand.hbm [shape: f32[208,256], index: 9, kind: input, shape index: {}]
  %s10 = inlined_call_operand.vmem [shape: f32[2,100,256], index: 10, kind: output, shape index: {}]
  %s11 = sld [smem:[#allocation0]]
  $region74: #{tpu_custom_call.1} parent=0
    _
  %s13 = ssub.s32 1, %s11
  %s14 = scalar_select 0, %s13, %s11
  $region1: #{tpu_custom_call.1} parent=0
    #allocation2 [shape = 'u8[106496]{0}', space=vmem, size = 0x1a000, scoped, tag = 'input window, operand 0, single buffered']
    #allocation3 [shape = 's32[1]{0}', space=sflag, size = 0x4, scoped, tag = 'scoped memory for tpu_custom_call.1']
    #allocation4 [shape = 'u8[98304]{0}', space=vmem, size = 0x18000, scoped, tag = 'input window, operand 1, single buffered']
    #allocation5 [shape = 's32[1]{0}', space=sflag, size = 0x4, scoped, tag = 'scoped memory for tpu_custom_call.1']
    #allocation6 [shape = 'u8[98304]{0}', space=vmem, size = 0x18000, scoped, tag = 'input window, operand 3, single buffered']
    #allocation7 [shape = 'u8[196608]{0}', space=vmem, size = 0x30000, scoped, tag = 'input window, operand 5, single buffered']
    #allocation8 [shape = 's32[1]{0}', space=sflag, size = 0x4, scoped, tag = 'scoped memory for tpu_custom_call.1']
    #allocation9 [shape = 'u8[786432]{0}', space=vmem, size = 0xc0000, scoped, tag = 'input window, operand 7, single buffered']
    #allocation10 [shape = 'u8[212992]{0}', space=vmem, size = 0x34000, scoped, tag = 'input window, operand 9, single buffered']
    #allocation11 [shape = 's32[1]{0}', space=sflag, size = 0x4, scoped, tag = 'scoped memory for tpu_custom_call.1']
    %15 = vsyncpa [#allocation3], 0
    %16 = vsyncpa [#allocation5], 0
    %17 = vsyncpa [#allocation8], 0
    %18 = vsyncpa [#allocation11], 0
    // Predicated region
    $region2: #{tpu_custom_call.1} parent=1 // pred_check
      _
    $region3: #{tpu_custom_call.1} parent=1 // pred_check_branch
      %20 = sbr.rel (0) target = $region5
    $region4: #{tpu_custom_call.1} parent=1 // pred_region
      %s22 = ssub.s32 3328, 3328
      %23 = vsyncadd [#allocation3], %s22
      %s24 = sshll.u32 [#allocation2], 4
      %s25 = int_to_ptr.vmem [resolvable:$true] %s24
      %30 = dma.hbm_to_vmem [thread:$0]  %s0, 3328, %s25, [#allocation3], 128, 128, 8
    $region5: #{tpu_custom_call.1} parent=1 // pred_fallthru
      _
    // Predicated region
    $region6: #{tpu_custom_call.1} parent=1 // pred_check
      _
    $region7: #{tpu_custom_call.1} parent=1 // pred_check_branch
      %32 = sbr.rel (0) target = $region9
    $region8: #{tpu_custom_call.1} parent=1 // pred_region
      %s34 = ssub.s32 3072, 3072
      %35 = vsyncadd [#allocation5], %s34
      %s36 = sshll.u32 [#allocation4], 4
      %s37 = int_to_ptr.vmem [resolvable:$true] %s36
      %42 = dma.hbm_to_vmem [thread:$0]  %s1, 3072, %s37, [#allocation5], 64, 64, 4
    $region9: #{tpu_custom_call.1} parent=1 // pred_fallthru
      _
    // Predicated region
    $region10: #{tpu_custom_call.1} parent=1 // pred_check
      _
    $region11: #{tpu_custom_call.1} parent=1 // pred_check_branch
      %44 = sbr.rel (0) target = $region13
    $region12: #{tpu_custom_call.1} parent=1 // pred_region
      _
    $region13: #{tpu_custom_call.1} parent=1 // pred_fallthru
      _
    // Predicated region
    $region14: #{tpu_custom_call.1} parent=1 // pred_check
      _
    $region15: #{tpu_custom_call.1} parent=1 // pred_check_branch
      %46 = sbr.rel (0) target = $region17
    $region16: #{tpu_custom_call.1} parent=1 // pred_region
      %s48 = ssub.s32 3072, 3072
      %49 = vsyncadd [#allocation5], %s48
      %s50 = sshll.u32 [#allocation6], 4
      %s51 = int_to_ptr.vmem [resolvable:$true] %s50
      %56 = dma.hbm_to_vmem [thread:$0]  %s3, 3072, %s51, [#allocation5], 64, 64, 4
    $region17: #{tpu_custom_call.1} parent=1 // pred_fallthru
      _
    // Predicated region
    $region18: #{tpu_custom_call.1} parent=1 // pred_check
      _
    $region19: #{tpu_custom_call.1} parent=1 // pred_check_branch
      %58 = sbr.rel (0) target = $region21
    $region20: #{tpu_custom_call.1} parent=1 // pred_region
      _
    $region21: #{tpu_custom_call.1} parent=1 // pred_fallthru
      _
    // Predicated region
    $region22: #{tpu_custom_call.1} parent=1 // pred_check
      _
    $region23: #{tpu_custom_call.1} parent=1 // pred_check_branch
      %60 = sbr.rel (0) target = $region25
    $region24: #{tpu_custom_call.1} parent=1 // pred_region
      %s62 = ssub.s32 6144, 6144
      %63 = vsyncadd [#allocation8], %s62
      %s64 = sshll.u32 [#allocation7], 4
      %s65 = int_to_ptr.vmem [resolvable:$true] %s64
      %70 = dma.hbm_to_vmem [thread:$0]  %s5, 6144, %s65, [#allocation8], 128, 128, 8
    $region25: #{tpu_custom_call.1} parent=1 // pred_fallthru
      _
    // Predicated region
    $region26: #{tpu_custom_call.1} parent=1 // pred_check
      _
    $region27: #{tpu_custom_call.1} parent=1 // pred_check_branch
      %72 = sbr.rel (0) target = $region29
    $region28: #{tpu_custom_call.1} parent=1 // pred_region
      _
    $region29: #{tpu_custom_call.1} parent=1 // pred_fallthru
      _
    // Predicated region
    $region30: #{tpu_custom_call.1} parent=1 // pred_check
      _
    $region31: #{tpu_custom_call.1} parent=1 // pred_check_branch
      %74 = sbr.rel (0) target = $region33
    $region32: #{tpu_custom_call.1} parent=1 // pred_region
      %s76 = ssub.s32 24576, 24576
      %77 = vsyncadd [#allocation8], %s76
      %s78 = sshll.u32 [#allocation9], 4
      %s79 = int_to_ptr.vmem [resolvable:$true] %s78
      %84 = dma.hbm_to_vmem [thread:$0]  %s7, 24576, %s79, [#allocation8], 256, 256, 16
    $region33: #{tpu_custom_call.1} parent=1 // pred_fallthru
      _
    // Predicated region
    $region34: #{tpu_custom_call.1} parent=1 // pred_check
      _
    $region35: #{tpu_custom_call.1} parent=1 // pred_check_branch
      %86 = sbr.rel (0) target = $region37
    $region36: #{tpu_custom_call.1} parent=1 // pred_region
      _
    $region37: #{tpu_custom_call.1} parent=1 // pred_fallthru
      _
    // Predicated region
    $region38: #{tpu_custom_call.1} parent=1 // pred_check
      _
    $region39: #{tpu_custom_call.1} parent=1 // pred_check_branch
      %88 = sbr.rel (0) target = $region41
    $region40: #{tpu_custom_call.1} parent=1 // pred_region
      %s90 = ssub.s32 6656, 6656
      %91 = vsyncadd [#allocation11], %s90
      %s92 = sshll.u32 [#allocation10], 4
      %s93 = int_to_ptr.vmem [resolvable:$true] %s92
      %98 = dma.hbm_to_vmem [thread:$0]  %s9, 6656, %s93, [#allocation11], 256, 256, 16
    $region41: #{tpu_custom_call.1} parent=1 // pred_fallthru
      _
    // Predicated region
    $region42: #{tpu_custom_call.1} parent=1 // pred_check
      _
    $region43: #{tpu_custom_call.1} parent=1 // pred_check_branch
      %100 = sbr.rel (0) target = $region45
    $region44: #{tpu_custom_call.1} parent=1 // pred_region
      %101 = dma.done [#allocation3], 3328
    $region45: #{tpu_custom_call.1} parent=1 // pred_fallthru
      _
    // Predicated region
    $region46: #{tpu_custom_call.1} parent=1 // pred_check
      _
    $region47: #{tpu_custom_call.1} parent=1 // pred_check_branch
      %103 = sbr.rel (0) target = $region49
    $region48: #{tpu_custom_call.1} parent=1 // pred_region
      %104 = dma.done [#allocation5], 3072
    $region49: #{tpu_custom_call.1} parent=1 // pred_fallthru
      _
    // Predicated region
    $region50: #{tpu_custom_call.1} parent=1 // pred_check
      _
    $region51: #{tpu_custom_call.1} parent=1 // pred_check_branch
      %106 = sbr.rel (0) target = $region53
    $region52: #{tpu_custom_call.1} parent=1 // pred_region
      %107 = dma.done [#allocation5], 3072
    $region53: #{tpu_custom_call.1} parent=1 // pred_fallthru
      _
    // Predicated region
    $region54: #{tpu_custom_call.1} parent=1 // pred_check
      _
    $region55: #{tpu_custom_call.1} parent=1 // pred_check_branch
      %109 = sbr.rel (0) target = $region57
    $region56: #{tpu_custom_call.1} parent=1 // pred_region
      %110 = dma.done [#allocation8], 6144
    $region57: #{tpu_custom_call.1} parent=1 // pred_fallthru
      _
    // Predicated region
    $region58: #{tpu_custom_call.1} parent=1 // pred_check
      _
    $region59: #{tpu_custom_call.1} parent=1 // pred_check_branch
      %112 = sbr.rel (0) target = $region61
    $region60: #{tpu_custom_call.1} parent=1 // pred_region
      %113 = dma.done [#allocation8], 24576
    $region61: #{tpu_custom_call.1} parent=1 // pred_fallthru
      _
    // Predicated region
    $region62: #{tpu_custom_call.1} parent=1 // pred_check
      _
    $region63: #{tpu_custom_call.1} parent=1 // pred_check_branch
      %115 = sbr.rel (0) target = $region65
    $region64: #{tpu_custom_call.1} parent=1 // pred_region
      %116 = dma.done [#allocation11], 6656
    $region65: #{tpu_custom_call.1} parent=1 // pred_fallthru
      _
    %v118 = vlaneseq
    %v119 = vshrl.u32 %v118, 7
    %v120 = vadd.s32 %v119, 8
    %v121 = vadd.s32 %v119, 16
    %v122 = vadd.s32 %v119, 24
    %v123 = vadd.s32 %v119, 32
    %v124 = vadd.s32 %v119, 40
    %v125 = vadd.s32 %v119, 48
    %v126 = vadd.s32 %v119, 56
    %v127 = vadd.s32 %v119, 64
    %v128 = vadd.s32 %v119, 72
    %v129 = vadd.s32 %v119, 80
    %v130 = vadd.s32 %v119, 88
    %v131 = vadd.s32 %v119, 96
    %v132 = vadd.s32 %v119, 104
    %v133 = vadd.s32 %v119, 112
    %v134 = vadd.s32 %v119, 120
    %v135 = vadd.s32 %v119, 128
    %v136 = vadd.s32 %v119, 136
    %v137 = vadd.s32 %v119, 144
    %v138 = vadd.s32 %v119, 152
    %v139 = vadd.s32 %v119, 160
    %v140 = vadd.s32 %v119, 168
    %v141 = vadd.s32 %v119, 176
    %v142 = vadd.s32 %v119, 184
    %v143 = vadd.s32 %v119, 192
    %v144 = vadd.s32 %v119, 200
    %vm145 = vcmp.lt.s32.totalorder %v119, 100
    %vm146 = vcmp.lt.s32.totalorder %v120, 100
    %vm147 = vcmp.lt.s32.totalorder %v121, 100
    %vm148 = vcmp.lt.s32.totalorder %v122, 100
    %vm149 = vcmp.lt.s32.totalorder %v123, 100
    %vm150 = vcmp.lt.s32.totalorder %v124, 100
    %vm151 = vcmp.lt.s32.totalorder %v125, 100
    %vm152 = vcmp.lt.s32.totalorder %v126, 100
    %vm153 = vcmp.lt.s32.totalorder %v127, 100
    %vm154 = vcmp.lt.s32.totalorder %v128, 100
    %vm155 = vcmp.lt.s32.totalorder %v129, 100
    %vm156 = vcmp.lt.s32.totalorder %v130, 100
    %vm157 = vcmp.lt.s32.totalorder %v131, 100
    %vm158 = vcmp.lt.s32.totalorder %v132, 100
    %vm159 = vcmp.lt.s32.totalorder %v133, 100
    %vm160 = vcmp.lt.s32.totalorder %v134, 100
    %vm161 = vcmp.lt.s32.totalorder %v135, 100
    %vm162 = vcmp.lt.s32.totalorder %v136, 100
    %vm163 = vcmp.lt.s32.totalorder %v137, 100
    %vm164 = vcmp.lt.s32.totalorder %v138, 100
    %vm165 = vcmp.lt.s32.totalorder %v139, 100
    %vm166 = vcmp.lt.s32.totalorder %v140, 100
    %vm167 = vcmp.lt.s32.totalorder %v141, 100
    %vm168 = vcmp.lt.s32.totalorder %v142, 100
    %vm169 = vcmp.lt.s32.totalorder %v143, 100
    %vm170 = vcmp.lt.s32.totalorder %v144, 100
    %vm171 = vcmp.ge.s32.totalorder %v119, 104
    %vm172 = vcmp.ge.s32.totalorder %v120, 104
    %vm173 = vcmp.ge.s32.totalorder %v121, 104
    %vm174 = vcmp.ge.s32.totalorder %v122, 104
    %vm175 = vcmp.ge.s32.totalorder %v123, 104
    %vm176 = vcmp.ge.s32.totalorder %v124, 104
    %vm177 = vcmp.ge.s32.totalorder %v125, 104
    %vm178 = vcmp.ge.s32.totalorder %v126, 104
    %vm179 = vcmp.ge.s32.totalorder %v127, 104
    %vm180 = vcmp.ge.s32.totalorder %v128, 104
    %vm181 = vcmp.ge.s32.totalorder %v129, 104
    %vm182 = vcmp.ge.s32.totalorder %v130, 104
    %vm183 = vcmp.ge.s32.totalorder %v131, 104
    %vm184 = vcmp.ge.s32.totalorder %v132, 104
    %vm185 = vcmp.ge.s32.totalorder %v133, 104
    %vm186 = vcmp.ge.s32.totalorder %v134, 104
    %vm187 = vcmp.ge.s32.totalorder %v135, 104
    %vm188 = vcmp.ge.s32.totalorder %v136, 104
    %vm189 = vcmp.ge.s32.totalorder %v137, 104
    %vm190 = vcmp.ge.s32.totalorder %v138, 104
    %vm191 = vcmp.ge.s32.totalorder %v139, 104
    %vm192 = vcmp.ge.s32.totalorder %v140, 104
    %vm193 = vcmp.ge.s32.totalorder %v141, 104
    %vm194 = vcmp.ge.s32.totalorder %v142, 104
    %vm195 = vcmp.ge.s32.totalorder %v143, 104
    %vm196 = vcmp.ge.s32.totalorder %v144, 104
    %vm197 = vcmp.lt.s32.totalorder %v119, 204
    %vm198 = vcmp.lt.s32.totalorder %v120, 204
    %vm199 = vcmp.lt.s32.totalorder %v121, 204
    %vm200 = vcmp.lt.s32.totalorder %v122, 204
    %vm201 = vcmp.lt.s32.totalorder %v123, 204
    %vm202 = vcmp.lt.s32.totalorder %v124, 204
    %vm203 = vcmp.lt.s32.totalorder %v125, 204
    %vm204 = vcmp.lt.s32.totalorder %v126, 204
    %vm205 = vcmp.lt.s32.totalorder %v127, 204
    %vm206 = vcmp.lt.s32.totalorder %v128, 204
    %vm207 = vcmp.lt.s32.totalorder %v129, 204
    %vm208 = vcmp.lt.s32.totalorder %v130, 204
    %vm209 = vcmp.lt.s32.totalorder %v131, 204
    %vm210 = vcmp.lt.s32.totalorder %v132, 204
    %vm211 = vcmp.lt.s32.totalorder %v133, 204
    %vm212 = vcmp.lt.s32.totalorder %v134, 204
    %vm213 = vcmp.lt.s32.totalorder %v135, 204
    %vm214 = vcmp.lt.s32.totalorder %v136, 204
    %vm215 = vcmp.lt.s32.totalorder %v137, 204
    %vm216 = vcmp.lt.s32.totalorder %v138, 204
    %vm217 = vcmp.lt.s32.totalorder %v139, 204
    %vm218 = vcmp.lt.s32.totalorder %v140, 204
    %vm219 = vcmp.lt.s32.totalorder %v141, 204
    %vm220 = vcmp.lt.s32.totalorder %v142, 204
    %vm221 = vcmp.lt.s32.totalorder %v143, 204
    %vm222 = vcmp.lt.s32.totalorder %v144, 204
    %vm223 = vmand %vm171, %vm197
    %vm224 = vmand %vm172, %vm198
    %vm225 = vmand %vm173, %vm199
    %vm226 = vmand %vm174, %vm200
    %vm227 = vmand %vm175, %vm201
    %vm228 = vmand %vm176, %vm202
    %vm229 = vmand %vm177, %vm203
    %vm230 = vmand %vm178, %vm204
    %vm231 = vmand %vm179, %vm205
    %vm232 = vmand %vm180, %vm206
    %vm233 = vmand %vm181, %vm207
    %vm234 = vmand %vm182, %vm208
    %vm235 = vmand %vm183, %vm209
    %vm236 = vmand %vm184, %vm210
    %vm237 = vmand %vm185, %vm211
    %vm238 = vmand %vm186, %vm212
    %vm239 = vmand %vm187, %vm213
    %vm240 = vmand %vm188, %vm214
    %vm241 = vmand %vm189, %vm215
    %vm242 = vmand %vm190, %vm216
    %vm243 = vmand %vm191, %vm217
    %vm244 = vmand %vm192, %vm218
    %vm245 = vmand %vm193, %vm219
    %vm246 = vmand %vm194, %vm220
    %vm247 = vmand %vm195, %vm221
    %vm248 = vmand %vm196, %vm222
    %vm249 = vmor %vm145, %vm223
    %vm250 = vmor %vm146, %vm224
    %vm251 = vmor %vm147, %vm225
    %vm252 = vmor %vm148, %vm226
    %vm253 = vmor %vm149, %vm227
    %vm254 = vmor %vm150, %vm228
    %vm255 = vmor %vm151, %vm229
    %vm256 = vmor %vm152, %vm230
    %vm257 = vmor %vm153, %vm231
    %vm258 = vmor %vm154, %vm232
    %vm259 = vmor %vm155, %vm233
    %vm260 = vmor %vm156, %vm234
    %vm261 = vmor %vm157, %vm235
    %vm262 = vmor %vm158, %vm236
    %vm263 = vmor %vm159, %vm237
    %vm264 = vmor %vm160, %vm238
    %vm265 = vmor %vm161, %vm239
    %vm266 = vmor %vm162, %vm240
    %vm267 = vmor %vm163, %vm241
    %vm268 = vmor %vm164, %vm242
    %vm269 = vmor %vm165, %vm243
    %vm270 = vmor %vm166, %vm244
    %vm271 = vmor %vm167, %vm245
    %vm272 = vmor %vm168, %vm246
    %vm273 = vmor %vm169, %vm247
    %vm274 = vmor %vm170, %vm248
    %v275 = vld [vmem:[#allocation2] sm:$0xff]
    %v276 = vld [vmem:[#allocation2 + $0x8] sm:$0xff]
    %v277 = vld [vmem:[#allocation2 + $0x10] sm:$0xff]
    %v278 = vld [vmem:[#allocation2 + $0x18] sm:$0xff]
    %v279 = vld [vmem:[#allocation2 + $0x20] sm:$0xff]
    %v280 = vld [vmem:[#allocation2 + $0x28] sm:$0xff]
    %v281 = vld [vmem:[#allocation2 + $0x30] sm:$0xff]
    %v282 = vld [vmem:[#allocation2 + $0x38] sm:$0xff]
    %v283 = vld [vmem:[#allocation2 + $0x40] sm:$0xff]
    %v284 = vld [vmem:[#allocation2 + $0x48] sm:$0xff]
    %v285 = vld [vmem:[#allocation2 + $0x50] sm:$0xff]
    %v286 = vld [vmem:[#allocation2 + $0x58] sm:$0xff]
    %v287 = vld [vmem:[#allocation2 + $0x60] sm:$0xff]
    %v288 = vld [vmem:[#allocation2 + $0x68] sm:$0xff]
    %v289 = vld [vmem:[#allocation2 + $0x70] sm:$0xff]
    %v290 = vld [vmem:[#allocation2 + $0x78] sm:$0xff]
    %v291 = vld [vmem:[#allocation2 + $0x80] sm:$0xff]
    %v292 = vld [vmem:[#allocation2 + $0x88] sm:$0xff]
    %v293 = vld [vmem:[#allocation2 + $0x90] sm:$0xff]
    %v294 = vld [vmem:[#allocation2 + $0x98] sm:$0xff]
    %v295 = vld [vmem:[#allocation2 + $0xa0] sm:$0xff]
    %v296 = vld [vmem:[#allocation2 + $0xa8] sm:$0xff]
    %v297 = vld [vmem:[#allocation2 + $0xb0] sm:$0xff]
    %v298 = vld [vmem:[#allocation2 + $0xb8] sm:$0xff]
    %v299 = vld [vmem:[#allocation2 + $0xc0] sm:$0xff]
    %v300 = vld [vmem:[#allocation2 + $0xc8] sm:$0xff]
    %v301 = vrot.slane %v275, 7
    %v302 = vrot.slane %v276, 7
    %v303 = vrot.slane %v277, 7
    %v304 = vrot.slane %v278, 7
    %v305 = vrot.slane %v279, 7
    %v306 = vrot.slane %v280, 7
    %v307 = vrot.slane %v281, 7
    %v308 = vrot.slane %v282, 7
    %v309 = vrot.slane %v283, 7
    %v310 = vrot.slane %v284, 7
    %v311 = vrot.slane %v285, 7
    %v312 = vrot.slane %v286, 7
    %v313 = vrot.slane %v287, 7
    %v314 = vrot.slane %v288, 7
    %v315 = vrot.slane %v289, 7
    %v316 = vrot.slane %v290, 7
    %v317 = vrot.slane %v291, 7
    %v318 = vrot.slane %v292, 7
    %v319 = vrot.slane %v293, 7
    %v320 = vrot.slane %v294, 7
    %v321 = vrot.slane %v295, 7
    %v322 = vrot.slane %v296, 7
    %v323 = vrot.slane %v297, 7
    %v324 = vrot.slane %v298, 7
    %v325 = vrot.slane %v299, 7
    %v326 = vrot.slane %v300, 7
    %vm327 = vcmp.lt.s32.totalorder %v119, 1
    %v328 = vsel %vm327, %v325, %v326
    %v329 = vsel %vm327, %v324, %v325
    %v330 = vsel %vm327, %v323, %v324
    %v331 = vsel %vm327, %v322, %v323
    %v332 = vsel %vm327, %v321, %v322
    %v333 = vsel %vm327, %v320, %v321
    %v334 = vsel %vm327, %v319, %v320
    %v335 = vsel %vm327, %v318, %v319
    %v336 = vsel %vm327, %v317, %v318
    %v337 = vsel %vm327, %v316, %v317
    %v338 = vsel %vm327, %v315, %v316
    %v339 = vsel %vm327, %v314, %v315
    %v340 = vsel %vm327, %v313, %v314
    %v341 = vsel %vm327, %v312, %v313
    %v342 = vsel %vm327, %v311, %v312
    %v343 = vsel %vm327, %v310, %v311
    %v344 = vsel %vm327, %v309, %v310
    %v345 = vsel %vm327, %v308, %v309
    %v346 = vsel %vm327, %v307, %v308
    %v347 = vsel %vm327, %v306, %v307
    %v348 = vsel %vm327, %v305, %v306
    %v349 = vsel %vm327, %v304, %v305
    %v350 = vsel %vm327, %v303, %v304
    %v351 = vsel %vm327, %v302, %v303
    %v352 = vsel %vm327, %v301, %v302
    %v353 = vsel %vm327, %v326, %v301
    %v354 = vrot.slane %v275, 1
    %v355 = vrot.slane %v276, 1
    %v356 = vrot.slane %v277, 1
    %v357 = vrot.slane %v278, 1
    %v358 = vrot.slane %v279, 1
    %v359 = vrot.slane %v280, 1
    %v360 = vrot.slane %v281, 1
    %v361 = vrot.slane %v282, 1
    %v362 = vrot.slane %v283, 1
    %v363 = vrot.slane %v284, 1
    %v364 = vrot.slane %v285, 1
    %v365 = vrot.slane %v286, 1
    %v366 = vrot.slane %v287, 1
    %v367 = vrot.slane %v288, 1
    %v368 = vrot.slane %v289, 1
    %v369 = vrot.slane %v290, 1
    %v370 = vrot.slane %v291, 1
    %v371 = vrot.slane %v292, 1
    %v372 = vrot.slane %v293, 1
    %v373 = vrot.slane %v294, 1
    %v374 = vrot.slane %v295, 1
    %v375 = vrot.slane %v296, 1
    %v376 = vrot.slane %v297, 1
    %v377 = vrot.slane %v298, 1
    %v378 = vrot.slane %v299, 1
    %v379 = vrot.slane %v300, 1
    %vm380 = vcmp.lt.s32.totalorder %v119, 7
    %v381 = vsel %vm380, %v378, %v379
    %v382 = vsel %vm380, %v377, %v378
    %v383 = vsel %vm380, %v376, %v377
    %v384 = vsel %vm380, %v375, %v376
    %v385 = vsel %vm380, %v374, %v375
    %v386 = vsel %vm380, %v373, %v374
    %v387 = vsel %vm380, %v372, %v373
    %v388 = vsel %vm380, %v371, %v372
    %v389 = vsel %vm380, %v370, %v371
    %v390 = vsel %vm380, %v369, %v370
    %v391 = vsel %vm380, %v368, %v369
    %v392 = vsel %vm380, %v367, %v368
    %v393 = vsel %vm380, %v366, %v367
    %v394 = vsel %vm380, %v365, %v366
    %v395 = vsel %vm380, %v364, %v365
    %v396 = vsel %vm380, %v363, %v364
    %v397 = vsel %vm380, %v362, %v363
    %v398 = vsel %vm380, %v361, %v362
    %v399 = vsel %vm380, %v360, %v361
    %v400 = vsel %vm380, %v359, %v360
    %v401 = vsel %vm380, %v358, %v359
    %v402 = vsel %vm380, %v357, %v358
    %v403 = vsel %vm380, %v356, %v357
    %v404 = vsel %vm380, %v355, %v356
    %v405 = vsel %vm380, %v354, %v355
    %v406 = vsel %vm380, %v379, %v354
    %v407 = vpack.c.bf16 %v352, %v353
    %v408 = vpack.c.bf16 %v350, %v351
    %v409 = vpack.c.bf16 %v348, %v349
    %v410 = vpack.c.bf16 %v346, %v347
    %v411 = vpack.c.bf16 %v344, %v345
    %v412 = vpack.c.bf16 %v342, %v343
    %v413 = vpack.c.bf16 %v340, %v341
    %v414 = vpack.c.bf16 %v338, %v339
    %v415 = vpack.c.bf16 %v336, %v337
    %v416 = vpack.c.bf16 %v334, %v335
    %v417 = vpack.c.bf16 %v332, %v333
    %v418 = vpack.c.bf16 %v330, %v331
    %v419 = vpack.c.bf16 %v328, %v329
    %v420 = vld [vmem:[#allocation4] sm:$0xf]
    %v421 = vld [vmem:[#allocation4 + $0x4] sm:$0xf]
    %v422 = vld [vmem:[#allocation4 + $0x8] sm:$0xf]
    %v423 = vld [vmem:[#allocation4 + $0xc] sm:$0xf]
    %v424 = vld [vmem:[#allocation4 + $0x10] sm:$0xf]
    %v425 = vld [vmem:[#allocation4 + $0x14] sm:$0xf]
    %v426 = vld [vmem:[#allocation4 + $0x18] sm:$0xf]
    %v427 = vld [vmem:[#allocation4 + $0x1c] sm:$0xf]
    %v428 = vld [vmem:[#allocation4 + $0x20] sm:$0xf]
    %v429 = vld [vmem:[#allocation4 + $0x24] sm:$0xf]
    %v430 = vld [vmem:[#allocation4 + $0x28] sm:$0xf]
    %v431 = vld [vmem:[#allocation4 + $0x2c] sm:$0xf]
    %v432 = vld [vmem:[#allocation4 + $0x30] sm:$0xf]
    %v433 = vld [vmem:[#allocation4 + $0x34] sm:$0xf]
    %v434 = vld [vmem:[#allocation4 + $0x38] sm:$0xf]
    %v435 = vld [vmem:[#allocation4 + $0x3c] sm:$0xf]
    %v436 = vpack.c.bf16 %v276, %v275
    %v437 = vpack.c.bf16 %v278, %v277
    %v438 = vpack.c.bf16 %v280, %v279
    %v439 = vpack.c.bf16 %v282, %v281
    %v440 = vpack.c.bf16 %v284, %v283
    %v441 = vpack.c.bf16 %v286, %v285
    %v442 = vpack.c.bf16 %v288, %v287
    %v443 = vpack.c.bf16 %v290, %v289
    %v444 = vpack.c.bf16 %v292, %v291
    %v445 = vpack.c.bf16 %v294, %v293
    %v446 = vpack.c.bf16 %v296, %v295
    %v447 = vpack.c.bf16 %v298, %v297
    %v448 = vpack.c.bf16 %v300, %v299
    %s449 = scalar_lea.vmem [#allocation4], 64
    %v450 = vld [vmem:[%s449] sm:$0xf]
    %v451 = vld [vmem:[%s449 + $0x4] sm:$0xf]
    %v452 = vld [vmem:[%s449 + $0x8] sm:$0xf]
    %v453 = vld [vmem:[%s449 + $0xc] sm:$0xf]
    %v454 = vld [vmem:[%s449 + $0x10] sm:$0xf]
    %v455 = vld [vmem:[%s449 + $0x14] sm:$0xf]
    %v456 = vld [vmem:[%s449 + $0x18] sm:$0xf]
    %v457 = vld [vmem:[%s449 + $0x1c] sm:$0xf]
    %v458 = vld [vmem:[%s449 + $0x20] sm:$0xf]
    %v459 = vld [vmem:[%s449 + $0x24] sm:$0xf]
    %v460 = vld [vmem:[%s449 + $0x28] sm:$0xf]
    %v461 = vld [vmem:[%s449 + $0x2c] sm:$0xf]
    %v462 = vld [vmem:[%s449 + $0x30] sm:$0xf]
    %v463 = vld [vmem:[%s449 + $0x34] sm:$0xf]
    %v464 = vld [vmem:[%s449 + $0x38] sm:$0xf]
    %v465 = vld [vmem:[%s449 + $0x3c] sm:$0xf]
    %v482 = vunpack.c.l.b16 %v450
    %v483 = vunpack.c.l.b16 %v451
    %v484 = vunpack.c.l.b16 %v452
    %v485 = vunpack.c.l.b16 %v453
    %v486 = vunpack.c.l.b16 %v454
    %v487 = vunpack.c.l.b16 %v455
    %v488 = vunpack.c.l.b16 %v456
    %v489 = vunpack.c.l.b16 %v457
    %v490 = vunpack.c.l.b16 %v458
    %v491 = vunpack.c.l.b16 %v459
    %v492 = vunpack.c.l.b16 %v460
    %v493 = vunpack.c.l.b16 %v461
    %v494 = vunpack.c.l.b16 %v462
    %v495 = vunpack.c.l.b16 %v463
    %v496 = vunpack.c.l.b16 %v464
    %v497 = vunpack.c.l.b16 %v465
    %v498 = vpack.c.b16 %v483, %v482
    %v499 = vpack.c.b16 %v485, %v484
    %v500 = vpack.c.b16 %v487, %v486
    %v501 = vpack.c.b16 %v489, %v488
    %v502 = vpack.c.b16 %v491, %v490
    %v503 = vpack.c.b16 %v493, %v492
    %v504 = vpack.c.b16 %v495, %v494
    %v505 = vpack.c.b16 %v497, %v496
    %514 = vmatprep.subr.bf16.mxu0 0
    %515 = vmatpush1.bf16.msra.mxu0 %v498
    %516 = vmatprep.subr.bf16.mxu0 0
    %517 = vmatpush1.bf16.msra.mxu0 %v499
    %518 = vmatprep.subr.bf16.mxu0 0
    %519 = vmatpush1.bf16.msra.mxu0 %v500
    %520 = vmatprep.subr.bf16.mxu0 0
    %521 = vmatpush1.bf16.msra.mxu0 %v501
    %522 = vmatprep.subr.bf16.mxu0 0
    %523 = vmatpush1.bf16.msra.mxu0 %v502
    %524 = vmatprep.subr.bf16.mxu0 0
    %525 = vmatpush1.bf16.msra.mxu0 %v503
    %526 = vmatprep.subr.bf16.mxu0 0
    %527 = vmatpush1.bf16.msra.mxu0 %v504
    %528 = vmatprep.subr.bf16.mxu0 0
    %529 = vmatpush1.bf16.msra.mxu0 %v505
    %530 = vmatprep.subr.bf16.mxu0 0
    %531 = vmatpush1.bf16.msra.mxu0 0
    %532 = vmatprep.subr.bf16.mxu0 0
    %533 = vmatpush1.bf16.msra.mxu0 0
    %534 = vmatprep.subr.bf16.mxu0 0
    %535 = vmatpush1.bf16.msra.mxu0 0
    %536 = vmatprep.subr.bf16.mxu0 0
    %537 = vmatpush1.bf16.msra.mxu0 0
    %538 = vmatprep.subr.bf16.mxu0 0
    %539 = vmatpush1.bf16.msra.mxu0 0
    %540 = vmatprep.subr.bf16.mxu0 0
    %541 = vmatpush1.bf16.msra.mxu0 0
    %542 = vmatprep.subr.bf16.mxu0 0
    %543 = vmatpush1.bf16.msra.mxu0 0
    %544 = vmatprep.subr.bf16.mxu0 0
    %545 = vmatpush1.bf16.msra.mxu0 0
    %546 = vmatprep.mubr.bf16.mxu0 0
    %547 = vmatmul.mubr.bf16.gmra.mrb[0].mxu0 %v436
    %v548 = vpop.f32.mrb[0].mxu0
    %v549 = vadd.f32 0.0, %v548
    %v550 = vpop.f32.mrb[0].mxu0
    %v551 = vpop.f32.mrb[0].mxu0
    %v552 = vadd.f32 0.0, %v551
    %v553 = vpop.f32.mrb[0].mxu0
    %554 = vmatprep.mubr.bf16.mxu0 0
    %555 = vmatmul.mubr.bf16.gmra.mrb[0].mxu0 %v437
    %v556 = vpop.f32.mrb[0].mxu0
    %v557 = vadd.f32 0.0, %v556
    %v558 = vpop.f32.mrb[0].mxu0
    %v559 = vpop.f32.mrb[0].mxu0
    %v560 = vadd.f32 0.0, %v559
    %v561 = vpop.f32.mrb[0].mxu0
    %562 = vmatprep.mubr.bf16.mxu0 0
    %563 = vmatmul.mubr.bf16.gmra.mrb[0].mxu0 %v438
    %v564 = vpop.f32.mrb[0].mxu0
    %v565 = vadd.f32 0.0, %v564
    %v566 = vpop.f32.mrb[0].mxu0
    %v567 = vpop.f32.mrb[0].mxu0
    %v568 = vadd.f32 0.0, %v567
    %v569 = vpop.f32.mrb[0].mxu0
    %570 = vmatprep.mubr.bf16.mxu0 0
    %571 = vmatmul.mubr.bf16.gmra.mrb[0].mxu0 %v439
    %v572 = vpop.f32.mrb[0].mxu0
    %v573 = vadd.f32 0.0, %v572
    %v574 = vpop.f32.mrb[0].mxu0
    %v575 = vpop.f32.mrb[0].mxu0
    %v576 = vadd.f32 0.0, %v575
    %v577 = vpop.f32.mrb[0].mxu0
    %578 = vmatprep.mubr.bf16.mxu0 0
    %579 = vmatmul.mubr.bf16.gmra.mrb[0].mxu0 %v440
    %v580 = vpop.f32.mrb[0].mxu0
    %v581 = vadd.f32 0.0, %v580
    %v582 = vpop.f32.mrb[0].mxu0
    %v583 = vpop.f32.mrb[0].mxu0
    %v584 = vadd.f32 0.0, %v583
    %v585 = vpop.f32.mrb[0].mxu0
    %586 = vmatprep.mubr.bf16.mxu0 0
    %587 = vmatmul.mubr.bf16.gmra.mrb[0].mxu0 %v441
    %v588 = vpop.f32.mrb[0].mxu0
    %v589 = vadd.f32 0.0, %v588
    %v590 = vpop.f32.mrb[0].mxu0
    %v591 = vpop.f32.mrb[0].mxu0
    %v592 = vadd.f32 0.0, %v591
    %v593 = vpop.f32.mrb[0].mxu0
    %594 = vmatprep.mubr.bf16.mxu0 0
    %595 = vmatmul.mubr.bf16.gmra.mrb[0].mxu0 %v442
    %v596 = vpop.f32.mrb[0].mxu0
    %v597 = vadd.f32 0.0, %v596
    %v598 = vpop.f32.mrb[0].mxu0
    %v599 = vpop.f32.mrb[0].mxu0
    %v600 = vadd.f32 0.0, %v599
    %v601 = vpop.f32.mrb[0].mxu0
    %602 = vmatprep.mubr.bf16.mxu0 0
    %603 = vmatmul.mubr.bf16.gmra.mrb[0].mxu0 %v443
    %v604 = vpop.f32.mrb[0].mxu0
    %v605 = vadd.f32 0.0, %v604
    %v606 = vpop.f32.mrb[0].mxu0
    %v607 = vpop.f32.mrb[0].mxu0
    %v608 = vadd.f32 0.0, %v607
    %v609 = vpop.f32.mrb[0].mxu0
    %610 = vmatprep.mubr.bf16.mxu0 0
    %611 = vmatmul.mubr.bf16.gmra.mrb[0].mxu0 %v444
    %v612 = vpop.f32.mrb[0].mxu0
    %v613 = vadd.f32 0.0, %v612
    %v614 = vpop.f32.mrb[0].mxu0
    %v615 = vpop.f32.mrb[0].mxu0
    %v616 = vadd.f32 0.0, %v615
    %v617 = vpop.f32.mrb[0].mxu0
    %618 = vmatprep.mubr.bf16.mxu0 0
    %619 = vmatmul.mubr.bf16.gmra.mrb[0].mxu0 %v445
    %v620 = vpop.f32.mrb[0].mxu0
    %v621 = vadd.f32 0.0, %v620
    %v622 = vpop.f32.mrb[0].mxu0
    %v623 = vpop.f32.mrb[0].mxu0
    %v624 = vadd.f32 0.0, %v623
    %v625 = vpop.f32.mrb[0].mxu0
    %626 = vmatprep.mubr.bf16.mxu0 0
    %627 = vmatmul.mubr.bf16.gmra.mrb[0].mxu0 %v446
    %v628 = vpop.f32.mrb[0].mxu0
    %v629 = vadd.f32 0.0, %v628
    %v630 = vpop.f32.mrb[0].mxu0
    %v631 = vpop.f32.mrb[0].mxu0
    %v632 = vadd.f32 0.0, %v631
    %v633 = vpop.f32.mrb[0].mxu0
    %634 = vmatprep.mubr.bf16.mxu0 0
    %635 = vmatmul.mubr.bf16.gmra.mrb[0].mxu0 %v447
    %v636 = vpop.f32.mrb[0].mxu0
    %v637 = vadd.f32 0.0, %v636
    %v638 = vpop.f32.mrb[0].mxu0
    %v639 = vpop.f32.mrb[0].mxu0
    %v640 = vadd.f32 0.0, %v639
    %v641 = vpop.f32.mrb[0].mxu0
    %642 = vmatprep.mubr.bf16.mxu0 0
    %643 = vmatmul.mubr.bf16.gmra.mrb[0].mxu0 %v448
    %v644 = vpop.f32.mrb[0].mxu0
    %v645 = vadd.f32 0.0, %v644
    %v646 = vpop.f32.mrb[0].mxu0
    %v647 = vpop.f32.mrb[0].mxu0
    %v648 = vadd.f32 0.0, %v647
    %v649 = vpop.f32.mrb[0].mxu0
    %650 = vdwg.mxu0
    %v667 = vunpack.c.l.b16 %v420
    %v668 = vunpack.c.l.b16 %v421
    %v669 = vunpack.c.l.b16 %v422
    %v670 = vunpack.c.l.b16 %v423
    %v671 = vunpack.c.l.b16 %v424
    %v672 = vunpack.c.l.b16 %v425
    %v673 = vunpack.c.l.b16 %v426
    %v674 = vunpack.c.l.b16 %v427
    %v675 = vunpack.c.l.b16 %v428
    %v676 = vunpack.c.l.b16 %v429
    %v677 = vunpack.c.l.b16 %v430
    %v678 = vunpack.c.l.b16 %v431
    %v679 = vunpack.c.l.b16 %v432
    %v680 = vunpack.c.l.b16 %v433
    %v681 = vunpack.c.l.b16 %v434
    %v682 = vunpack.c.l.b16 %v435
    %v683 = vpack.c.b16 %v668, %v667
    %v684 = vpack.c.b16 %v670, %v669
    %v685 = vpack.c.b16 %v672, %v671
    %v686 = vpack.c.b16 %v674, %v673
    %v687 = vpack.c.b16 %v676, %v675
    %v688 = vpack.c.b16 %v678, %v677
    %v689 = vpack.c.b16 %v680, %v679
    %v690 = vpack.c.b16 %v682, %v681
    %699 = vmatprep.subr.bf16.mxu0 0
    %700 = vmatpush1.bf16.msra.mxu0 %v683
    %701 = vmatprep.subr.bf16.mxu0 0
    %702 = vmatpush1.bf16.msra.mxu0 %v684
    %703 = vmatprep.subr.bf16.mxu0 0
    %704 = vmatpush1.bf16.msra.mxu0 %v685
    %705 = vmatprep.subr.bf16.mxu0 0
    %706 = vmatpush1.bf16.msra.mxu0 %v686
    %707 = vmatprep.subr.bf16.mxu0 0
    %708 = vmatpush1.bf16.msra.mxu0 %v687
    %709 = vmatprep.subr.bf16.mxu0 0
    %710 = vmatpush1.bf16.msra.mxu0 %v688
    %711 = vmatprep.subr.bf16.mxu0 0
    %712 = vmatpush1.bf16.msra.mxu0 %v689
    %713 = vmatprep.subr.bf16.mxu0 0
    %714 = vmatpush1.bf16.msra.mxu0 %v690
    %715 = vmatprep.subr.bf16.mxu0 0
    %716 = vmatpush1.bf16.msra.mxu0 0
    %717 = vmatprep.subr.bf16.mxu0 0
    %718 = vmatpush1.bf16.msra.mxu0 0
    %719 = vmatprep.subr.bf16.mxu0 0
    %720 = vmatpush1.bf16.msra.mxu0 0
    %721 = vmatprep.subr.bf16.mxu0 0
    %722 = vmatpush1.bf16.msra.mxu0 0
    %723 = vmatprep.subr.bf16.mxu0 0
    %724 = vmatpush1.bf16.msra.mxu0 0
    %725 = vmatprep.subr.bf16.mxu0 0
    %726 = vmatpush1.bf16.msra.mxu0 0
    %727 = vmatprep.subr.bf16.mxu0 0
    %728 = vmatpush1.bf16.msra.mxu0 0
    %729 = vmatprep.subr.bf16.mxu0 0
    %730 = vmatpush1.bf16.msra.mxu0 0
    %731 = vmatprep.mubr.bf16.mxu0 0
    %732 = vmatmul.mubr.bf16.gmra.mrb[0].mxu0 %v407
    %v733 = vpop.f32.mrb[0].mxu0
    %v734 = vadd.f32 %v549, %v733
    %v735 = vpop.f32.mrb[0].mxu0
    %v736 = vpop.f32.mrb[0].mxu0
    %v737 = vadd.f32 %v552, %v736
    %v738 = vpop.f32.mrb[0].mxu0
    %739 = vmatprep.mubr.bf16.mxu0 0
    %740 = vmatmul.mubr.bf16.gmra.mrb[0].mxu0 %v408
    %v741 = vpop.f32.mrb[0].mxu0
    %v742 = vadd.f32 %v557, %v741
    %v743 = vpop.f32.mrb[0].mxu0
    %v744 = vpop.f32.mrb[0].mxu0
    %v745 = vadd.f32 %v560, %v744
    %v746 = vpop.f32.mrb[0].mxu0
    %747 = vmatprep.mubr.bf16.mxu0 0
    %748 = vmatmul.mubr.bf16.gmra.mrb[0].mxu0 %v409
    %v749 = vpop.f32.mrb[0].mxu0
    %v750 = vadd.f32 %v565, %v749
    %v751 = vpop.f32.mrb[0].mxu0
    %v752 = vpop.f32.mrb[0].mxu0
    %v753 = vadd.f32 %v568, %v752
    %v754 = vpop.f32.mrb[0].mxu0
    %755 = vmatprep.mubr.bf16.mxu0 0
    %756 = vmatmul.mubr.bf16.gmra.mrb[0].mxu0 %v410
    %v757 = vpop.f32.mrb[0].mxu0
    %v758 = vadd.f32 %v573, %v757
    %v759 = vpop.f32.mrb[0].mxu0
    %v760 = vpop.f32.mrb[0].mxu0
    %v761 = vadd.f32 %v576, %v760
    %v762 = vpop.f32.mrb[0].mxu0
    %763 = vmatprep.mubr.bf16.mxu0 0
    %764 = vmatmul.mubr.bf16.gmra.mrb[0].mxu0 %v411
    %v765 = vpop.f32.mrb[0].mxu0
    %v766 = vadd.f32 %v581, %v765
    %v767 = vpop.f32.mrb[0].mxu0
    %v768 = vpop.f32.mrb[0].mxu0
    %v769 = vadd.f32 %v584, %v768
    %v770 = vpop.f32.mrb[0].mxu0
    %771 = vmatprep.mubr.bf16.mxu0 0
    %772 = vmatmul.mubr.bf16.gmra.mrb[0].mxu0 %v412
    %v773 = vpop.f32.mrb[0].mxu0
    %v774 = vadd.f32 %v589, %v773
    %v775 = vpop.f32.mrb[0].mxu0
    %v776 = vpop.f32.mrb[0].mxu0
    %v777 = vadd.f32 %v592, %v776
    %v778 = vpop.f32.mrb[0].mxu0
    %779 = vmatprep.mubr.bf16.mxu0 0
    %780 = vmatmul.mubr.bf16.gmra.mrb[0].mxu0 %v413
    %v781 = vpop.f32.mrb[0].mxu0
    %v782 = vadd.f32 %v597, %v781
    %v783 = vpop.f32.mrb[0].mxu0
    %v784 = vpop.f32.mrb[0].mxu0
    %v785 = vadd.f32 %v600, %v784
    %v786 = vpop.f32.mrb[0].mxu0
    %787 = vmatprep.mubr.bf16.mxu0 0
    %788 = vmatmul.mubr.bf16.gmra.mrb[0].mxu0 %v414
    %v789 = vpop.f32.mrb[0].mxu0
    %v790 = vadd.f32 %v605, %v789
    %v791 = vpop.f32.mrb[0].mxu0
    %v792 = vpop.f32.mrb[0].mxu0
    %v793 = vadd.f32 %v608, %v792
    %v794 = vpop.f32.mrb[0].mxu0
    %795 = vmatprep.mubr.bf16.mxu0 0
    %796 = vmatmul.mubr.bf16.gmra.mrb[0].mxu0 %v415
    %v797 = vpop.f32.mrb[0].mxu0
    %v798 = vadd.f32 %v613, %v797
    %v799 = vpop.f32.mrb[0].mxu0
    %v800 = vpop.f32.mrb[0].mxu0
    %v801 = vadd.f32 %v616, %v800
    %v802 = vpop.f32.mrb[0].mxu0
    %803 = vmatprep.mubr.bf16.mxu0 0
    %804 = vmatmul.mubr.bf16.gmra.mrb[0].mxu0 %v416
    %v805 = vpop.f32.mrb[0].mxu0
    %v806 = vadd.f32 %v621, %v805
    %v807 = vpop.f32.mrb[0].mxu0
    %v808 = vpop.f32.mrb[0].mxu0
    %v809 = vadd.f32 %v624, %v808
    %v810 = vpop.f32.mrb[0].mxu0
    %811 = vmatprep.mubr.bf16.mxu0 0
    %812 = vmatmul.mubr.bf16.gmra.mrb[0].mxu0 %v417
    %v813 = vpop.f32.mrb[0].mxu0
    %v814 = vadd.f32 %v629, %v813
    %v815 = vpop.f32.mrb[0].mxu0
    %v816 = vpop.f32.mrb[0].mxu0
    %v817 = vadd.f32 %v632, %v816
    %v818 = vpop.f32.mrb[0].mxu0
    %819 = vmatprep.mubr.bf16.mxu0 0
    %820 = vmatmul.mubr.bf16.gmra.mrb[0].mxu0 %v418
    %v821 = vpop.f32.mrb[0].mxu0
    %v822 = vadd.f32 %v637, %v821
    %v823 = vpop.f32.mrb[0].mxu0
    %v824 = vpop.f32.mrb[0].mxu0
    %v825 = vadd.f32 %v640, %v824
    %v826 = vpop.f32.mrb[0].mxu0
    %827 = vmatprep.mubr.bf16.mxu0 0
    %828 = vmatmul.mubr.bf16.gmra.mrb[0].mxu0 %v419
    %v829 = vpop.f32.mrb[0].mxu0
    %v830 = vadd.f32 %v645, %v829
    %v831 = vpop.f32.mrb[0].mxu0
    %v832 = vpop.f32.mrb[0].mxu0
    %v833 = vadd.f32 %v648, %v832
    %v834 = vpop.f32.mrb[0].mxu0
    %835 = vdwg.mxu0
    %v836 = vpack.c.bf16 %v404, %v405
    %v837 = vpack.c.bf16 %v402, %v403
    %v838 = vpack.c.bf16 %v400, %v401
    %v839 = vpack.c.bf16 %v398, %v399
    %v840 = vpack.c.bf16 %v396, %v397
    %v841 = vpack.c.bf16 %v394, %v395
    %v842 = vpack.c.bf16 %v392, %v393
    %v843 = vpack.c.bf16 %v390, %v391
    %v844 = vpack.c.bf16 %v388, %v389
    %v845 = vpack.c.bf16 %v386, %v387
    %v846 = vpack.c.bf16 %v384, %v385
    %v847 = vpack.c.bf16 %v382, %v383
    %v848 = vpack.c.bf16 %v406, %v381
    %s849 = scalar_lea.vmem [#allocation4], 128
    %v850 = vld [vmem:[%s849] sm:$0xf]
    %v851 = vld [vmem:[%s849 + $0x4] sm:$0xf]
    %v852 = vld [vmem:[%s849 + $0x8] sm:$0xf]
    %v853 = vld [vmem:[%s849 + $0xc] sm:$0xf]
    %v854 = vld [vmem:[%s849 + $0x10] sm:$0xf]
    %v855 = vld [vmem:[%s849 + $0x14] sm:$0xf]
    %v856 = vld [vmem:[%s849 + $0x18] sm:$0xf]
    %v857 = vld [vmem:[%s849 + $0x1c] sm:$0xf]
    %v858 = vld [vmem:[%s849 + $0x20] sm:$0xf]
    %v859 = vld [vmem:[%s849 + $0x24] sm:$0xf]
    %v860 = vld [vmem:[%s849 + $0x28] sm:$0xf]
    %v861 = vld [vmem:[%s849 + $0x2c] sm:$0xf]
    %v862 = vld [vmem:[%s849 + $0x30] sm:$0xf]
    %v863 = vld [vmem:[%s849 + $0x34] sm:$0xf]
    %v864 = vld [vmem:[%s849 + $0x38] sm:$0xf]
    %v865 = vld [vmem:[%s849 + $0x3c] sm:$0xf]
    %v882 = vunpack.c.l.b16 %v850
    %v883 = vunpack.c.l.b16 %v851
    %v884 = vunpack.c.l.b16 %v852
    %v885 = vunpack.c.l.b16 %v853
    %v886 = vunpack.c.l.b16 %v854
    %v887 = vunpack.c.l.b16 %v855
    %v888 = vunpack.c.l.b16 %v856
    %v889 = vunpack.c.l.b16 %v857
    %v890 = vunpack.c.l.b16 %v858
    %v891 = vunpack.c.l.b16 %v859
    %v892 = vunpack.c.l.b16 %v860
    %v893 = vunpack.c.l.b16 %v861
    %v894 = vunpack.c.l.b16 %v862
    %v895 = vunpack.c.l.b16 %v863
    %v896 = vunpack.c.l.b16 %v864
    %v897 = vunpack.c.l.b16 %v865
    %v898 = vpack.c.b16 %v883, %v882
    %v899 = vpack.c.b16 %v885, %v884
    %v900 = vpack.c.b16 %v887, %v886
    %v901 = vpack.c.b16 %v889, %v888
    %v902 = vpack.c.b16 %v891, %v890
    %v903 = vpack.c.b16 %v893, %v892
    %v904 = vpack.c.b16 %v895, %v894
    %v905 = vpack.c.b16 %v897, %v896
    %914 = vmatprep.subr.bf16.mxu0 0
    %915 = vmatpush1.bf16.msra.mxu0 %v898
    %916 = vmatprep.subr.bf16.mxu0 0
    %917 = vmatpush1.bf16.msra.mxu0 %v899
    %918 = vmatprep.subr.bf16.mxu0 0
    %919 = vmatpush1.bf16.msra.mxu0 %v900
    %920 = vmatprep.subr.bf16.mxu0 0
    %921 = vmatpush1.bf16.msra.mxu0 %v901
    %922 = vmatprep.subr.bf16.mxu0 0
    %923 = vmatpush1.bf16.msra.mxu0 %v902
    %924 = vmatprep.subr.bf16.mxu0 0
    %925 = vmatpush1.bf16.msra.mxu0 %v903
    %926 = vmatprep.subr.bf16.mxu0 0
    %927 = vmatpush1.bf16.msra.mxu0 %v904
    %928 = vmatprep.subr.bf16.mxu0 0
    %929 = vmatpush1.bf16.msra.mxu0 %v905
    %930 = vmatprep.subr.bf16.mxu0 0
    %931 = vmatpush1.bf16.msra.mxu0 0
    %932 = vmatprep.subr.bf16.mxu0 0
    %933 = vmatpush1.bf16.msra.mxu0 0
    %934 = vmatprep.subr.bf16.mxu0 0
    %935 = vmatpush1.bf16.msra.mxu0 0
    %936 = vmatprep.subr.bf16.mxu0 0
    %937 = vmatpush1.bf16.msra.mxu0 0
    %938 = vmatprep.subr.bf16.mxu0 0
    %939 = vmatpush1.bf16.msra.mxu0 0
    %940 = vmatprep.subr.bf16.mxu0 0
    %941 = vmatpush1.bf16.msra.mxu0 0
    %942 = vmatprep.subr.bf16.mxu0 0
    %943 = vmatpush1.bf16.msra.mxu0 0
    %944 = vmatprep.subr.bf16.mxu0 0
    %945 = vmatpush1.bf16.msra.mxu0 0
    %946 = vmatprep.mubr.bf16.mxu0 0
    %947 = vmatmul.mubr.bf16.gmra.mrb[0].mxu0 %v836
    %v948 = vpop.f32.mrb[0].mxu0
    %v949 = vadd.f32 0.0, %v948
    %v950 = vpop.f32.mrb[0].mxu0
    %v951 = vpop.f32.mrb[0].mxu0
    %v952 = vadd.f32 0.0, %v951
    %v953 = vpop.f32.mrb[0].mxu0
    %954 = vmatprep.mubr.bf16.mxu0 0
    %955 = vmatmul.mubr.bf16.gmra.mrb[0].mxu0 %v837
    %v956 = vpop.f32.mrb[0].mxu0
    %v957 = vadd.f32 0.0, %v956
    %v958 = vpop.f32.mrb[0].mxu0
    %v959 = vpop.f32.mrb[0].mxu0
    %v960 = vadd.f32 0.0, %v959
    %v961 = vpop.f32.mrb[0].mxu0
    %962 = vmatprep.mubr.bf16.mxu0 0
    %963 = vmatmul.mubr.bf16.gmra.mrb[0].mxu0 %v838
    %v964 = vpop.f32.mrb[0].mxu0
    %v965 = vadd.f32 0.0, %v964
    %v966 = vpop.f32.mrb[0].mxu0
    %v967 = vpop.f32.mrb[0].mxu0
    %v968 = vadd.f32 0.0, %v967
    %v969 = vpop.f32.mrb[0].mxu0
    %970 = vmatprep.mubr.bf16.mxu0 0
    %971 = vmatmul.mubr.bf16.gmra.mrb[0].mxu0 %v839
    %v972 = vpop.f32.mrb[0].mxu0
    %v973 = vadd.f32 0.0, %v972
    %v974 = vpop.f32.mrb[0].mxu0
    %v975 = vpop.f32.mrb[0].mxu0
    %v976 = vadd.f32 0.0, %v975
    %v977 = vpop.f32.mrb[0].mxu0
    %978 = vmatprep.mubr.bf16.mxu0 0
    %979 = vmatmul.mubr.bf16.gmra.mrb[0].mxu0 %v840
    %v980 = vpop.f32.mrb[0].mxu0
    %v981 = vadd.f32 0.0, %v980
    %v982 = vpop.f32.mrb[0].mxu0
    %v983 = vpop.f32.mrb[0].mxu0
    %v984 = vadd.f32 0.0, %v983
    %v985 = vpop.f32.mrb[0].mxu0
    %986 = vmatprep.mubr.bf16.mxu0 0
    %987 = vmatmul.mubr.bf16.gmra.mrb[0].mxu0 %v841
    %v988 = vpop.f32.mrb[0].mxu0
    %v989 = vadd.f32 0.0, %v988
    %v990 = vpop.f32.mrb[0].mxu0
    %v991 = vpop.f32.mrb[0].mxu0
    %v992 = vadd.f32 0.0, %v991
    %v993 = vpop.f32.mrb[0].mxu0
    %994 = vmatprep.mubr.bf16.mxu0 0
    %995 = vmatmul.mubr.bf16.gmra.mrb[0].mxu0 %v842
    %v996 = vpop.f32.mrb[0].mxu0
    %v997 = vadd.f32 0.0, %v996
    %v998 = vpop.f32.mrb[0].mxu0
    %v999 = vpop.f32.mrb[0].mxu0
    %v1000 = vadd.f32 0.0, %v999
    %v1001 = vpop.f32.mrb[0].mxu0
    %1002 = vmatprep.mubr.bf16.mxu0 0
    %1003 = vmatmul.mubr.bf16.gmra.mrb[0].mxu0 %v843
    %v1004 = vpop.f32.mrb[0].mxu0
    %v1005 = vadd.f32 0.0, %v1004
    %v1006 = vpop.f32.mrb[0].mxu0
    %v1007 = vpop.f32.mrb[0].mxu0
    %v1008 = vadd.f32 0.0, %v1007
    %v1009 = vpop.f32.mrb[0].mxu0
    %1010 = vmatprep.mubr.bf16.mxu0 0
    %1011 = vmatmul.mubr.bf16.gmra.mrb[0].mxu0 %v844
    %v1012 = vpop.f32.mrb[0].mxu0
    %v1013 = vadd.f32 0.0, %v1012
    %v1014 = vpop.f32.mrb[0].mxu0
    %v1015 = vpop.f32.mrb[0].mxu0
    %v1016 = vadd.f32 0.0, %v1015
    %v1017 = vpop.f32.mrb[0].mxu0
    %1018 = vmatprep.mubr.bf16.mxu0 0
    %1019 = vmatmul.mubr.bf16.gmra.mrb[0].mxu0 %v845
    %v1020 = vpop.f32.mrb[0].mxu0
    %v1021 = vadd.f32 0.0, %v1020
    %v1022 = vpop.f32.mrb[0].mxu0
    %v1023 = vpop.f32.mrb[0].mxu0
    %v1024 = vadd.f32 0.0, %v1023
    %v1025 = vpop.f32.mrb[0].mxu0
    %1026 = vmatprep.mubr.bf16.mxu0 0
    %1027 = vmatmul.mubr.bf16.gmra.mrb[0].mxu0 %v846
    %v1028 = vpop.f32.mrb[0].mxu0
    %v1029 = vadd.f32 0.0, %v1028
    %v1030 = vpop.f32.mrb[0].mxu0
    %v1031 = vpop.f32.mrb[0].mxu0
    %v1032 = vadd.f32 0.0, %v1031
    %v1033 = vpop.f32.mrb[0].mxu0
    %1034 = vmatprep.mubr.bf16.mxu0 0
    %1035 = vmatmul.mubr.bf16.gmra.mrb[0].mxu0 %v847
    %v1036 = vpop.f32.mrb[0].mxu0
    %v1037 = vadd.f32 0.0, %v1036
    %v1038 = vpop.f32.mrb[0].mxu0
    %v1039 = vpop.f32.mrb[0].mxu0
    %v1040 = vadd.f32 0.0, %v1039
    %v1041 = vpop.f32.mrb[0].mxu0
    %1042 = vmatprep.mubr.bf16.mxu0 0
    %1043 = vmatmul.mubr.bf16.gmra.mrb[0].mxu0 %v848
    %v1044 = vpop.f32.mrb[0].mxu0
    %v1045 = vadd.f32 0.0, %v1044
    %v1046 = vpop.f32.mrb[0].mxu0
    %v1047 = vpop.f32.mrb[0].mxu0
    %v1048 = vadd.f32 0.0, %v1047
    %v1049 = vpop.f32.mrb[0].mxu0
    %1050 = vdwg.mxu0
    %v1051 = vadd.f32 %v734, %v949
    %v1052 = vadd.f32 %v737, %v952
    %v1053 = vadd.f32 %v742, %v957
    %v1054 = vadd.f32 %v745, %v960
    %v1055 = vadd.f32 %v750, %v965
    %v1056 = vadd.f32 %v753, %v968
    %v1057 = vadd.f32 %v758, %v973
    %v1058 = vadd.f32 %v761, %v976
    %v1059 = vadd.f32 %v766, %v981
    %v1060 = vadd.f32 %v769, %v984
    %v1061 = vadd.f32 %v774, %v989
    %v1062 = vadd.f32 %v777, %v992
    %v1063 = vadd.f32 %v782, %v997
    %v1064 = vadd.f32 %v785, %v1000
    %v1065 = vadd.f32 %v790, %v1005
    %v1066 = vadd.f32 %v793, %v1008
    %v1067 = vadd.f32 %v798, %v1013
    %v1068 = vadd.f32 %v801, %v1016
    %v1069 = vadd.f32 %v806, %v1021
    %v1070 = vadd.f32 %v809, %v1024
    %v1071 = vadd.f32 %v814, %v1029
    %v1072 = vadd.f32 %v817, %v1032
    %v1073 = vadd.f32 %v822, %v1037
    %v1074 = vadd.f32 %v825, %v1040
    %v1075 = vadd.f32 %v830, %v1045
    %v1076 = vadd.f32 %v833, %v1048
    %v1077 = vld [vmem:[%s2] sm:$0x1]
    %v1079 = vlaneseq
    %v1080 = vshrl.u32 %v1079, 7
    %v1081 = vsub.s32 0, %v1080
    %v1082 = vrot.slane %v1077, %v1081
    %v1084 = vadd.f32 %v1051, %v1082
    %v1085 = vadd.f32 %v1052, %v1082
    %v1086 = vadd.f32 %v1053, %v1082
    %v1087 = vadd.f32 %v1054, %v1082
    %v1088 = vadd.f32 %v1055, %v1082
    %v1089 = vadd.f32 %v1056, %v1082
    %v1090 = vadd.f32 %v1057, %v1082
    %v1091 = vadd.f32 %v1058, %v1082
    %v1092 = vadd.f32 %v1059, %v1082
    %v1093 = vadd.f32 %v1060, %v1082
    %v1094 = vadd.f32 %v1061, %v1082
    %v1095 = vadd.f32 %v1062, %v1082
    %v1096 = vadd.f32 %v1063, %v1082
    %v1097 = vadd.f32 %v1064, %v1082
    %v1098 = vadd.f32 %v1065, %v1082
    %v1099 = vadd.f32 %v1066, %v1082
    %v1100 = vadd.f32 %v1067, %v1082
    %v1101 = vadd.f32 %v1068, %v1082
    %v1102 = vadd.f32 %v1069, %v1082
    %v1103 = vadd.f32 %v1070, %v1082
    %v1104 = vadd.f32 %v1071, %v1082
    %v1105 = vadd.f32 %v1072, %v1082
    %v1106 = vadd.f32 %v1073, %v1082
    %v1107 = vadd.f32 %v1074, %v1082
    %v1108 = vadd.f32 %v1075, %v1082
    %v1109 = vadd.f32 %v1076, %v1082
    %v1110 = vsel %vm249, 1, 0
    %v1111 = vsel %vm250, 1, 0
    %v1112 = vsel %vm251, 1, 0
    %v1113 = vsel %vm252, 1, 0
    %v1114 = vsel %vm253, 1, 0
    %v1115 = vsel %vm254, 1, 0
    %v1116 = vsel %vm255, 1, 0
    %v1117 = vsel %vm256, 1, 0
    %v1118 = vsel %vm257, 1, 0
    %v1119 = vsel %vm258, 1, 0
    %v1120 = vsel %vm259, 1, 0
    %v1121 = vsel %vm260, 1, 0
    %v1122 = vsel %vm261, 1, 0
    %v1123 = vsel %vm262, 1, 0
    %v1124 = vsel %vm263, 1, 0
    %v1125 = vsel %vm264, 1, 0
    %v1126 = vsel %vm265, 1, 0
    %v1127 = vsel %vm266, 1, 0
    %v1128 = vsel %vm267, 1, 0
    %v1129 = vsel %vm268, 1, 0
    %v1130 = vsel %vm269, 1, 0
    %v1131 = vsel %vm270, 1, 0
    %v1132 = vsel %vm271, 1, 0
    %v1133 = vsel %vm272, 1, 0
    %v1134 = vsel %vm273, 1, 0
    %v1135 = vsel %vm274, 1, 0
    %vm1136 = vcmp.eq.s32.totalorder %v1110, 1
    %vm1137 = vcmp.eq.s32.totalorder %v1111, 1
    %vm1138 = vcmp.eq.s32.totalorder %v1112, 1
    %vm1139 = vcmp.eq.s32.totalorder %v1113, 1
    %vm1140 = vcmp.eq.s32.totalorder %v1114, 1
    %vm1141 = vcmp.eq.s32.totalorder %v1115, 1
    %vm1142 = vcmp.eq.s32.totalorder %v1116, 1
    %vm1143 = vcmp.eq.s32.totalorder %v1117, 1
    %vm1144 = vcmp.eq.s32.totalorder %v1118, 1
    %vm1145 = vcmp.eq.s32.totalorder %v1119, 1
    %vm1146 = vcmp.eq.s32.totalorder %v1120, 1
    %vm1147 = vcmp.eq.s32.totalorder %v1121, 1
    %vm1148 = vcmp.eq.s32.totalorder %v1122, 1
    %vm1149 = vcmp.eq.s32.totalorder %v1123, 1
    %vm1150 = vcmp.eq.s32.totalorder %v1124, 1
    %vm1151 = vcmp.eq.s32.totalorder %v1125, 1
    %vm1152 = vcmp.eq.s32.totalorder %v1126, 1
    %vm1153 = vcmp.eq.s32.totalorder %v1127, 1
    %vm1154 = vcmp.eq.s32.totalorder %v1128, 1
    %vm1155 = vcmp.eq.s32.totalorder %v1129, 1
    %vm1156 = vcmp.eq.s32.totalorder %v1130, 1
    %vm1157 = vcmp.eq.s32.totalorder %v1131, 1
    %vm1158 = vcmp.eq.s32.totalorder %v1132, 1
    %vm1159 = vcmp.eq.s32.totalorder %v1133, 1
    %vm1160 = vcmp.eq.s32.totalorder %v1134, 1
    %vm1161 = vcmp.eq.s32.totalorder %v1135, 1
    %v1162 = vsel %vm1136, %v1084, 0.0
    %v1163 = vsel %vm1137, %v1085, 0.0
    %v1164 = vsel %vm1138, %v1086, 0.0
    %v1165 = vsel %vm1139, %v1087, 0.0
    %v1166 = vsel %vm1140, %v1088, 0.0
    %v1167 = vsel %vm1141, %v1089, 0.0
    %v1168 = vsel %vm1142, %v1090, 0.0
    %v1169 = vsel %vm1143, %v1091, 0.0
    %v1170 = vsel %vm1144, %v1092, 0.0
    %v1171 = vsel %vm1145, %v1093, 0.0
    %v1172 = vsel %vm1146, %v1094, 0.0
    %v1173 = vsel %vm1147, %v1095, 0.0
    %v1174 = vsel %vm1148, %v1096, 0.0
    %v1175 = vsel %vm1149, %v1097, 0.0
    %v1176 = vsel %vm1150, %v1098, 0.0
    %v1177 = vsel %vm1151, %v1099, 0.0
    %v1178 = vsel %vm1152, %v1100, 0.0
    %v1179 = vsel %vm1153, %v1101, 0.0
    %v1180 = vsel %vm1154, %v1102, 0.0
    %v1181 = vsel %vm1155, %v1103, 0.0
    %v1182 = vsel %vm1156, %v1104, 0.0
    %v1183 = vsel %vm1157, %v1105, 0.0
    %v1184 = vsel %vm1158, %v1106, 0.0
    %v1185 = vsel %vm1159, %v1107, 0.0
    %v1186 = vsel %vm1160, %v1108, 0.0
    %v1187 = vsel %vm1161, %v1109, 0.0
    %v1188 = vrot.slane %v1162, 7
    %v1189 = vrot.slane %v1163, 7
    %v1190 = vrot.slane %v1164, 7
    %v1191 = vrot.slane %v1165, 7
    %v1192 = vrot.slane %v1166, 7
    %v1193 = vrot.slane %v1167, 7
    %v1194 = vrot.slane %v1168, 7
    %v1195 = vrot.slane %v1169, 7
    %v1196 = vrot.slane %v1170, 7
    %v1197 = vrot.slane %v1171, 7
    %v1198 = vrot.slane %v1172, 7
    %v1199 = vrot.slane %v1173, 7
    %v1200 = vrot.slane %v1174, 7
    %v1201 = vrot.slane %v1175, 7
    %v1202 = vrot.slane %v1176, 7
    %v1203 = vrot.slane %v1177, 7
    %v1204 = vrot.slane %v1178, 7
    %v1205 = vrot.slane %v1179, 7
    %v1206 = vrot.slane %v1180, 7
    %v1207 = vrot.slane %v1181, 7
    %v1208 = vrot.slane %v1182, 7
    %v1209 = vrot.slane %v1183, 7
    %v1210 = vrot.slane %v1184, 7
    %v1211 = vrot.slane %v1185, 7
    %v1212 = vrot.slane %v1186, 7
    %v1213 = vrot.slane %v1187, 7
    %v1214 = vsel %vm327, %v1212, %v1213
    %v1215 = vsel %vm327, %v1211, %v1212
    %v1216 = vsel %vm327, %v1210, %v1211
    %v1217 = vsel %vm327, %v1209, %v1210
    %v1218 = vsel %vm327, %v1208, %v1209
    %v1219 = vsel %vm327, %v1207, %v1208
    %v1220 = vsel %vm327, %v1206, %v1207
    %v1221 = vsel %vm327, %v1205, %v1206
    %v1222 = vsel %vm327, %v1204, %v1205
    %v1223 = vsel %vm327, %v1203, %v1204
    %v1224 = vsel %vm327, %v1202, %v1203
    %v1225 = vsel %vm327, %v1201, %v1202
    %v1226 = vsel %vm327, %v1200, %v1201
    %v1227 = vsel %vm327, %v1199, %v1200
    %v1228 = vsel %vm327, %v1198, %v1199
    %v1229 = vsel %vm327, %v1197, %v1198
    %v1230 = vsel %vm327, %v1196, %v1197
    %v1231 = vsel %vm327, %v1195, %v1196
    %v1232 = vsel %vm327, %v1194, %v1195
    %v1233 = vsel %vm327, %v1193, %v1194
    %v1234 = vsel %vm327, %v1192, %v1193
    %v1235 = vsel %vm327, %v1191, %v1192
    %v1236 = vsel %vm327, %v1190, %v1191
    %v1237 = vsel %vm327, %v1189, %v1190
    %v1238 = vsel %vm327, %v1188, %v1189
    %v1239 = vsel %vm327, %v1213, %v1188
    %v1240 = vrot.slane %v1162, 1
    %v1241 = vrot.slane %v1163, 1
    %v1242 = vrot.slane %v1164, 1
    %v1243 = vrot.slane %v1165, 1
    %v1244 = vrot.slane %v1166, 1
    %v1245 = vrot.slane %v1167, 1
    %v1246 = vrot.slane %v1168, 1
    %v1247 = vrot.slane %v1169, 1
    %v1248 = vrot.slane %v1170, 1
    %v1249 = vrot.slane %v1171, 1
    %v1250 = vrot.slane %v1172, 1
    %v1251 = vrot.slane %v1173, 1
    %v1252 = vrot.slane %v1174, 1
    %v1253 = vrot.slane %v1175, 1
    %v1254 = vrot.slane %v1176, 1
    %v1255 = vrot.slane %v1177, 1
    %v1256 = vrot.slane %v1178, 1
    %v1257 = vrot.slane %v1179, 1
    %v1258 = vrot.slane %v1180, 1
    %v1259 = vrot.slane %v1181, 1
    %v1260 = vrot.slane %v1182, 1
    %v1261 = vrot.slane %v1183, 1
    %v1262 = vrot.slane %v1184, 1
    %v1263 = vrot.slane %v1185, 1
    %v1264 = vrot.slane %v1186, 1
    %v1265 = vrot.slane %v1187, 1
    %v1266 = vsel %vm380, %v1264, %v1265
    %v1267 = vsel %vm380, %v1263, %v1264
    %v1268 = vsel %vm380, %v1262, %v1263
    %v1269 = vsel %vm380, %v1261, %v1262
    %v1270 = vsel %vm380, %v1260, %v1261
    %v1271 = vsel %vm380, %v1259, %v1260
    %v1272 = vsel %vm380, %v1258, %v1259
    %v1273 = vsel %vm380, %v1257, %v1258
    %v1274 = vsel %vm380, %v1256, %v1257
    %v1275 = vsel %vm380, %v1255, %v1256
    %v1276 = vsel %vm380, %v1254, %v1255
    %v1277 = vsel %vm380, %v1253, %v1254
    %v1278 = vsel %vm380, %v1252, %v1253
    %v1279 = vsel %vm380, %v1251, %v1252
    %v1280 = vsel %vm380, %v1250, %v1251
    %v1281 = vsel %vm380, %v1249, %v1250
    %v1282 = vsel %vm380, %v1248, %v1249
    %v1283 = vsel %vm380, %v1247, %v1248
    %v1284 = vsel %vm380, %v1246, %v1247
    %v1285 = vsel %vm380, %v1245, %v1246
    %v1286 = vsel %vm380, %v1244, %v1245
    %v1287 = vsel %vm380, %v1243, %v1244
    %v1288 = vsel %vm380, %v1242, %v1243
    %v1289 = vsel %vm380, %v1241, %v1242
    %v1290 = vsel %vm380, %v1240, %v1241
    %v1291 = vsel %vm380, %v1265, %v1240
    %v1292 = vpack.c.bf16 %v1238, %v1239
    %v1293 = vpack.c.bf16 %v1236, %v1237
    %v1294 = vpack.c.bf16 %v1234, %v1235
    %v1295 = vpack.c.bf16 %v1232, %v1233
    %v1296 = vpack.c.bf16 %v1230, %v1231
    %v1297 = vpack.c.bf16 %v1228, %v1229
    %v1298 = vpack.c.bf16 %v1226, %v1227
    %v1299 = vpack.c.bf16 %v1224, %v1225
    %v1300 = vpack.c.bf16 %v1222, %v1223
    %v1301 = vpack.c.bf16 %v1220, %v1221
    %v1302 = vpack.c.bf16 %v1218, %v1219
    %v1303 = vpack.c.bf16 %v1216, %v1217
    %v1304 = vpack.c.bf16 %v1214, %v1215
    %v1305 = vld [vmem:[#allocation6] sm:$0xf]
    %v1306 = vld [vmem:[#allocation6 + $0x4] sm:$0xf]
    %v1307 = vld [vmem:[#allocation6 + $0x8] sm:$0xf]
    %v1308 = vld [vmem:[#allocation6 + $0xc] sm:$0xf]
    %v1309 = vld [vmem:[#allocation6 + $0x10] sm:$0xf]
    %v1310 = vld [vmem:[#allocation6 + $0x14] sm:$0xf]
    %v1311 = vld [vmem:[#allocation6 + $0x18] sm:$0xf]
    %v1312 = vld [vmem:[#allocation6 + $0x1c] sm:$0xf]
    %v1313 = vld [vmem:[#allocation6 + $0x20] sm:$0xf]
    %v1314 = vld [vmem:[#allocation6 + $0x24] sm:$0xf]
    %v1315 = vld [vmem:[#allocation6 + $0x28] sm:$0xf]
    %v1316 = vld [vmem:[#allocation6 + $0x2c] sm:$0xf]
    %v1317 = vld [vmem:[#allocation6 + $0x30] sm:$0xf]
    %v1318 = vld [vmem:[#allocation6 + $0x34] sm:$0xf]
    %v1319 = vld [vmem:[#allocation6 + $0x38] sm:$0xf]
    %v1320 = vld [vmem:[#allocation6 + $0x3c] sm:$0xf]
    %v1321 = vpack.c.bf16 %v1163, %v1162
    %v1322 = vpack.c.bf16 %v1165, %v1164
    %v1323 = vpack.c.bf16 %v1167, %v1166
    %v1324 = vpack.c.bf16 %v1169, %v1168
    %v1325 = vpack.c.bf16 %v1171, %v1170
    %v1326 = vpack.c.bf16 %v1173, %v1172
    %v1327 = vpack.c.bf16 %v1175, %v1174
    %v1328 = vpack.c.bf16 %v1177, %v1176
    %v1329 = vpack.c.bf16 %v1179, %v1178
    %v1330 = vpack.c.bf16 %v1181, %v1180
    %v1331 = vpack.c.bf16 %v1183, %v1182
    %v1332 = vpack.c.bf16 %v1185, %v1184
    %v1333 = vpack.c.bf16 %v1187, %v1186
    %s1334 = scalar_lea.vmem [#allocation6], 64
    %v1335 = vld [vmem:[%s1334] sm:$0xf]
    %v1336 = vld [vmem:[%s1334 + $0x4] sm:$0xf]
    %v1337 = vld [vmem:[%s1334 + $0x8] sm:$0xf]
    %v1338 = vld [vmem:[%s1334 + $0xc] sm:$0xf]
    %v1339 = vld [vmem:[%s1334 + $0x10] sm:$0xf]
    %v1340 = vld [vmem:[%s1334 + $0x14] sm:$0xf]
    %v1341 = vld [vmem:[%s1334 + $0x18] sm:$0xf]
    %v1342 = vld [vmem:[%s1334 + $0x1c] sm:$0xf]
    %v1343 = vld [vmem:[%s1334 + $0x20] sm:$0xf]
    %v1344 = vld [vmem:[%s1334 + $0x24] sm:$0xf]
    %v1345 = vld [vmem:[%s1334 + $0x28] sm:$0xf]
    %v1346 = vld [vmem:[%s1334 + $0x2c] sm:$0xf]
    %v1347 = vld [vmem:[%s1334 + $0x30] sm:$0xf]
    %v1348 = vld [vmem:[%s1334 + $0x34] sm:$0xf]
    %v1349 = vld [vmem:[%s1334 + $0x38] sm:$0xf]
    %v1350 = vld [vmem:[%s1334 + $0x3c] sm:$0xf]
    %v1367 = vunpack.c.l.b16 %v1335
    %v1368 = vunpack.c.l.b16 %v1336
    %v1369 = vunpack.c.l.b16 %v1337
    %v1370 = vunpack.c.l.b16 %v1338
    %v1371 = vunpack.c.l.b16 %v1339
    %v1372 = vunpack.c.l.b16 %v1340
    %v1373 = vunpack.c.l.b16 %v1341
    %v1374 = vunpack.c.l.b16 %v1342
    %v1375 = vunpack.c.l.b16 %v1343
    %v1376 = vunpack.c.l.b16 %v1344
    %v1377 = vunpack.c.l.b16 %v1345
    %v1378 = vunpack.c.l.b16 %v1346
    %v1379 = vunpack.c.l.b16 %v1347
    %v1380 = vunpack.c.l.b16 %v1348
    %v1381 = vunpack.c.l.b16 %v1349
    %v1382 = vunpack.c.l.b16 %v1350
    %v1383 = vpack.c.b16 %v1368, %v1367
    %v1384 = vpack.c.b16 %v1370, %v1369
    %v1385 = vpack.c.b16 %v1372, %v1371
    %v1386 = vpack.c.b16 %v1374, %v1373
    %v1387 = vpack.c.b16 %v1376, %v1375
    %v1388 = vpack.c.b16 %v1378, %v1377
    %v1389 = vpack.c.b16 %v1380, %v1379
    %v1390 = vpack.c.b16 %v1382, %v1381
    %1399 = vmatprep.subr.bf16.mxu0 0
    %1400 = vmatpush1.bf16.msra.mxu0 %v1383
    %1401 = vmatprep.subr.bf16.mxu0 0
    %1402 = vmatpush1.bf16.msra.mxu0 %v1384
    %1403 = vmatprep.subr.bf16.mxu0 0
    %1404 = vmatpush1.bf16.msra.mxu0 %v1385
    %1405 = vmatprep.subr.bf16.mxu0 0
    %1406 = vmatpush1.bf16.msra.mxu0 %v1386
    %1407 = vmatprep.subr.bf16.mxu0 0
    %1408 = vmatpush1.bf16.msra.mxu0 %v1387
    %1409 = vmatprep.subr.bf16.mxu0 0
    %1410 = vmatpush1.bf16.msra.mxu0 %v1388
    %1411 = vmatprep.subr.bf16.mxu0 0
    %1412 = vmatpush1.bf16.msra.mxu0 %v1389
    %1413 = vmatprep.subr.bf16.mxu0 0
    %1414 = vmatpush1.bf16.msra.mxu0 %v1390
    %1415 = vmatprep.subr.bf16.mxu0 0
    %1416 = vmatpush1.bf16.msra.mxu0 0
    %1417 = vmatprep.subr.bf16.mxu0 0
    %1418 = vmatpush1.bf16.msra.mxu0 0
    %1419 = vmatprep.subr.bf16.mxu0 0
    %1420 = vmatpush1.bf16.msra.mxu0 0
    %1421 = vmatprep.subr.bf16.mxu0 0
    %1422 = vmatpush1.bf16.msra.mxu0 0
    %1423 = vmatprep.subr.bf16.mxu0 0
    %1424 = vmatpush1.bf16.msra.mxu0 0
    %1425 = vmatprep.subr.bf16.mxu0 0
    %1426 = vmatpush1.bf16.msra.mxu0 0
    %1427 = vmatprep.subr.bf16.mxu0 0
    %1428 = vmatpush1.bf16.msra.mxu0 0
    %1429 = vmatprep.subr.bf16.mxu0 0
    %1430 = vmatpush1.bf16.msra.mxu0 0
    %1431 = vmatprep.mubr.bf16.mxu0 0
    %1432 = vmatmul.mubr.bf16.gmra.mrb[0].mxu0 %v1321
    %v1433 = vpop.f32.mrb[0].mxu0
    %v1434 = vadd.f32 0.0, %v1433
    %v1435 = vpop.f32.mrb[0].mxu0
    %v1436 = vpop.f32.mrb[0].mxu0
    %v1437 = vadd.f32 0.0, %v1436
    %v1438 = vpop.f32.mrb[0].mxu0
    %1439 = vmatprep.mubr.bf16.mxu0 0
    %1440 = vmatmul.mubr.bf16.gmra.mrb[0].mxu0 %v1322
    %v1441 = vpop.f32.mrb[0].mxu0
    %v1442 = vadd.f32 0.0, %v1441
    %v1443 = vpop.f32.mrb[0].mxu0
    %v1444 = vpop.f32.mrb[0].mxu0
    %v1445 = vadd.f32 0.0, %v1444
    %v1446 = vpop.f32.mrb[0].mxu0
    %1447 = vmatprep.mubr.bf16.mxu0 0
    %1448 = vmatmul.mubr.bf16.gmra.mrb[0].mxu0 %v1323
    %v1449 = vpop.f32.mrb[0].mxu0
    %v1450 = vadd.f32 0.0, %v1449
    %v1451 = vpop.f32.mrb[0].mxu0
    %v1452 = vpop.f32.mrb[0].mxu0
    %v1453 = vadd.f32 0.0, %v1452
    %v1454 = vpop.f32.mrb[0].mxu0
    %1455 = vmatprep.mubr.bf16.mxu0 0
    %1456 = vmatmul.mubr.bf16.gmra.mrb[0].mxu0 %v1324
    %v1457 = vpop.f32.mrb[0].mxu0
    %v1458 = vadd.f32 0.0, %v1457
    %v1459 = vpop.f32.mrb[0].mxu0
    %v1460 = vpop.f32.mrb[0].mxu0
    %v1461 = vadd.f32 0.0, %v1460
    %v1462 = vpop.f32.mrb[0].mxu0
    %1463 = vmatprep.mubr.bf16.mxu0 0
    %1464 = vmatmul.mubr.bf16.gmra.mrb[0].mxu0 %v1325
    %v1465 = vpop.f32.mrb[0].mxu0
    %v1466 = vadd.f32 0.0, %v1465
    %v1467 = vpop.f32.mrb[0].mxu0
    %v1468 = vpop.f32.mrb[0].mxu0
    %v1469 = vadd.f32 0.0, %v1468
    %v1470 = vpop.f32.mrb[0].mxu0
    %1471 = vmatprep.mubr.bf16.mxu0 0
    %1472 = vmatmul.mubr.bf16.gmra.mrb[0].mxu0 %v1326
    %v1473 = vpop.f32.mrb[0].mxu0
    %v1474 = vadd.f32 0.0, %v1473
    %v1475 = vpop.f32.mrb[0].mxu0
    %v1476 = vpop.f32.mrb[0].mxu0
    %v1477 = vadd.f32 0.0, %v1476
    %v1478 = vpop.f32.mrb[0].mxu0
    %1479 = vmatprep.mubr.bf16.mxu0 0
    %1480 = vmatmul.mubr.bf16.gmra.mrb[0].mxu0 %v1327
    %v1481 = vpop.f32.mrb[0].mxu0
    %v1482 = vadd.f32 0.0, %v1481
    %v1483 = vpop.f32.mrb[0].mxu0
    %v1484 = vpop.f32.mrb[0].mxu0
    %v1485 = vadd.f32 0.0, %v1484
    %v1486 = vpop.f32.mrb[0].mxu0
    %1487 = vmatprep.mubr.bf16.mxu0 0
    %1488 = vmatmul.mubr.bf16.gmra.mrb[0].mxu0 %v1328
    %v1489 = vpop.f32.mrb[0].mxu0
    %v1490 = vadd.f32 0.0, %v1489
    %v1491 = vpop.f32.mrb[0].mxu0
    %v1492 = vpop.f32.mrb[0].mxu0
    %v1493 = vadd.f32 0.0, %v1492
    %v1494 = vpop.f32.mrb[0].mxu0
    %1495 = vmatprep.mubr.bf16.mxu0 0
    %1496 = vmatmul.mubr.bf16.gmra.mrb[0].mxu0 %v1329
    %v1497 = vpop.f32.mrb[0].mxu0
    %v1498 = vadd.f32 0.0, %v1497
    %v1499 = vpop.f32.mrb[0].mxu0
    %v1500 = vpop.f32.mrb[0].mxu0
    %v1501 = vadd.f32 0.0, %v1500
    %v1502 = vpop.f32.mrb[0].mxu0
    %1503 = vmatprep.mubr.bf16.mxu0 0
    %1504 = vmatmul.mubr.bf16.gmra.mrb[0].mxu0 %v1330
    %v1505 = vpop.f32.mrb[0].mxu0
    %v1506 = vadd.f32 0.0, %v1505
    %v1507 = vpop.f32.mrb[0].mxu0
    %v1508 = vpop.f32.mrb[0].mxu0
    %v1509 = vadd.f32 0.0, %v1508
    %v1510 = vpop.f32.mrb[0].mxu0
    %1511 = vmatprep.mubr.bf16.mxu0 0
    %1512 = vmatmul.mubr.bf16.gmra.mrb[0].mxu0 %v1331
    %v1513 = vpop.f32.mrb[0].mxu0
    %v1514 = vadd.f32 0.0, %v1513
    %v1515 = vpop.f32.mrb[0].mxu0
    %v1516 = vpop.f32.mrb[0].mxu0
    %v1517 = vadd.f32 0.0, %v1516
    %v1518 = vpop.f32.mrb[0].mxu0
    %1519 = vmatprep.mubr.bf16.mxu0 0
    %1520 = vmatmul.mubr.bf16.gmra.mrb[0].mxu0 %v1332
    %v1521 = vpop.f32.mrb[0].mxu0
    %v1522 = vadd.f32 0.0, %v1521
    %v1523 = vpop.f32.mrb[0].mxu0
    %v1524 = vpop.f32.mrb[0].mxu0
    %v1525 = vadd.f32 0.0, %v1524
    %v1526 = vpop.f32.mrb[0].mxu0
    %1527 = vmatprep.mubr.bf16.mxu0 0
    %1528 = vmatmul.mubr.bf16.gmra.mrb[0].mxu0 %v1333
    %v1529 = vpop.f32.mrb[0].mxu0
    %v1530 = vadd.f32 0.0, %v1529
    %v1531 = vpop.f32.mrb[0].mxu0
    %v1532 = vpop.f32.mrb[0].mxu0
    %v1533 = vadd.f32 0.0, %v1532
    %v1534 = vpop.f32.mrb[0].mxu0
    %1535 = vdwg.mxu0
    %v1552 = vunpack.c.l.b16 %v1305
    %v1553 = vunpack.c.l.b16 %v1306
    %v1554 = vunpack.c.l.b16 %v1307
    %v1555 = vunpack.c.l.b16 %v1308
    %v1556 = vunpack.c.l.b16 %v1309
    %v1557 = vunpack.c.l.b16 %v1310
    %v1558 = vunpack.c.l.b16 %v1311
    %v1559 = vunpack.c.l.b16 %v1312
    %v1560 = vunpack.c.l.b16 %v1313
    %v1561 = vunpack.c.l.b16 %v1314
    %v1562 = vunpack.c.l.b16 %v1315
    %v1563 = vunpack.c.l.b16 %v1316
    %v1564 = vunpack.c.l.b16 %v1317
    %v1565 = vunpack.c.l.b16 %v1318
    %v1566 = vunpack.c.l.b16 %v1319
    %v1567 = vunpack.c.l.b16 %v1320
    %v1568 = vpack.c.b16 %v1553, %v1552
    %v1569 = vpack.c.b16 %v1555, %v1554
    %v1570 = vpack.c.b16 %v1557, %v1556
    %v1571 = vpack.c.b16 %v1559, %v1558
    %v1572 = vpack.c.b16 %v1561, %v1560
    %v1573 = vpack.c.b16 %v1563, %v1562
    %v1574 = vpack.c.b16 %v1565, %v1564
    %v1575 = vpack.c.b16 %v1567, %v1566
    %1584 = vmatprep.subr.bf16.mxu0 0
    %1585 = vmatpush1.bf16.msra.mxu0 %v1568
    %1586 = vmatprep.subr.bf16.mxu0 0
    %1587 = vmatpush1.bf16.msra.mxu0 %v1569
    %1588 = vmatprep.subr.bf16.mxu0 0
    %1589 = vmatpush1.bf16.msra.mxu0 %v1570
    %1590 = vmatprep.subr.bf16.mxu0 0
    %1591 = vmatpush1.bf16.msra.mxu0 %v1571
    %1592 = vmatprep.subr.bf16.mxu0 0
    %1593 = vmatpush1.bf16.msra.mxu0 %v1572
    %1594 = vmatprep.subr.bf16.mxu0 0
    %1595 = vmatpush1.bf16.msra.mxu0 %v1573
    %1596 = vmatprep.subr.bf16.mxu0 0
    %1597 = vmatpush1.bf16.msra.mxu0 %v1574
    %1598 = vmatprep.subr.bf16.mxu0 0
    %1599 = vmatpush1.bf16.msra.mxu0 %v1575
    %1600 = vmatprep.subr.bf16.mxu0 0
    %1601 = vmatpush1.bf16.msra.mxu0 0
    %1602 = vmatprep.subr.bf16.mxu0 0
    %1603 = vmatpush1.bf16.msra.mxu0 0
    %1604 = vmatprep.subr.bf16.mxu0 0
    %1605 = vmatpush1.bf16.msra.mxu0 0
    %1606 = vmatprep.subr.bf16.mxu0 0
    %1607 = vmatpush1.bf16.msra.mxu0 0
    %1608 = vmatprep.subr.bf16.mxu0 0
    %1609 = vmatpush1.bf16.msra.mxu0 0
    %1610 = vmatprep.subr.bf16.mxu0 0
    %1611 = vmatpush1.bf16.msra.mxu0 0
    %1612 = vmatprep.subr.bf16.mxu0 0
    %1613 = vmatpush1.bf16.msra.mxu0 0
    %1614 = vmatprep.subr.bf16.mxu0 0
    %1615 = vmatpush1.bf16.msra.mxu0 0
    %1616 = vmatprep.mubr.bf16.mxu0 0
    %1617 = vmatmul.mubr.bf16.gmra.mrb[0].mxu0 %v1292
    %v1618 = vpop.f32.mrb[0].mxu0
    %v1619 = vadd.f32 %v1434, %v1618
    %v1620 = vpop.f32.mrb[0].mxu0
    %v1621 = vpop.f32.mrb[0].mxu0
    %v1622 = vadd.f32 %v1437, %v1621
    %v1623 = vpop.f32.mrb[0].mxu0
    %1624 = vmatprep.mubr.bf16.mxu0 0
    %1625 = vmatmul.mubr.bf16.gmra.mrb[0].mxu0 %v1293
    %v1626 = vpop.f32.mrb[0].mxu0
    %v1627 = vadd.f32 %v1442, %v1626
    %v1628 = vpop.f32.mrb[0].mxu0
    %v1629 = vpop.f32.mrb[0].mxu0
    %v1630 = vadd.f32 %v1445, %v1629
    %v1631 = vpop.f32.mrb[0].mxu0
    %1632 = vmatprep.mubr.bf16.mxu0 0
    %1633 = vmatmul.mubr.bf16.gmra.mrb[0].mxu0 %v1294
    %v1634 = vpop.f32.mrb[0].mxu0
    %v1635 = vadd.f32 %v1450, %v1634
    %v1636 = vpop.f32.mrb[0].mxu0
    %v1637 = vpop.f32.mrb[0].mxu0
    %v1638 = vadd.f32 %v1453, %v1637
    %v1639 = vpop.f32.mrb[0].mxu0
    %1640 = vmatprep.mubr.bf16.mxu0 0
    %1641 = vmatmul.mubr.bf16.gmra.mrb[0].mxu0 %v1295
    %v1642 = vpop.f32.mrb[0].mxu0
    %v1643 = vadd.f32 %v1458, %v1642
    %v1644 = vpop.f32.mrb[0].mxu0
    %v1645 = vpop.f32.mrb[0].mxu0
    %v1646 = vadd.f32 %v1461, %v1645
    %v1647 = vpop.f32.mrb[0].mxu0
    %1648 = vmatprep.mubr.bf16.mxu0 0
    %1649 = vmatmul.mubr.bf16.gmra.mrb[0].mxu0 %v1296
    %v1650 = vpop.f32.mrb[0].mxu0
    %v1651 = vadd.f32 %v1466, %v1650
    %v1652 = vpop.f32.mrb[0].mxu0
    %v1653 = vpop.f32.mrb[0].mxu0
    %v1654 = vadd.f32 %v1469, %v1653
    %v1655 = vpop.f32.mrb[0].mxu0
    %1656 = vmatprep.mubr.bf16.mxu0 0
    %1657 = vmatmul.mubr.bf16.gmra.mrb[0].mxu0 %v1297
    %v1658 = vpop.f32.mrb[0].mxu0
    %v1659 = vadd.f32 %v1474, %v1658
    %v1660 = vpop.f32.mrb[0].mxu0
    %v1661 = vpop.f32.mrb[0].mxu0
    %v1662 = vadd.f32 %v1477, %v1661
    %v1663 = vpop.f32.mrb[0].mxu0
    %1664 = vmatprep.mubr.bf16.mxu0 0
    %1665 = vmatmul.mubr.bf16.gmra.mrb[0].mxu0 %v1298
    %v1666 = vpop.f32.mrb[0].mxu0
    %v1667 = vadd.f32 %v1482, %v1666
    %v1668 = vpop.f32.mrb[0].mxu0
    %v1669 = vpop.f32.mrb[0].mxu0
    %v1670 = vadd.f32 %v1485, %v1669
    %v1671 = vpop.f32.mrb[0].mxu0
    %1672 = vmatprep.mubr.bf16.mxu0 0
    %1673 = vmatmul.mubr.bf16.gmra.mrb[0].mxu0 %v1299
    %v1674 = vpop.f32.mrb[0].mxu0
    %v1675 = vadd.f32 %v1490, %v1674
    %v1676 = vpop.f32.mrb[0].mxu0
    %v1677 = vpop.f32.mrb[0].mxu0
    %v1678 = vadd.f32 %v1493, %v1677
    %v1679 = vpop.f32.mrb[0].mxu0
    %1680 = vmatprep.mubr.bf16.mxu0 0
    %1681 = vmatmul.mubr.bf16.gmra.mrb[0].mxu0 %v1300
    %v1682 = vpop.f32.mrb[0].mxu0
    %v1683 = vadd.f32 %v1498, %v1682
    %v1684 = vpop.f32.mrb[0].mxu0
    %v1685 = vpop.f32.mrb[0].mxu0
    %v1686 = vadd.f32 %v1501, %v1685
    %v1687 = vpop.f32.mrb[0].mxu0
    %1688 = vmatprep.mubr.bf16.mxu0 0
    %1689 = vmatmul.mubr.bf16.gmra.mrb[0].mxu0 %v1301
    %v1690 = vpop.f32.mrb[0].mxu0
    %v1691 = vadd.f32 %v1506, %v1690
    %v1692 = vpop.f32.mrb[0].mxu0
    %v1693 = vpop.f32.mrb[0].mxu0
    %v1694 = vadd.f32 %v1509, %v1693
    %v1695 = vpop.f32.mrb[0].mxu0
    %1696 = vmatprep.mubr.bf16.mxu0 0
    %1697 = vmatmul.mubr.bf16.gmra.mrb[0].mxu0 %v1302
    %v1698 = vpop.f32.mrb[0].mxu0
    %v1699 = vadd.f32 %v1514, %v1698
    %v1700 = vpop.f32.mrb[0].mxu0
    %v1701 = vpop.f32.mrb[0].mxu0
    %v1702 = vadd.f32 %v1517, %v1701
    %v1703 = vpop.f32.mrb[0].mxu0
    %1704 = vmatprep.mubr.bf16.mxu0 0
    %1705 = vmatmul.mubr.bf16.gmra.mrb[0].mxu0 %v1303
    %v1706 = vpop.f32.mrb[0].mxu0
    %v1707 = vadd.f32 %v1522, %v1706
    %v1708 = vpop.f32.mrb[0].mxu0
    %v1709 = vpop.f32.mrb[0].mxu0
    %v1710 = vadd.f32 %v1525, %v1709
    %v1711 = vpop.f32.mrb[0].mxu0
    %1712 = vmatprep.mubr.bf16.mxu0 0
    %1713 = vmatmul.mubr.bf16.gmra.mrb[0].mxu0 %v1304
    %v1714 = vpop.f32.mrb[0].mxu0
    %v1715 = vadd.f32 %v1530, %v1714
    %v1716 = vpop.f32.mrb[0].mxu0
    %v1717 = vpop.f32.mrb[0].mxu0
    %v1718 = vadd.f32 %v1533, %v1717
    %v1719 = vpop.f32.mrb[0].mxu0
    %1720 = vdwg.mxu0
    %v1721 = vpack.c.bf16 %v1289, %v1290
    %v1722 = vpack.c.bf16 %v1287, %v1288
    %v1723 = vpack.c.bf16 %v1285, %v1286
    %v1724 = vpack.c.bf16 %v1283, %v1284
    %v1725 = vpack.c.bf16 %v1281, %v1282
    %v1726 = vpack.c.bf16 %v1279, %v1280
    %v1727 = vpack.c.bf16 %v1277, %v1278
    %v1728 = vpack.c.bf16 %v1275, %v1276
    %v1729 = vpack.c.bf16 %v1273, %v1274
    %v1730 = vpack.c.bf16 %v1271, %v1272
    %v1731 = vpack.c.bf16 %v1269, %v1270
    %v1732 = vpack.c.bf16 %v1267, %v1268
    %v1733 = vpack.c.bf16 %v1291, %v1266
    %s1734 = scalar_lea.vmem [#allocation6], 128
    %v1735 = vld [vmem:[%s1734] sm:$0xf]
    %v1736 = vld [vmem:[%s1734 + $0x4] sm:$0xf]
    %v1737 = vld [vmem:[%s1734 + $0x8] sm:$0xf]
    %v1738 = vld [vmem:[%s1734 + $0xc] sm:$0xf]
    %v1739 = vld [vmem:[%s1734 + $0x10] sm:$0xf]
    %v1740 = vld [vmem:[%s1734 + $0x14] sm:$0xf]
    %v1741 = vld [vmem:[%s1734 + $0x18] sm:$0xf]
    %v1742 = vld [vmem:[%s1734 + $0x1c] sm:$0xf]
    %v1743 = vld [vmem:[%s1734 + $0x20] sm:$0xf]
    %v1744 = vld [vmem:[%s1734 + $0x24] sm:$0xf]
    %v1745 = vld [vmem:[%s1734 + $0x28] sm:$0xf]
    %v1746 = vld [vmem:[%s1734 + $0x2c] sm:$0xf]
    %v1747 = vld [vmem:[%s1734 + $0x30] sm:$0xf]
    %v1748 = vld [vmem:[%s1734 + $0x34] sm:$0xf]
    %v1749 = vld [vmem:[%s1734 + $0x38] sm:$0xf]
    %v1750 = vld [vmem:[%s1734 + $0x3c] sm:$0xf]
    %v1767 = vunpack.c.l.b16 %v1735
    %v1768 = vunpack.c.l.b16 %v1736
    %v1769 = vunpack.c.l.b16 %v1737
    %v1770 = vunpack.c.l.b16 %v1738
    %v1771 = vunpack.c.l.b16 %v1739
    %v1772 = vunpack.c.l.b16 %v1740
    %v1773 = vunpack.c.l.b16 %v1741
    %v1774 = vunpack.c.l.b16 %v1742
    %v1775 = vunpack.c.l.b16 %v1743
    %v1776 = vunpack.c.l.b16 %v1744
    %v1777 = vunpack.c.l.b16 %v1745
    %v1778 = vunpack.c.l.b16 %v1746
    %v1779 = vunpack.c.l.b16 %v1747
    %v1780 = vunpack.c.l.b16 %v1748
    %v1781 = vunpack.c.l.b16 %v1749
    %v1782 = vunpack.c.l.b16 %v1750
    %v1783 = vpack.c.b16 %v1768, %v1767
    %v1784 = vpack.c.b16 %v1770, %v1769
    %v1785 = vpack.c.b16 %v1772, %v1771
    %v1786 = vpack.c.b16 %v1774, %v1773
    %v1787 = vpack.c.b16 %v1776, %v1775
    %v1788 = vpack.c.b16 %v1778, %v1777
    %v1789 = vpack.c.b16 %v1780, %v1779
    %v1790 = vpack.c.b16 %v1782, %v1781
    %1799 = vmatprep.subr.bf16.mxu0 0
    %1800 = vmatpush1.bf16.msra.mxu0 %v1783
    %1801 = vmatprep.subr.bf16.mxu0 0
    %1802 = vmatpush1.bf16.msra.mxu0 %v1784
    %1803 = vmatprep.subr.bf16.mxu0 0
    %1804 = vmatpush1.bf16.msra.mxu0 %v1785
    %1805 = vmatprep.subr.bf16.mxu0 0
    %1806 = vmatpush1.bf16.msra.mxu0 %v1786
    %1807 = vmatprep.subr.bf16.mxu0 0
    %1808 = vmatpush1.bf16.msra.mxu0 %v1787
    %1809 = vmatprep.subr.bf16.mxu0 0
    %1810 = vmatpush1.bf16.msra.mxu0 %v1788
    %1811 = vmatprep.subr.bf16.mxu0 0
    %1812 = vmatpush1.bf16.msra.mxu0 %v1789
    %1813 = vmatprep.subr.bf16.mxu0 0
    %1814 = vmatpush1.bf16.msra.mxu0 %v1790
    %1815 = vmatprep.subr.bf16.mxu0 0
    %1816 = vmatpush1.bf16.msra.mxu0 0
    %1817 = vmatprep.subr.bf16.mxu0 0
    %1818 = vmatpush1.bf16.msra.mxu0 0
    %1819 = vmatprep.subr.bf16.mxu0 0
    %1820 = vmatpush1.bf16.msra.mxu0 0
    %1821 = vmatprep.subr.bf16.mxu0 0
    %1822 = vmatpush1.bf16.msra.mxu0 0
    %1823 = vmatprep.subr.bf16.mxu0 0
    %1824 = vmatpush1.bf16.msra.mxu0 0
    %1825 = vmatprep.subr.bf16.mxu0 0
    %1826 = vmatpush1.bf16.msra.mxu0 0
    %1827 = vmatprep.subr.bf16.mxu0 0
    %1828 = vmatpush1.bf16.msra.mxu0 0
    %1829 = vmatprep.subr.bf16.mxu0 0
    %1830 = vmatpush1.bf16.msra.mxu0 0
    %1831 = vmatprep.mubr.bf16.mxu0 0
    %1832 = vmatmul.mubr.bf16.gmra.mrb[0].mxu0 %v1721
    %v1833 = vpop.f32.mrb[0].mxu0
    %v1834 = vadd.f32 0.0, %v1833
    %v1835 = vpop.f32.mrb[0].mxu0
    %v1836 = vpop.f32.mrb[0].mxu0
    %v1837 = vadd.f32 0.0, %v1836
    %v1838 = vpop.f32.mrb[0].mxu0
    %1839 = vmatprep.mubr.bf16.mxu0 0
    %1840 = vmatmul.mubr.bf16.gmra.mrb[0].mxu0 %v1722
    %v1841 = vpop.f32.mrb[0].mxu0
    %v1842 = vadd.f32 0.0, %v1841
    %v1843 = vpop.f32.mrb[0].mxu0
    %v1844 = vpop.f32.mrb[0].mxu0
    %v1845 = vadd.f32 0.0, %v1844
    %v1846 = vpop.f32.mrb[0].mxu0
    %1847 = vmatprep.mubr.bf16.mxu0 0
    %1848 = vmatmul.mubr.bf16.gmra.mrb[0].mxu0 %v1723
    %v1849 = vpop.f32.mrb[0].mxu0
    %v1850 = vadd.f32 0.0, %v1849
    %v1851 = vpop.f32.mrb[0].mxu0
    %v1852 = vpop.f32.mrb[0].mxu0
    %v1853 = vadd.f32 0.0, %v1852
    %v1854 = vpop.f32.mrb[0].mxu0
    %1855 = vmatprep.mubr.bf16.mxu0 0
    %1856 = vmatmul.mubr.bf16.gmra.mrb[0].mxu0 %v1724
    %v1857 = vpop.f32.mrb[0].mxu0
    %v1858 = vadd.f32 0.0, %v1857
    %v1859 = vpop.f32.mrb[0].mxu0
    %v1860 = vpop.f32.mrb[0].mxu0
    %v1861 = vadd.f32 0.0, %v1860
    %v1862 = vpop.f32.mrb[0].mxu0
    %1863 = vmatprep.mubr.bf16.mxu0 0
    %1864 = vmatmul.mubr.bf16.gmra.mrb[0].mxu0 %v1725
    %v1865 = vpop.f32.mrb[0].mxu0
    %v1866 = vadd.f32 0.0, %v1865
    %v1867 = vpop.f32.mrb[0].mxu0
    %v1868 = vpop.f32.mrb[0].mxu0
    %v1869 = vadd.f32 0.0, %v1868
    %v1870 = vpop.f32.mrb[0].mxu0
    %1871 = vmatprep.mubr.bf16.mxu0 0
    %1872 = vmatmul.mubr.bf16.gmra.mrb[0].mxu0 %v1726
    %v1873 = vpop.f32.mrb[0].mxu0
    %v1874 = vadd.f32 0.0, %v1873
    %v1875 = vpop.f32.mrb[0].mxu0
    %v1876 = vpop.f32.mrb[0].mxu0
    %v1877 = vadd.f32 0.0, %v1876
    %v1878 = vpop.f32.mrb[0].mxu0
    %1879 = vmatprep.mubr.bf16.mxu0 0
    %1880 = vmatmul.mubr.bf16.gmra.mrb[0].mxu0 %v1727
    %v1881 = vpop.f32.mrb[0].mxu0
    %v1882 = vadd.f32 0.0, %v1881
    %v1883 = vpop.f32.mrb[0].mxu0
    %v1884 = vpop.f32.mrb[0].mxu0
    %v1885 = vadd.f32 0.0, %v1884
    %v1886 = vpop.f32.mrb[0].mxu0
    %1887 = vmatprep.mubr.bf16.mxu0 0
    %1888 = vmatmul.mubr.bf16.gmra.mrb[0].mxu0 %v1728
    %v1889 = vpop.f32.mrb[0].mxu0
    %v1890 = vadd.f32 0.0, %v1889
    %v1891 = vpop.f32.mrb[0].mxu0
    %v1892 = vpop.f32.mrb[0].mxu0
    %v1893 = vadd.f32 0.0, %v1892
    %v1894 = vpop.f32.mrb[0].mxu0
    %1895 = vmatprep.mubr.bf16.mxu0 0
    %1896 = vmatmul.mubr.bf16.gmra.mrb[0].mxu0 %v1729
    %v1897 = vpop.f32.mrb[0].mxu0
    %v1898 = vadd.f32 0.0, %v1897
    %v1899 = vpop.f32.mrb[0].mxu0
    %v1900 = vpop.f32.mrb[0].mxu0
    %v1901 = vadd.f32 0.0, %v1900
    %v1902 = vpop.f32.mrb[0].mxu0
    %1903 = vmatprep.mubr.bf16.mxu0 0
    %1904 = vmatmul.mubr.bf16.gmra.mrb[0].mxu0 %v1730
    %v1905 = vpop.f32.mrb[0].mxu0
    %v1906 = vadd.f32 0.0, %v1905
    %v1907 = vpop.f32.mrb[0].mxu0
    %v1908 = vpop.f32.mrb[0].mxu0
    %v1909 = vadd.f32 0.0, %v1908
    %v1910 = vpop.f32.mrb[0].mxu0
    %1911 = vmatprep.mubr.bf16.mxu0 0
    %1912 = vmatmul.mubr.bf16.gmra.mrb[0].mxu0 %v1731
    %v1913 = vpop.f32.mrb[0].mxu0
    %v1914 = vadd.f32 0.0, %v1913
    %v1915 = vpop.f32.mrb[0].mxu0
    %v1916 = vpop.f32.mrb[0].mxu0
    %v1917 = vadd.f32 0.0, %v1916
    %v1918 = vpop.f32.mrb[0].mxu0
    %1919 = vmatprep.mubr.bf16.mxu0 0
    %1920 = vmatmul.mubr.bf16.gmra.mrb[0].mxu0 %v1732
    %v1921 = vpop.f32.mrb[0].mxu0
    %v1922 = vadd.f32 0.0, %v1921
    %v1923 = vpop.f32.mrb[0].mxu0
    %v1924 = vpop.f32.mrb[0].mxu0
    %v1925 = vadd.f32 0.0, %v1924
    %v1926 = vpop.f32.mrb[0].mxu0
    %1927 = vmatprep.mubr.bf16.mxu0 0
    %1928 = vmatmul.mubr.bf16.gmra.mrb[0].mxu0 %v1733
    %v1929 = vpop.f32.mrb[0].mxu0
    %v1930 = vadd.f32 0.0, %v1929
    %v1931 = vpop.f32.mrb[0].mxu0
    %v1932 = vpop.f32.mrb[0].mxu0
    %v1933 = vadd.f32 0.0, %v1932
    %v1934 = vpop.f32.mrb[0].mxu0
    %1935 = vdwg.mxu0
    %v1936 = vadd.f32 %v1619, %v1834
    %v1937 = vadd.f32 %v1622, %v1837
    %v1938 = vadd.f32 %v1627, %v1842
    %v1939 = vadd.f32 %v1630, %v1845
    %v1940 = vadd.f32 %v1635, %v1850
    %v1941 = vadd.f32 %v1638, %v1853
    %v1942 = vadd.f32 %v1643, %v1858
    %v1943 = vadd.f32 %v1646, %v1861
    %v1944 = vadd.f32 %v1651, %v1866
    %v1945 = vadd.f32 %v1654, %v1869
    %v1946 = vadd.f32 %v1659, %v1874
    %v1947 = vadd.f32 %v1662, %v1877
    %v1948 = vadd.f32 %v1667, %v1882
    %v1949 = vadd.f32 %v1670, %v1885
    %v1950 = vadd.f32 %v1675, %v1890
    %v1951 = vadd.f32 %v1678, %v1893
    %v1952 = vadd.f32 %v1683, %v1898
    %v1953 = vadd.f32 %v1686, %v1901
    %v1954 = vadd.f32 %v1691, %v1906
    %v1955 = vadd.f32 %v1694, %v1909
    %v1956 = vadd.f32 %v1699, %v1914
    %v1957 = vadd.f32 %v1702, %v1917
    %v1958 = vadd.f32 %v1707, %v1922
    %v1959 = vadd.f32 %v1710, %v1925
    %v1960 = vadd.f32 %v1715, %v1930
    %v1961 = vadd.f32 %v1718, %v1933
    %v1962 = vld [vmem:[%s4] sm:$0x1]
    %v1964 = vlaneseq
    %v1965 = vshrl.u32 %v1964, 7
    %v1966 = vsub.s32 0, %v1965
    %v1967 = vrot.slane %v1962, %v1966
    %v1969 = vadd.f32 %v1936, %v1967
    %v1970 = vadd.f32 %v1937, %v1967
    %v1971 = vadd.f32 %v1938, %v1967
    %v1972 = vadd.f32 %v1939, %v1967
    %v1973 = vadd.f32 %v1940, %v1967
    %v1974 = vadd.f32 %v1941, %v1967
    %v1975 = vadd.f32 %v1942, %v1967
    %v1976 = vadd.f32 %v1943, %v1967
    %v1977 = vadd.f32 %v1944, %v1967
    %v1978 = vadd.f32 %v1945, %v1967
    %v1979 = vadd.f32 %v1946, %v1967
    %v1980 = vadd.f32 %v1947, %v1967
    %v1981 = vadd.f32 %v1948, %v1967
    %v1982 = vadd.f32 %v1949, %v1967
    %v1983 = vadd.f32 %v1950, %v1967
    %v1984 = vadd.f32 %v1951, %v1967
    %v1985 = vadd.f32 %v1952, %v1967
    %v1986 = vadd.f32 %v1953, %v1967
    %v1987 = vadd.f32 %v1954, %v1967
    %v1988 = vadd.f32 %v1955, %v1967
    %v1989 = vadd.f32 %v1956, %v1967
    %v1990 = vadd.f32 %v1957, %v1967
    %v1991 = vadd.f32 %v1958, %v1967
    %v1992 = vadd.f32 %v1959, %v1967
    %v1993 = vadd.f32 %v1960, %v1967
    %v1994 = vadd.f32 %v1961, %v1967
    %v1995 = vsel %vm1136, %v1969, 0.0
    %v1996 = vsel %vm1137, %v1970, 0.0
    %v1997 = vsel %vm1138, %v1971, 0.0
    %v1998 = vsel %vm1139, %v1972, 0.0
    %v1999 = vsel %vm1140, %v1973, 0.0
    %v2000 = vsel %vm1141, %v1974, 0.0
    %v2001 = vsel %vm1142, %v1975, 0.0
    %v2002 = vsel %vm1143, %v1976, 0.0
    %v2003 = vsel %vm1144, %v1977, 0.0
    %v2004 = vsel %vm1145, %v1978, 0.0
    %v2005 = vsel %vm1146, %v1979, 0.0
    %v2006 = vsel %vm1147, %v1980, 0.0
    %v2007 = vsel %vm1148, %v1981, 0.0
    %v2008 = vsel %vm1149, %v1982, 0.0
    %v2009 = vsel %vm1150, %v1983, 0.0
    %v2010 = vsel %vm1151, %v1984, 0.0
    %v2011 = vsel %vm1152, %v1985, 0.0
    %v2012 = vsel %vm1153, %v1986, 0.0
    %v2013 = vsel %vm1154, %v1987, 0.0
    %v2014 = vsel %vm1155, %v1988, 0.0
    %v2015 = vsel %vm1156, %v1989, 0.0
    %v2016 = vsel %vm1157, %v1990, 0.0
    %v2017 = vsel %vm1158, %v1991, 0.0
    %v2018 = vsel %vm1159, %v1992, 0.0
    %v2019 = vsel %vm1160, %v1993, 0.0
    %v2020 = vsel %vm1161, %v1994, 0.0
    %v2021 = vrot.slane %v1995, 7
    %v2022 = vrot.slane %v1996, 7
    %v2023 = vrot.slane %v1997, 7
    %v2024 = vrot.slane %v1998, 7
    %v2025 = vrot.slane %v1999, 7
    %v2026 = vrot.slane %v2000, 7
    %v2027 = vrot.slane %v2001, 7
    %v2028 = vrot.slane %v2002, 7
    %v2029 = vrot.slane %v2003, 7
    %v2030 = vrot.slane %v2004, 7
    %v2031 = vrot.slane %v2005, 7
    %v2032 = vrot.slane %v2006, 7
    %v2033 = vrot.slane %v2007, 7
    %v2034 = vrot.slane %v2008, 7
    %v2035 = vrot.slane %v2009, 7
    %v2036 = vrot.slane %v2010, 7
    %v2037 = vrot.slane %v2011, 7
    %v2038 = vrot.slane %v2012, 7
    %v2039 = vrot.slane %v2013, 7
    %v2040 = vrot.slane %v2014, 7
    %v2041 = vrot.slane %v2015, 7
    %v2042 = vrot.slane %v2016, 7
    %v2043 = vrot.slane %v2017, 7
    %v2044 = vrot.slane %v2018, 7
    %v2045 = vrot.slane %v2019, 7
    %v2046 = vrot.slane %v2020, 7
    %v2047 = vsel %vm327, %v2045, %v2046
    %v2048 = vsel %vm327, %v2044, %v2045
    %v2049 = vsel %vm327, %v2043, %v2044
    %v2050 = vsel %vm327, %v2042, %v2043
    %v2051 = vsel %vm327, %v2041, %v2042
    %v2052 = vsel %vm327, %v2040, %v2041
    %v2053 = vsel %vm327, %v2039, %v2040
    %v2054 = vsel %vm327, %v2038, %v2039
    %v2055 = vsel %vm327, %v2037, %v2038
    %v2056 = vsel %vm327, %v2036, %v2037
    %v2057 = vsel %vm327, %v2035, %v2036
    %v2058 = vsel %vm327, %v2034, %v2035
    %v2059 = vsel %vm327, %v2033, %v2034
    %v2060 = vsel %vm327, %v2032, %v2033
    %v2061 = vsel %vm327, %v2031, %v2032
    %v2062 = vsel %vm327, %v2030, %v2031
    %v2063 = vsel %vm327, %v2029, %v2030
    %v2064 = vsel %vm327, %v2028, %v2029
    %v2065 = vsel %vm327, %v2027, %v2028
    %v2066 = vsel %vm327, %v2026, %v2027
    %v2067 = vsel %vm327, %v2025, %v2026
    %v2068 = vsel %vm327, %v2024, %v2025
    %v2069 = vsel %vm327, %v2023, %v2024
    %v2070 = vsel %vm327, %v2022, %v2023
    %v2071 = vsel %vm327, %v2021, %v2022
    %v2072 = vsel %vm327, %v2046, %v2021
    %v2073 = vrot.slane %v1995, 1
    %v2074 = vrot.slane %v1996, 1
    %v2075 = vrot.slane %v1997, 1
    %v2076 = vrot.slane %v1998, 1
    %v2077 = vrot.slane %v1999, 1
    %v2078 = vrot.slane %v2000, 1
    %v2079 = vrot.slane %v2001, 1
    %v2080 = vrot.slane %v2002, 1
    %v2081 = vrot.slane %v2003, 1
    %v2082 = vrot.slane %v2004, 1
    %v2083 = vrot.slane %v2005, 1
    %v2084 = vrot.slane %v2006, 1
    %v2085 = vrot.slane %v2007, 1
    %v2086 = vrot.slane %v2008, 1
    %v2087 = vrot.slane %v2009, 1
    %v2088 = vrot.slane %v2010, 1
    %v2089 = vrot.slane %v2011, 1
    %v2090 = vrot.slane %v2012, 1
    %v2091 = vrot.slane %v2013, 1
    %v2092 = vrot.slane %v2014, 1
    %v2093 = vrot.slane %v2015, 1
    %v2094 = vrot.slane %v2016, 1
    %v2095 = vrot.slane %v2017, 1
    %v2096 = vrot.slane %v2018, 1
    %v2097 = vrot.slane %v2019, 1
    %v2098 = vrot.slane %v2020, 1
    %v2099 = vsel %vm380, %v2097, %v2098
    %v2100 = vsel %vm380, %v2096, %v2097
    %v2101 = vsel %vm380, %v2095, %v2096
    %v2102 = vsel %vm380, %v2094, %v2095
    %v2103 = vsel %vm380, %v2093, %v2094
    %v2104 = vsel %vm380, %v2092, %v2093
    %v2105 = vsel %vm380, %v2091, %v2092
    %v2106 = vsel %vm380, %v2090, %v2091
    %v2107 = vsel %vm380, %v2089, %v2090
    %v2108 = vsel %vm380, %v2088, %v2089
    %v2109 = vsel %vm380, %v2087, %v2088
    %v2110 = vsel %vm380, %v2086, %v2087
    %v2111 = vsel %vm380, %v2085, %v2086
    %v2112 = vsel %vm380, %v2084, %v2085
    %v2113 = vsel %vm380, %v2083, %v2084
    %v2114 = vsel %vm380, %v2082, %v2083
    %v2115 = vsel %vm380, %v2081, %v2082
    %v2116 = vsel %vm380, %v2080, %v2081
    %v2117 = vsel %vm380, %v2079, %v2080
    %v2118 = vsel %vm380, %v2078, %v2079
    %v2119 = vsel %vm380, %v2077, %v2078
    %v2120 = vsel %vm380, %v2076, %v2077
    %v2121 = vsel %vm380, %v2075, %v2076
    %v2122 = vsel %vm380, %v2074, %v2075
    %v2123 = vsel %vm380, %v2073, %v2074
    %v2124 = vsel %vm380, %v2098, %v2073
    %v2125 = vpack.c.bf16 %v2071, %v2072
    %v2126 = vpack.c.bf16 %v2069, %v2070
    %v2127 = vpack.c.bf16 %v2067, %v2068
    %v2128 = vpack.c.bf16 %v2065, %v2066
    %v2129 = vpack.c.bf16 %v2063, %v2064
    %v2130 = vpack.c.bf16 %v2061, %v2062
    %v2131 = vpack.c.bf16 %v2059, %v2060
    %v2132 = vpack.c.bf16 %v2057, %v2058
    %v2133 = vpack.c.bf16 %v2055, %v2056
    %v2134 = vpack.c.bf16 %v2053, %v2054
    %v2135 = vpack.c.bf16 %v2051, %v2052
    %v2136 = vpack.c.bf16 %v2049, %v2050
    %v2137 = vpack.c.bf16 %v2047, %v2048
    %v2138 = vld [vmem:[#allocation7] sm:$0xff]
    %v2139 = vld [vmem:[#allocation7 + $0x8] sm:$0xff]
    %v2140 = vld [vmem:[#allocation7 + $0x10] sm:$0xff]
    %v2141 = vld [vmem:[#allocation7 + $0x18] sm:$0xff]
    %v2142 = vld [vmem:[#allocation7 + $0x20] sm:$0xff]
    %v2143 = vld [vmem:[#allocation7 + $0x28] sm:$0xff]
    %v2144 = vld [vmem:[#allocation7 + $0x30] sm:$0xff]
    %v2145 = vld [vmem:[#allocation7 + $0x38] sm:$0xff]
    %v2146 = vld [vmem:[#allocation7 + $0x40] sm:$0xff]
    %v2147 = vld [vmem:[#allocation7 + $0x48] sm:$0xff]
    %v2148 = vld [vmem:[#allocation7 + $0x50] sm:$0xff]
    %v2149 = vld [vmem:[#allocation7 + $0x58] sm:$0xff]
    %v2150 = vld [vmem:[#allocation7 + $0x60] sm:$0xff]
    %v2151 = vld [vmem:[#allocation7 + $0x68] sm:$0xff]
    %v2152 = vld [vmem:[#allocation7 + $0x70] sm:$0xff]
    %v2153 = vld [vmem:[#allocation7 + $0x78] sm:$0xff]
    %v2154 = vpack.c.bf16 %v1996, %v1995
    %v2155 = vpack.c.bf16 %v1998, %v1997
    %v2156 = vpack.c.bf16 %v2000, %v1999
    %v2157 = vpack.c.bf16 %v2002, %v2001
    %v2158 = vpack.c.bf16 %v2004, %v2003
    %v2159 = vpack.c.bf16 %v2006, %v2005
    %v2160 = vpack.c.bf16 %v2008, %v2007
    %v2161 = vpack.c.bf16 %v2010, %v2009
    %v2162 = vpack.c.bf16 %v2012, %v2011
    %v2163 = vpack.c.bf16 %v2014, %v2013
    %v2164 = vpack.c.bf16 %v2016, %v2015
    %v2165 = vpack.c.bf16 %v2018, %v2017
    %v2166 = vpack.c.bf16 %v2020, %v2019
    %s2167 = scalar_lea.vmem [#allocation7], 128
    %v2168 = vld [vmem:[%s2167] sm:$0xff]
    %v2169 = vld [vmem:[%s2167 + $0x8] sm:$0xff]
    %v2170 = vld [vmem:[%s2167 + $0x10] sm:$0xff]
    %v2171 = vld [vmem:[%s2167 + $0x18] sm:$0xff]
    %v2172 = vld [vmem:[%s2167 + $0x20] sm:$0xff]
    %v2173 = vld [vmem:[%s2167 + $0x28] sm:$0xff]
    %v2174 = vld [vmem:[%s2167 + $0x30] sm:$0xff]
    %v2175 = vld [vmem:[%s2167 + $0x38] sm:$0xff]
    %v2176 = vld [vmem:[%s2167 + $0x40] sm:$0xff]
    %v2177 = vld [vmem:[%s2167 + $0x48] sm:$0xff]
    %v2178 = vld [vmem:[%s2167 + $0x50] sm:$0xff]
    %v2179 = vld [vmem:[%s2167 + $0x58] sm:$0xff]
    %v2180 = vld [vmem:[%s2167 + $0x60] sm:$0xff]
    %v2181 = vld [vmem:[%s2167 + $0x68] sm:$0xff]
    %v2182 = vld [vmem:[%s2167 + $0x70] sm:$0xff]
    %v2183 = vld [vmem:[%s2167 + $0x78] sm:$0xff]
    %v2200 = vunpack.c.l.b16 %v2168
    %v2201 = vunpack.c.h.b16 %v2168
    %v2202 = vunpack.c.l.b16 %v2169
    %v2203 = vunpack.c.h.b16 %v2169
    %v2204 = vunpack.c.l.b16 %v2170
    %v2205 = vunpack.c.h.b16 %v2170
    %v2206 = vunpack.c.l.b16 %v2171
    %v2207 = vunpack.c.h.b16 %v2171
    %v2208 = vunpack.c.l.b16 %v2172
    %v2209 = vunpack.c.h.b16 %v2172
    %v2210 = vunpack.c.l.b16 %v2173
    %v2211 = vunpack.c.h.b16 %v2173
    %v2212 = vunpack.c.l.b16 %v2174
    %v2213 = vunpack.c.h.b16 %v2174
    %v2214 = vunpack.c.l.b16 %v2175
    %v2215 = vunpack.c.h.b16 %v2175
    %v2216 = vunpack.c.l.b16 %v2176
    %v2217 = vunpack.c.h.b16 %v2176
    %v2218 = vunpack.c.l.b16 %v2177
    %v2219 = vunpack.c.h.b16 %v2177
    %v2220 = vunpack.c.l.b16 %v2178
    %v2221 = vunpack.c.h.b16 %v2178
    %v2222 = vunpack.c.l.b16 %v2179
    %v2223 = vunpack.c.h.b16 %v2179
    %v2224 = vunpack.c.l.b16 %v2180
    %v2225 = vunpack.c.h.b16 %v2180
    %v2226 = vunpack.c.l.b16 %v2181
    %v2227 = vunpack.c.h.b16 %v2181
    %v2228 = vunpack.c.l.b16 %v2182
    %v2229 = vunpack.c.h.b16 %v2182
    %v2230 = vunpack.c.l.b16 %v2183
    %v2231 = vunpack.c.h.b16 %v2183
    %v2232 = vpack.c.b16 %v2202, %v2200
    %v2233 = vpack.c.b16 %v2203, %v2201
    %v2234 = vpack.c.b16 %v2206, %v2204
    %v2235 = vpack.c.b16 %v2207, %v2205
    %v2236 = vpack.c.b16 %v2210, %v2208
    %v2237 = vpack.c.b16 %v2211, %v2209
    %v2238 = vpack.c.b16 %v2214, %v2212
    %v2239 = vpack.c.b16 %v2215, %v2213
    %v2240 = vpack.c.b16 %v2218, %v2216
    %v2241 = vpack.c.b16 %v2219, %v2217
    %v2242 = vpack.c.b16 %v2222, %v2220
    %v2243 = vpack.c.b16 %v2223, %v2221
    %v2244 = vpack.c.b16 %v2226, %v2224
    %v2245 = vpack.c.b16 %v2227, %v2225
    %v2246 = vpack.c.b16 %v2230, %v2228
    %v2247 = vpack.c.b16 %v2231, %v2229
    %2264 = vmatprep.subr.bf16.mxu0 %v2233
    %2265 = vmatpush1.bf16.msra.mxu0 %v2232
    %2266 = vmatprep.subr.bf16.mxu0 %v2235
    %2267 = vmatpush1.bf16.msra.mxu0 %v2234
    %2268 = vmatprep.subr.bf16.mxu0 %v2237
    %2269 = vmatpush1.bf16.msra.mxu0 %v2236
    %2270 = vmatprep.subr.bf16.mxu0 %v2239
    %2271 = vmatpush1.bf16.msra.mxu0 %v2238
    %2272 = vmatprep.subr.bf16.mxu0 %v2241
    %2273 = vmatpush1.bf16.msra.mxu0 %v2240
    %2274 = vmatprep.subr.bf16.mxu0 %v2243
    %2275 = vmatpush1.bf16.msra.mxu0 %v2242
    %2276 = vmatprep.subr.bf16.mxu0 %v2245
    %2277 = vmatpush1.bf16.msra.mxu0 %v2244
    %2278 = vmatprep.subr.bf16.mxu0 %v2247
    %2279 = vmatpush1.bf16.msra.mxu0 %v2246
    %2280 = vmatprep.subr.bf16.mxu0 0
    %2281 = vmatpush1.bf16.msra.mxu0 0
    %2282 = vmatprep.subr.bf16.mxu0 0
    %2283 = vmatpush1.bf16.msra.mxu0 0
    %2284 = vmatprep.subr.bf16.mxu0 0
    %2285 = vmatpush1.bf16.msra.mxu0 0
    %2286 = vmatprep.subr.bf16.mxu0 0
    %2287 = vmatpush1.bf16.msra.mxu0 0
    %2288 = vmatprep.subr.bf16.mxu0 0
    %2289 = vmatpush1.bf16.msra.mxu0 0
    %2290 = vmatprep.subr.bf16.mxu0 0
    %2291 = vmatpush1.bf16.msra.mxu0 0
    %2292 = vmatprep.subr.bf16.mxu0 0
    %2293 = vmatpush1.bf16.msra.mxu0 0
    %2294 = vmatprep.subr.bf16.mxu0 0
    %2295 = vmatpush1.bf16.msra.mxu0 0
    %2296 = vmatprep.mubr.bf16.mxu0 0
    %2297 = vmatmul.mubr.bf16.gmra.mrb[0].mxu0 %v2154
    %v2298 = vpop.f32.mrb[0].mxu0
    %v2299 = vadd.f32 0.0, %v2298
    %v2300 = vpop.f32.mrb[0].mxu0
    %v2301 = vadd.f32 0.0, %v2300
    %v2302 = vpop.f32.mrb[0].mxu0
    %v2303 = vadd.f32 0.0, %v2302
    %v2304 = vpop.f32.mrb[0].mxu0
    %v2305 = vadd.f32 0.0, %v2304
    %2306 = vmatprep.mubr.bf16.mxu0 0
    %2307 = vmatmul.mubr.bf16.gmra.mrb[0].mxu0 %v2155
    %v2308 = vpop.f32.mrb[0].mxu0
    %v2309 = vadd.f32 0.0, %v2308
    %v2310 = vpop.f32.mrb[0].mxu0
    %v2311 = vadd.f32 0.0, %v2310
    %v2312 = vpop.f32.mrb[0].mxu0
    %v2313 = vadd.f32 0.0, %v2312
    %v2314 = vpop.f32.mrb[0].mxu0
    %v2315 = vadd.f32 0.0, %v2314
    %2316 = vmatprep.mubr.bf16.mxu0 0
    %2317 = vmatmul.mubr.bf16.gmra.mrb[0].mxu0 %v2156
    %v2318 = vpop.f32.mrb[0].mxu0
    %v2319 = vadd.f32 0.0, %v2318
    %v2320 = vpop.f32.mrb[0].mxu0
    %v2321 = vadd.f32 0.0, %v2320
    %v2322 = vpop.f32.mrb[0].mxu0
    %v2323 = vadd.f32 0.0, %v2322
    %v2324 = vpop.f32.mrb[0].mxu0
    %v2325 = vadd.f32 0.0, %v2324
    %2326 = vmatprep.mubr.bf16.mxu0 0
    %2327 = vmatmul.mubr.bf16.gmra.mrb[0].mxu0 %v2157
    %v2328 = vpop.f32.mrb[0].mxu0
    %v2329 = vadd.f32 0.0, %v2328
    %v2330 = vpop.f32.mrb[0].mxu0
    %v2331 = vadd.f32 0.0, %v2330
    %v2332 = vpop.f32.mrb[0].mxu0
    %v2333 = vadd.f32 0.0, %v2332
    %v2334 = vpop.f32.mrb[0].mxu0
    %v2335 = vadd.f32 0.0, %v2334
    %2336 = vmatprep.mubr.bf16.mxu0 0
    %2337 = vmatmul.mubr.bf16.gmra.mrb[0].mxu0 %v2158
    %v2338 = vpop.f32.mrb[0].mxu0
    %v2339 = vadd.f32 0.0, %v2338
    %v2340 = vpop.f32.mrb[0].mxu0
    %v2341 = vadd.f32 0.0, %v2340
    %v2342 = vpop.f32.mrb[0].mxu0
    %v2343 = vadd.f32 0.0, %v2342
    %v2344 = vpop.f32.mrb[0].mxu0
    %v2345 = vadd.f32 0.0, %v2344
    %2346 = vmatprep.mubr.bf16.mxu0 0
    %2347 = vmatmul.mubr.bf16.gmra.mrb[0].mxu0 %v2159
    %v2348 = vpop.f32.mrb[0].mxu0
    %v2349 = vadd.f32 0.0, %v2348
    %v2350 = vpop.f32.mrb[0].mxu0
    %v2351 = vadd.f32 0.0, %v2350
    %v2352 = vpop.f32.mrb[0].mxu0
    %v2353 = vadd.f32 0.0, %v2352
    %v2354 = vpop.f32.mrb[0].mxu0
    %v2355 = vadd.f32 0.0, %v2354
    %2356 = vmatprep.mubr.bf16.mxu0 0
    %2357 = vmatmul.mubr.bf16.gmra.mrb[0].mxu0 %v2160
    %v2358 = vpop.f32.mrb[0].mxu0
    %v2359 = vadd.f32 0.0, %v2358
    %v2360 = vpop.f32.mrb[0].mxu0
    %v2361 = vadd.f32 0.0, %v2360
    %v2362 = vpop.f32.mrb[0].mxu0
    %v2363 = vadd.f32 0.0, %v2362
    %v2364 = vpop.f32.mrb[0].mxu0
    %v2365 = vadd.f32 0.0, %v2364
    %2366 = vmatprep.mubr.bf16.mxu0 0
    %2367 = vmatmul.mubr.bf16.gmra.mrb[0].mxu0 %v2161
    %v2368 = vpop.f32.mrb[0].mxu0
    %v2369 = vadd.f32 0.0, %v2368
    %v2370 = vpop.f32.mrb[0].mxu0
    %v2371 = vadd.f32 0.0, %v2370
    %v2372 = vpop.f32.mrb[0].mxu0
    %v2373 = vadd.f32 0.0, %v2372
    %v2374 = vpop.f32.mrb[0].mxu0
    %v2375 = vadd.f32 0.0, %v2374
    %2376 = vmatprep.mubr.bf16.mxu0 0
    %2377 = vmatmul.mubr.bf16.gmra.mrb[0].mxu0 %v2162
    %v2378 = vpop.f32.mrb[0].mxu0
    %v2379 = vadd.f32 0.0, %v2378
    %v2380 = vpop.f32.mrb[0].mxu0
    %v2381 = vadd.f32 0.0, %v2380
    %v2382 = vpop.f32.mrb[0].mxu0
    %v2383 = vadd.f32 0.0, %v2382
    %v2384 = vpop.f32.mrb[0].mxu0
    %v2385 = vadd.f32 0.0, %v2384
    %2386 = vmatprep.mubr.bf16.mxu0 0
    %2387 = vmatmul.mubr.bf16.gmra.mrb[0].mxu0 %v2163
    %v2388 = vpop.f32.mrb[0].mxu0
    %v2389 = vadd.f32 0.0, %v2388
    %v2390 = vpop.f32.mrb[0].mxu0
    %v2391 = vadd.f32 0.0, %v2390
    %v2392 = vpop.f32.mrb[0].mxu0
    %v2393 = vadd.f32 0.0, %v2392
    %v2394 = vpop.f32.mrb[0].mxu0
    %v2395 = vadd.f32 0.0, %v2394
    %2396 = vmatprep.mubr.bf16.mxu0 0
    %2397 = vmatmul.mubr.bf16.gmra.mrb[0].mxu0 %v2164
    %v2398 = vpop.f32.mrb[0].mxu0
    %v2399 = vadd.f32 0.0, %v2398
    %v2400 = vpop.f32.mrb[0].mxu0
    %v2401 = vadd.f32 0.0, %v2400
    %v2402 = vpop.f32.mrb[0].mxu0
    %v2403 = vadd.f32 0.0, %v2402
    %v2404 = vpop.f32.mrb[0].mxu0
    %v2405 = vadd.f32 0.0, %v2404
    %2406 = vmatprep.mubr.bf16.mxu0 0
    %2407 = vmatmul.mubr.bf16.gmra.mrb[0].mxu0 %v2165
    %v2408 = vpop.f32.mrb[0].mxu0
    %v2409 = vadd.f32 0.0, %v2408
    %v2410 = vpop.f32.mrb[0].mxu0
    %v2411 = vadd.f32 0.0, %v2410
    %v2412 = vpop.f32.mrb[0].mxu0
    %v2413 = vadd.f32 0.0, %v2412
    %v2414 = vpop.f32.mrb[0].mxu0
    %v2415 = vadd.f32 0.0, %v2414
    %2416 = vmatprep.mubr.bf16.mxu0 0
    %2417 = vmatmul.mubr.bf16.gmra.mrb[0].mxu0 %v2166
    %v2418 = vpop.f32.mrb[0].mxu0
    %v2419 = vadd.f32 0.0, %v2418
    %v2420 = vpop.f32.mrb[0].mxu0
    %v2421 = vadd.f32 0.0, %v2420
    %v2422 = vpop.f32.mrb[0].mxu0
    %v2423 = vadd.f32 0.0, %v2422
    %v2424 = vpop.f32.mrb[0].mxu0
    %v2425 = vadd.f32 0.0, %v2424
    %2426 = vdwg.mxu0
    %v2443 = vunpack.c.l.b16 %v2138
    %v2444 = vunpack.c.h.b16 %v2138
    %v2445 = vunpack.c.l.b16 %v2139
    %v2446 = vunpack.c.h.b16 %v2139
    %v2447 = vunpack.c.l.b16 %v2140
    %v2448 = vunpack.c.h.b16 %v2140
    %v2449 = vunpack.c.l.b16 %v2141
    %v2450 = vunpack.c.h.b16 %v2141
    %v2451 = vunpack.c.l.b16 %v2142
    %v2452 = vunpack.c.h.b16 %v2142
    %v2453 = vunpack.c.l.b16 %v2143
    %v2454 = vunpack.c.h.b16 %v2143
    %v2455 = vunpack.c.l.b16 %v2144
    %v2456 = vunpack.c.h.b16 %v2144
    %v2457 = vunpack.c.l.b16 %v2145
    %v2458 = vunpack.c.h.b16 %v2145
    %v2459 = vunpack.c.l.b16 %v2146
    %v2460 = vunpack.c.h.b16 %v2146
    %v2461 = vunpack.c.l.b16 %v2147
    %v2462 = vunpack.c.h.b16 %v2147
    %v2463 = vunpack.c.l.b16 %v2148
    %v2464 = vunpack.c.h.b16 %v2148
    %v2465 = vunpack.c.l.b16 %v2149
    %v2466 = vunpack.c.h.b16 %v2149
    %v2467 = vunpack.c.l.b16 %v2150
    %v2468 = vunpack.c.h.b16 %v2150
    %v2469 = vunpack.c.l.b16 %v2151
    %v2470 = vunpack.c.h.b16 %v2151
    %v2471 = vunpack.c.l.b16 %v2152
    %v2472 = vunpack.c.h.b16 %v2152
    %v2473 = vunpack.c.l.b16 %v2153
    %v2474 = vunpack.c.h.b16 %v2153
    %v2475 = vpack.c.b16 %v2445, %v2443
    %v2476 = vpack.c.b16 %v2446, %v2444
    %v2477 = vpack.c.b16 %v2449, %v2447
    %v2478 = vpack.c.b16 %v2450, %v2448
    %v2479 = vpack.c.b16 %v2453, %v2451
    %v2480 = vpack.c.b16 %v2454, %v2452
    %v2481 = vpack.c.b16 %v2457, %v2455
    %v2482 = vpack.c.b16 %v2458, %v2456
    %v2483 = vpack.c.b16 %v2461, %v2459
    %v2484 = vpack.c.b16 %v2462, %v2460
    %v2485 = vpack.c.b16 %v2465, %v2463
    %v2486 = vpack.c.b16 %v2466, %v2464
    %v2487 = vpack.c.b16 %v2469, %v2467
    %v2488 = vpack.c.b16 %v2470, %v2468
    %v2489 = vpack.c.b16 %v2473, %v2471
    %v2490 = vpack.c.b16 %v2474, %v2472
    %2507 = vmatprep.subr.bf16.mxu0 %v2476
    %2508 = vmatpush1.bf16.msra.mxu0 %v2475
    %2509 = vmatprep.subr.bf16.mxu0 %v2478
    %2510 = vmatpush1.bf16.msra.mxu0 %v2477
    %2511 = vmatprep.subr.bf16.mxu0 %v2480
    %2512 = vmatpush1.bf16.msra.mxu0 %v2479
    %2513 = vmatprep.subr.bf16.mxu0 %v2482
    %2514 = vmatpush1.bf16.msra.mxu0 %v2481
    %2515 = vmatprep.subr.bf16.mxu0 %v2484
    %2516 = vmatpush1.bf16.msra.mxu0 %v2483
    %2517 = vmatprep.subr.bf16.mxu0 %v2486
    %2518 = vmatpush1.bf16.msra.mxu0 %v2485
    %2519 = vmatprep.subr.bf16.mxu0 %v2488
    %2520 = vmatpush1.bf16.msra.mxu0 %v2487
    %2521 = vmatprep.subr.bf16.mxu0 %v2490
    %2522 = vmatpush1.bf16.msra.mxu0 %v2489
    %2523 = vmatprep.subr.bf16.mxu0 0
    %2524 = vmatpush1.bf16.msra.mxu0 0
    %2525 = vmatprep.subr.bf16.mxu0 0
    %2526 = vmatpush1.bf16.msra.mxu0 0
    %2527 = vmatprep.subr.bf16.mxu0 0
    %2528 = vmatpush1.bf16.msra.mxu0 0
    %2529 = vmatprep.subr.bf16.mxu0 0
    %2530 = vmatpush1.bf16.msra.mxu0 0
    %2531 = vmatprep.subr.bf16.mxu0 0
    %2532 = vmatpush1.bf16.msra.mxu0 0
    %2533 = vmatprep.subr.bf16.mxu0 0
    %2534 = vmatpush1.bf16.msra.mxu0 0
    %2535 = vmatprep.subr.bf16.mxu0 0
    %2536 = vmatpush1.bf16.msra.mxu0 0
    %2537 = vmatprep.subr.bf16.mxu0 0
    %2538 = vmatpush1.bf16.msra.mxu0 0
    %2539 = vmatprep.mubr.bf16.mxu0 0
    %2540 = vmatmul.mubr.bf16.gmra.mrb[0].mxu0 %v2125
    %v2541 = vpop.f32.mrb[0].mxu0
    %v2542 = vadd.f32 %v2299, %v2541
    %v2543 = vpop.f32.mrb[0].mxu0
    %v2544 = vadd.f32 %v2301, %v2543
    %v2545 = vpop.f32.mrb[0].mxu0
    %v2546 = vadd.f32 %v2303, %v2545
    %v2547 = vpop.f32.mrb[0].mxu0
    %v2548 = vadd.f32 %v2305, %v2547
    %2549 = vmatprep.mubr.bf16.mxu0 0
    %2550 = vmatmul.mubr.bf16.gmra.mrb[0].mxu0 %v2126
    %v2551 = vpop.f32.mrb[0].mxu0
    %v2552 = vadd.f32 %v2309, %v2551
    %v2553 = vpop.f32.mrb[0].mxu0
    %v2554 = vadd.f32 %v2311, %v2553
    %v2555 = vpop.f32.mrb[0].mxu0
    %v2556 = vadd.f32 %v2313, %v2555
    %v2557 = vpop.f32.mrb[0].mxu0
    %v2558 = vadd.f32 %v2315, %v2557
    %2559 = vmatprep.mubr.bf16.mxu0 0
    %2560 = vmatmul.mubr.bf16.gmra.mrb[0].mxu0 %v2127
    %v2561 = vpop.f32.mrb[0].mxu0
    %v2562 = vadd.f32 %v2319, %v2561
    %v2563 = vpop.f32.mrb[0].mxu0
    %v2564 = vadd.f32 %v2321, %v2563
    %v2565 = vpop.f32.mrb[0].mxu0
    %v2566 = vadd.f32 %v2323, %v2565
    %v2567 = vpop.f32.mrb[0].mxu0
    %v2568 = vadd.f32 %v2325, %v2567
    %2569 = vmatprep.mubr.bf16.mxu0 0
    %2570 = vmatmul.mubr.bf16.gmra.mrb[0].mxu0 %v2128
    %v2571 = vpop.f32.mrb[0].mxu0
    %v2572 = vadd.f32 %v2329, %v2571
    %v2573 = vpop.f32.mrb[0].mxu0
    %v2574 = vadd.f32 %v2331, %v2573
    %v2575 = vpop.f32.mrb[0].mxu0
    %v2576 = vadd.f32 %v2333, %v2575
    %v2577 = vpop.f32.mrb[0].mxu0
    %v2578 = vadd.f32 %v2335, %v2577
    %2579 = vmatprep.mubr.bf16.mxu0 0
    %2580 = vmatmul.mubr.bf16.gmra.mrb[0].mxu0 %v2129
    %v2581 = vpop.f32.mrb[0].mxu0
    %v2582 = vadd.f32 %v2339, %v2581
    %v2583 = vpop.f32.mrb[0].mxu0
    %v2584 = vadd.f32 %v2341, %v2583
    %v2585 = vpop.f32.mrb[0].mxu0
    %v2586 = vadd.f32 %v2343, %v2585
    %v2587 = vpop.f32.mrb[0].mxu0
    %v2588 = vadd.f32 %v2345, %v2587
    %2589 = vmatprep.mubr.bf16.mxu0 0
    %2590 = vmatmul.mubr.bf16.gmra.mrb[0].mxu0 %v2130
    %v2591 = vpop.f32.mrb[0].mxu0
    %v2592 = vadd.f32 %v2349, %v2591
    %v2593 = vpop.f32.mrb[0].mxu0
    %v2594 = vadd.f32 %v2351, %v2593
    %v2595 = vpop.f32.mrb[0].mxu0
    %v2596 = vadd.f32 %v2353, %v2595
    %v2597 = vpop.f32.mrb[0].mxu0
    %v2598 = vadd.f32 %v2355, %v2597
    %2599 = vmatprep.mubr.bf16.mxu0 0
    %2600 = vmatmul.mubr.bf16.gmra.mrb[0].mxu0 %v2131
    %v2601 = vpop.f32.mrb[0].mxu0
    %v2602 = vadd.f32 %v2359, %v2601
    %v2603 = vpop.f32.mrb[0].mxu0
    %v2604 = vadd.f32 %v2361, %v2603
    %v2605 = vpop.f32.mrb[0].mxu0
    %v2606 = vadd.f32 %v2363, %v2605
    %v2607 = vpop.f32.mrb[0].mxu0
    %v2608 = vadd.f32 %v2365, %v2607
    %2609 = vmatprep.mubr.bf16.mxu0 0
    %2610 = vmatmul.mubr.bf16.gmra.mrb[0].mxu0 %v2132
    %v2611 = vpop.f32.mrb[0].mxu0
    %v2612 = vadd.f32 %v2369, %v2611
    %v2613 = vpop.f32.mrb[0].mxu0
    %v2614 = vadd.f32 %v2371, %v2613
    %v2615 = vpop.f32.mrb[0].mxu0
    %v2616 = vadd.f32 %v2373, %v2615
    %v2617 = vpop.f32.mrb[0].mxu0
    %v2618 = vadd.f32 %v2375, %v2617
    %2619 = vmatprep.mubr.bf16.mxu0 0
    %2620 = vmatmul.mubr.bf16.gmra.mrb[0].mxu0 %v2133
    %v2621 = vpop.f32.mrb[0].mxu0
    %v2622 = vadd.f32 %v2379, %v2621
    %v2623 = vpop.f32.mrb[0].mxu0
    %v2624 = vadd.f32 %v2381, %v2623
    %v2625 = vpop.f32.mrb[0].mxu0
    %v2626 = vadd.f32 %v2383, %v2625
    %v2627 = vpop.f32.mrb[0].mxu0
    %v2628 = vadd.f32 %v2385, %v2627
    %2629 = vmatprep.mubr.bf16.mxu0 0
    %2630 = vmatmul.mubr.bf16.gmra.mrb[0].mxu0 %v2134
    %v2631 = vpop.f32.mrb[0].mxu0
    %v2632 = vadd.f32 %v2389, %v2631
    %v2633 = vpop.f32.mrb[0].mxu0
    %v2634 = vadd.f32 %v2391, %v2633
    %v2635 = vpop.f32.mrb[0].mxu0
    %v2636 = vadd.f32 %v2393, %v2635
    %v2637 = vpop.f32.mrb[0].mxu0
    %v2638 = vadd.f32 %v2395, %v2637
    %2639 = vmatprep.mubr.bf16.mxu0 0
    %2640 = vmatmul.mubr.bf16.gmra.mrb[0].mxu0 %v2135
    %v2641 = vpop.f32.mrb[0].mxu0
    %v2642 = vadd.f32 %v2399, %v2641
    %v2643 = vpop.f32.mrb[0].mxu0
    %v2644 = vadd.f32 %v2401, %v2643
    %v2645 = vpop.f32.mrb[0].mxu0
    %v2646 = vadd.f32 %v2403, %v2645
    %v2647 = vpop.f32.mrb[0].mxu0
    %v2648 = vadd.f32 %v2405, %v2647
    %2649 = vmatprep.mubr.bf16.mxu0 0
    %2650 = vmatmul.mubr.bf16.gmra.mrb[0].mxu0 %v2136
    %v2651 = vpop.f32.mrb[0].mxu0
    %v2652 = vadd.f32 %v2409, %v2651
    %v2653 = vpop.f32.mrb[0].mxu0
    %v2654 = vadd.f32 %v2411, %v2653
    %v2655 = vpop.f32.mrb[0].mxu0
    %v2656 = vadd.f32 %v2413, %v2655
    %v2657 = vpop.f32.mrb[0].mxu0
    %v2658 = vadd.f32 %v2415, %v2657
    %2659 = vmatprep.mubr.bf16.mxu0 0
    %2660 = vmatmul.mubr.bf16.gmra.mrb[0].mxu0 %v2137
    %v2661 = vpop.f32.mrb[0].mxu0
    %v2662 = vadd.f32 %v2419, %v2661
    %v2663 = vpop.f32.mrb[0].mxu0
    %v2664 = vadd.f32 %v2421, %v2663
    %v2665 = vpop.f32.mrb[0].mxu0
    %v2666 = vadd.f32 %v2423, %v2665
    %v2667 = vpop.f32.mrb[0].mxu0
    %v2668 = vadd.f32 %v2425, %v2667
    %2669 = vdwg.mxu0
    %v2670 = vpack.c.bf16 %v2122, %v2123
    %v2671 = vpack.c.bf16 %v2120, %v2121
    %v2672 = vpack.c.bf16 %v2118, %v2119
    %v2673 = vpack.c.bf16 %v2116, %v2117
    %v2674 = vpack.c.bf16 %v2114, %v2115
    %v2675 = vpack.c.bf16 %v2112, %v2113
    %v2676 = vpack.c.bf16 %v2110, %v2111
    %v2677 = vpack.c.bf16 %v2108, %v2109
    %v2678 = vpack.c.bf16 %v2106, %v2107
    %v2679 = vpack.c.bf16 %v2104, %v2105
    %v2680 = vpack.c.bf16 %v2102, %v2103
    %v2681 = vpack.c.bf16 %v2100, %v2101
    %v2682 = vpack.c.bf16 %v2124, %v2099
    %s2683 = scalar_lea.vmem [#allocation7], 256
    %v2684 = vld [vmem:[%s2683] sm:$0xff]
    %v2685 = vld [vmem:[%s2683 + $0x8] sm:$0xff]
    %v2686 = vld [vmem:[%s2683 + $0x10] sm:$0xff]
    %v2687 = vld [vmem:[%s2683 + $0x18] sm:$0xff]
    %v2688 = vld [vmem:[%s2683 + $0x20] sm:$0xff]
    %v2689 = vld [vmem:[%s2683 + $0x28] sm:$0xff]
    %v2690 = vld [vmem:[%s2683 + $0x30] sm:$0xff]
    %v2691 = vld [vmem:[%s2683 + $0x38] sm:$0xff]
    %v2692 = vld [vmem:[%s2683 + $0x40] sm:$0xff]
    %v2693 = vld [vmem:[%s2683 + $0x48] sm:$0xff]
    %v2694 = vld [vmem:[%s2683 + $0x50] sm:$0xff]
    %v2695 = vld [vmem:[%s2683 + $0x58] sm:$0xff]
    %v2696 = vld [vmem:[%s2683 + $0x60] sm:$0xff]
    %v2697 = vld [vmem:[%s2683 + $0x68] sm:$0xff]
    %v2698 = vld [vmem:[%s2683 + $0x70] sm:$0xff]
    %v2699 = vld [vmem:[%s2683 + $0x78] sm:$0xff]
    %v2716 = vunpack.c.l.b16 %v2684
    %v2717 = vunpack.c.h.b16 %v2684
    %v2718 = vunpack.c.l.b16 %v2685
    %v2719 = vunpack.c.h.b16 %v2685
    %v2720 = vunpack.c.l.b16 %v2686
    %v2721 = vunpack.c.h.b16 %v2686
    %v2722 = vunpack.c.l.b16 %v2687
    %v2723 = vunpack.c.h.b16 %v2687
    %v2724 = vunpack.c.l.b16 %v2688
    %v2725 = vunpack.c.h.b16 %v2688
    %v2726 = vunpack.c.l.b16 %v2689
    %v2727 = vunpack.c.h.b16 %v2689
    %v2728 = vunpack.c.l.b16 %v2690
    %v2729 = vunpack.c.h.b16 %v2690
    %v2730 = vunpack.c.l.b16 %v2691
    %v2731 = vunpack.c.h.b16 %v2691
    %v2732 = vunpack.c.l.b16 %v2692
    %v2733 = vunpack.c.h.b16 %v2692
    %v2734 = vunpack.c.l.b16 %v2693
    %v2735 = vunpack.c.h.b16 %v2693
    %v2736 = vunpack.c.l.b16 %v2694
    %v2737 = vunpack.c.h.b16 %v2694
    %v2738 = vunpack.c.l.b16 %v2695
    %v2739 = vunpack.c.h.b16 %v2695
    %v2740 = vunpack.c.l.b16 %v2696
    %v2741 = vunpack.c.h.b16 %v2696
    %v2742 = vunpack.c.l.b16 %v2697
    %v2743 = vunpack.c.h.b16 %v2697
    %v2744 = vunpack.c.l.b16 %v2698
    %v2745 = vunpack.c.h.b16 %v2698
    %v2746 = vunpack.c.l.b16 %v2699
    %v2747 = vunpack.c.h.b16 %v2699
    %v2748 = vpack.c.b16 %v2718, %v2716
    %v2749 = vpack.c.b16 %v2719, %v2717
    %v2750 = vpack.c.b16 %v2722, %v2720
    %v2751 = vpack.c.b16 %v2723, %v2721
    %v2752 = vpack.c.b16 %v2726, %v2724
    %v2753 = vpack.c.b16 %v2727, %v2725
    %v2754 = vpack.c.b16 %v2730, %v2728
    %v2755 = vpack.c.b16 %v2731, %v2729
    %v2756 = vpack.c.b16 %v2734, %v2732
    %v2757 = vpack.c.b16 %v2735, %v2733
    %v2758 = vpack.c.b16 %v2738, %v2736
    %v2759 = vpack.c.b16 %v2739, %v2737
    %v2760 = vpack.c.b16 %v2742, %v2740
    %v2761 = vpack.c.b16 %v2743, %v2741
    %v2762 = vpack.c.b16 %v2746, %v2744
    %v2763 = vpack.c.b16 %v2747, %v2745
    %2780 = vmatprep.subr.bf16.mxu0 %v2749
    %2781 = vmatpush1.bf16.msra.mxu0 %v2748
    %2782 = vmatprep.subr.bf16.mxu0 %v2751
    %2783 = vmatpush1.bf16.msra.mxu0 %v2750
    %2784 = vmatprep.subr.bf16.mxu0 %v2753
    %2785 = vmatpush1.bf16.msra.mxu0 %v2752
    %2786 = vmatprep.subr.bf16.mxu0 %v2755
    %2787 = vmatpush1.bf16.msra.mxu0 %v2754
    %2788 = vmatprep.subr.bf16.mxu0 %v2757
    %2789 = vmatpush1.bf16.msra.mxu0 %v2756
    %2790 = vmatprep.subr.bf16.mxu0 %v2759
    %2791 = vmatpush1.bf16.msra.mxu0 %v2758
    %2792 = vmatprep.subr.bf16.mxu0 %v2761
    %2793 = vmatpush1.bf16.msra.mxu0 %v2760
    %2794 = vmatprep.subr.bf16.mxu0 %v2763
    %2795 = vmatpush1.bf16.msra.mxu0 %v2762
    %2796 = vmatprep.subr.bf16.mxu0 0
    %2797 = vmatpush1.bf16.msra.mxu0 0
    %2798 = vmatprep.subr.bf16.mxu0 0
    %2799 = vmatpush1.bf16.msra.mxu0 0
    %2800 = vmatprep.subr.bf16.mxu0 0
    %2801 = vmatpush1.bf16.msra.mxu0 0
    %2802 = vmatprep.subr.bf16.mxu0 0
    %2803 = vmatpush1.bf16.msra.mxu0 0
    %2804 = vmatprep.subr.bf16.mxu0 0
    %2805 = vmatpush1.bf16.msra.mxu0 0
    %2806 = vmatprep.subr.bf16.mxu0 0
    %2807 = vmatpush1.bf16.msra.mxu0 0
    %2808 = vmatprep.subr.bf16.mxu0 0
    %2809 = vmatpush1.bf16.msra.mxu0 0
    %2810 = vmatprep.subr.bf16.mxu0 0
    %2811 = vmatpush1.bf16.msra.mxu0 0
    %2812 = vmatprep.mubr.bf16.mxu0 0
    %2813 = vmatmul.mubr.bf16.gmra.mrb[0].mxu0 %v2670
    %v2814 = vpop.f32.mrb[0].mxu0
    %v2815 = vadd.f32 0.0, %v2814
    %v2816 = vpop.f32.mrb[0].mxu0
    %v2817 = vadd.f32 0.0, %v2816
    %v2818 = vpop.f32.mrb[0].mxu0
    %v2819 = vadd.f32 0.0, %v2818
    %v2820 = vpop.f32.mrb[0].mxu0
    %v2821 = vadd.f32 0.0, %v2820
    %2822 = vmatprep.mubr.bf16.mxu0 0
    %2823 = vmatmul.mubr.bf16.gmra.mrb[0].mxu0 %v2671
    %v2824 = vpop.f32.mrb[0].mxu0
    %v2825 = vadd.f32 0.0, %v2824
    %v2826 = vpop.f32.mrb[0].mxu0
    %v2827 = vadd.f32 0.0, %v2826
    %v2828 = vpop.f32.mrb[0].mxu0
    %v2829 = vadd.f32 0.0, %v2828
    %v2830 = vpop.f32.mrb[0].mxu0
    %v2831 = vadd.f32 0.0, %v2830
    %2832 = vmatprep.mubr.bf16.mxu0 0
    %2833 = vmatmul.mubr.bf16.gmra.mrb[0].mxu0 %v2672
    %v2834 = vpop.f32.mrb[0].mxu0
    %v2835 = vadd.f32 0.0, %v2834
    %v2836 = vpop.f32.mrb[0].mxu0
    %v2837 = vadd.f32 0.0, %v2836
    %v2838 = vpop.f32.mrb[0].mxu0
    %v2839 = vadd.f32 0.0, %v2838
    %v2840 = vpop.f32.mrb[0].mxu0
    %v2841 = vadd.f32 0.0, %v2840
    %2842 = vmatprep.mubr.bf16.mxu0 0
    %2843 = vmatmul.mubr.bf16.gmra.mrb[0].mxu0 %v2673
    %v2844 = vpop.f32.mrb[0].mxu0
    %v2845 = vadd.f32 0.0, %v2844
    %v2846 = vpop.f32.mrb[0].mxu0
    %v2847 = vadd.f32 0.0, %v2846
    %v2848 = vpop.f32.mrb[0].mxu0
    %v2849 = vadd.f32 0.0, %v2848
    %v2850 = vpop.f32.mrb[0].mxu0
    %v2851 = vadd.f32 0.0, %v2850
    %2852 = vmatprep.mubr.bf16.mxu0 0
    %2853 = vmatmul.mubr.bf16.gmra.mrb[0].mxu0 %v2674
    %v2854 = vpop.f32.mrb[0].mxu0
    %v2855 = vadd.f32 0.0, %v2854
    %v2856 = vpop.f32.mrb[0].mxu0
    %v2857 = vadd.f32 0.0, %v2856
    %v2858 = vpop.f32.mrb[0].mxu0
    %v2859 = vadd.f32 0.0, %v2858
    %v2860 = vpop.f32.mrb[0].mxu0
    %v2861 = vadd.f32 0.0, %v2860
    %2862 = vmatprep.mubr.bf16.mxu0 0
    %2863 = vmatmul.mubr.bf16.gmra.mrb[0].mxu0 %v2675
    %v2864 = vpop.f32.mrb[0].mxu0
    %v2865 = vadd.f32 0.0, %v2864
    %v2866 = vpop.f32.mrb[0].mxu0
    %v2867 = vadd.f32 0.0, %v2866
    %v2868 = vpop.f32.mrb[0].mxu0
    %v2869 = vadd.f32 0.0, %v2868
    %v2870 = vpop.f32.mrb[0].mxu0
    %v2871 = vadd.f32 0.0, %v2870
    %2872 = vmatprep.mubr.bf16.mxu0 0
    %2873 = vmatmul.mubr.bf16.gmra.mrb[0].mxu0 %v2676
    %v2874 = vpop.f32.mrb[0].mxu0
    %v2875 = vadd.f32 0.0, %v2874
    %v2876 = vpop.f32.mrb[0].mxu0
    %v2877 = vadd.f32 0.0, %v2876
    %v2878 = vpop.f32.mrb[0].mxu0
    %v2879 = vadd.f32 0.0, %v2878
    %v2880 = vpop.f32.mrb[0].mxu0
    %v2881 = vadd.f32 0.0, %v2880
    %2882 = vmatprep.mubr.bf16.mxu0 0
    %2883 = vmatmul.mubr.bf16.gmra.mrb[0].mxu0 %v2677
    %v2884 = vpop.f32.mrb[0].mxu0
    %v2885 = vadd.f32 0.0, %v2884
    %v2886 = vpop.f32.mrb[0].mxu0
    %v2887 = vadd.f32 0.0, %v2886
    %v2888 = vpop.f32.mrb[0].mxu0
    %v2889 = vadd.f32 0.0, %v2888
    %v2890 = vpop.f32.mrb[0].mxu0
    %v2891 = vadd.f32 0.0, %v2890
    %2892 = vmatprep.mubr.bf16.mxu0 0
    %2893 = vmatmul.mubr.bf16.gmra.mrb[0].mxu0 %v2678
    %v2894 = vpop.f32.mrb[0].mxu0
    %v2895 = vadd.f32 0.0, %v2894
    %v2896 = vpop.f32.mrb[0].mxu0
    %v2897 = vadd.f32 0.0, %v2896
    %v2898 = vpop.f32.mrb[0].mxu0
    %v2899 = vadd.f32 0.0, %v2898
    %v2900 = vpop.f32.mrb[0].mxu0
    %v2901 = vadd.f32 0.0, %v2900
    %2902 = vmatprep.mubr.bf16.mxu0 0
    %2903 = vmatmul.mubr.bf16.gmra.mrb[0].mxu0 %v2679
    %v2904 = vpop.f32.mrb[0].mxu0
    %v2905 = vadd.f32 0.0, %v2904
    %v2906 = vpop.f32.mrb[0].mxu0
    %v2907 = vadd.f32 0.0, %v2906
    %v2908 = vpop.f32.mrb[0].mxu0
    %v2909 = vadd.f32 0.0, %v2908
    %v2910 = vpop.f32.mrb[0].mxu0
    %v2911 = vadd.f32 0.0, %v2910
    %2912 = vmatprep.mubr.bf16.mxu0 0
    %2913 = vmatmul.mubr.bf16.gmra.mrb[0].mxu0 %v2680
    %v2914 = vpop.f32.mrb[0].mxu0
    %v2915 = vadd.f32 0.0, %v2914
    %v2916 = vpop.f32.mrb[0].mxu0
    %v2917 = vadd.f32 0.0, %v2916
    %v2918 = vpop.f32.mrb[0].mxu0
    %v2919 = vadd.f32 0.0, %v2918
    %v2920 = vpop.f32.mrb[0].mxu0
    %v2921 = vadd.f32 0.0, %v2920
    %2922 = vmatprep.mubr.bf16.mxu0 0
    %2923 = vmatmul.mubr.bf16.gmra.mrb[0].mxu0 %v2681
    %v2924 = vpop.f32.mrb[0].mxu0
    %v2925 = vadd.f32 0.0, %v2924
    %v2926 = vpop.f32.mrb[0].mxu0
    %v2927 = vadd.f32 0.0, %v2926
    %v2928 = vpop.f32.mrb[0].mxu0
    %v2929 = vadd.f32 0.0, %v2928
    %v2930 = vpop.f32.mrb[0].mxu0
    %v2931 = vadd.f32 0.0, %v2930
    %2932 = vmatprep.mubr.bf16.mxu0 0
    %2933 = vmatmul.mubr.bf16.gmra.mrb[0].mxu0 %v2682
    %v2934 = vpop.f32.mrb[0].mxu0
    %v2935 = vadd.f32 0.0, %v2934
    %v2936 = vpop.f32.mrb[0].mxu0
    %v2937 = vadd.f32 0.0, %v2936
    %v2938 = vpop.f32.mrb[0].mxu0
    %v2939 = vadd.f32 0.0, %v2938
    %v2940 = vpop.f32.mrb[0].mxu0
    %v2941 = vadd.f32 0.0, %v2940
    %2942 = vdwg.mxu0
    %v2943 = vadd.f32 %v2542, %v2815
    %v2944 = vadd.f32 %v2544, %v2817
    %v2945 = vadd.f32 %v2546, %v2819
    %v2946 = vadd.f32 %v2548, %v2821
    %v2947 = vadd.f32 %v2552, %v2825
    %v2948 = vadd.f32 %v2554, %v2827
    %v2949 = vadd.f32 %v2556, %v2829
    %v2950 = vadd.f32 %v2558, %v2831
    %v2951 = vadd.f32 %v2562, %v2835
    %v2952 = vadd.f32 %v2564, %v2837
    %v2953 = vadd.f32 %v2566, %v2839
    %v2954 = vadd.f32 %v2568, %v2841
    %v2955 = vadd.f32 %v2572, %v2845
    %v2956 = vadd.f32 %v2574, %v2847
    %v2957 = vadd.f32 %v2576, %v2849
    %v2958 = vadd.f32 %v2578, %v2851
    %v2959 = vadd.f32 %v2582, %v2855
    %v2960 = vadd.f32 %v2584, %v2857
    %v2961 = vadd.f32 %v2586, %v2859
    %v2962 = vadd.f32 %v2588, %v2861
    %v2963 = vadd.f32 %v2592, %v2865
    %v2964 = vadd.f32 %v2594, %v2867
    %v2965 = vadd.f32 %v2596, %v2869
    %v2966 = vadd.f32 %v2598, %v2871
    %v2967 = vadd.f32 %v2602, %v2875
    %v2968 = vadd.f32 %v2604, %v2877
    %v2969 = vadd.f32 %v2606, %v2879
    %v2970 = vadd.f32 %v2608, %v2881
    %v2971 = vadd.f32 %v2612, %v2885
    %v2972 = vadd.f32 %v2614, %v2887
    %v2973 = vadd.f32 %v2616, %v2889
    %v2974 = vadd.f32 %v2618, %v2891
    %v2975 = vadd.f32 %v2622, %v2895
    %v2976 = vadd.f32 %v2624, %v2897
    %v2977 = vadd.f32 %v2626, %v2899
    %v2978 = vadd.f32 %v2628, %v2901
    %v2979 = vadd.f32 %v2632, %v2905
    %v2980 = vadd.f32 %v2634, %v2907
    %v2981 = vadd.f32 %v2636, %v2909
    %v2982 = vadd.f32 %v2638, %v2911
    %v2983 = vadd.f32 %v2642, %v2915
    %v2984 = vadd.f32 %v2644, %v2917
    %v2985 = vadd.f32 %v2646, %v2919
    %v2986 = vadd.f32 %v2648, %v2921
    %v2987 = vadd.f32 %v2652, %v2925
    %v2988 = vadd.f32 %v2654, %v2927
    %v2989 = vadd.f32 %v2656, %v2929
    %v2990 = vadd.f32 %v2658, %v2931
    %v2991 = vadd.f32 %v2662, %v2935
    %v2992 = vadd.f32 %v2664, %v2937
    %v2993 = vadd.f32 %v2666, %v2939
    %v2994 = vadd.f32 %v2668, %v2941
    %v2995 = vld [vmem:[%s6] sm:$0x3]
    %v2997 = vlaneseq
    %v2998 = vshrl.u32 %v2997, 7
    %v2999 = vsub.s32 0, %v2998
    %v3000 = vrot.slane %v2995, %v2999
    %v3001 = vlaneseq
    %v3002 = vshrl.u32 %v3001, 7
    %v3003 = vsub.s32 1, %v3002
    %v3004 = vrot.slane %v2995, %v3003
    %v3007 = vadd.f32 %v2943, %v3000
    %v3008 = vadd.f32 %v2944, %v3004
    %v3009 = vadd.f32 %v2945, %v3000
    %v3010 = vadd.f32 %v2946, %v3004
    %v3011 = vadd.f32 %v2947, %v3000
    %v3012 = vadd.f32 %v2948, %v3004
    %v3013 = vadd.f32 %v2949, %v3000
    %v3014 = vadd.f32 %v2950, %v3004
    %v3015 = vadd.f32 %v2951, %v3000
    %v3016 = vadd.f32 %v2952, %v3004
    %v3017 = vadd.f32 %v2953, %v3000
    %v3018 = vadd.f32 %v2954, %v3004
    %v3019 = vadd.f32 %v2955, %v3000
    %v3020 = vadd.f32 %v2956, %v3004
    %v3021 = vadd.f32 %v2957, %v3000
    %v3022 = vadd.f32 %v2958, %v3004
    %v3023 = vadd.f32 %v2959, %v3000
    %v3024 = vadd.f32 %v2960, %v3004
    %v3025 = vadd.f32 %v2961, %v3000
    %v3026 = vadd.f32 %v2962, %v3004
    %v3027 = vadd.f32 %v2963, %v3000
    %v3028 = vadd.f32 %v2964, %v3004
    %v3029 = vadd.f32 %v2965, %v3000
    %v3030 = vadd.f32 %v2966, %v3004
    %v3031 = vadd.f32 %v2967, %v3000
    %v3032 = vadd.f32 %v2968, %v3004
    %v3033 = vadd.f32 %v2969, %v3000
    %v3034 = vadd.f32 %v2970, %v3004
    %v3035 = vadd.f32 %v2971, %v3000
    %v3036 = vadd.f32 %v2972, %v3004
    %v3037 = vadd.f32 %v2973, %v3000
    %v3038 = vadd.f32 %v2974, %v3004
    %v3039 = vadd.f32 %v2975, %v3000
    %v3040 = vadd.f32 %v2976, %v3004
    %v3041 = vadd.f32 %v2977, %v3000
    %v3042 = vadd.f32 %v2978, %v3004
    %v3043 = vadd.f32 %v2979, %v3000
    %v3044 = vadd.f32 %v2980, %v3004
    %v3045 = vadd.f32 %v2981, %v3000
    %v3046 = vadd.f32 %v2982, %v3004
    %v3047 = vadd.f32 %v2983, %v3000
    %v3048 = vadd.f32 %v2984, %v3004
    %v3049 = vadd.f32 %v2985, %v3000
    %v3050 = vadd.f32 %v2986, %v3004
    %v3051 = vadd.f32 %v2987, %v3000
    %v3052 = vadd.f32 %v2988, %v3004
    %v3053 = vadd.f32 %v2989, %v3000
    %v3054 = vadd.f32 %v2990, %v3004
    %v3055 = vadd.f32 %v2991, %v3000
    %v3056 = vadd.f32 %v2992, %v3004
    %v3057 = vadd.f32 %v2993, %v3000
    %v3058 = vadd.f32 %v2994, %v3004
    %v3059 = vsel %vm1136, %v3007, 0.0
    %v3060 = vsel %vm1136, %v3008, 0.0
    %v3061 = vsel %vm1137, %v3009, 0.0
    %v3062 = vsel %vm1137, %v3010, 0.0
    %v3063 = vsel %vm1138, %v3011, 0.0
    %v3064 = vsel %vm1138, %v3012, 0.0
    %v3065 = vsel %vm1139, %v3013, 0.0
    %v3066 = vsel %vm1139, %v3014, 0.0
    %v3067 = vsel %vm1140, %v3015, 0.0
    %v3068 = vsel %vm1140, %v3016, 0.0
    %v3069 = vsel %vm1141, %v3017, 0.0
    %v3070 = vsel %vm1141, %v3018, 0.0
    %v3071 = vsel %vm1142, %v3019, 0.0
    %v3072 = vsel %vm1142, %v3020, 0.0
    %v3073 = vsel %vm1143, %v3021, 0.0
    %v3074 = vsel %vm1143, %v3022, 0.0
    %v3075 = vsel %vm1144, %v3023, 0.0
    %v3076 = vsel %vm1144, %v3024, 0.0
    %v3077 = vsel %vm1145, %v3025, 0.0
    %v3078 = vsel %vm1145, %v3026, 0.0
    %v3079 = vsel %vm1146, %v3027, 0.0
    %v3080 = vsel %vm1146, %v3028, 0.0
    %v3081 = vsel %vm1147, %v3029, 0.0
    %v3082 = vsel %vm1147, %v3030, 0.0
    %v3083 = vsel %vm1148, %v3031, 0.0
    %v3084 = vsel %vm1148, %v3032, 0.0
    %v3085 = vsel %vm1149, %v3033, 0.0
    %v3086 = vsel %vm1149, %v3034, 0.0
    %v3087 = vsel %vm1150, %v3035, 0.0
    %v3088 = vsel %vm1150, %v3036, 0.0
    %v3089 = vsel %vm1151, %v3037, 0.0
    %v3090 = vsel %vm1151, %v3038, 0.0
    %v3091 = vsel %vm1152, %v3039, 0.0
    %v3092 = vsel %vm1152, %v3040, 0.0
    %v3093 = vsel %vm1153, %v3041, 0.0
    %v3094 = vsel %vm1153, %v3042, 0.0
    %v3095 = vsel %vm1154, %v3043, 0.0
    %v3096 = vsel %vm1154, %v3044, 0.0
    %v3097 = vsel %vm1155, %v3045, 0.0
    %v3098 = vsel %vm1155, %v3046, 0.0
    %v3099 = vsel %vm1156, %v3047, 0.0
    %v3100 = vsel %vm1156, %v3048, 0.0
    %v3101 = vsel %vm1157, %v3049, 0.0
    %v3102 = vsel %vm1157, %v3050, 0.0
    %v3103 = vsel %vm1158, %v3051, 0.0
    %v3104 = vsel %vm1158, %v3052, 0.0
    %v3105 = vsel %vm1159, %v3053, 0.0
    %v3106 = vsel %vm1159, %v3054, 0.0
    %v3107 = vsel %vm1160, %v3055, 0.0
    %v3108 = vsel %vm1160, %v3056, 0.0
    %v3109 = vsel %vm1161, %v3057, 0.0
    %v3110 = vsel %vm1161, %v3058, 0.0
    %v3111 = vrot.slane %v3059, 7
    %v3112 = vrot.slane %v3060, 7
    %v3113 = vrot.slane %v3061, 7
    %v3114 = vrot.slane %v3062, 7
    %v3115 = vrot.slane %v3063, 7
    %v3116 = vrot.slane %v3064, 7
    %v3117 = vrot.slane %v3065, 7
    %v3118 = vrot.slane %v3066, 7
    %v3119 = vrot.slane %v3067, 7
    %v3120 = vrot.slane %v3068, 7
    %v3121 = vrot.slane %v3069, 7
    %v3122 = vrot.slane %v3070, 7
    %v3123 = vrot.slane %v3071, 7
    %v3124 = vrot.slane %v3072, 7
    %v3125 = vrot.slane %v3073, 7
    %v3126 = vrot.slane %v3074, 7
    %v3127 = vrot.slane %v3075, 7
    %v3128 = vrot.slane %v3076, 7
    %v3129 = vrot.slane %v3077, 7
    %v3130 = vrot.slane %v3078, 7
    %v3131 = vrot.slane %v3079, 7
    %v3132 = vrot.slane %v3080, 7
    %v3133 = vrot.slane %v3081, 7
    %v3134 = vrot.slane %v3082, 7
    %v3135 = vrot.slane %v3083, 7
    %v3136 = vrot.slane %v3084, 7
    %v3137 = vrot.slane %v3085, 7
    %v3138 = vrot.slane %v3086, 7
    %v3139 = vrot.slane %v3087, 7
    %v3140 = vrot.slane %v3088, 7
    %v3141 = vrot.slane %v3089, 7
    %v3142 = vrot.slane %v3090, 7
    %v3143 = vrot.slane %v3091, 7
    %v3144 = vrot.slane %v3092, 7
    %v3145 = vrot.slane %v3093, 7
    %v3146 = vrot.slane %v3094, 7
    %v3147 = vrot.slane %v3095, 7
    %v3148 = vrot.slane %v3096, 7
    %v3149 = vrot.slane %v3097, 7
    %v3150 = vrot.slane %v3098, 7
    %v3151 = vrot.slane %v3099, 7
    %v3152 = vrot.slane %v3100, 7
    %v3153 = vrot.slane %v3101, 7
    %v3154 = vrot.slane %v3102, 7
    %v3155 = vrot.slane %v3103, 7
    %v3156 = vrot.slane %v3104, 7
    %v3157 = vrot.slane %v3105, 7
    %v3158 = vrot.slane %v3106, 7
    %v3159 = vrot.slane %v3107, 7
    %v3160 = vrot.slane %v3108, 7
    %v3161 = vrot.slane %v3109, 7
    %v3162 = vrot.slane %v3110, 7
    %v3163 = vsel %vm327, %v3159, %v3161
    %v3164 = vsel %vm327, %v3160, %v3162
    %v3165 = vsel %vm327, %v3157, %v3159
    %v3166 = vsel %vm327, %v3158, %v3160
    %v3167 = vsel %vm327, %v3155, %v3157
    %v3168 = vsel %vm327, %v3156, %v3158
    %v3169 = vsel %vm327, %v3153, %v3155
    %v3170 = vsel %vm327, %v3154, %v3156
    %v3171 = vsel %vm327, %v3151, %v3153
    %v3172 = vsel %vm327, %v3152, %v3154
    %v3173 = vsel %vm327, %v3149, %v3151
    %v3174 = vsel %vm327, %v3150, %v3152
    %v3175 = vsel %vm327, %v3147, %v3149
    %v3176 = vsel %vm327, %v3148, %v3150
    %v3177 = vsel %vm327, %v3145, %v3147
    %v3178 = vsel %vm327, %v3146, %v3148
    %v3179 = vsel %vm327, %v3143, %v3145
    %v3180 = vsel %vm327, %v3144, %v3146
    %v3181 = vsel %vm327, %v3141, %v3143
    %v3182 = vsel %vm327, %v3142, %v3144
    %v3183 = vsel %vm327, %v3139, %v3141
    %v3184 = vsel %vm327, %v3140, %v3142
    %v3185 = vsel %vm327, %v3137, %v3139
    %v3186 = vsel %vm327, %v3138, %v3140
    %v3187 = vsel %vm327, %v3135, %v3137
    %v3188 = vsel %vm327, %v3136, %v3138
    %v3189 = vsel %vm327, %v3133, %v3135
    %v3190 = vsel %vm327, %v3134, %v3136
    %v3191 = vsel %vm327, %v3131, %v3133
    %v3192 = vsel %vm327, %v3132, %v3134
    %v3193 = vsel %vm327, %v3129, %v3131
    %v3194 = vsel %vm327, %v3130, %v3132
    %v3195 = vsel %vm327, %v3127, %v3129
    %v3196 = vsel %vm327, %v3128, %v3130
    %v3197 = vsel %vm327, %v3125, %v3127
    %v3198 = vsel %vm327, %v3126, %v3128
    %v3199 = vsel %vm327, %v3123, %v3125
    %v3200 = vsel %vm327, %v3124, %v3126
    %v3201 = vsel %vm327, %v3121, %v3123
    %v3202 = vsel %vm327, %v3122, %v3124
    %v3203 = vsel %vm327, %v3119, %v3121
    %v3204 = vsel %vm327, %v3120, %v3122
    %v3205 = vsel %vm327, %v3117, %v3119
    %v3206 = vsel %vm327, %v3118, %v3120
    %v3207 = vsel %vm327, %v3115, %v3117
    %v3208 = vsel %vm327, %v3116, %v3118
    %v3209 = vsel %vm327, %v3113, %v3115
    %v3210 = vsel %vm327, %v3114, %v3116
    %v3211 = vsel %vm327, %v3111, %v3113
    %v3212 = vsel %vm327, %v3112, %v3114
    %v3213 = vsel %vm327, %v3161, %v3111
    %v3214 = vsel %vm327, %v3162, %v3112
    %v3215 = vrot.slane %v3059, 1
    %v3216 = vrot.slane %v3060, 1
    %v3217 = vrot.slane %v3061, 1
    %v3218 = vrot.slane %v3062, 1
    %v3219 = vrot.slane %v3063, 1
    %v3220 = vrot.slane %v3064, 1
    %v3221 = vrot.slane %v3065, 1
    %v3222 = vrot.slane %v3066, 1
    %v3223 = vrot.slane %v3067, 1
    %v3224 = vrot.slane %v3068, 1
    %v3225 = vrot.slane %v3069, 1
    %v3226 = vrot.slane %v3070, 1
    %v3227 = vrot.slane %v3071, 1
    %v3228 = vrot.slane %v3072, 1
    %v3229 = vrot.slane %v3073, 1
    %v3230 = vrot.slane %v3074, 1
    %v3231 = vrot.slane %v3075, 1
    %v3232 = vrot.slane %v3076, 1
    %v3233 = vrot.slane %v3077, 1
    %v3234 = vrot.slane %v3078, 1
    %v3235 = vrot.slane %v3079, 1
    %v3236 = vrot.slane %v3080, 1
    %v3237 = vrot.slane %v3081, 1
    %v3238 = vrot.slane %v3082, 1
    %v3239 = vrot.slane %v3083, 1
    %v3240 = vrot.slane %v3084, 1
    %v3241 = vrot.slane %v3085, 1
    %v3242 = vrot.slane %v3086, 1
    %v3243 = vrot.slane %v3087, 1
    %v3244 = vrot.slane %v3088, 1
    %v3245 = vrot.slane %v3089, 1
    %v3246 = vrot.slane %v3090, 1
    %v3247 = vrot.slane %v3091, 1
    %v3248 = vrot.slane %v3092, 1
    %v3249 = vrot.slane %v3093, 1
    %v3250 = vrot.slane %v3094, 1
    %v3251 = vrot.slane %v3095, 1
    %v3252 = vrot.slane %v3096, 1
    %v3253 = vrot.slane %v3097, 1
    %v3254 = vrot.slane %v3098, 1
    %v3255 = vrot.slane %v3099, 1
    %v3256 = vrot.slane %v3100, 1
    %v3257 = vrot.slane %v3101, 1
    %v3258 = vrot.slane %v3102, 1
    %v3259 = vrot.slane %v3103, 1
    %v3260 = vrot.slane %v3104, 1
    %v3261 = vrot.slane %v3105, 1
    %v3262 = vrot.slane %v3106, 1
    %v3263 = vrot.slane %v3107, 1
    %v3264 = vrot.slane %v3108, 1
    %v3265 = vrot.slane %v3109, 1
    %v3266 = vrot.slane %v3110, 1
    %v3267 = vsel %vm380, %v3263, %v3265
    %v3268 = vsel %vm380, %v3264, %v3266
    %v3269 = vsel %vm380, %v3261, %v3263
    %v3270 = vsel %vm380, %v3262, %v3264
    %v3271 = vsel %vm380, %v3259, %v3261
    %v3272 = vsel %vm380, %v3260, %v3262
    %v3273 = vsel %vm380, %v3257, %v3259
    %v3274 = vsel %vm380, %v3258, %v3260
    %v3275 = vsel %vm380, %v3255, %v3257
    %v3276 = vsel %vm380, %v3256, %v3258
    %v3277 = vsel %vm380, %v3253, %v3255
    %v3278 = vsel %vm380, %v3254, %v3256
    %v3279 = vsel %vm380, %v3251, %v3253
    %v3280 = vsel %vm380, %v3252, %v3254
    %v3281 = vsel %vm380, %v3249, %v3251
    %v3282 = vsel %vm380, %v3250, %v3252
    %v3283 = vsel %vm380, %v3247, %v3249
    %v3284 = vsel %vm380, %v3248, %v3250
    %v3285 = vsel %vm380, %v3245, %v3247
    %v3286 = vsel %vm380, %v3246, %v3248
    %v3287 = vsel %vm380, %v3243, %v3245
    %v3288 = vsel %vm380, %v3244, %v3246
    %v3289 = vsel %vm380, %v3241, %v3243
    %v3290 = vsel %vm380, %v3242, %v3244
    %v3291 = vsel %vm380, %v3239, %v3241
    %v3292 = vsel %vm380, %v3240, %v3242
    %v3293 = vsel %vm380, %v3237, %v3239
    %v3294 = vsel %vm380, %v3238, %v3240
    %v3295 = vsel %vm380, %v3235, %v3237
    %v3296 = vsel %vm380, %v3236, %v3238
    %v3297 = vsel %vm380, %v3233, %v3235
    %v3298 = vsel %vm380, %v3234, %v3236
    %v3299 = vsel %vm380, %v3231, %v3233
    %v3300 = vsel %vm380, %v3232, %v3234
    %v3301 = vsel %vm380, %v3229, %v3231
    %v3302 = vsel %vm380, %v3230, %v3232
    %v3303 = vsel %vm380, %v3227, %v3229
    %v3304 = vsel %vm380, %v3228, %v3230
    %v3305 = vsel %vm380, %v3225, %v3227
    %v3306 = vsel %vm380, %v3226, %v3228
    %v3307 = vsel %vm380, %v3223, %v3225
    %v3308 = vsel %vm380, %v3224, %v3226
    %v3309 = vsel %vm380, %v3221, %v3223
    %v3310 = vsel %vm380, %v3222, %v3224
    %v3311 = vsel %vm380, %v3219, %v3221
    %v3312 = vsel %vm380, %v3220, %v3222
    %v3313 = vsel %vm380, %v3217, %v3219
    %v3314 = vsel %vm380, %v3218, %v3220
    %v3315 = vsel %vm380, %v3215, %v3217
    %v3316 = vsel %vm380, %v3216, %v3218
    %v3317 = vsel %vm380, %v3265, %v3215
    %v3318 = vsel %vm380, %v3266, %v3216
    %v3319 = vpack.c.bf16 %v3211, %v3213
    %v3320 = vpack.c.bf16 %v3212, %v3214
    %v3321 = vpack.c.bf16 %v3207, %v3209
    %v3322 = vpack.c.bf16 %v3208, %v3210
    %v3323 = vpack.c.bf16 %v3203, %v3205
    %v3324 = vpack.c.bf16 %v3204, %v3206
    %v3325 = vpack.c.bf16 %v3199, %v3201
    %v3326 = vpack.c.bf16 %v3200, %v3202
    %v3327 = vpack.c.bf16 %v3195, %v3197
    %v3328 = vpack.c.bf16 %v3196, %v3198
    %v3329 = vpack.c.bf16 %v3191, %v3193
    %v3330 = vpack.c.bf16 %v3192, %v3194
    %v3331 = vpack.c.bf16 %v3187, %v3189
    %v3332 = vpack.c.bf16 %v3188, %v3190
    %v3333 = vpack.c.bf16 %v3183, %v3185
    %v3334 = vpack.c.bf16 %v3184, %v3186
    %v3335 = vpack.c.bf16 %v3179, %v3181
    %v3336 = vpack.c.bf16 %v3180, %v3182
    %v3337 = vpack.c.bf16 %v3175, %v3177
    %v3338 = vpack.c.bf16 %v3176, %v3178
    %v3339 = vpack.c.bf16 %v3171, %v3173
    %v3340 = vpack.c.bf16 %v3172, %v3174
    %v3341 = vpack.c.bf16 %v3167, %v3169
    %v3342 = vpack.c.bf16 %v3168, %v3170
    %v3343 = vpack.c.bf16 %v3163, %v3165
    %v3344 = vpack.c.bf16 %v3164, %v3166
    %v3345 = vld [vmem:[#allocation9] sm:$0xff]
    %v3346 = vld [vmem:[#allocation9 + $0x8] sm:$0xff]
    %v3347 = vld [vmem:[#allocation9 + $0x10] sm:$0xff]
    %v3348 = vld [vmem:[#allocation9 + $0x18] sm:$0xff]
    %v3349 = vld [vmem:[#allocation9 + $0x20] sm:$0xff]
    %v3350 = vld [vmem:[#allocation9 + $0x28] sm:$0xff]
    %v3351 = vld [vmem:[#allocation9 + $0x30] sm:$0xff]
    %v3352 = vld [vmem:[#allocation9 + $0x38] sm:$0xff]
    %v3353 = vld [vmem:[#allocation9 + $0x40] sm:$0xff]
    %v3354 = vld [vmem:[#allocation9 + $0x48] sm:$0xff]
    %v3355 = vld [vmem:[#allocation9 + $0x50] sm:$0xff]
    %v3356 = vld [vmem:[#allocation9 + $0x58] sm:$0xff]
    %v3357 = vld [vmem:[#allocation9 + $0x60] sm:$0xff]
    %v3358 = vld [vmem:[#allocation9 + $0x68] sm:$0xff]
    %v3359 = vld [vmem:[#allocation9 + $0x70] sm:$0xff]
    %v3360 = vld [vmem:[#allocation9 + $0x78] sm:$0xff]
    %v3361 = vld [vmem:[#allocation9 + $0x80] sm:$0xff]
    %v3362 = vld [vmem:[#allocation9 + $0x88] sm:$0xff]
    %v3363 = vld [vmem:[#allocation9 + $0x90] sm:$0xff]
    %v3364 = vld [vmem:[#allocation9 + $0x98] sm:$0xff]
    %v3365 = vld [vmem:[#allocation9 + $0xa0] sm:$0xff]
    %v3366 = vld [vmem:[#allocation9 + $0xa8] sm:$0xff]
    %v3367 = vld [vmem:[#allocation9 + $0xb0] sm:$0xff]
    %v3368 = vld [vmem:[#allocation9 + $0xb8] sm:$0xff]
    %v3369 = vld [vmem:[#allocation9 + $0xc0] sm:$0xff]
    %v3370 = vld [vmem:[#allocation9 + $0xc8] sm:$0xff]
    %v3371 = vld [vmem:[#allocation9 + $0xd0] sm:$0xff]
    %v3372 = vld [vmem:[#allocation9 + $0xd8] sm:$0xff]
    %v3373 = vld [vmem:[#allocation9 + $0xe0] sm:$0xff]
    %v3374 = vld [vmem:[#allocation9 + $0xe8] sm:$0xff]
    %v3375 = vld [vmem:[#allocation9 + $0xf0] sm:$0xff]
    %v3376 = vld [vmem:[#allocation9 + $0xf8] sm:$0xff]
    %v3377 = vld [vmem:[#allocation9 + $0x100] sm:$0xff]
    %v3378 = vld [vmem:[#allocation9 + $0x108] sm:$0xff]
    %v3379 = vld [vmem:[#allocation9 + $0x110] sm:$0xff]
    %v3380 = vld [vmem:[#allocation9 + $0x118] sm:$0xff]
    %v3381 = vld [vmem:[#allocation9 + $0x120] sm:$0xff]
    %v3382 = vld [vmem:[#allocation9 + $0x128] sm:$0xff]
    %v3383 = vld [vmem:[#allocation9 + $0x130] sm:$0xff]
    %v3384 = vld [vmem:[#allocation9 + $0x138] sm:$0xff]
    %v3385 = vld [vmem:[#allocation9 + $0x140] sm:$0xff]
    %v3386 = vld [vmem:[#allocation9 + $0x148] sm:$0xff]
    %v3387 = vld [vmem:[#allocation9 + $0x150] sm:$0xff]
    %v3388 = vld [vmem:[#allocation9 + $0x158] sm:$0xff]
    %v3389 = vld [vmem:[#allocation9 + $0x160] sm:$0xff]
    %v3390 = vld [vmem:[#allocation9 + $0x168] sm:$0xff]
    %v3391 = vld [vmem:[#allocation9 + $0x170] sm:$0xff]
    %v3392 = vld [vmem:[#allocation9 + $0x178] sm:$0xff]
    %v3393 = vld [vmem:[#allocation9 + $0x180] sm:$0xff]
    %v3394 = vld [vmem:[#allocation9 + $0x188] sm:$0xff]
    %v3395 = vld [vmem:[#allocation9 + $0x190] sm:$0xff]
    %v3396 = vld [vmem:[#allocation9 + $0x198] sm:$0xff]
    %v3397 = vld [vmem:[#allocation9 + $0x1a0] sm:$0xff]
    %v3398 = vld [vmem:[#allocation9 + $0x1a8] sm:$0xff]
    %v3399 = vld [vmem:[#allocation9 + $0x1b0] sm:$0xff]
    %v3400 = vld [vmem:[#allocation9 + $0x1b8] sm:$0xff]
    %v3401 = vld [vmem:[#allocation9 + $0x1c0] sm:$0xff]
    %v3402 = vld [vmem:[#allocation9 + $0x1c8] sm:$0xff]
    %v3403 = vld [vmem:[#allocation9 + $0x1d0] sm:$0xff]
    %v3404 = vld [vmem:[#allocation9 + $0x1d8] sm:$0xff]
    %v3405 = vld [vmem:[#allocation9 + $0x1e0] sm:$0xff]
    %v3406 = vld [vmem:[#allocation9 + $0x1e8] sm:$0xff]
    %v3407 = vld [vmem:[#allocation9 + $0x1f0] sm:$0xff]
    %v3408 = vld [vmem:[#allocation9 + $0x1f8] sm:$0xff]
    %v3409 = vpack.c.bf16 %v3061, %v3059
    %v3410 = vpack.c.bf16 %v3062, %v3060
    %v3411 = vpack.c.bf16 %v3065, %v3063
    %v3412 = vpack.c.bf16 %v3066, %v3064
    %v3413 = vpack.c.bf16 %v3069, %v3067
    %v3414 = vpack.c.bf16 %v3070, %v3068
    %v3415 = vpack.c.bf16 %v3073, %v3071
    %v3416 = vpack.c.bf16 %v3074, %v3072
    %v3417 = vpack.c.bf16 %v3077, %v3075
    %v3418 = vpack.c.bf16 %v3078, %v3076
    %v3419 = vpack.c.bf16 %v3081, %v3079
    %v3420 = vpack.c.bf16 %v3082, %v3080
    %v3421 = vpack.c.bf16 %v3085, %v3083
    %v3422 = vpack.c.bf16 %v3086, %v3084
    %v3423 = vpack.c.bf16 %v3089, %v3087
    %v3424 = vpack.c.bf16 %v3090, %v3088
    %v3425 = vpack.c.bf16 %v3093, %v3091
    %v3426 = vpack.c.bf16 %v3094, %v3092
    %v3427 = vpack.c.bf16 %v3097, %v3095
    %v3428 = vpack.c.bf16 %v3098, %v3096
    %v3429 = vpack.c.bf16 %v3101, %v3099
    %v3430 = vpack.c.bf16 %v3102, %v3100
    %v3431 = vpack.c.bf16 %v3105, %v3103
    %v3432 = vpack.c.bf16 %v3106, %v3104
    %v3433 = vpack.c.bf16 %v3109, %v3107
    %v3434 = vpack.c.bf16 %v3110, %v3108
    %s3435 = scalar_lea.vmem [#allocation9], 512
    %v3436 = vld [vmem:[%s3435] sm:$0xff]
    %v3437 = vld [vmem:[%s3435 + $0x8] sm:$0xff]
    %v3438 = vld [vmem:[%s3435 + $0x10] sm:$0xff]
    %v3439 = vld [vmem:[%s3435 + $0x18] sm:$0xff]
    %v3440 = vld [vmem:[%s3435 + $0x20] sm:$0xff]
    %v3441 = vld [vmem:[%s3435 + $0x28] sm:$0xff]
    %v3442 = vld [vmem:[%s3435 + $0x30] sm:$0xff]
    %v3443 = vld [vmem:[%s3435 + $0x38] sm:$0xff]
    %v3444 = vld [vmem:[%s3435 + $0x40] sm:$0xff]
    %v3445 = vld [vmem:[%s3435 + $0x48] sm:$0xff]
    %v3446 = vld [vmem:[%s3435 + $0x50] sm:$0xff]
    %v3447 = vld [vmem:[%s3435 + $0x58] sm:$0xff]
    %v3448 = vld [vmem:[%s3435 + $0x60] sm:$0xff]
    %v3449 = vld [vmem:[%s3435 + $0x68] sm:$0xff]
    %v3450 = vld [vmem:[%s3435 + $0x70] sm:$0xff]
    %v3451 = vld [vmem:[%s3435 + $0x78] sm:$0xff]
    %v3452 = vld [vmem:[%s3435 + $0x80] sm:$0xff]
    %v3453 = vld [vmem:[%s3435 + $0x88] sm:$0xff]
    %v3454 = vld [vmem:[%s3435 + $0x90] sm:$0xff]
    %v3455 = vld [vmem:[%s3435 + $0x98] sm:$0xff]
    %v3456 = vld [vmem:[%s3435 + $0xa0] sm:$0xff]
    %v3457 = vld [vmem:[%s3435 + $0xa8] sm:$0xff]
    %v3458 = vld [vmem:[%s3435 + $0xb0] sm:$0xff]
    %v3459 = vld [vmem:[%s3435 + $0xb8] sm:$0xff]
    %v3460 = vld [vmem:[%s3435 + $0xc0] sm:$0xff]
    %v3461 = vld [vmem:[%s3435 + $0xc8] sm:$0xff]
    %v3462 = vld [vmem:[%s3435 + $0xd0] sm:$0xff]
    %v3463 = vld [vmem:[%s3435 + $0xd8] sm:$0xff]
    %v3464 = vld [vmem:[%s3435 + $0xe0] sm:$0xff]
    %v3465 = vld [vmem:[%s3435 + $0xe8] sm:$0xff]
    %v3466 = vld [vmem:[%s3435 + $0xf0] sm:$0xff]
    %v3467 = vld [vmem:[%s3435 + $0xf8] sm:$0xff]
    %v3468 = vld [vmem:[%s3435 + $0x100] sm:$0xff]
    %v3469 = vld [vmem:[%s3435 + $0x108] sm:$0xff]
    %v3470 = vld [vmem:[%s3435 + $0x110] sm:$0xff]
    %v3471 = vld [vmem:[%s3435 + $0x118] sm:$0xff]
    %v3472 = vld [vmem:[%s3435 + $0x120] sm:$0xff]
    %v3473 = vld [vmem:[%s3435 + $0x128] sm:$0xff]
    %v3474 = vld [vmem:[%s3435 + $0x130] sm:$0xff]
    %v3475 = vld [vmem:[%s3435 + $0x138] sm:$0xff]
    %v3476 = vld [vmem:[%s3435 + $0x140] sm:$0xff]
    %v3477 = vld [vmem:[%s3435 + $0x148] sm:$0xff]
    %v3478 = vld [vmem:[%s3435 + $0x150] sm:$0xff]
    %v3479 = vld [vmem:[%s3435 + $0x158] sm:$0xff]
    %v3480 = vld [vmem:[%s3435 + $0x160] sm:$0xff]
    %v3481 = vld [vmem:[%s3435 + $0x168] sm:$0xff]
    %v3482 = vld [vmem:[%s3435 + $0x170] sm:$0xff]
    %v3483 = vld [vmem:[%s3435 + $0x178] sm:$0xff]
    %v3484 = vld [vmem:[%s3435 + $0x180] sm:$0xff]
    %v3485 = vld [vmem:[%s3435 + $0x188] sm:$0xff]
    %v3486 = vld [vmem:[%s3435 + $0x190] sm:$0xff]
    %v3487 = vld [vmem:[%s3435 + $0x198] sm:$0xff]
    %v3488 = vld [vmem:[%s3435 + $0x1a0] sm:$0xff]
    %v3489 = vld [vmem:[%s3435 + $0x1a8] sm:$0xff]
    %v3490 = vld [vmem:[%s3435 + $0x1b0] sm:$0xff]
    %v3491 = vld [vmem:[%s3435 + $0x1b8] sm:$0xff]
    %v3492 = vld [vmem:[%s3435 + $0x1c0] sm:$0xff]
    %v3493 = vld [vmem:[%s3435 + $0x1c8] sm:$0xff]
    %v3494 = vld [vmem:[%s3435 + $0x1d0] sm:$0xff]
    %v3495 = vld [vmem:[%s3435 + $0x1d8] sm:$0xff]
    %v3496 = vld [vmem:[%s3435 + $0x1e0] sm:$0xff]
    %v3497 = vld [vmem:[%s3435 + $0x1e8] sm:$0xff]
    %v3498 = vld [vmem:[%s3435 + $0x1f0] sm:$0xff]
    %v3499 = vld [vmem:[%s3435 + $0x1f8] sm:$0xff]
    %v3564 = vunpack.c.l.b16 %v3436
    %v3565 = vunpack.c.h.b16 %v3436
    %v3566 = vunpack.c.l.b16 %v3437
    %v3567 = vunpack.c.h.b16 %v3437
    %v3568 = vunpack.c.l.b16 %v3438
    %v3569 = vunpack.c.h.b16 %v3438
    %v3570 = vunpack.c.l.b16 %v3439
    %v3571 = vunpack.c.h.b16 %v3439
    %v3572 = vunpack.c.l.b16 %v3440
    %v3573 = vunpack.c.h.b16 %v3440
    %v3574 = vunpack.c.l.b16 %v3441
    %v3575 = vunpack.c.h.b16 %v3441
    %v3576 = vunpack.c.l.b16 %v3442
    %v3577 = vunpack.c.h.b16 %v3442
    %v3578 = vunpack.c.l.b16 %v3443
    %v3579 = vunpack.c.h.b16 %v3443
    %v3580 = vunpack.c.l.b16 %v3444
    %v3581 = vunpack.c.h.b16 %v3444
    %v3582 = vunpack.c.l.b16 %v3445
    %v3583 = vunpack.c.h.b16 %v3445
    %v3584 = vunpack.c.l.b16 %v3446
    %v3585 = vunpack.c.h.b16 %v3446
    %v3586 = vunpack.c.l.b16 %v3447
    %v3587 = vunpack.c.h.b16 %v3447
    %v3588 = vunpack.c.l.b16 %v3448
    %v3589 = vunpack.c.h.b16 %v3448
    %v3590 = vunpack.c.l.b16 %v3449
    %v3591 = vunpack.c.h.b16 %v3449
    %v3592 = vunpack.c.l.b16 %v3450
    %v3593 = vunpack.c.h.b16 %v3450
    %v3594 = vunpack.c.l.b16 %v3451
    %v3595 = vunpack.c.h.b16 %v3451
    %v3596 = vunpack.c.l.b16 %v3452
    %v3597 = vunpack.c.h.b16 %v3452
    %v3598 = vunpack.c.l.b16 %v3453
    %v3599 = vunpack.c.h.b16 %v3453
    %v3600 = vunpack.c.l.b16 %v3454
    %v3601 = vunpack.c.h.b16 %v3454
    %v3602 = vunpack.c.l.b16 %v3455
    %v3603 = vunpack.c.h.b16 %v3455
    %v3604 = vunpack.c.l.b16 %v3456
    %v3605 = vunpack.c.h.b16 %v3456
    %v3606 = vunpack.c.l.b16 %v3457
    %v3607 = vunpack.c.h.b16 %v3457
    %v3608 = vunpack.c.l.b16 %v3458
    %v3609 = vunpack.c.h.b16 %v3458
    %v3610 = vunpack.c.l.b16 %v3459
    %v3611 = vunpack.c.h.b16 %v3459
    %v3612 = vunpack.c.l.b16 %v3460
    %v3613 = vunpack.c.h.b16 %v3460
    %v3614 = vunpack.c.l.b16 %v3461
    %v3615 = vunpack.c.h.b16 %v3461
    %v3616 = vunpack.c.l.b16 %v3462
    %v3617 = vunpack.c.h.b16 %v3462
    %v3618 = vunpack.c.l.b16 %v3463
    %v3619 = vunpack.c.h.b16 %v3463
    %v3620 = vunpack.c.l.b16 %v3464
    %v3621 = vunpack.c.h.b16 %v3464
    %v3622 = vunpack.c.l.b16 %v3465
    %v3623 = vunpack.c.h.b16 %v3465
    %v3624 = vunpack.c.l.b16 %v3466
    %v3625 = vunpack.c.h.b16 %v3466
    %v3626 = vunpack.c.l.b16 %v3467
    %v3627 = vunpack.c.h.b16 %v3467
    %v3628 = vunpack.c.l.b16 %v3468
    %v3629 = vunpack.c.h.b16 %v3468
    %v3630 = vunpack.c.l.b16 %v3469
    %v3631 = vunpack.c.h.b16 %v3469
    %v3632 = vunpack.c.l.b16 %v3470
    %v3633 = vunpack.c.h.b16 %v3470
    %v3634 = vunpack.c.l.b16 %v3471
    %v3635 = vunpack.c.h.b16 %v3471
    %v3636 = vunpack.c.l.b16 %v3472
    %v3637 = vunpack.c.h.b16 %v3472
    %v3638 = vunpack.c.l.b16 %v3473
    %v3639 = vunpack.c.h.b16 %v3473
    %v3640 = vunpack.c.l.b16 %v3474
    %v3641 = vunpack.c.h.b16 %v3474
    %v3642 = vunpack.c.l.b16 %v3475
    %v3643 = vunpack.c.h.b16 %v3475
    %v3644 = vunpack.c.l.b16 %v3476
    %v3645 = vunpack.c.h.b16 %v3476
    %v3646 = vunpack.c.l.b16 %v3477
    %v3647 = vunpack.c.h.b16 %v3477
    %v3648 = vunpack.c.l.b16 %v3478
    %v3649 = vunpack.c.h.b16 %v3478
    %v3650 = vunpack.c.l.b16 %v3479
    %v3651 = vunpack.c.h.b16 %v3479
    %v3652 = vunpack.c.l.b16 %v3480
    %v3653 = vunpack.c.h.b16 %v3480
    %v3654 = vunpack.c.l.b16 %v3481
    %v3655 = vunpack.c.h.b16 %v3481
    %v3656 = vunpack.c.l.b16 %v3482
    %v3657 = vunpack.c.h.b16 %v3482
    %v3658 = vunpack.c.l.b16 %v3483
    %v3659 = vunpack.c.h.b16 %v3483
    %v3660 = vunpack.c.l.b16 %v3484
    %v3661 = vunpack.c.h.b16 %v3484
    %v3662 = vunpack.c.l.b16 %v3485
    %v3663 = vunpack.c.h.b16 %v3485
    %v3664 = vunpack.c.l.b16 %v3486
    %v3665 = vunpack.c.h.b16 %v3486
    %v3666 = vunpack.c.l.b16 %v3487
    %v3667 = vunpack.c.h.b16 %v3487
    %v3668 = vunpack.c.l.b16 %v3488
    %v3669 = vunpack.c.h.b16 %v3488
    %v3670 = vunpack.c.l.b16 %v3489
    %v3671 = vunpack.c.h.b16 %v3489
    %v3672 = vunpack.c.l.b16 %v3490
    %v3673 = vunpack.c.h.b16 %v3490
    %v3674 = vunpack.c.l.b16 %v3491
    %v3675 = vunpack.c.h.b16 %v3491
    %v3676 = vunpack.c.l.b16 %v3492
    %v3677 = vunpack.c.h.b16 %v3492
    %v3678 = vunpack.c.l.b16 %v3493
    %v3679 = vunpack.c.h.b16 %v3493
    %v3680 = vunpack.c.l.b16 %v3494
    %v3681 = vunpack.c.h.b16 %v3494
    %v3682 = vunpack.c.l.b16 %v3495
    %v3683 = vunpack.c.h.b16 %v3495
    %v3684 = vunpack.c.l.b16 %v3496
    %v3685 = vunpack.c.h.b16 %v3496
    %v3686 = vunpack.c.l.b16 %v3497
    %v3687 = vunpack.c.h.b16 %v3497
    %v3688 = vunpack.c.l.b16 %v3498
    %v3689 = vunpack.c.h.b16 %v3498
    %v3690 = vunpack.c.l.b16 %v3499
    %v3691 = vunpack.c.h.b16 %v3499
    %v3692 = vpack.c.b16 %v3568, %v3564
    %v3693 = vpack.c.b16 %v3569, %v3565
    %v3694 = vpack.c.b16 %v3570, %v3566
    %v3695 = vpack.c.b16 %v3571, %v3567
    %v3696 = vpack.c.b16 %v3576, %v3572
    %v3697 = vpack.c.b16 %v3577, %v3573
    %v3698 = vpack.c.b16 %v3578, %v3574
    %v3699 = vpack.c.b16 %v3579, %v3575
    %v3700 = vpack.c.b16 %v3584, %v3580
    %v3701 = vpack.c.b16 %v3585, %v3581
    %v3702 = vpack.c.b16 %v3586, %v3582
    %v3703 = vpack.c.b16 %v3587, %v3583
    %v3704 = vpack.c.b16 %v3592, %v3588
    %v3705 = vpack.c.b16 %v3593, %v3589
    %v3706 = vpack.c.b16 %v3594, %v3590
    %v3707 = vpack.c.b16 %v3595, %v3591
    %v3708 = vpack.c.b16 %v3600, %v3596
    %v3709 = vpack.c.b16 %v3601, %v3597
    %v3710 = vpack.c.b16 %v3602, %v3598
    %v3711 = vpack.c.b16 %v3603, %v3599
    %v3712 = vpack.c.b16 %v3608, %v3604
    %v3713 = vpack.c.b16 %v3609, %v3605
    %v3714 = vpack.c.b16 %v3610, %v3606
    %v3715 = vpack.c.b16 %v3611, %v3607
    %v3716 = vpack.c.b16 %v3616, %v3612
    %v3717 = vpack.c.b16 %v3617, %v3613
    %v3718 = vpack.c.b16 %v3618, %v3614
    %v3719 = vpack.c.b16 %v3619, %v3615
    %v3720 = vpack.c.b16 %v3624, %v3620
    %v3721 = vpack.c.b16 %v3625, %v3621
    %v3722 = vpack.c.b16 %v3626, %v3622
    %v3723 = vpack.c.b16 %v3627, %v3623
    %v3724 = vpack.c.b16 %v3632, %v3628
    %v3725 = vpack.c.b16 %v3633, %v3629
    %v3726 = vpack.c.b16 %v3634, %v3630
    %v3727 = vpack.c.b16 %v3635, %v3631
    %v3728 = vpack.c.b16 %v3640, %v3636
    %v3729 = vpack.c.b16 %v3641, %v3637
    %v3730 = vpack.c.b16 %v3642, %v3638
    %v3731 = vpack.c.b16 %v3643, %v3639
    %v3732 = vpack.c.b16 %v3648, %v3644
    %v3733 = vpack.c.b16 %v3649, %v3645
    %v3734 = vpack.c.b16 %v3650, %v3646
    %v3735 = vpack.c.b16 %v3651, %v3647
    %v3736 = vpack.c.b16 %v3656, %v3652
    %v3737 = vpack.c.b16 %v3657, %v3653
    %v3738 = vpack.c.b16 %v3658, %v3654
    %v3739 = vpack.c.b16 %v3659, %v3655
    %v3740 = vpack.c.b16 %v3664, %v3660
    %v3741 = vpack.c.b16 %v3665, %v3661
    %v3742 = vpack.c.b16 %v3666, %v3662
    %v3743 = vpack.c.b16 %v3667, %v3663
    %v3744 = vpack.c.b16 %v3672, %v3668
    %v3745 = vpack.c.b16 %v3673, %v3669
    %v3746 = vpack.c.b16 %v3674, %v3670
    %v3747 = vpack.c.b16 %v3675, %v3671
    %v3748 = vpack.c.b16 %v3680, %v3676
    %v3749 = vpack.c.b16 %v3681, %v3677
    %v3750 = vpack.c.b16 %v3682, %v3678
    %v3751 = vpack.c.b16 %v3683, %v3679
    %v3752 = vpack.c.b16 %v3688, %v3684
    %v3753 = vpack.c.b16 %v3689, %v3685
    %v3754 = vpack.c.b16 %v3690, %v3686
    %v3755 = vpack.c.b16 %v3691, %v3687
    %3820 = vmatprep.subr.bf16.mxu0 %v3693
    %3821 = vmatpush1.bf16.msra.mxu0 %v3692
    %3822 = vmatprep.subr.bf16.mxu0 %v3697
    %3823 = vmatpush1.bf16.msra.mxu0 %v3696
    %3824 = vmatprep.subr.bf16.mxu0 %v3701
    %3825 = vmatpush1.bf16.msra.mxu0 %v3700
    %3826 = vmatprep.subr.bf16.mxu0 %v3705
    %3827 = vmatpush1.bf16.msra.mxu0 %v3704
    %3828 = vmatprep.subr.bf16.mxu0 %v3709
    %3829 = vmatpush1.bf16.msra.mxu0 %v3708
    %3830 = vmatprep.subr.bf16.mxu0 %v3713
    %3831 = vmatpush1.bf16.msra.mxu0 %v3712
    %3832 = vmatprep.subr.bf16.mxu0 %v3717
    %3833 = vmatpush1.bf16.msra.mxu0 %v3716
    %3834 = vmatprep.subr.bf16.mxu0 %v3721
    %3835 = vmatpush1.bf16.msra.mxu0 %v3720
    %3836 = vmatprep.subr.bf16.mxu0 %v3725
    %3837 = vmatpush1.bf16.msra.mxu0 %v3724
    %3838 = vmatprep.subr.bf16.mxu0 %v3729
    %3839 = vmatpush1.bf16.msra.mxu0 %v3728
    %3840 = vmatprep.subr.bf16.mxu0 %v3733
    %3841 = vmatpush1.bf16.msra.mxu0 %v3732
    %3842 = vmatprep.subr.bf16.mxu0 %v3737
    %3843 = vmatpush1.bf16.msra.mxu0 %v3736
    %3844 = vmatprep.subr.bf16.mxu0 %v3741
    %3845 = vmatpush1.bf16.msra.mxu0 %v3740
    %3846 = vmatprep.subr.bf16.mxu0 %v3745
    %3847 = vmatpush1.bf16.msra.mxu0 %v3744
    %3848 = vmatprep.subr.bf16.mxu0 %v3749
    %3849 = vmatpush1.bf16.msra.mxu0 %v3748
    %3850 = vmatprep.subr.bf16.mxu0 %v3753
    %3851 = vmatpush1.bf16.msra.mxu0 %v3752
    %3852 = vmatprep.mubr.bf16.mxu0 %v3410
    %3853 = vmatmul.mubr.bf16.gmra.mrb[0].mxu0 %v3409
    %v3854 = vpop.f32.mrb[0].mxu0
    %v3855 = vadd.f32 0.0, %v3854
    %v3856 = vpop.f32.mrb[0].mxu0
    %v3857 = vadd.f32 0.0, %v3856
    %v3858 = vpop.f32.mrb[0].mxu0
    %v3859 = vadd.f32 0.0, %v3858
    %v3860 = vpop.f32.mrb[0].mxu0
    %v3861 = vadd.f32 0.0, %v3860
    %3862 = vmatprep.mubr.bf16.mxu0 %v3412
    %3863 = vmatmul.mubr.bf16.gmra.mrb[0].mxu0 %v3411
    %v3864 = vpop.f32.mrb[0].mxu0
    %v3865 = vadd.f32 0.0, %v3864
    %v3866 = vpop.f32.mrb[0].mxu0
    %v3867 = vadd.f32 0.0, %v3866
    %v3868 = vpop.f32.mrb[0].mxu0
    %v3869 = vadd.f32 0.0, %v3868
    %v3870 = vpop.f32.mrb[0].mxu0
    %v3871 = vadd.f32 0.0, %v3870
    %3872 = vmatprep.mubr.bf16.mxu0 %v3414
    %3873 = vmatmul.mubr.bf16.gmra.mrb[0].mxu0 %v3413
    %v3874 = vpop.f32.mrb[0].mxu0
    %v3875 = vadd.f32 0.0, %v3874
    %v3876 = vpop.f32.mrb[0].mxu0
    %v3877 = vadd.f32 0.0, %v3876
    %v3878 = vpop.f32.mrb[0].mxu0
    %v3879 = vadd.f32 0.0, %v3878
    %v3880 = vpop.f32.mrb[0].mxu0
    %v3881 = vadd.f32 0.0, %v3880
    %3882 = vmatprep.mubr.bf16.mxu0 %v3416
    %3883 = vmatmul.mubr.bf16.gmra.mrb[0].mxu0 %v3415
    %v3884 = vpop.f32.mrb[0].mxu0
    %v3885 = vadd.f32 0.0, %v3884
    %v3886 = vpop.f32.mrb[0].mxu0
    %v3887 = vadd.f32 0.0, %v3886
    %v3888 = vpop.f32.mrb[0].mxu0
    %v3889 = vadd.f32 0.0, %v3888
    %v3890 = vpop.f32.mrb[0].mxu0
    %v3891 = vadd.f32 0.0, %v3890
    %3892 = vmatprep.mubr.bf16.mxu0 %v3418
    %3893 = vmatmul.mubr.bf16.gmra.mrb[0].mxu0 %v3417
    %v3894 = vpop.f32.mrb[0].mxu0
    %v3895 = vadd.f32 0.0, %v3894
    %v3896 = vpop.f32.mrb[0].mxu0
    %v3897 = vadd.f32 0.0, %v3896
    %v3898 = vpop.f32.mrb[0].mxu0
    %v3899 = vadd.f32 0.0, %v3898
    %v3900 = vpop.f32.mrb[0].mxu0
    %v3901 = vadd.f32 0.0, %v3900
    %3902 = vmatprep.mubr.bf16.mxu0 %v3420
    %3903 = vmatmul.mubr.bf16.gmra.mrb[0].mxu0 %v3419
    %v3904 = vpop.f32.mrb[0].mxu0
    %v3905 = vadd.f32 0.0, %v3904
    %v3906 = vpop.f32.mrb[0].mxu0
    %v3907 = vadd.f32 0.0, %v3906
    %v3908 = vpop.f32.mrb[0].mxu0
    %v3909 = vadd.f32 0.0, %v3908
    %v3910 = vpop.f32.mrb[0].mxu0
    %v3911 = vadd.f32 0.0, %v3910
    %3912 = vmatprep.mubr.bf16.mxu0 %v3422
    %3913 = vmatmul.mubr.bf16.gmra.mrb[0].mxu0 %v3421
    %v3914 = vpop.f32.mrb[0].mxu0
    %v3915 = vadd.f32 0.0, %v3914
    %v3916 = vpop.f32.mrb[0].mxu0
    %v3917 = vadd.f32 0.0, %v3916
    %v3918 = vpop.f32.mrb[0].mxu0
    %v3919 = vadd.f32 0.0, %v3918
    %v3920 = vpop.f32.mrb[0].mxu0
    %v3921 = vadd.f32 0.0, %v3920
    %3922 = vmatprep.mubr.bf16.mxu0 %v3424
    %3923 = vmatmul.mubr.bf16.gmra.mrb[0].mxu0 %v3423
    %v3924 = vpop.f32.mrb[0].mxu0
    %v3925 = vadd.f32 0.0, %v3924
    %v3926 = vpop.f32.mrb[0].mxu0
    %v3927 = vadd.f32 0.0, %v3926
    %v3928 = vpop.f32.mrb[0].mxu0
    %v3929 = vadd.f32 0.0, %v3928
    %v3930 = vpop.f32.mrb[0].mxu0
    %v3931 = vadd.f32 0.0, %v3930
    %3932 = vmatprep.mubr.bf16.mxu0 %v3426
    %3933 = vmatmul.mubr.bf16.gmra.mrb[0].mxu0 %v3425
    %v3934 = vpop.f32.mrb[0].mxu0
    %v3935 = vadd.f32 0.0, %v3934
    %v3936 = vpop.f32.mrb[0].mxu0
    %v3937 = vadd.f32 0.0, %v3936
    %v3938 = vpop.f32.mrb[0].mxu0
    %v3939 = vadd.f32 0.0, %v3938
    %v3940 = vpop.f32.mrb[0].mxu0
    %v3941 = vadd.f32 0.0, %v3940
    %3942 = vmatprep.mubr.bf16.mxu0 %v3428
    %3943 = vmatmul.mubr.bf16.gmra.mrb[0].mxu0 %v3427
    %v3944 = vpop.f32.mrb[0].mxu0
    %v3945 = vadd.f32 0.0, %v3944
    %v3946 = vpop.f32.mrb[0].mxu0
    %v3947 = vadd.f32 0.0, %v3946
    %v3948 = vpop.f32.mrb[0].mxu0
    %v3949 = vadd.f32 0.0, %v3948
    %v3950 = vpop.f32.mrb[0].mxu0
    %v3951 = vadd.f32 0.0, %v3950
    %3952 = vmatprep.mubr.bf16.mxu0 %v3430
    %3953 = vmatmul.mubr.bf16.gmra.mrb[0].mxu0 %v3429
    %v3954 = vpop.f32.mrb[0].mxu0
    %v3955 = vadd.f32 0.0, %v3954
    %v3956 = vpop.f32.mrb[0].mxu0
    %v3957 = vadd.f32 0.0, %v3956
    %v3958 = vpop.f32.mrb[0].mxu0
    %v3959 = vadd.f32 0.0, %v3958
    %v3960 = vpop.f32.mrb[0].mxu0
    %v3961 = vadd.f32 0.0, %v3960
    %3962 = vmatprep.mubr.bf16.mxu0 %v3432
    %3963 = vmatmul.mubr.bf16.gmra.mrb[0].mxu0 %v3431
    %v3964 = vpop.f32.mrb[0].mxu0
    %v3965 = vadd.f32 0.0, %v3964
    %v3966 = vpop.f32.mrb[0].mxu0
    %v3967 = vadd.f32 0.0, %v3966
    %v3968 = vpop.f32.mrb[0].mxu0
    %v3969 = vadd.f32 0.0, %v3968
    %v3970 = vpop.f32.mrb[0].mxu0
    %v3971 = vadd.f32 0.0, %v3970
    %3972 = vmatprep.mubr.bf16.mxu0 %v3434
    %3973 = vmatmul.mubr.bf16.gmra.mrb[0].mxu0 %v3433
    %v3974 = vpop.f32.mrb[0].mxu0
    %v3975 = vadd.f32 0.0, %v3974
    %v3976 = vpop.f32.mrb[0].mxu0
    %v3977 = vadd.f32 0.0, %v3976
    %v3978 = vpop.f32.mrb[0].mxu0
    %v3979 = vadd.f32 0.0, %v3978
    %v3980 = vpop.f32.mrb[0].mxu0
    %v3981 = vadd.f32 0.0, %v3980
    %3982 = vdwg.mxu0
    %3983 = vmatprep.subr.bf16.mxu0 %v3695
    %3984 = vmatpush1.bf16.msra.mxu0 %v3694
    %3985 = vmatprep.subr.bf16.mxu0 %v3699
    %3986 = vmatpush1.bf16.msra.mxu0 %v3698
    %3987 = vmatprep.subr.bf16.mxu0 %v3703
    %3988 = vmatpush1.bf16.msra.mxu0 %v3702
    %3989 = vmatprep.subr.bf16.mxu0 %v3707
    %3990 = vmatpush1.bf16.msra.mxu0 %v3706
    %3991 = vmatprep.subr.bf16.mxu0 %v3711
    %3992 = vmatpush1.bf16.msra.mxu0 %v3710
    %3993 = vmatprep.subr.bf16.mxu0 %v3715
    %3994 = vmatpush1.bf16.msra.mxu0 %v3714
    %3995 = vmatprep.subr.bf16.mxu0 %v3719
    %3996 = vmatpush1.bf16.msra.mxu0 %v3718
    %3997 = vmatprep.subr.bf16.mxu0 %v3723
    %3998 = vmatpush1.bf16.msra.mxu0 %v3722
    %3999 = vmatprep.subr.bf16.mxu0 %v3727
    %4000 = vmatpush1.bf16.msra.mxu0 %v3726
    %4001 = vmatprep.subr.bf16.mxu0 %v3731
    %4002 = vmatpush1.bf16.msra.mxu0 %v3730
    %4003 = vmatprep.subr.bf16.mxu0 %v3735
    %4004 = vmatpush1.bf16.msra.mxu0 %v3734
    %4005 = vmatprep.subr.bf16.mxu0 %v3739
    %4006 = vmatpush1.bf16.msra.mxu0 %v3738
    %4007 = vmatprep.subr.bf16.mxu0 %v3743
    %4008 = vmatpush1.bf16.msra.mxu0 %v3742
    %4009 = vmatprep.subr.bf16.mxu0 %v3747
    %4010 = vmatpush1.bf16.msra.mxu0 %v3746
    %4011 = vmatprep.subr.bf16.mxu0 %v3751
    %4012 = vmatpush1.bf16.msra.mxu0 %v3750
    %4013 = vmatprep.subr.bf16.mxu0 %v3755
    %4014 = vmatpush1.bf16.msra.mxu0 %v3754
    %4015 = vmatprep.mubr.bf16.mxu0 %v3410
    %4016 = vmatmul.mubr.bf16.gmra.mrb[0].mxu0 %v3409
    %v4017 = vpop.f32.mrb[0].mxu0
    %v4018 = vadd.f32 0.0, %v4017
    %v4019 = vpop.f32.mrb[0].mxu0
    %v4020 = vadd.f32 0.0, %v4019
    %v4021 = vpop.f32.mrb[0].mxu0
    %v4022 = vadd.f32 0.0, %v4021
    %v4023 = vpop.f32.mrb[0].mxu0
    %v4024 = vadd.f32 0.0, %v4023
    %4025 = vmatprep.mubr.bf16.mxu0 %v3412
    %4026 = vmatmul.mubr.bf16.gmra.mrb[0].mxu0 %v3411
    %v4027 = vpop.f32.mrb[0].mxu0
    %v4028 = vadd.f32 0.0, %v4027
    %v4029 = vpop.f32.mrb[0].mxu0
    %v4030 = vadd.f32 0.0, %v4029
    %v4031 = vpop.f32.mrb[0].mxu0
    %v4032 = vadd.f32 0.0, %v4031
    %v4033 = vpop.f32.mrb[0].mxu0
    %v4034 = vadd.f32 0.0, %v4033
    %4035 = vmatprep.mubr.bf16.mxu0 %v3414
    %4036 = vmatmul.mubr.bf16.gmra.mrb[0].mxu0 %v3413
    %v4037 = vpop.f32.mrb[0].mxu0
    %v4038 = vadd.f32 0.0, %v4037
    %v4039 = vpop.f32.mrb[0].mxu0
    %v4040 = vadd.f32 0.0, %v4039
    %v4041 = vpop.f32.mrb[0].mxu0
    %v4042 = vadd.f32 0.0, %v4041
    %v4043 = vpop.f32.mrb[0].mxu0
    %v4044 = vadd.f32 0.0, %v4043
    %4045 = vmatprep.mubr.bf16.mxu0 %v3416
    %4046 = vmatmul.mubr.bf16.gmra.mrb[0].mxu0 %v3415
    %v4047 = vpop.f32.mrb[0].mxu0
    %v4048 = vadd.f32 0.0, %v4047
    %v4049 = vpop.f32.mrb[0].mxu0
    %v4050 = vadd.f32 0.0, %v4049
    %v4051 = vpop.f32.mrb[0].mxu0
    %v4052 = vadd.f32 0.0, %v4051
    %v4053 = vpop.f32.mrb[0].mxu0
    %v4054 = vadd.f32 0.0, %v4053
    %4055 = vmatprep.mubr.bf16.mxu0 %v3418
    %4056 = vmatmul.mubr.bf16.gmra.mrb[0].mxu0 %v3417
    %v4057 = vpop.f32.mrb[0].mxu0
    %v4058 = vadd.f32 0.0, %v4057
    %v4059 = vpop.f32.mrb[0].mxu0
    %v4060 = vadd.f32 0.0, %v4059
    %v4061 = vpop.f32.mrb[0].mxu0
    %v4062 = vadd.f32 0.0, %v4061
    %v4063 = vpop.f32.mrb[0].mxu0
    %v4064 = vadd.f32 0.0, %v4063
    %4065 = vmatprep.mubr.bf16.mxu0 %v3420
    %4066 = vmatmul.mubr.bf16.gmra.mrb[0].mxu0 %v3419
    %v4067 = vpop.f32.mrb[0].mxu0
    %v4068 = vadd.f32 0.0, %v4067
    %v4069 = vpop.f32.mrb[0].mxu0
    %v4070 = vadd.f32 0.0, %v4069
    %v4071 = vpop.f32.mrb[0].mxu0
    %v4072 = vadd.f32 0.0, %v4071
    %v4073 = vpop.f32.mrb[0].mxu0
    %v4074 = vadd.f32 0.0, %v4073
    %4075 = vmatprep.mubr.bf16.mxu0 %v3422
    %4076 = vmatmul.mubr.bf16.gmra.mrb[0].mxu0 %v3421
    %v4077 = vpop.f32.mrb[0].mxu0
    %v4078 = vadd.f32 0.0, %v4077
    %v4079 = vpop.f32.mrb[0].mxu0
    %v4080 = vadd.f32 0.0, %v4079
    %v4081 = vpop.f32.mrb[0].mxu0
    %v4082 = vadd.f32 0.0, %v4081
    %v4083 = vpop.f32.mrb[0].mxu0
    %v4084 = vadd.f32 0.0, %v4083
    %4085 = vmatprep.mubr.bf16.mxu0 %v3424
    %4086 = vmatmul.mubr.bf16.gmra.mrb[0].mxu0 %v3423
    %v4087 = vpop.f32.mrb[0].mxu0
    %v4088 = vadd.f32 0.0, %v4087
    %v4089 = vpop.f32.mrb[0].mxu0
    %v4090 = vadd.f32 0.0, %v4089
    %v4091 = vpop.f32.mrb[0].mxu0
    %v4092 = vadd.f32 0.0, %v4091
    %v4093 = vpop.f32.mrb[0].mxu0
    %v4094 = vadd.f32 0.0, %v4093
    %4095 = vmatprep.mubr.bf16.mxu0 %v3426
    %4096 = vmatmul.mubr.bf16.gmra.mrb[0].mxu0 %v3425
    %v4097 = vpop.f32.mrb[0].mxu0
    %v4098 = vadd.f32 0.0, %v4097
    %v4099 = vpop.f32.mrb[0].mxu0
    %v4100 = vadd.f32 0.0, %v4099
    %v4101 = vpop.f32.mrb[0].mxu0
    %v4102 = vadd.f32 0.0, %v4101
    %v4103 = vpop.f32.mrb[0].mxu0
    %v4104 = vadd.f32 0.0, %v4103
    %4105 = vmatprep.mubr.bf16.mxu0 %v3428
    %4106 = vmatmul.mubr.bf16.gmra.mrb[0].mxu0 %v3427
    %v4107 = vpop.f32.mrb[0].mxu0
    %v4108 = vadd.f32 0.0, %v4107
    %v4109 = vpop.f32.mrb[0].mxu0
    %v4110 = vadd.f32 0.0, %v4109
    %v4111 = vpop.f32.mrb[0].mxu0
    %v4112 = vadd.f32 0.0, %v4111
    %v4113 = vpop.f32.mrb[0].mxu0
    %v4114 = vadd.f32 0.0, %v4113
    %4115 = vmatprep.mubr.bf16.mxu0 %v3430
    %4116 = vmatmul.mubr.bf16.gmra.mrb[0].mxu0 %v3429
    %v4117 = vpop.f32.mrb[0].mxu0
    %v4118 = vadd.f32 0.0, %v4117
    %v4119 = vpop.f32.mrb[0].mxu0
    %v4120 = vadd.f32 0.0, %v4119
    %v4121 = vpop.f32.mrb[0].mxu0
    %v4122 = vadd.f32 0.0, %v4121
    %v4123 = vpop.f32.mrb[0].mxu0
    %v4124 = vadd.f32 0.0, %v4123
    %4125 = vmatprep.mubr.bf16.mxu0 %v3432
    %4126 = vmatmul.mubr.bf16.gmra.mrb[0].mxu0 %v3431
    %v4127 = vpop.f32.mrb[0].mxu0
    %v4128 = vadd.f32 0.0, %v4127
    %v4129 = vpop.f32.mrb[0].mxu0
    %v4130 = vadd.f32 0.0, %v4129
    %v4131 = vpop.f32.mrb[0].mxu0
    %v4132 = vadd.f32 0.0, %v4131
    %v4133 = vpop.f32.mrb[0].mxu0
    %v4134 = vadd.f32 0.0, %v4133
    %4135 = vmatprep.mubr.bf16.mxu0 %v3434
    %4136 = vmatmul.mubr.bf16.gmra.mrb[0].mxu0 %v3433
    %v4137 = vpop.f32.mrb[0].mxu0
    %v4138 = vadd.f32 0.0, %v4137
    %v4139 = vpop.f32.mrb[0].mxu0
    %v4140 = vadd.f32 0.0, %v4139
    %v4141 = vpop.f32.mrb[0].mxu0
    %v4142 = vadd.f32 0.0, %v4141
    %v4143 = vpop.f32.mrb[0].mxu0
    %v4144 = vadd.f32 0.0, %v4143
    %4145 = vdwg.mxu0
    %v4210 = vunpack.c.l.b16 %v3345
    %v4211 = vunpack.c.h.b16 %v3345
    %v4212 = vunpack.c.l.b16 %v3346
    %v4213 = vunpack.c.h.b16 %v3346
    %v4214 = vunpack.c.l.b16 %v3347
    %v4215 = vunpack.c.h.b16 %v3347
    %v4216 = vunpack.c.l.b16 %v3348
    %v4217 = vunpack.c.h.b16 %v3348
    %v4218 = vunpack.c.l.b16 %v3349
    %v4219 = vunpack.c.h.b16 %v3349
    %v4220 = vunpack.c.l.b16 %v3350
    %v4221 = vunpack.c.h.b16 %v3350
    %v4222 = vunpack.c.l.b16 %v3351
    %v4223 = vunpack.c.h.b16 %v3351
    %v4224 = vunpack.c.l.b16 %v3352
    %v4225 = vunpack.c.h.b16 %v3352
    %v4226 = vunpack.c.l.b16 %v3353
    %v4227 = vunpack.c.h.b16 %v3353
    %v4228 = vunpack.c.l.b16 %v3354
    %v4229 = vunpack.c.h.b16 %v3354
    %v4230 = vunpack.c.l.b16 %v3355
    %v4231 = vunpack.c.h.b16 %v3355
    %v4232 = vunpack.c.l.b16 %v3356
    %v4233 = vunpack.c.h.b16 %v3356
    %v4234 = vunpack.c.l.b16 %v3357
    %v4235 = vunpack.c.h.b16 %v3357
    %v4236 = vunpack.c.l.b16 %v3358
    %v4237 = vunpack.c.h.b16 %v3358
    %v4238 = vunpack.c.l.b16 %v3359
    %v4239 = vunpack.c.h.b16 %v3359
    %v4240 = vunpack.c.l.b16 %v3360
    %v4241 = vunpack.c.h.b16 %v3360
    %v4242 = vunpack.c.l.b16 %v3361
    %v4243 = vunpack.c.h.b16 %v3361
    %v4244 = vunpack.c.l.b16 %v3362
    %v4245 = vunpack.c.h.b16 %v3362
    %v4246 = vunpack.c.l.b16 %v3363
    %v4247 = vunpack.c.h.b16 %v3363
    %v4248 = vunpack.c.l.b16 %v3364
    %v4249 = vunpack.c.h.b16 %v3364
    %v4250 = vunpack.c.l.b16 %v3365
    %v4251 = vunpack.c.h.b16 %v3365
    %v4252 = vunpack.c.l.b16 %v3366
    %v4253 = vunpack.c.h.b16 %v3366
    %v4254 = vunpack.c.l.b16 %v3367
    %v4255 = vunpack.c.h.b16 %v3367
    %v4256 = vunpack.c.l.b16 %v3368
    %v4257 = vunpack.c.h.b16 %v3368
    %v4258 = vunpack.c.l.b16 %v3369
    %v4259 = vunpack.c.h.b16 %v3369
    %v4260 = vunpack.c.l.b16 %v3370
    %v4261 = vunpack.c.h.b16 %v3370
    %v4262 = vunpack.c.l.b16 %v3371
    %v4263 = vunpack.c.h.b16 %v3371
    %v4264 = vunpack.c.l.b16 %v3372
    %v4265 = vunpack.c.h.b16 %v3372
    %v4266 = vunpack.c.l.b16 %v3373
    %v4267 = vunpack.c.h.b16 %v3373
    %v4268 = vunpack.c.l.b16 %v3374
    %v4269 = vunpack.c.h.b16 %v3374
    %v4270 = vunpack.c.l.b16 %v3375
    %v4271 = vunpack.c.h.b16 %v3375
    %v4272 = vunpack.c.l.b16 %v3376
    %v4273 = vunpack.c.h.b16 %v3376
    %v4274 = vunpack.c.l.b16 %v3377
    %v4275 = vunpack.c.h.b16 %v3377
    %v4276 = vunpack.c.l.b16 %v3378
    %v4277 = vunpack.c.h.b16 %v3378
    %v4278 = vunpack.c.l.b16 %v3379
    %v4279 = vunpack.c.h.b16 %v3379
    %v4280 = vunpack.c.l.b16 %v3380
    %v4281 = vunpack.c.h.b16 %v3380
    %v4282 = vunpack.c.l.b16 %v3381
    %v4283 = vunpack.c.h.b16 %v3381
    %v4284 = vunpack.c.l.b16 %v3382
    %v4285 = vunpack.c.h.b16 %v3382
    %v4286 = vunpack.c.l.b16 %v3383
    %v4287 = vunpack.c.h.b16 %v3383
    %v4288 = vunpack.c.l.b16 %v3384
    %v4289 = vunpack.c.h.b16 %v3384
    %v4290 = vunpack.c.l.b16 %v3385
    %v4291 = vunpack.c.h.b16 %v3385
    %v4292 = vunpack.c.l.b16 %v3386
    %v4293 = vunpack.c.h.b16 %v3386
    %v4294 = vunpack.c.l.b16 %v3387
    %v4295 = vunpack.c.h.b16 %v3387
    %v4296 = vunpack.c.l.b16 %v3388
    %v4297 = vunpack.c.h.b16 %v3388
    %v4298 = vunpack.c.l.b16 %v3389
    %v4299 = vunpack.c.h.b16 %v3389
    %v4300 = vunpack.c.l.b16 %v3390
    %v4301 = vunpack.c.h.b16 %v3390
    %v4302 = vunpack.c.l.b16 %v3391
    %v4303 = vunpack.c.h.b16 %v3391
    %v4304 = vunpack.c.l.b16 %v3392
    %v4305 = vunpack.c.h.b16 %v3392
    %v4306 = vunpack.c.l.b16 %v3393
    %v4307 = vunpack.c.h.b16 %v3393
    %v4308 = vunpack.c.l.b16 %v3394
    %v4309 = vunpack.c.h.b16 %v3394
    %v4310 = vunpack.c.l.b16 %v3395
    %v4311 = vunpack.c.h.b16 %v3395
    %v4312 = vunpack.c.l.b16 %v3396
    %v4313 = vunpack.c.h.b16 %v3396
    %v4314 = vunpack.c.l.b16 %v3397
    %v4315 = vunpack.c.h.b16 %v3397
    %v4316 = vunpack.c.l.b16 %v3398
    %v4317 = vunpack.c.h.b16 %v3398
    %v4318 = vunpack.c.l.b16 %v3399
    %v4319 = vunpack.c.h.b16 %v3399
    %v4320 = vunpack.c.l.b16 %v3400
    %v4321 = vunpack.c.h.b16 %v3400
    %v4322 = vunpack.c.l.b16 %v3401
    %v4323 = vunpack.c.h.b16 %v3401
    %v4324 = vunpack.c.l.b16 %v3402
    %v4325 = vunpack.c.h.b16 %v3402
    %v4326 = vunpack.c.l.b16 %v3403
    %v4327 = vunpack.c.h.b16 %v3403
    %v4328 = vunpack.c.l.b16 %v3404
    %v4329 = vunpack.c.h.b16 %v3404
    %v4330 = vunpack.c.l.b16 %v3405
    %v4331 = vunpack.c.h.b16 %v3405
    %v4332 = vunpack.c.l.b16 %v3406
    %v4333 = vunpack.c.h.b16 %v3406
    %v4334 = vunpack.c.l.b16 %v3407
    %v4335 = vunpack.c.h.b16 %v3407
    %v4336 = vunpack.c.l.b16 %v3408
    %v4337 = vunpack.c.h.b16 %v3408
    %v4338 = vpack.c.b16 %v4214, %v4210
    %v4339 = vpack.c.b16 %v4215, %v4211
    %v4340 = vpack.c.b16 %v4216, %v4212
    %v4341 = vpack.c.b16 %v4217, %v4213
    %v4342 = vpack.c.b16 %v4222, %v4218
    %v4343 = vpack.c.b16 %v4223, %v4219
    %v4344 = vpack.c.b16 %v4224, %v4220
    %v4345 = vpack.c.b16 %v4225, %v4221
    %v4346 = vpack.c.b16 %v4230, %v4226
    %v4347 = vpack.c.b16 %v4231, %v4227
    %v4348 = vpack.c.b16 %v4232, %v4228
    %v4349 = vpack.c.b16 %v4233, %v4229
    %v4350 = vpack.c.b16 %v4238, %v4234
    %v4351 = vpack.c.b16 %v4239, %v4235
    %v4352 = vpack.c.b16 %v4240, %v4236
    %v4353 = vpack.c.b16 %v4241, %v4237
    %v4354 = vpack.c.b16 %v4246, %v4242
    %v4355 = vpack.c.b16 %v4247, %v4243
    %v4356 = vpack.c.b16 %v4248, %v4244
    %v4357 = vpack.c.b16 %v4249, %v4245
    %v4358 = vpack.c.b16 %v4254, %v4250
    %v4359 = vpack.c.b16 %v4255, %v4251
    %v4360 = vpack.c.b16 %v4256, %v4252
    %v4361 = vpack.c.b16 %v4257, %v4253
    %v4362 = vpack.c.b16 %v4262, %v4258
    %v4363 = vpack.c.b16 %v4263, %v4259
    %v4364 = vpack.c.b16 %v4264, %v4260
    %v4365 = vpack.c.b16 %v4265, %v4261
    %v4366 = vpack.c.b16 %v4270, %v4266
    %v4367 = vpack.c.b16 %v4271, %v4267
    %v4368 = vpack.c.b16 %v4272, %v4268
    %v4369 = vpack.c.b16 %v4273, %v4269
    %v4370 = vpack.c.b16 %v4278, %v4274
    %v4371 = vpack.c.b16 %v4279, %v4275
    %v4372 = vpack.c.b16 %v4280, %v4276
    %v4373 = vpack.c.b16 %v4281, %v4277
    %v4374 = vpack.c.b16 %v4286, %v4282
    %v4375 = vpack.c.b16 %v4287, %v4283
    %v4376 = vpack.c.b16 %v4288, %v4284
    %v4377 = vpack.c.b16 %v4289, %v4285
    %v4378 = vpack.c.b16 %v4294, %v4290
    %v4379 = vpack.c.b16 %v4295, %v4291
    %v4380 = vpack.c.b16 %v4296, %v4292
    %v4381 = vpack.c.b16 %v4297, %v4293
    %v4382 = vpack.c.b16 %v4302, %v4298
    %v4383 = vpack.c.b16 %v4303, %v4299
    %v4384 = vpack.c.b16 %v4304, %v4300
    %v4385 = vpack.c.b16 %v4305, %v4301
    %v4386 = vpack.c.b16 %v4310, %v4306
    %v4387 = vpack.c.b16 %v4311, %v4307
    %v4388 = vpack.c.b16 %v4312, %v4308
    %v4389 = vpack.c.b16 %v4313, %v4309
    %v4390 = vpack.c.b16 %v4318, %v4314
    %v4391 = vpack.c.b16 %v4319, %v4315
    %v4392 = vpack.c.b16 %v4320, %v4316
    %v4393 = vpack.c.b16 %v4321, %v4317
    %v4394 = vpack.c.b16 %v4326, %v4322
    %v4395 = vpack.c.b16 %v4327, %v4323
    %v4396 = vpack.c.b16 %v4328, %v4324
    %v4397 = vpack.c.b16 %v4329, %v4325
    %v4398 = vpack.c.b16 %v4334, %v4330
    %v4399 = vpack.c.b16 %v4335, %v4331
    %v4400 = vpack.c.b16 %v4336, %v4332
    %v4401 = vpack.c.b16 %v4337, %v4333
    %4466 = vmatprep.subr.bf16.mxu0 %v4339
    %4467 = vmatpush1.bf16.msra.mxu0 %v4338
    %4468 = vmatprep.subr.bf16.mxu0 %v4343
    %4469 = vmatpush1.bf16.msra.mxu0 %v4342
    %4470 = vmatprep.subr.bf16.mxu0 %v4347
    %4471 = vmatpush1.bf16.msra.mxu0 %v4346
    %4472 = vmatprep.subr.bf16.mxu0 %v4351
    %4473 = vmatpush1.bf16.msra.mxu0 %v4350
    %4474 = vmatprep.subr.bf16.mxu0 %v4355
    %4475 = vmatpush1.bf16.msra.mxu0 %v4354
    %4476 = vmatprep.subr.bf16.mxu0 %v4359
    %4477 = vmatpush1.bf16.msra.mxu0 %v4358
    %4478 = vmatprep.subr.bf16.mxu0 %v4363
    %4479 = vmatpush1.bf16.msra.mxu0 %v4362
    %4480 = vmatprep.subr.bf16.mxu0 %v4367
    %4481 = vmatpush1.bf16.msra.mxu0 %v4366
    %4482 = vmatprep.subr.bf16.mxu0 %v4371
    %4483 = vmatpush1.bf16.msra.mxu0 %v4370
    %4484 = vmatprep.subr.bf16.mxu0 %v4375
    %4485 = vmatpush1.bf16.msra.mxu0 %v4374
    %4486 = vmatprep.subr.bf16.mxu0 %v4379
    %4487 = vmatpush1.bf16.msra.mxu0 %v4378
    %4488 = vmatprep.subr.bf16.mxu0 %v4383
    %4489 = vmatpush1.bf16.msra.mxu0 %v4382
    %4490 = vmatprep.subr.bf16.mxu0 %v4387
    %4491 = vmatpush1.bf16.msra.mxu0 %v4386
    %4492 = vmatprep.subr.bf16.mxu0 %v4391
    %4493 = vmatpush1.bf16.msra.mxu0 %v4390
    %4494 = vmatprep.subr.bf16.mxu0 %v4395
    %4495 = vmatpush1.bf16.msra.mxu0 %v4394
    %4496 = vmatprep.subr.bf16.mxu0 %v4399
    %4497 = vmatpush1.bf16.msra.mxu0 %v4398
    %4498 = vmatprep.mubr.bf16.mxu0 %v3320
    %4499 = vmatmul.mubr.bf16.gmra.mrb[0].mxu0 %v3319
    %v4500 = vpop.f32.mrb[0].mxu0
    %v4501 = vadd.f32 %v3855, %v4500
    %v4502 = vpop.f32.mrb[0].mxu0
    %v4503 = vadd.f32 %v3857, %v4502
    %v4504 = vpop.f32.mrb[0].mxu0
    %v4505 = vadd.f32 %v3859, %v4504
    %v4506 = vpop.f32.mrb[0].mxu0
    %v4507 = vadd.f32 %v3861, %v4506
    %4508 = vmatprep.mubr.bf16.mxu0 %v3322
    %4509 = vmatmul.mubr.bf16.gmra.mrb[0].mxu0 %v3321
    %v4510 = vpop.f32.mrb[0].mxu0
    %v4511 = vadd.f32 %v3865, %v4510
    %v4512 = vpop.f32.mrb[0].mxu0
    %v4513 = vadd.f32 %v3867, %v4512
    %v4514 = vpop.f32.mrb[0].mxu0
    %v4515 = vadd.f32 %v3869, %v4514
    %v4516 = vpop.f32.mrb[0].mxu0
    %v4517 = vadd.f32 %v3871, %v4516
    %4518 = vmatprep.mubr.bf16.mxu0 %v3324
    %4519 = vmatmul.mubr.bf16.gmra.mrb[0].mxu0 %v3323
    %v4520 = vpop.f32.mrb[0].mxu0
    %v4521 = vadd.f32 %v3875, %v4520
    %v4522 = vpop.f32.mrb[0].mxu0
    %v4523 = vadd.f32 %v3877, %v4522
    %v4524 = vpop.f32.mrb[0].mxu0
    %v4525 = vadd.f32 %v3879, %v4524
    %v4526 = vpop.f32.mrb[0].mxu0
    %v4527 = vadd.f32 %v3881, %v4526
    %4528 = vmatprep.mubr.bf16.mxu0 %v3326
    %4529 = vmatmul.mubr.bf16.gmra.mrb[0].mxu0 %v3325
    %v4530 = vpop.f32.mrb[0].mxu0
    %v4531 = vadd.f32 %v3885, %v4530
    %v4532 = vpop.f32.mrb[0].mxu0
    %v4533 = vadd.f32 %v3887, %v4532
    %v4534 = vpop.f32.mrb[0].mxu0
    %v4535 = vadd.f32 %v3889, %v4534
    %v4536 = vpop.f32.mrb[0].mxu0
    %v4537 = vadd.f32 %v3891, %v4536
    %4538 = vmatprep.mubr.bf16.mxu0 %v3328
    %4539 = vmatmul.mubr.bf16.gmra.mrb[0].mxu0 %v3327
    %v4540 = vpop.f32.mrb[0].mxu0
    %v4541 = vadd.f32 %v3895, %v4540
    %v4542 = vpop.f32.mrb[0].mxu0
    %v4543 = vadd.f32 %v3897, %v4542
    %v4544 = vpop.f32.mrb[0].mxu0
    %v4545 = vadd.f32 %v3899, %v4544
    %v4546 = vpop.f32.mrb[0].mxu0
    %v4547 = vadd.f32 %v3901, %v4546
    %4548 = vmatprep.mubr.bf16.mxu0 %v3330
    %4549 = vmatmul.mubr.bf16.gmra.mrb[0].mxu0 %v3329
    %v4550 = vpop.f32.mrb[0].mxu0
    %v4551 = vadd.f32 %v3905, %v4550
    %v4552 = vpop.f32.mrb[0].mxu0
    %v4553 = vadd.f32 %v3907, %v4552
    %v4554 = vpop.f32.mrb[0].mxu0
    %v4555 = vadd.f32 %v3909, %v4554
    %v4556 = vpop.f32.mrb[0].mxu0
    %v4557 = vadd.f32 %v3911, %v4556
    %4558 = vmatprep.mubr.bf16.mxu0 %v3332
    %4559 = vmatmul.mubr.bf16.gmra.mrb[0].mxu0 %v3331
    %v4560 = vpop.f32.mrb[0].mxu0
    %v4561 = vadd.f32 %v3915, %v4560
    %v4562 = vpop.f32.mrb[0].mxu0
    %v4563 = vadd.f32 %v3917, %v4562
    %v4564 = vpop.f32.mrb[0].mxu0
    %v4565 = vadd.f32 %v3919, %v4564
    %v4566 = vpop.f32.mrb[0].mxu0
    %v4567 = vadd.f32 %v3921, %v4566
    %4568 = vmatprep.mubr.bf16.mxu0 %v3334
    %4569 = vmatmul.mubr.bf16.gmra.mrb[0].mxu0 %v3333
    %v4570 = vpop.f32.mrb[0].mxu0
    %v4571 = vadd.f32 %v3925, %v4570
    %v4572 = vpop.f32.mrb[0].mxu0
    %v4573 = vadd.f32 %v3927, %v4572
    %v4574 = vpop.f32.mrb[0].mxu0
    %v4575 = vadd.f32 %v3929, %v4574
    %v4576 = vpop.f32.mrb[0].mxu0
    %v4577 = vadd.f32 %v3931, %v4576
    %4578 = vmatprep.mubr.bf16.mxu0 %v3336
    %4579 = vmatmul.mubr.bf16.gmra.mrb[0].mxu0 %v3335
    %v4580 = vpop.f32.mrb[0].mxu0
    %v4581 = vadd.f32 %v3935, %v4580
    %v4582 = vpop.f32.mrb[0].mxu0
    %v4583 = vadd.f32 %v3937, %v4582
    %v4584 = vpop.f32.mrb[0].mxu0
    %v4585 = vadd.f32 %v3939, %v4584
    %v4586 = vpop.f32.mrb[0].mxu0
    %v4587 = vadd.f32 %v3941, %v4586
    %4588 = vmatprep.mubr.bf16.mxu0 %v3338
    %4589 = vmatmul.mubr.bf16.gmra.mrb[0].mxu0 %v3337
    %v4590 = vpop.f32.mrb[0].mxu0
    %v4591 = vadd.f32 %v3945, %v4590
    %v4592 = vpop.f32.mrb[0].mxu0
    %v4593 = vadd.f32 %v3947, %v4592
    %v4594 = vpop.f32.mrb[0].mxu0
    %v4595 = vadd.f32 %v3949, %v4594
    %v4596 = vpop.f32.mrb[0].mxu0
    %v4597 = vadd.f32 %v3951, %v4596
    %4598 = vmatprep.mubr.bf16.mxu0 %v3340
    %4599 = vmatmul.mubr.bf16.gmra.mrb[0].mxu0 %v3339
    %v4600 = vpop.f32.mrb[0].mxu0
    %v4601 = vadd.f32 %v3955, %v4600
    %v4602 = vpop.f32.mrb[0].mxu0
    %v4603 = vadd.f32 %v3957, %v4602
    %v4604 = vpop.f32.mrb[0].mxu0
    %v4605 = vadd.f32 %v3959, %v4604
    %v4606 = vpop.f32.mrb[0].mxu0
    %v4607 = vadd.f32 %v3961, %v4606
    %4608 = vmatprep.mubr.bf16.mxu0 %v3342
    %4609 = vmatmul.mubr.bf16.gmra.mrb[0].mxu0 %v3341
    %v4610 = vpop.f32.mrb[0].mxu0
    %v4611 = vadd.f32 %v3965, %v4610
    %v4612 = vpop.f32.mrb[0].mxu0
    %v4613 = vadd.f32 %v3967, %v4612
    %v4614 = vpop.f32.mrb[0].mxu0
    %v4615 = vadd.f32 %v3969, %v4614
    %v4616 = vpop.f32.mrb[0].mxu0
    %v4617 = vadd.f32 %v3971, %v4616
    %4618 = vmatprep.mubr.bf16.mxu0 %v3344
    %4619 = vmatmul.mubr.bf16.gmra.mrb[0].mxu0 %v3343
    %v4620 = vpop.f32.mrb[0].mxu0
    %v4621 = vadd.f32 %v3975, %v4620
    %v4622 = vpop.f32.mrb[0].mxu0
    %v4623 = vadd.f32 %v3977, %v4622
    %v4624 = vpop.f32.mrb[0].mxu0
    %v4625 = vadd.f32 %v3979, %v4624
    %v4626 = vpop.f32.mrb[0].mxu0
    %v4627 = vadd.f32 %v3981, %v4626
    %4628 = vdwg.mxu0
    %4629 = vmatprep.subr.bf16.mxu0 %v4341
    %4630 = vmatpush1.bf16.msra.mxu0 %v4340
    %4631 = vmatprep.subr.bf16.mxu0 %v4345
    %4632 = vmatpush1.bf16.msra.mxu0 %v4344
    %4633 = vmatprep.subr.bf16.mxu0 %v4349
    %4634 = vmatpush1.bf16.msra.mxu0 %v4348
    %4635 = vmatprep.subr.bf16.mxu0 %v4353
    %4636 = vmatpush1.bf16.msra.mxu0 %v4352
    %4637 = vmatprep.subr.bf16.mxu0 %v4357
    %4638 = vmatpush1.bf16.msra.mxu0 %v4356
    %4639 = vmatprep.subr.bf16.mxu0 %v4361
    %4640 = vmatpush1.bf16.msra.mxu0 %v4360
    %4641 = vmatprep.subr.bf16.mxu0 %v4365
    %4642 = vmatpush1.bf16.msra.mxu0 %v4364
    %4643 = vmatprep.subr.bf16.mxu0 %v4369
    %4644 = vmatpush1.bf16.msra.mxu0 %v4368
    %4645 = vmatprep.subr.bf16.mxu0 %v4373
    %4646 = vmatpush1.bf16.msra.mxu0 %v4372
    %4647 = vmatprep.subr.bf16.mxu0 %v4377
    %4648 = vmatpush1.bf16.msra.mxu0 %v4376
    %4649 = vmatprep.subr.bf16.mxu0 %v4381
    %4650 = vmatpush1.bf16.msra.mxu0 %v4380
    %4651 = vmatprep.subr.bf16.mxu0 %v4385
    %4652 = vmatpush1.bf16.msra.mxu0 %v4384
    %4653 = vmatprep.subr.bf16.mxu0 %v4389
    %4654 = vmatpush1.bf16.msra.mxu0 %v4388
    %4655 = vmatprep.subr.bf16.mxu0 %v4393
    %4656 = vmatpush1.bf16.msra.mxu0 %v4392
    %4657 = vmatprep.subr.bf16.mxu0 %v4397
    %4658 = vmatpush1.bf16.msra.mxu0 %v4396
    %4659 = vmatprep.subr.bf16.mxu0 %v4401
    %4660 = vmatpush1.bf16.msra.mxu0 %v4400
    %4661 = vmatprep.mubr.bf16.mxu0 %v3320
    %4662 = vmatmul.mubr.bf16.gmra.mrb[0].mxu0 %v3319
    %v4663 = vpop.f32.mrb[0].mxu0
    %v4664 = vadd.f32 %v4018, %v4663
    %v4665 = vpop.f32.mrb[0].mxu0
    %v4666 = vadd.f32 %v4020, %v4665
    %v4667 = vpop.f32.mrb[0].mxu0
    %v4668 = vadd.f32 %v4022, %v4667
    %v4669 = vpop.f32.mrb[0].mxu0
    %v4670 = vadd.f32 %v4024, %v4669
    %4671 = vmatprep.mubr.bf16.mxu0 %v3322
    %4672 = vmatmul.mubr.bf16.gmra.mrb[0].mxu0 %v3321
    %v4673 = vpop.f32.mrb[0].mxu0
    %v4674 = vadd.f32 %v4028, %v4673
    %v4675 = vpop.f32.mrb[0].mxu0
    %v4676 = vadd.f32 %v4030, %v4675
    %v4677 = vpop.f32.mrb[0].mxu0
    %v4678 = vadd.f32 %v4032, %v4677
    %v4679 = vpop.f32.mrb[0].mxu0
    %v4680 = vadd.f32 %v4034, %v4679
    %4681 = vmatprep.mubr.bf16.mxu0 %v3324
    %4682 = vmatmul.mubr.bf16.gmra.mrb[0].mxu0 %v3323
    %v4683 = vpop.f32.mrb[0].mxu0
    %v4684 = vadd.f32 %v4038, %v4683
    %v4685 = vpop.f32.mrb[0].mxu0
    %v4686 = vadd.f32 %v4040, %v4685
    %v4687 = vpop.f32.mrb[0].mxu0
    %v4688 = vadd.f32 %v4042, %v4687
    %v4689 = vpop.f32.mrb[0].mxu0
    %v4690 = vadd.f32 %v4044, %v4689
    %4691 = vmatprep.mubr.bf16.mxu0 %v3326
    %4692 = vmatmul.mubr.bf16.gmra.mrb[0].mxu0 %v3325
    %v4693 = vpop.f32.mrb[0].mxu0
    %v4694 = vadd.f32 %v4048, %v4693
    %v4695 = vpop.f32.mrb[0].mxu0
    %v4696 = vadd.f32 %v4050, %v4695
    %v4697 = vpop.f32.mrb[0].mxu0
    %v4698 = vadd.f32 %v4052, %v4697
    %v4699 = vpop.f32.mrb[0].mxu0
    %v4700 = vadd.f32 %v4054, %v4699
    %4701 = vmatprep.mubr.bf16.mxu0 %v3328
    %4702 = vmatmul.mubr.bf16.gmra.mrb[0].mxu0 %v3327
    %v4703 = vpop.f32.mrb[0].mxu0
    %v4704 = vadd.f32 %v4058, %v4703
    %v4705 = vpop.f32.mrb[0].mxu0
    %v4706 = vadd.f32 %v4060, %v4705
    %v4707 = vpop.f32.mrb[0].mxu0
    %v4708 = vadd.f32 %v4062, %v4707
    %v4709 = vpop.f32.mrb[0].mxu0
    %v4710 = vadd.f32 %v4064, %v4709
    %4711 = vmatprep.mubr.bf16.mxu0 %v3330
    %4712 = vmatmul.mubr.bf16.gmra.mrb[0].mxu0 %v3329
    %v4713 = vpop.f32.mrb[0].mxu0
    %v4714 = vadd.f32 %v4068, %v4713
    %v4715 = vpop.f32.mrb[0].mxu0
    %v4716 = vadd.f32 %v4070, %v4715
    %v4717 = vpop.f32.mrb[0].mxu0
    %v4718 = vadd.f32 %v4072, %v4717
    %v4719 = vpop.f32.mrb[0].mxu0
    %v4720 = vadd.f32 %v4074, %v4719
    %4721 = vmatprep.mubr.bf16.mxu0 %v3332
    %4722 = vmatmul.mubr.bf16.gmra.mrb[0].mxu0 %v3331
    %v4723 = vpop.f32.mrb[0].mxu0
    %v4724 = vadd.f32 %v4078, %v4723
    %v4725 = vpop.f32.mrb[0].mxu0
    %v4726 = vadd.f32 %v4080, %v4725
    %v4727 = vpop.f32.mrb[0].mxu0
    %v4728 = vadd.f32 %v4082, %v4727
    %v4729 = vpop.f32.mrb[0].mxu0
    %v4730 = vadd.f32 %v4084, %v4729
    %4731 = vmatprep.mubr.bf16.mxu0 %v3334
    %4732 = vmatmul.mubr.bf16.gmra.mrb[0].mxu0 %v3333
    %v4733 = vpop.f32.mrb[0].mxu0
    %v4734 = vadd.f32 %v4088, %v4733
    %v4735 = vpop.f32.mrb[0].mxu0
    %v4736 = vadd.f32 %v4090, %v4735
    %v4737 = vpop.f32.mrb[0].mxu0
    %v4738 = vadd.f32 %v4092, %v4737
    %v4739 = vpop.f32.mrb[0].mxu0
    %v4740 = vadd.f32 %v4094, %v4739
    %4741 = vmatprep.mubr.bf16.mxu0 %v3336
    %4742 = vmatmul.mubr.bf16.gmra.mrb[0].mxu0 %v3335
    %v4743 = vpop.f32.mrb[0].mxu0
    %v4744 = vadd.f32 %v4098, %v4743
    %v4745 = vpop.f32.mrb[0].mxu0
    %v4746 = vadd.f32 %v4100, %v4745
    %v4747 = vpop.f32.mrb[0].mxu0
    %v4748 = vadd.f32 %v4102, %v4747
    %v4749 = vpop.f32.mrb[0].mxu0
    %v4750 = vadd.f32 %v4104, %v4749
    %4751 = vmatprep.mubr.bf16.mxu0 %v3338
    %4752 = vmatmul.mubr.bf16.gmra.mrb[0].mxu0 %v3337
    %v4753 = vpop.f32.mrb[0].mxu0
    %v4754 = vadd.f32 %v4108, %v4753
    %v4755 = vpop.f32.mrb[0].mxu0
    %v4756 = vadd.f32 %v4110, %v4755
    %v4757 = vpop.f32.mrb[0].mxu0
    %v4758 = vadd.f32 %v4112, %v4757
    %v4759 = vpop.f32.mrb[0].mxu0
    %v4760 = vadd.f32 %v4114, %v4759
    %4761 = vmatprep.mubr.bf16.mxu0 %v3340
    %4762 = vmatmul.mubr.bf16.gmra.mrb[0].mxu0 %v3339
    %v4763 = vpop.f32.mrb[0].mxu0
    %v4764 = vadd.f32 %v4118, %v4763
    %v4765 = vpop.f32.mrb[0].mxu0
    %v4766 = vadd.f32 %v4120, %v4765
    %v4767 = vpop.f32.mrb[0].mxu0
    %v4768 = vadd.f32 %v4122, %v4767
    %v4769 = vpop.f32.mrb[0].mxu0
    %v4770 = vadd.f32 %v4124, %v4769
    %4771 = vmatprep.mubr.bf16.mxu0 %v3342
    %4772 = vmatmul.mubr.bf16.gmra.mrb[0].mxu0 %v3341
    %v4773 = vpop.f32.mrb[0].mxu0
    %v4774 = vadd.f32 %v4128, %v4773
    %v4775 = vpop.f32.mrb[0].mxu0
    %v4776 = vadd.f32 %v4130, %v4775
    %v4777 = vpop.f32.mrb[0].mxu0
    %v4778 = vadd.f32 %v4132, %v4777
    %v4779 = vpop.f32.mrb[0].mxu0
    %v4780 = vadd.f32 %v4134, %v4779
    %4781 = vmatprep.mubr.bf16.mxu0 %v3344
    %4782 = vmatmul.mubr.bf16.gmra.mrb[0].mxu0 %v3343
    %v4783 = vpop.f32.mrb[0].mxu0
    %v4784 = vadd.f32 %v4138, %v4783
    %v4785 = vpop.f32.mrb[0].mxu0
    %v4786 = vadd.f32 %v4140, %v4785
    %v4787 = vpop.f32.mrb[0].mxu0
    %v4788 = vadd.f32 %v4142, %v4787
    %v4789 = vpop.f32.mrb[0].mxu0
    %v4790 = vadd.f32 %v4144, %v4789
    %4791 = vdwg.mxu0
    %v4792 = vpack.c.bf16 %v3313, %v3315
    %v4793 = vpack.c.bf16 %v3314, %v3316
    %v4794 = vpack.c.bf16 %v3309, %v3311
    %v4795 = vpack.c.bf16 %v3310, %v3312
    %v4796 = vpack.c.bf16 %v3305, %v3307
    %v4797 = vpack.c.bf16 %v3306, %v3308
    %v4798 = vpack.c.bf16 %v3301, %v3303
    %v4799 = vpack.c.bf16 %v3302, %v3304
    %v4800 = vpack.c.bf16 %v3297, %v3299
    %v4801 = vpack.c.bf16 %v3298, %v3300
    %v4802 = vpack.c.bf16 %v3293, %v3295
    %v4803 = vpack.c.bf16 %v3294, %v3296
    %v4804 = vpack.c.bf16 %v3289, %v3291
    %v4805 = vpack.c.bf16 %v3290, %v3292
    %v4806 = vpack.c.bf16 %v3285, %v3287
    %v4807 = vpack.c.bf16 %v3286, %v3288
    %v4808 = vpack.c.bf16 %v3281, %v3283
    %v4809 = vpack.c.bf16 %v3282, %v3284
    %v4810 = vpack.c.bf16 %v3277, %v3279
    %v4811 = vpack.c.bf16 %v3278, %v3280
    %v4812 = vpack.c.bf16 %v3273, %v3275
    %v4813 = vpack.c.bf16 %v3274, %v3276
    %v4814 = vpack.c.bf16 %v3269, %v3271
    %v4815 = vpack.c.bf16 %v3270, %v3272
    %v4816 = vpack.c.bf16 %v3317, %v3267
    %v4817 = vpack.c.bf16 %v3318, %v3268
    %s4818 = scalar_lea.vmem [#allocation9], 1024
    %v4819 = vld [vmem:[%s4818] sm:$0xff]
    %v4820 = vld [vmem:[%s4818 + $0x8] sm:$0xff]
    %v4821 = vld [vmem:[%s4818 + $0x10] sm:$0xff]
    %v4822 = vld [vmem:[%s4818 + $0x18] sm:$0xff]
    %v4823 = vld [vmem:[%s4818 + $0x20] sm:$0xff]
    %v4824 = vld [vmem:[%s4818 + $0x28] sm:$0xff]
    %v4825 = vld [vmem:[%s4818 + $0x30] sm:$0xff]
    %v4826 = vld [vmem:[%s4818 + $0x38] sm:$0xff]
    %v4827 = vld [vmem:[%s4818 + $0x40] sm:$0xff]
    %v4828 = vld [vmem:[%s4818 + $0x48] sm:$0xff]
    %v4829 = vld [vmem:[%s4818 + $0x50] sm:$0xff]
    %v4830 = vld [vmem:[%s4818 + $0x58] sm:$0xff]
    %v4831 = vld [vmem:[%s4818 + $0x60] sm:$0xff]
    %v4832 = vld [vmem:[%s4818 + $0x68] sm:$0xff]
    %v4833 = vld [vmem:[%s4818 + $0x70] sm:$0xff]
    %v4834 = vld [vmem:[%s4818 + $0x78] sm:$0xff]
    %v4835 = vld [vmem:[%s4818 + $0x80] sm:$0xff]
    %v4836 = vld [vmem:[%s4818 + $0x88] sm:$0xff]
    %v4837 = vld [vmem:[%s4818 + $0x90] sm:$0xff]
    %v4838 = vld [vmem:[%s4818 + $0x98] sm:$0xff]
    %v4839 = vld [vmem:[%s4818 + $0xa0] sm:$0xff]
    %v4840 = vld [vmem:[%s4818 + $0xa8] sm:$0xff]
    %v4841 = vld [vmem:[%s4818 + $0xb0] sm:$0xff]
    %v4842 = vld [vmem:[%s4818 + $0xb8] sm:$0xff]
    %v4843 = vld [vmem:[%s4818 + $0xc0] sm:$0xff]
    %v4844 = vld [vmem:[%s4818 + $0xc8] sm:$0xff]
    %v4845 = vld [vmem:[%s4818 + $0xd0] sm:$0xff]
    %v4846 = vld [vmem:[%s4818 + $0xd8] sm:$0xff]
    %v4847 = vld [vmem:[%s4818 + $0xe0] sm:$0xff]
    %v4848 = vld [vmem:[%s4818 + $0xe8] sm:$0xff]
    %v4849 = vld [vmem:[%s4818 + $0xf0] sm:$0xff]
    %v4850 = vld [vmem:[%s4818 + $0xf8] sm:$0xff]
    %v4851 = vld [vmem:[%s4818 + $0x100] sm:$0xff]
    %v4852 = vld [vmem:[%s4818 + $0x108] sm:$0xff]
    %v4853 = vld [vmem:[%s4818 + $0x110] sm:$0xff]
    %v4854 = vld [vmem:[%s4818 + $0x118] sm:$0xff]
    %v4855 = vld [vmem:[%s4818 + $0x120] sm:$0xff]
    %v4856 = vld [vmem:[%s4818 + $0x128] sm:$0xff]
    %v4857 = vld [vmem:[%s4818 + $0x130] sm:$0xff]
    %v4858 = vld [vmem:[%s4818 + $0x138] sm:$0xff]
    %v4859 = vld [vmem:[%s4818 + $0x140] sm:$0xff]
    %v4860 = vld [vmem:[%s4818 + $0x148] sm:$0xff]
    %v4861 = vld [vmem:[%s4818 + $0x150] sm:$0xff]
    %v4862 = vld [vmem:[%s4818 + $0x158] sm:$0xff]
    %v4863 = vld [vmem:[%s4818 + $0x160] sm:$0xff]
    %v4864 = vld [vmem:[%s4818 + $0x168] sm:$0xff]
    %v4865 = vld [vmem:[%s4818 + $0x170] sm:$0xff]
    %v4866 = vld [vmem:[%s4818 + $0x178] sm:$0xff]
    %v4867 = vld [vmem:[%s4818 + $0x180] sm:$0xff]
    %v4868 = vld [vmem:[%s4818 + $0x188] sm:$0xff]
    %v4869 = vld [vmem:[%s4818 + $0x190] sm:$0xff]
    %v4870 = vld [vmem:[%s4818 + $0x198] sm:$0xff]
    %v4871 = vld [vmem:[%s4818 + $0x1a0] sm:$0xff]
    %v4872 = vld [vmem:[%s4818 + $0x1a8] sm:$0xff]
    %v4873 = vld [vmem:[%s4818 + $0x1b0] sm:$0xff]
    %v4874 = vld [vmem:[%s4818 + $0x1b8] sm:$0xff]
    %v4875 = vld [vmem:[%s4818 + $0x1c0] sm:$0xff]
    %v4876 = vld [vmem:[%s4818 + $0x1c8] sm:$0xff]
    %v4877 = vld [vmem:[%s4818 + $0x1d0] sm:$0xff]
    %v4878 = vld [vmem:[%s4818 + $0x1d8] sm:$0xff]
    %v4879 = vld [vmem:[%s4818 + $0x1e0] sm:$0xff]
    %v4880 = vld [vmem:[%s4818 + $0x1e8] sm:$0xff]
    %v4881 = vld [vmem:[%s4818 + $0x1f0] sm:$0xff]
    %v4882 = vld [vmem:[%s4818 + $0x1f8] sm:$0xff]
    %v4947 = vunpack.c.l.b16 %v4819
    %v4948 = vunpack.c.h.b16 %v4819
    %v4949 = vunpack.c.l.b16 %v4820
    %v4950 = vunpack.c.h.b16 %v4820
    %v4951 = vunpack.c.l.b16 %v4821
    %v4952 = vunpack.c.h.b16 %v4821
    %v4953 = vunpack.c.l.b16 %v4822
    %v4954 = vunpack.c.h.b16 %v4822
    %v4955 = vunpack.c.l.b16 %v4823
    %v4956 = vunpack.c.h.b16 %v4823
    %v4957 = vunpack.c.l.b16 %v4824
    %v4958 = vunpack.c.h.b16 %v4824
    %v4959 = vunpack.c.l.b16 %v4825
    %v4960 = vunpack.c.h.b16 %v4825
    %v4961 = vunpack.c.l.b16 %v4826
    %v4962 = vunpack.c.h.b16 %v4826
    %v4963 = vunpack.c.l.b16 %v4827
    %v4964 = vunpack.c.h.b16 %v4827
    %v4965 = vunpack.c.l.b16 %v4828
    %v4966 = vunpack.c.h.b16 %v4828
    %v4967 = vunpack.c.l.b16 %v4829
    %v4968 = vunpack.c.h.b16 %v4829
    %v4969 = vunpack.c.l.b16 %v4830
    %v4970 = vunpack.c.h.b16 %v4830
    %v4971 = vunpack.c.l.b16 %v4831
    %v4972 = vunpack.c.h.b16 %v4831
    %v4973 = vunpack.c.l.b16 %v4832
    %v4974 = vunpack.c.h.b16 %v4832
    %v4975 = vunpack.c.l.b16 %v4833
    %v4976 = vunpack.c.h.b16 %v4833
    %v4977 = vunpack.c.l.b16 %v4834
    %v4978 = vunpack.c.h.b16 %v4834
    %v4979 = vunpack.c.l.b16 %v4835
    %v4980 = vunpack.c.h.b16 %v4835
    %v4981 = vunpack.c.l.b16 %v4836
    %v4982 = vunpack.c.h.b16 %v4836
    %v4983 = vunpack.c.l.b16 %v4837
    %v4984 = vunpack.c.h.b16 %v4837
    %v4985 = vunpack.c.l.b16 %v4838
    %v4986 = vunpack.c.h.b16 %v4838
    %v4987 = vunpack.c.l.b16 %v4839
    %v4988 = vunpack.c.h.b16 %v4839
    %v4989 = vunpack.c.l.b16 %v4840
    %v4990 = vunpack.c.h.b16 %v4840
    %v4991 = vunpack.c.l.b16 %v4841
    %v4992 = vunpack.c.h.b16 %v4841
    %v4993 = vunpack.c.l.b16 %v4842
    %v4994 = vunpack.c.h.b16 %v4842
    %v4995 = vunpack.c.l.b16 %v4843
    %v4996 = vunpack.c.h.b16 %v4843
    %v4997 = vunpack.c.l.b16 %v4844
    %v4998 = vunpack.c.h.b16 %v4844
    %v4999 = vunpack.c.l.b16 %v4845
    %v5000 = vunpack.c.h.b16 %v4845
    %v5001 = vunpack.c.l.b16 %v4846
    %v5002 = vunpack.c.h.b16 %v4846
    %v5003 = vunpack.c.l.b16 %v4847
    %v5004 = vunpack.c.h.b16 %v4847
    %v5005 = vunpack.c.l.b16 %v4848
    %v5006 = vunpack.c.h.b16 %v4848
    %v5007 = vunpack.c.l.b16 %v4849
    %v5008 = vunpack.c.h.b16 %v4849
    %v5009 = vunpack.c.l.b16 %v4850
    %v5010 = vunpack.c.h.b16 %v4850
    %v5011 = vunpack.c.l.b16 %v4851
    %v5012 = vunpack.c.h.b16 %v4851
    %v5013 = vunpack.c.l.b16 %v4852
    %v5014 = vunpack.c.h.b16 %v4852
    %v5015 = vunpack.c.l.b16 %v4853
    %v5016 = vunpack.c.h.b16 %v4853
    %v5017 = vunpack.c.l.b16 %v4854
    %v5018 = vunpack.c.h.b16 %v4854
    %v5019 = vunpack.c.l.b16 %v4855
    %v5020 = vunpack.c.h.b16 %v4855
    %v5021 = vunpack.c.l.b16 %v4856
    %v5022 = vunpack.c.h.b16 %v4856
    %v5023 = vunpack.c.l.b16 %v4857
    %v5024 = vunpack.c.h.b16 %v4857
    %v5025 = vunpack.c.l.b16 %v4858
    %v5026 = vunpack.c.h.b16 %v4858
    %v5027 = vunpack.c.l.b16 %v4859
    %v5028 = vunpack.c.h.b16 %v4859
    %v5029 = vunpack.c.l.b16 %v4860
    %v5030 = vunpack.c.h.b16 %v4860
    %v5031 = vunpack.c.l.b16 %v4861
    %v5032 = vunpack.c.h.b16 %v4861
    %v5033 = vunpack.c.l.b16 %v4862
    %v5034 = vunpack.c.h.b16 %v4862
    %v5035 = vunpack.c.l.b16 %v4863
    %v5036 = vunpack.c.h.b16 %v4863
    %v5037 = vunpack.c.l.b16 %v4864
    %v5038 = vunpack.c.h.b16 %v4864
    %v5039 = vunpack.c.l.b16 %v4865
    %v5040 = vunpack.c.h.b16 %v4865
    %v5041 = vunpack.c.l.b16 %v4866
    %v5042 = vunpack.c.h.b16 %v4866
    %v5043 = vunpack.c.l.b16 %v4867
    %v5044 = vunpack.c.h.b16 %v4867
    %v5045 = vunpack.c.l.b16 %v4868
    %v5046 = vunpack.c.h.b16 %v4868
    %v5047 = vunpack.c.l.b16 %v4869
    %v5048 = vunpack.c.h.b16 %v4869
    %v5049 = vunpack.c.l.b16 %v4870
    %v5050 = vunpack.c.h.b16 %v4870
    %v5051 = vunpack.c.l.b16 %v4871
    %v5052 = vunpack.c.h.b16 %v4871
    %v5053 = vunpack.c.l.b16 %v4872
    %v5054 = vunpack.c.h.b16 %v4872
    %v5055 = vunpack.c.l.b16 %v4873
    %v5056 = vunpack.c.h.b16 %v4873
    %v5057 = vunpack.c.l.b16 %v4874
    %v5058 = vunpack.c.h.b16 %v4874
    %v5059 = vunpack.c.l.b16 %v4875
    %v5060 = vunpack.c.h.b16 %v4875
    %v5061 = vunpack.c.l.b16 %v4876
    %v5062 = vunpack.c.h.b16 %v4876
    %v5063 = vunpack.c.l.b16 %v4877
    %v5064 = vunpack.c.h.b16 %v4877
    %v5065 = vunpack.c.l.b16 %v4878
    %v5066 = vunpack.c.h.b16 %v4878
    %v5067 = vunpack.c.l.b16 %v4879
    %v5068 = vunpack.c.h.b16 %v4879
    %v5069 = vunpack.c.l.b16 %v4880
    %v5070 = vunpack.c.h.b16 %v4880
    %v5071 = vunpack.c.l.b16 %v4881
    %v5072 = vunpack.c.h.b16 %v4881
    %v5073 = vunpack.c.l.b16 %v4882
    %v5074 = vunpack.c.h.b16 %v4882
    %v5075 = vpack.c.b16 %v4951, %v4947
    %v5076 = vpack.c.b16 %v4952, %v4948
    %v5077 = vpack.c.b16 %v4953, %v4949
    %v5078 = vpack.c.b16 %v4954, %v4950
    %v5079 = vpack.c.b16 %v4959, %v4955
    %v5080 = vpack.c.b16 %v4960, %v4956
    %v5081 = vpack.c.b16 %v4961, %v4957
    %v5082 = vpack.c.b16 %v4962, %v4958
    %v5083 = vpack.c.b16 %v4967, %v4963
    %v5084 = vpack.c.b16 %v4968, %v4964
    %v5085 = vpack.c.b16 %v4969, %v4965
    %v5086 = vpack.c.b16 %v4970, %v4966
    %v5087 = vpack.c.b16 %v4975, %v4971
    %v5088 = vpack.c.b16 %v4976, %v4972
    %v5089 = vpack.c.b16 %v4977, %v4973
    %v5090 = vpack.c.b16 %v4978, %v4974
    %v5091 = vpack.c.b16 %v4983, %v4979
    %v5092 = vpack.c.b16 %v4984, %v4980
    %v5093 = vpack.c.b16 %v4985, %v4981
    %v5094 = vpack.c.b16 %v4986, %v4982
    %v5095 = vpack.c.b16 %v4991, %v4987
    %v5096 = vpack.c.b16 %v4992, %v4988
    %v5097 = vpack.c.b16 %v4993, %v4989
    %v5098 = vpack.c.b16 %v4994, %v4990
    %v5099 = vpack.c.b16 %v4999, %v4995
    %v5100 = vpack.c.b16 %v5000, %v4996
    %v5101 = vpack.c.b16 %v5001, %v4997
    %v5102 = vpack.c.b16 %v5002, %v4998
    %v5103 = vpack.c.b16 %v5007, %v5003
    %v5104 = vpack.c.b16 %v5008, %v5004
    %v5105 = vpack.c.b16 %v5009, %v5005
    %v5106 = vpack.c.b16 %v5010, %v5006
    %v5107 = vpack.c.b16 %v5015, %v5011
    %v5108 = vpack.c.b16 %v5016, %v5012
    %v5109 = vpack.c.b16 %v5017, %v5013
    %v5110 = vpack.c.b16 %v5018, %v5014
    %v5111 = vpack.c.b16 %v5023, %v5019
    %v5112 = vpack.c.b16 %v5024, %v5020
    %v5113 = vpack.c.b16 %v5025, %v5021
    %v5114 = vpack.c.b16 %v5026, %v5022
    %v5115 = vpack.c.b16 %v5031, %v5027
    %v5116 = vpack.c.b16 %v5032, %v5028
    %v5117 = vpack.c.b16 %v5033, %v5029
    %v5118 = vpack.c.b16 %v5034, %v5030
    %v5119 = vpack.c.b16 %v5039, %v5035
    %v5120 = vpack.c.b16 %v5040, %v5036
    %v5121 = vpack.c.b16 %v5041, %v5037
    %v5122 = vpack.c.b16 %v5042, %v5038
    %v5123 = vpack.c.b16 %v5047, %v5043
    %v5124 = vpack.c.b16 %v5048, %v5044
    %v5125 = vpack.c.b16 %v5049, %v5045
    %v5126 = vpack.c.b16 %v5050, %v5046
    %v5127 = vpack.c.b16 %v5055, %v5051
    %v5128 = vpack.c.b16 %v5056, %v5052
    %v5129 = vpack.c.b16 %v5057, %v5053
    %v5130 = vpack.c.b16 %v5058, %v5054
    %v5131 = vpack.c.b16 %v5063, %v5059
    %v5132 = vpack.c.b16 %v5064, %v5060
    %v5133 = vpack.c.b16 %v5065, %v5061
    %v5134 = vpack.c.b16 %v5066, %v5062
    %v5135 = vpack.c.b16 %v5071, %v5067
    %v5136 = vpack.c.b16 %v5072, %v5068
    %v5137 = vpack.c.b16 %v5073, %v5069
    %v5138 = vpack.c.b16 %v5074, %v5070
    %5203 = vmatprep.subr.bf16.mxu0 %v5076
    %5204 = vmatpush1.bf16.msra.mxu0 %v5075
    %5205 = vmatprep.subr.bf16.mxu0 %v5080
    %5206 = vmatpush1.bf16.msra.mxu0 %v5079
    %5207 = vmatprep.subr.bf16.mxu0 %v5084
    %5208 = vmatpush1.bf16.msra.mxu0 %v5083
    %5209 = vmatprep.subr.bf16.mxu0 %v5088
    %5210 = vmatpush1.bf16.msra.mxu0 %v5087
    %5211 = vmatprep.subr.bf16.mxu0 %v5092
    %5212 = vmatpush1.bf16.msra.mxu0 %v5091
    %5213 = vmatprep.subr.bf16.mxu0 %v5096
    %5214 = vmatpush1.bf16.msra.mxu0 %v5095
    %5215 = vmatprep.subr.bf16.mxu0 %v5100
    %5216 = vmatpush1.bf16.msra.mxu0 %v5099
    %5217 = vmatprep.subr.bf16.mxu0 %v5104
    %5218 = vmatpush1.bf16.msra.mxu0 %v5103
    %5219 = vmatprep.subr.bf16.mxu0 %v5108
    %5220 = vmatpush1.bf16.msra.mxu0 %v5107
    %5221 = vmatprep.subr.bf16.mxu0 %v5112
    %5222 = vmatpush1.bf16.msra.mxu0 %v5111
    %5223 = vmatprep.subr.bf16.mxu0 %v5116
    %5224 = vmatpush1.bf16.msra.mxu0 %v5115
    %5225 = vmatprep.subr.bf16.mxu0 %v5120
    %5226 = vmatpush1.bf16.msra.mxu0 %v5119
    %5227 = vmatprep.subr.bf16.mxu0 %v5124
    %5228 = vmatpush1.bf16.msra.mxu0 %v5123
    %5229 = vmatprep.subr.bf16.mxu0 %v5128
    %5230 = vmatpush1.bf16.msra.mxu0 %v5127
    %5231 = vmatprep.subr.bf16.mxu0 %v5132
    %5232 = vmatpush1.bf16.msra.mxu0 %v5131
    %5233 = vmatprep.subr.bf16.mxu0 %v5136
    %5234 = vmatpush1.bf16.msra.mxu0 %v5135
    %5235 = vmatprep.mubr.bf16.mxu0 %v4793
    %5236 = vmatmul.mubr.bf16.gmra.mrb[0].mxu0 %v4792
    %v5237 = vpop.f32.mrb[0].mxu0
    %v5238 = vadd.f32 0.0, %v5237
    %v5239 = vpop.f32.mrb[0].mxu0
    %v5240 = vadd.f32 0.0, %v5239
    %v5241 = vpop.f32.mrb[0].mxu0
    %v5242 = vadd.f32 0.0, %v5241
    %v5243 = vpop.f32.mrb[0].mxu0
    %v5244 = vadd.f32 0.0, %v5243
    %5245 = vmatprep.mubr.bf16.mxu0 %v4795
    %5246 = vmatmul.mubr.bf16.gmra.mrb[0].mxu0 %v4794
    %v5247 = vpop.f32.mrb[0].mxu0
    %v5248 = vadd.f32 0.0, %v5247
    %v5249 = vpop.f32.mrb[0].mxu0
    %v5250 = vadd.f32 0.0, %v5249
    %v5251 = vpop.f32.mrb[0].mxu0
    %v5252 = vadd.f32 0.0, %v5251
    %v5253 = vpop.f32.mrb[0].mxu0
    %v5254 = vadd.f32 0.0, %v5253
    %5255 = vmatprep.mubr.bf16.mxu0 %v4797
    %5256 = vmatmul.mubr.bf16.gmra.mrb[0].mxu0 %v4796
    %v5257 = vpop.f32.mrb[0].mxu0
    %v5258 = vadd.f32 0.0, %v5257
    %v5259 = vpop.f32.mrb[0].mxu0
    %v5260 = vadd.f32 0.0, %v5259
    %v5261 = vpop.f32.mrb[0].mxu0
    %v5262 = vadd.f32 0.0, %v5261
    %v5263 = vpop.f32.mrb[0].mxu0
    %v5264 = vadd.f32 0.0, %v5263
    %5265 = vmatprep.mubr.bf16.mxu0 %v4799
    %5266 = vmatmul.mubr.bf16.gmra.mrb[0].mxu0 %v4798
    %v5267 = vpop.f32.mrb[0].mxu0
    %v5268 = vadd.f32 0.0, %v5267
    %v5269 = vpop.f32.mrb[0].mxu0
    %v5270 = vadd.f32 0.0, %v5269
    %v5271 = vpop.f32.mrb[0].mxu0
    %v5272 = vadd.f32 0.0, %v5271
    %v5273 = vpop.f32.mrb[0].mxu0
    %v5274 = vadd.f32 0.0, %v5273
    %5275 = vmatprep.mubr.bf16.mxu0 %v4801
    %5276 = vmatmul.mubr.bf16.gmra.mrb[0].mxu0 %v4800
    %v5277 = vpop.f32.mrb[0].mxu0
    %v5278 = vadd.f32 0.0, %v5277
    %v5279 = vpop.f32.mrb[0].mxu0
    %v5280 = vadd.f32 0.0, %v5279
    %v5281 = vpop.f32.mrb[0].mxu0
    %v5282 = vadd.f32 0.0, %v5281
    %v5283 = vpop.f32.mrb[0].mxu0
    %v5284 = vadd.f32 0.0, %v5283
    %5285 = vmatprep.mubr.bf16.mxu0 %v4803
    %5286 = vmatmul.mubr.bf16.gmra.mrb[0].mxu0 %v4802
    %v5287 = vpop.f32.mrb[0].mxu0
    %v5288 = vadd.f32 0.0, %v5287
    %v5289 = vpop.f32.mrb[0].mxu0
    %v5290 = vadd.f32 0.0, %v5289
    %v5291 = vpop.f32.mrb[0].mxu0
    %v5292 = vadd.f32 0.0, %v5291
    %v5293 = vpop.f32.mrb[0].mxu0
    %v5294 = vadd.f32 0.0, %v5293
    %5295 = vmatprep.mubr.bf16.mxu0 %v4805
    %5296 = vmatmul.mubr.bf16.gmra.mrb[0].mxu0 %v4804
    %v5297 = vpop.f32.mrb[0].mxu0
    %v5298 = vadd.f32 0.0, %v5297
    %v5299 = vpop.f32.mrb[0].mxu0
    %v5300 = vadd.f32 0.0, %v5299
    %v5301 = vpop.f32.mrb[0].mxu0
    %v5302 = vadd.f32 0.0, %v5301
    %v5303 = vpop.f32.mrb[0].mxu0
    %v5304 = vadd.f32 0.0, %v5303
    %5305 = vmatprep.mubr.bf16.mxu0 %v4807
    %5306 = vmatmul.mubr.bf16.gmra.mrb[0].mxu0 %v4806
    %v5307 = vpop.f32.mrb[0].mxu0
    %v5308 = vadd.f32 0.0, %v5307
    %v5309 = vpop.f32.mrb[0].mxu0
    %v5310 = vadd.f32 0.0, %v5309
    %v5311 = vpop.f32.mrb[0].mxu0
    %v5312 = vadd.f32 0.0, %v5311
    %v5313 = vpop.f32.mrb[0].mxu0
    %v5314 = vadd.f32 0.0, %v5313
    %5315 = vmatprep.mubr.bf16.mxu0 %v4809
    %5316 = vmatmul.mubr.bf16.gmra.mrb[0].mxu0 %v4808
    %v5317 = vpop.f32.mrb[0].mxu0
    %v5318 = vadd.f32 0.0, %v5317
    %v5319 = vpop.f32.mrb[0].mxu0
    %v5320 = vadd.f32 0.0, %v5319
    %v5321 = vpop.f32.mrb[0].mxu0
    %v5322 = vadd.f32 0.0, %v5321
    %v5323 = vpop.f32.mrb[0].mxu0
    %v5324 = vadd.f32 0.0, %v5323
    %5325 = vmatprep.mubr.bf16.mxu0 %v4811
    %5326 = vmatmul.mubr.bf16.gmra.mrb[0].mxu0 %v4810
    %v5327 = vpop.f32.mrb[0].mxu0
    %v5328 = vadd.f32 0.0, %v5327
    %v5329 = vpop.f32.mrb[0].mxu0
    %v5330 = vadd.f32 0.0, %v5329
    %v5331 = vpop.f32.mrb[0].mxu0
    %v5332 = vadd.f32 0.0, %v5331
    %v5333 = vpop.f32.mrb[0].mxu0
    %v5334 = vadd.f32 0.0, %v5333
    %5335 = vmatprep.mubr.bf16.mxu0 %v4813
    %5336 = vmatmul.mubr.bf16.gmra.mrb[0].mxu0 %v4812
    %v5337 = vpop.f32.mrb[0].mxu0
    %v5338 = vadd.f32 0.0, %v5337
    %v5339 = vpop.f32.mrb[0].mxu0
    %v5340 = vadd.f32 0.0, %v5339
    %v5341 = vpop.f32.mrb[0].mxu0
    %v5342 = vadd.f32 0.0, %v5341
    %v5343 = vpop.f32.mrb[0].mxu0
    %v5344 = vadd.f32 0.0, %v5343
    %5345 = vmatprep.mubr.bf16.mxu0 %v4815
    %5346 = vmatmul.mubr.bf16.gmra.mrb[0].mxu0 %v4814
    %v5347 = vpop.f32.mrb[0].mxu0
    %v5348 = vadd.f32 0.0, %v5347
    %v5349 = vpop.f32.mrb[0].mxu0
    %v5350 = vadd.f32 0.0, %v5349
    %v5351 = vpop.f32.mrb[0].mxu0
    %v5352 = vadd.f32 0.0, %v5351
    %v5353 = vpop.f32.mrb[0].mxu0
    %v5354 = vadd.f32 0.0, %v5353
    %5355 = vmatprep.mubr.bf16.mxu0 %v4817
    %5356 = vmatmul.mubr.bf16.gmra.mrb[0].mxu0 %v4816
    %v5357 = vpop.f32.mrb[0].mxu0
    %v5358 = vadd.f32 0.0, %v5357
    %v5359 = vpop.f32.mrb[0].mxu0
    %v5360 = vadd.f32 0.0, %v5359
    %v5361 = vpop.f32.mrb[0].mxu0
    %v5362 = vadd.f32 0.0, %v5361
    %v5363 = vpop.f32.mrb[0].mxu0
    %v5364 = vadd.f32 0.0, %v5363
    %5365 = vdwg.mxu0
    %5366 = vmatprep.subr.bf16.mxu0 %v5078
    %5367 = vmatpush1.bf16.msra.mxu0 %v5077
    %5368 = vmatprep.subr.bf16.mxu0 %v5082
    %5369 = vmatpush1.bf16.msra.mxu0 %v5081
    %5370 = vmatprep.subr.bf16.mxu0 %v5086
    %5371 = vmatpush1.bf16.msra.mxu0 %v5085
    %5372 = vmatprep.subr.bf16.mxu0 %v5090
    %5373 = vmatpush1.bf16.msra.mxu0 %v5089
    %5374 = vmatprep.subr.bf16.mxu0 %v5094
    %5375 = vmatpush1.bf16.msra.mxu0 %v5093
    %5376 = vmatprep.subr.bf16.mxu0 %v5098
    %5377 = vmatpush1.bf16.msra.mxu0 %v5097
    %5378 = vmatprep.subr.bf16.mxu0 %v5102
    %5379 = vmatpush1.bf16.msra.mxu0 %v5101
    %5380 = vmatprep.subr.bf16.mxu0 %v5106
    %5381 = vmatpush1.bf16.msra.mxu0 %v5105
    %5382 = vmatprep.subr.bf16.mxu0 %v5110
    %5383 = vmatpush1.bf16.msra.mxu0 %v5109
    %5384 = vmatprep.subr.bf16.mxu0 %v5114
    %5385 = vmatpush1.bf16.msra.mxu0 %v5113
    %5386 = vmatprep.subr.bf16.mxu0 %v5118
    %5387 = vmatpush1.bf16.msra.mxu0 %v5117
    %5388 = vmatprep.subr.bf16.mxu0 %v5122
    %5389 = vmatpush1.bf16.msra.mxu0 %v5121
    %5390 = vmatprep.subr.bf16.mxu0 %v5126
    %5391 = vmatpush1.bf16.msra.mxu0 %v5125
    %5392 = vmatprep.subr.bf16.mxu0 %v5130
    %5393 = vmatpush1.bf16.msra.mxu0 %v5129
    %5394 = vmatprep.subr.bf16.mxu0 %v5134
    %5395 = vmatpush1.bf16.msra.mxu0 %v5133
    %5396 = vmatprep.subr.bf16.mxu0 %v5138
    %5397 = vmatpush1.bf16.msra.mxu0 %v5137
    %5398 = vmatprep.mubr.bf16.mxu0 %v4793
    %5399 = vmatmul.mubr.bf16.gmra.mrb[0].mxu0 %v4792
    %v5400 = vpop.f32.mrb[0].mxu0
    %v5401 = vadd.f32 0.0, %v5400
    %v5402 = vpop.f32.mrb[0].mxu0
    %v5403 = vadd.f32 0.0, %v5402
    %v5404 = vpop.f32.mrb[0].mxu0
    %v5405 = vadd.f32 0.0, %v5404
    %v5406 = vpop.f32.mrb[0].mxu0
    %v5407 = vadd.f32 0.0, %v5406
    %5408 = vmatprep.mubr.bf16.mxu0 %v4795
    %5409 = vmatmul.mubr.bf16.gmra.mrb[0].mxu0 %v4794
    %v5410 = vpop.f32.mrb[0].mxu0
    %v5411 = vadd.f32 0.0, %v5410
    %v5412 = vpop.f32.mrb[0].mxu0
    %v5413 = vadd.f32 0.0, %v5412
    %v5414 = vpop.f32.mrb[0].mxu0
    %v5415 = vadd.f32 0.0, %v5414
    %v5416 = vpop.f32.mrb[0].mxu0
    %v5417 = vadd.f32 0.0, %v5416
    %5418 = vmatprep.mubr.bf16.mxu0 %v4797
    %5419 = vmatmul.mubr.bf16.gmra.mrb[0].mxu0 %v4796
    %v5420 = vpop.f32.mrb[0].mxu0
    %v5421 = vadd.f32 0.0, %v5420
    %v5422 = vpop.f32.mrb[0].mxu0
    %v5423 = vadd.f32 0.0, %v5422
    %v5424 = vpop.f32.mrb[0].mxu0
    %v5425 = vadd.f32 0.0, %v5424
    %v5426 = vpop.f32.mrb[0].mxu0
    %v5427 = vadd.f32 0.0, %v5426
    %5428 = vmatprep.mubr.bf16.mxu0 %v4799
    %5429 = vmatmul.mubr.bf16.gmra.mrb[0].mxu0 %v4798
    %v5430 = vpop.f32.mrb[0].mxu0
    %v5431 = vadd.f32 0.0, %v5430
    %v5432 = vpop.f32.mrb[0].mxu0
    %v5433 = vadd.f32 0.0, %v5432
    %v5434 = vpop.f32.mrb[0].mxu0
    %v5435 = vadd.f32 0.0, %v5434
    %v5436 = vpop.f32.mrb[0].mxu0
    %v5437 = vadd.f32 0.0, %v5436
    %5438 = vmatprep.mubr.bf16.mxu0 %v4801
    %5439 = vmatmul.mubr.bf16.gmra.mrb[0].mxu0 %v4800
    %v5440 = vpop.f32.mrb[0].mxu0
    %v5441 = vadd.f32 0.0, %v5440
    %v5442 = vpop.f32.mrb[0].mxu0
    %v5443 = vadd.f32 0.0, %v5442
    %v5444 = vpop.f32.mrb[0].mxu0
    %v5445 = vadd.f32 0.0, %v5444
    %v5446 = vpop.f32.mrb[0].mxu0
    %v5447 = vadd.f32 0.0, %v5446
    %5448 = vmatprep.mubr.bf16.mxu0 %v4803
    %5449 = vmatmul.mubr.bf16.gmra.mrb[0].mxu0 %v4802
    %v5450 = vpop.f32.mrb[0].mxu0
    %v5451 = vadd.f32 0.0, %v5450
    %v5452 = vpop.f32.mrb[0].mxu0
    %v5453 = vadd.f32 0.0, %v5452
    %v5454 = vpop.f32.mrb[0].mxu0
    %v5455 = vadd.f32 0.0, %v5454
    %v5456 = vpop.f32.mrb[0].mxu0
    %v5457 = vadd.f32 0.0, %v5456
    %5458 = vmatprep.mubr.bf16.mxu0 %v4805
    %5459 = vmatmul.mubr.bf16.gmra.mrb[0].mxu0 %v4804
    %v5460 = vpop.f32.mrb[0].mxu0
    %v5461 = vadd.f32 0.0, %v5460
    %v5462 = vpop.f32.mrb[0].mxu0
    %v5463 = vadd.f32 0.0, %v5462
    %v5464 = vpop.f32.mrb[0].mxu0
    %v5465 = vadd.f32 0.0, %v5464
    %v5466 = vpop.f32.mrb[0].mxu0
    %v5467 = vadd.f32 0.0, %v5466
    %5468 = vmatprep.mubr.bf16.mxu0 %v4807
    %5469 = vmatmul.mubr.bf16.gmra.mrb[0].mxu0 %v4806
    %v5470 = vpop.f32.mrb[0].mxu0
    %v5471 = vadd.f32 0.0, %v5470
    %v5472 = vpop.f32.mrb[0].mxu0
    %v5473 = vadd.f32 0.0, %v5472
    %v5474 = vpop.f32.mrb[0].mxu0
    %v5475 = vadd.f32 0.0, %v5474
    %v5476 = vpop.f32.mrb[0].mxu0
    %v5477 = vadd.f32 0.0, %v5476
    %5478 = vmatprep.mubr.bf16.mxu0 %v4809
    %5479 = vmatmul.mubr.bf16.gmra.mrb[0].mxu0 %v4808
    %v5480 = vpop.f32.mrb[0].mxu0
    %v5481 = vadd.f32 0.0, %v5480
    %v5482 = vpop.f32.mrb[0].mxu0
    %v5483 = vadd.f32 0.0, %v5482
    %v5484 = vpop.f32.mrb[0].mxu0
    %v5485 = vadd.f32 0.0, %v5484
    %v5486 = vpop.f32.mrb[0].mxu0
    %v5487 = vadd.f32 0.0, %v5486
    %5488 = vmatprep.mubr.bf16.mxu0 %v4811
    %5489 = vmatmul.mubr.bf16.gmra.mrb[0].mxu0 %v4810
    %v5490 = vpop.f32.mrb[0].mxu0
    %v5491 = vadd.f32 0.0, %v5490
    %v5492 = vpop.f32.mrb[0].mxu0
    %v5493 = vadd.f32 0.0, %v5492
    %v5494 = vpop.f32.mrb[0].mxu0
    %v5495 = vadd.f32 0.0, %v5494
    %v5496 = vpop.f32.mrb[0].mxu0
    %v5497 = vadd.f32 0.0, %v5496
    %5498 = vmatprep.mubr.bf16.mxu0 %v4813
    %5499 = vmatmul.mubr.bf16.gmra.mrb[0].mxu0 %v4812
    %v5500 = vpop.f32.mrb[0].mxu0
    %v5501 = vadd.f32 0.0, %v5500
    %v5502 = vpop.f32.mrb[0].mxu0
    %v5503 = vadd.f32 0.0, %v5502
    %v5504 = vpop.f32.mrb[0].mxu0
    %v5505 = vadd.f32 0.0, %v5504
    %v5506 = vpop.f32.mrb[0].mxu0
    %v5507 = vadd.f32 0.0, %v5506
    %5508 = vmatprep.mubr.bf16.mxu0 %v4815
    %5509 = vmatmul.mubr.bf16.gmra.mrb[0].mxu0 %v4814
    %v5510 = vpop.f32.mrb[0].mxu0
    %v5511 = vadd.f32 0.0, %v5510
    %v5512 = vpop.f32.mrb[0].mxu0
    %v5513 = vadd.f32 0.0, %v5512
    %v5514 = vpop.f32.mrb[0].mxu0
    %v5515 = vadd.f32 0.0, %v5514
    %v5516 = vpop.f32.mrb[0].mxu0
    %v5517 = vadd.f32 0.0, %v5516
    %5518 = vmatprep.mubr.bf16.mxu0 %v4817
    %5519 = vmatmul.mubr.bf16.gmra.mrb[0].mxu0 %v4816
    %v5520 = vpop.f32.mrb[0].mxu0
    %v5521 = vadd.f32 0.0, %v5520
    %v5522 = vpop.f32.mrb[0].mxu0
    %v5523 = vadd.f32 0.0, %v5522
    %v5524 = vpop.f32.mrb[0].mxu0
    %v5525 = vadd.f32 0.0, %v5524
    %v5526 = vpop.f32.mrb[0].mxu0
    %v5527 = vadd.f32 0.0, %v5526
    %5528 = vdwg.mxu0
    %v5529 = vadd.f32 %v4501, %v5238
    %v5530 = vadd.f32 %v4503, %v5240
    %v5531 = vadd.f32 %v4664, %v5401
    %v5532 = vadd.f32 %v4666, %v5403
    %v5533 = vadd.f32 %v4505, %v5242
    %v5534 = vadd.f32 %v4507, %v5244
    %v5535 = vadd.f32 %v4668, %v5405
    %v5536 = vadd.f32 %v4670, %v5407
    %v5537 = vadd.f32 %v4511, %v5248
    %v5538 = vadd.f32 %v4513, %v5250
    %v5539 = vadd.f32 %v4674, %v5411
    %v5540 = vadd.f32 %v4676, %v5413
    %v5541 = vadd.f32 %v4515, %v5252
    %v5542 = vadd.f32 %v4517, %v5254
    %v5543 = vadd.f32 %v4678, %v5415
    %v5544 = vadd.f32 %v4680, %v5417
    %v5545 = vadd.f32 %v4521, %v5258
    %v5546 = vadd.f32 %v4523, %v5260
    %v5547 = vadd.f32 %v4684, %v5421
    %v5548 = vadd.f32 %v4686, %v5423
    %v5549 = vadd.f32 %v4525, %v5262
    %v5550 = vadd.f32 %v4527, %v5264
    %v5551 = vadd.f32 %v4688, %v5425
    %v5552 = vadd.f32 %v4690, %v5427
    %v5553 = vadd.f32 %v4531, %v5268
    %v5554 = vadd.f32 %v4533, %v5270
    %v5555 = vadd.f32 %v4694, %v5431
    %v5556 = vadd.f32 %v4696, %v5433
    %v5557 = vadd.f32 %v4535, %v5272
    %v5558 = vadd.f32 %v4537, %v5274
    %v5559 = vadd.f32 %v4698, %v5435
    %v5560 = vadd.f32 %v4700, %v5437
    %v5561 = vadd.f32 %v4541, %v5278
    %v5562 = vadd.f32 %v4543, %v5280
    %v5563 = vadd.f32 %v4704, %v5441
    %v5564 = vadd.f32 %v4706, %v5443
    %v5565 = vadd.f32 %v4545, %v5282
    %v5566 = vadd.f32 %v4547, %v5284
    %v5567 = vadd.f32 %v4708, %v5445
    %v5568 = vadd.f32 %v4710, %v5447
    %v5569 = vadd.f32 %v4551, %v5288
    %v5570 = vadd.f32 %v4553, %v5290
    %v5571 = vadd.f32 %v4714, %v5451
    %v5572 = vadd.f32 %v4716, %v5453
    %v5573 = vadd.f32 %v4555, %v5292
    %v5574 = vadd.f32 %v4557, %v5294
    %v5575 = vadd.f32 %v4718, %v5455
    %v5576 = vadd.f32 %v4720, %v5457
    %v5577 = vadd.f32 %v4561, %v5298
    %v5578 = vadd.f32 %v4563, %v5300
    %v5579 = vadd.f32 %v4724, %v5461
    %v5580 = vadd.f32 %v4726, %v5463
    %v5581 = vadd.f32 %v4565, %v5302
    %v5582 = vadd.f32 %v4567, %v5304
    %v5583 = vadd.f32 %v4728, %v5465
    %v5584 = vadd.f32 %v4730, %v5467
    %v5585 = vadd.f32 %v4571, %v5308
    %v5586 = vadd.f32 %v4573, %v5310
    %v5587 = vadd.f32 %v4734, %v5471
    %v5588 = vadd.f32 %v4736, %v5473
    %v5589 = vadd.f32 %v4575, %v5312
    %v5590 = vadd.f32 %v4577, %v5314
    %v5591 = vadd.f32 %v4738, %v5475
    %v5592 = vadd.f32 %v4740, %v5477
    %v5593 = vadd.f32 %v4581, %v5318
    %v5594 = vadd.f32 %v4583, %v5320
    %v5595 = vadd.f32 %v4744, %v5481
    %v5596 = vadd.f32 %v4746, %v5483
    %v5597 = vadd.f32 %v4585, %v5322
    %v5598 = vadd.f32 %v4587, %v5324
    %v5599 = vadd.f32 %v4748, %v5485
    %v5600 = vadd.f32 %v4750, %v5487
    %v5601 = vadd.f32 %v4591, %v5328
    %v5602 = vadd.f32 %v4593, %v5330
    %v5603 = vadd.f32 %v4754, %v5491
    %v5604 = vadd.f32 %v4756, %v5493
    %v5605 = vadd.f32 %v4595, %v5332
    %v5606 = vadd.f32 %v4597, %v5334
    %v5607 = vadd.f32 %v4758, %v5495
    %v5608 = vadd.f32 %v4760, %v5497
    %v5609 = vadd.f32 %v4601, %v5338
    %v5610 = vadd.f32 %v4603, %v5340
    %v5611 = vadd.f32 %v4764, %v5501
    %v5612 = vadd.f32 %v4766, %v5503
    %v5613 = vadd.f32 %v4605, %v5342
    %v5614 = vadd.f32 %v4607, %v5344
    %v5615 = vadd.f32 %v4768, %v5505
    %v5616 = vadd.f32 %v4770, %v5507
    %v5617 = vadd.f32 %v4611, %v5348
    %v5618 = vadd.f32 %v4613, %v5350
    %v5619 = vadd.f32 %v4774, %v5511
    %v5620 = vadd.f32 %v4776, %v5513
    %v5621 = vadd.f32 %v4615, %v5352
    %v5622 = vadd.f32 %v4617, %v5354
    %v5623 = vadd.f32 %v4778, %v5515
    %v5624 = vadd.f32 %v4780, %v5517
    %v5625 = vadd.f32 %v4621, %v5358
    %v5626 = vadd.f32 %v4623, %v5360
    %v5627 = vadd.f32 %v4784, %v5521
    %v5628 = vadd.f32 %v4786, %v5523
    %v5629 = vadd.f32 %v4625, %v5362
    %v5630 = vadd.f32 %v4627, %v5364
    %v5631 = vadd.f32 %v4788, %v5525
    %v5632 = vadd.f32 %v4790, %v5527
    %v5633 = vld [vmem:[%s8] sm:$0xf]
    %v5635 = vlaneseq
    %v5636 = vshrl.u32 %v5635, 7
    %v5637 = vsub.s32 0, %v5636
    %v5638 = vrot.slane %v5633, %v5637
    %v5639 = vlaneseq
    %v5640 = vshrl.u32 %v5639, 7
    %v5641 = vsub.s32 1, %v5640
    %v5642 = vrot.slane %v5633, %v5641
    %v5643 = vlaneseq
    %v5644 = vshrl.u32 %v5643, 7
    %v5645 = vsub.s32 2, %v5644
    %v5646 = vrot.slane %v5633, %v5645
    %v5647 = vlaneseq
    %v5648 = vshrl.u32 %v5647, 7
    %v5649 = vsub.s32 3, %v5648
    %v5650 = vrot.slane %v5633, %v5649
    %v5655 = vadd.f32 %v5529, %v5638
    %v5656 = vadd.f32 %v5530, %v5642
    %v5657 = vadd.f32 %v5531, %v5646
    %v5658 = vadd.f32 %v5532, %v5650
    %v5659 = vadd.f32 %v5533, %v5638
    %v5660 = vadd.f32 %v5534, %v5642
    %v5661 = vadd.f32 %v5535, %v5646
    %v5662 = vadd.f32 %v5536, %v5650
    %v5663 = vadd.f32 %v5537, %v5638
    %v5664 = vadd.f32 %v5538, %v5642
    %v5665 = vadd.f32 %v5539, %v5646
    %v5666 = vadd.f32 %v5540, %v5650
    %v5667 = vadd.f32 %v5541, %v5638
    %v5668 = vadd.f32 %v5542, %v5642
    %v5669 = vadd.f32 %v5543, %v5646
    %v5670 = vadd.f32 %v5544, %v5650
    %v5671 = vadd.f32 %v5545, %v5638
    %v5672 = vadd.f32 %v5546, %v5642
    %v5673 = vadd.f32 %v5547, %v5646
    %v5674 = vadd.f32 %v5548, %v5650
    %v5675 = vadd.f32 %v5549, %v5638
    %v5676 = vadd.f32 %v5550, %v5642
    %v5677 = vadd.f32 %v5551, %v5646
    %v5678 = vadd.f32 %v5552, %v5650
    %v5679 = vadd.f32 %v5553, %v5638
    %v5680 = vadd.f32 %v5554, %v5642
    %v5681 = vadd.f32 %v5555, %v5646
    %v5682 = vadd.f32 %v5556, %v5650
    %v5683 = vadd.f32 %v5557, %v5638
    %v5684 = vadd.f32 %v5558, %v5642
    %v5685 = vadd.f32 %v5559, %v5646
    %v5686 = vadd.f32 %v5560, %v5650
    %v5687 = vadd.f32 %v5561, %v5638
    %v5688 = vadd.f32 %v5562, %v5642
    %v5689 = vadd.f32 %v5563, %v5646
    %v5690 = vadd.f32 %v5564, %v5650
    %v5691 = vadd.f32 %v5565, %v5638
    %v5692 = vadd.f32 %v5566, %v5642
    %v5693 = vadd.f32 %v5567, %v5646
    %v5694 = vadd.f32 %v5568, %v5650
    %v5695 = vadd.f32 %v5569, %v5638
    %v5696 = vadd.f32 %v5570, %v5642
    %v5697 = vadd.f32 %v5571, %v5646
    %v5698 = vadd.f32 %v5572, %v5650
    %v5699 = vadd.f32 %v5573, %v5638
    %v5700 = vadd.f32 %v5574, %v5642
    %v5701 = vadd.f32 %v5575, %v5646
    %v5702 = vadd.f32 %v5576, %v5650
    %v5703 = vadd.f32 %v5577, %v5638
    %v5704 = vadd.f32 %v5578, %v5642
    %v5705 = vadd.f32 %v5579, %v5646
    %v5706 = vadd.f32 %v5580, %v5650
    %v5707 = vadd.f32 %v5581, %v5638
    %v5708 = vadd.f32 %v5582, %v5642
    %v5709 = vadd.f32 %v5583, %v5646
    %v5710 = vadd.f32 %v5584, %v5650
    %v5711 = vadd.f32 %v5585, %v5638
    %v5712 = vadd.f32 %v5586, %v5642
    %v5713 = vadd.f32 %v5587, %v5646
    %v5714 = vadd.f32 %v5588, %v5650
    %v5715 = vadd.f32 %v5589, %v5638
    %v5716 = vadd.f32 %v5590, %v5642
    %v5717 = vadd.f32 %v5591, %v5646
    %v5718 = vadd.f32 %v5592, %v5650
    %v5719 = vadd.f32 %v5593, %v5638
    %v5720 = vadd.f32 %v5594, %v5642
    %v5721 = vadd.f32 %v5595, %v5646
    %v5722 = vadd.f32 %v5596, %v5650
    %v5723 = vadd.f32 %v5597, %v5638
    %v5724 = vadd.f32 %v5598, %v5642
    %v5725 = vadd.f32 %v5599, %v5646
    %v5726 = vadd.f32 %v5600, %v5650
    %v5727 = vadd.f32 %v5601, %v5638
    %v5728 = vadd.f32 %v5602, %v5642
    %v5729 = vadd.f32 %v5603, %v5646
    %v5730 = vadd.f32 %v5604, %v5650
    %v5731 = vadd.f32 %v5605, %v5638
    %v5732 = vadd.f32 %v5606, %v5642
    %v5733 = vadd.f32 %v5607, %v5646
    %v5734 = vadd.f32 %v5608, %v5650
    %v5735 = vadd.f32 %v5609, %v5638
    %v5736 = vadd.f32 %v5610, %v5642
    %v5737 = vadd.f32 %v5611, %v5646
    %v5738 = vadd.f32 %v5612, %v5650
    %v5739 = vadd.f32 %v5613, %v5638
    %v5740 = vadd.f32 %v5614, %v5642
    %v5741 = vadd.f32 %v5615, %v5646
    %v5742 = vadd.f32 %v5616, %v5650
    %v5743 = vadd.f32 %v5617, %v5638
    %v5744 = vadd.f32 %v5618, %v5642
    %v5745 = vadd.f32 %v5619, %v5646
    %v5746 = vadd.f32 %v5620, %v5650
    %v5747 = vadd.f32 %v5621, %v5638
    %v5748 = vadd.f32 %v5622, %v5642
    %v5749 = vadd.f32 %v5623, %v5646
    %v5750 = vadd.f32 %v5624, %v5650
    %v5751 = vadd.f32 %v5625, %v5638
    %v5752 = vadd.f32 %v5626, %v5642
    %v5753 = vadd.f32 %v5627, %v5646
    %v5754 = vadd.f32 %v5628, %v5650
    %v5755 = vadd.f32 %v5629, %v5638
    %v5756 = vadd.f32 %v5630, %v5642
    %v5757 = vadd.f32 %v5631, %v5646
    %v5758 = vadd.f32 %v5632, %v5650
    %v5759 = vld [vmem:[#allocation10] sm:$0xff]
    %v5760 = vld [vmem:[#allocation10 + $0x8] sm:$0xff]
    %v5761 = vld [vmem:[#allocation10 + $0x10] sm:$0xff]
    %v5762 = vld [vmem:[#allocation10 + $0x18] sm:$0xff]
    %v5763 = vld [vmem:[#allocation10 + $0x20] sm:$0xff]
    %v5764 = vld [vmem:[#allocation10 + $0x28] sm:$0xff]
    %v5765 = vld [vmem:[#allocation10 + $0x30] sm:$0xff]
    %v5766 = vld [vmem:[#allocation10 + $0x38] sm:$0xff]
    %v5767 = vld [vmem:[#allocation10 + $0x40] sm:$0xff]
    %v5768 = vld [vmem:[#allocation10 + $0x48] sm:$0xff]
    %v5769 = vld [vmem:[#allocation10 + $0x50] sm:$0xff]
    %v5770 = vld [vmem:[#allocation10 + $0x58] sm:$0xff]
    %v5771 = vld [vmem:[#allocation10 + $0x60] sm:$0xff]
    %v5772 = vld [vmem:[#allocation10 + $0x68] sm:$0xff]
    %v5773 = vld [vmem:[#allocation10 + $0x70] sm:$0xff]
    %v5774 = vld [vmem:[#allocation10 + $0x78] sm:$0xff]
    %v5775 = vld [vmem:[#allocation10 + $0x80] sm:$0xff]
    %v5776 = vld [vmem:[#allocation10 + $0x88] sm:$0xff]
    %v5777 = vld [vmem:[#allocation10 + $0x90] sm:$0xff]
    %v5778 = vld [vmem:[#allocation10 + $0x98] sm:$0xff]
    %v5779 = vld [vmem:[#allocation10 + $0xa0] sm:$0xff]
    %v5780 = vld [vmem:[#allocation10 + $0xa8] sm:$0xff]
    %v5781 = vld [vmem:[#allocation10 + $0xb0] sm:$0xff]
    %v5782 = vld [vmem:[#allocation10 + $0xb8] sm:$0xff]
    %v5783 = vld [vmem:[#allocation10 + $0xc0] sm:$0xff]
    %v5784 = vld [vmem:[#allocation10 + $0xc8] sm:$0xff]
    %v5785 = vld [vmem:[#allocation10 + $0xd0] sm:$0xff]
    %v5786 = vld [vmem:[#allocation10 + $0xd8] sm:$0xff]
    %v5787 = vld [vmem:[#allocation10 + $0xe0] sm:$0xff]
    %v5788 = vld [vmem:[#allocation10 + $0xe8] sm:$0xff]
    %v5789 = vld [vmem:[#allocation10 + $0xf0] sm:$0xff]
    %v5790 = vld [vmem:[#allocation10 + $0xf8] sm:$0xff]
    %v5791 = vld [vmem:[#allocation10 + $0x100] sm:$0xff]
    %v5792 = vld [vmem:[#allocation10 + $0x108] sm:$0xff]
    %v5793 = vld [vmem:[#allocation10 + $0x110] sm:$0xff]
    %v5794 = vld [vmem:[#allocation10 + $0x118] sm:$0xff]
    %v5795 = vld [vmem:[#allocation10 + $0x120] sm:$0xff]
    %v5796 = vld [vmem:[#allocation10 + $0x128] sm:$0xff]
    %v5797 = vld [vmem:[#allocation10 + $0x130] sm:$0xff]
    %v5798 = vld [vmem:[#allocation10 + $0x138] sm:$0xff]
    %v5799 = vld [vmem:[#allocation10 + $0x140] sm:$0xff]
    %v5800 = vld [vmem:[#allocation10 + $0x148] sm:$0xff]
    %v5801 = vld [vmem:[#allocation10 + $0x150] sm:$0xff]
    %v5802 = vld [vmem:[#allocation10 + $0x158] sm:$0xff]
    %v5803 = vld [vmem:[#allocation10 + $0x160] sm:$0xff]
    %v5804 = vld [vmem:[#allocation10 + $0x168] sm:$0xff]
    %v5805 = vld [vmem:[#allocation10 + $0x170] sm:$0xff]
    %v5806 = vld [vmem:[#allocation10 + $0x178] sm:$0xff]
    %v5807 = vld [vmem:[#allocation10 + $0x180] sm:$0xff]
    %v5808 = vld [vmem:[#allocation10 + $0x188] sm:$0xff]
    %v5809 = vld [vmem:[#allocation10 + $0x190] sm:$0xff]
    %v5810 = vld [vmem:[#allocation10 + $0x198] sm:$0xff]
    %v5811 = vmul.f32 %v5657, 0.5
    %v5812 = vmul.f32 %v5658, 0.5
    %v5813 = vmul.f32 %v5661, 0.5
    %v5814 = vmul.f32 %v5662, 0.5
    %v5815 = vmul.f32 %v5665, 0.5
    %v5816 = vmul.f32 %v5666, 0.5
    %v5817 = vmul.f32 %v5669, 0.5
    %v5818 = vmul.f32 %v5670, 0.5
    %v5819 = vmul.f32 %v5673, 0.5
    %v5820 = vmul.f32 %v5674, 0.5
    %v5821 = vmul.f32 %v5677, 0.5
    %v5822 = vmul.f32 %v5678, 0.5
    %v5823 = vmul.f32 %v5681, 0.5
    %v5824 = vmul.f32 %v5682, 0.5
    %v5825 = vmul.f32 %v5685, 0.5
    %v5826 = vmul.f32 %v5686, 0.5
    %v5827 = vmul.f32 %v5689, 0.5
    %v5828 = vmul.f32 %v5690, 0.5
    %v5829 = vmul.f32 %v5693, 0.5
    %v5830 = vmul.f32 %v5694, 0.5
    %v5831 = vmul.f32 %v5697, 0.5
    %v5832 = vmul.f32 %v5698, 0.5
    %v5833 = vmul.f32 %v5701, 0.5
    %v5834 = vmul.f32 %v5702, 0.5
    %v5835 = vmul.f32 %v5705, 0.5
    %v5836 = vmul.f32 %v5706, 0.5
    %v5837 = vmul.f32 %v5709, 0.5
    %v5838 = vmul.f32 %v5710, 0.5
    %v5839 = vmul.f32 %v5713, 0.5
    %v5840 = vmul.f32 %v5714, 0.5
    %v5841 = vmul.f32 %v5717, 0.5
    %v5842 = vmul.f32 %v5718, 0.5
    %v5843 = vmul.f32 %v5721, 0.5
    %v5844 = vmul.f32 %v5722, 0.5
    %v5845 = vmul.f32 %v5725, 0.5
    %v5846 = vmul.f32 %v5726, 0.5
    %v5847 = vmul.f32 %v5729, 0.5
    %v5848 = vmul.f32 %v5730, 0.5
    %v5849 = vmul.f32 %v5733, 0.5
    %v5850 = vmul.f32 %v5734, 0.5
    %v5851 = vmul.f32 %v5737, 0.5
    %v5852 = vmul.f32 %v5738, 0.5
    %v5853 = vmul.f32 %v5741, 0.5
    %v5854 = vmul.f32 %v5742, 0.5
    %v5855 = vmul.f32 %v5745, 0.5
    %v5856 = vmul.f32 %v5746, 0.5
    %v5857 = vmul.f32 %v5749, 0.5
    %v5858 = vmul.f32 %v5750, 0.5
    %v5859 = vmul.f32 %v5753, 0.5
    %v5860 = vmul.f32 %v5754, 0.5
    %v5861 = vmul.f32 %v5757, 0.5
    %v5862 = vmul.f32 %v5758, 0.5
    %v5863 = vmul.f32 %v5811, 1.442695
    %v5864 = vpow.pop %v5863
    %v5865 = vmul.f32 %v5812, 1.442695
    %v5866 = vpow.pop %v5865
    %v5867 = vmul.f32 %v5813, 1.442695
    %v5868 = vpow.pop %v5867
    %v5869 = vmul.f32 %v5814, 1.442695
    %v5870 = vpow.pop %v5869
    %v5871 = vmul.f32 %v5815, 1.442695
    %v5872 = vpow.pop %v5871
    %v5873 = vmul.f32 %v5816, 1.442695
    %v5874 = vpow.pop %v5873
    %v5875 = vmul.f32 %v5817, 1.442695
    %v5876 = vpow.pop %v5875
    %v5877 = vmul.f32 %v5818, 1.442695
    %v5878 = vpow.pop %v5877
    %v5879 = vmul.f32 %v5819, 1.442695
    %v5880 = vpow.pop %v5879
    %v5881 = vmul.f32 %v5820, 1.442695
    %v5882 = vpow.pop %v5881
    %v5883 = vmul.f32 %v5821, 1.442695
    %v5884 = vpow.pop %v5883
    %v5885 = vmul.f32 %v5822, 1.442695
    %v5886 = vpow.pop %v5885
    %v5887 = vmul.f32 %v5823, 1.442695
    %v5888 = vpow.pop %v5887
    %v5889 = vmul.f32 %v5824, 1.442695
    %v5890 = vpow.pop %v5889
    %v5891 = vmul.f32 %v5825, 1.442695
    %v5892 = vpow.pop %v5891
    %v5893 = vmul.f32 %v5826, 1.442695
    %v5894 = vpow.pop %v5893
    %v5895 = vmul.f32 %v5827, 1.442695
    %v5896 = vpow.pop %v5895
    %v5897 = vmul.f32 %v5828, 1.442695
    %v5898 = vpow.pop %v5897
    %v5899 = vmul.f32 %v5829, 1.442695
    %v5900 = vpow.pop %v5899
    %v5901 = vmul.f32 %v5830, 1.442695
    %v5902 = vpow.pop %v5901
    %v5903 = vmul.f32 %v5831, 1.442695
    %v5904 = vpow.pop %v5903
    %v5905 = vmul.f32 %v5832, 1.442695
    %v5906 = vpow.pop %v5905
    %v5907 = vmul.f32 %v5833, 1.442695
    %v5908 = vpow.pop %v5907
    %v5909 = vmul.f32 %v5834, 1.442695
    %v5910 = vpow.pop %v5909
    %v5911 = vmul.f32 %v5835, 1.442695
    %v5912 = vpow.pop %v5911
    %v5913 = vmul.f32 %v5836, 1.442695
    %v5914 = vpow.pop %v5913
    %v5915 = vmul.f32 %v5837, 1.442695
    %v5916 = vpow.pop %v5915
    %v5917 = vmul.f32 %v5838, 1.442695
    %v5918 = vpow.pop %v5917
    %v5919 = vmul.f32 %v5839, 1.442695
    %v5920 = vpow.pop %v5919
    %v5921 = vmul.f32 %v5840, 1.442695
    %v5922 = vpow.pop %v5921
    %v5923 = vmul.f32 %v5841, 1.442695
    %v5924 = vpow.pop %v5923
    %v5925 = vmul.f32 %v5842, 1.442695
    %v5926 = vpow.pop %v5925
    %v5927 = vmul.f32 %v5843, 1.442695
    %v5928 = vpow.pop %v5927
    %v5929 = vmul.f32 %v5844, 1.442695
    %v5930 = vpow.pop %v5929
    %v5931 = vmul.f32 %v5845, 1.442695
    %v5932 = vpow.pop %v5931
    %v5933 = vmul.f32 %v5846, 1.442695
    %v5934 = vpow.pop %v5933
    %v5935 = vmul.f32 %v5847, 1.442695
    %v5936 = vpow.pop %v5935
    %v5937 = vmul.f32 %v5848, 1.442695
    %v5938 = vpow.pop %v5937
    %v5939 = vmul.f32 %v5849, 1.442695
    %v5940 = vpow.pop %v5939
    %v5941 = vmul.f32 %v5850, 1.442695
    %v5942 = vpow.pop %v5941
    %v5943 = vmul.f32 %v5851, 1.442695
    %v5944 = vpow.pop %v5943
    %v5945 = vmul.f32 %v5852, 1.442695
    %v5946 = vpow.pop %v5945
    %v5947 = vmul.f32 %v5853, 1.442695
    %v5948 = vpow.pop %v5947
    %v5949 = vmul.f32 %v5854, 1.442695
    %v5950 = vpow.pop %v5949
    %v5951 = vmul.f32 %v5855, 1.442695
    %v5952 = vpow.pop %v5951
    %v5953 = vmul.f32 %v5856, 1.442695
    %v5954 = vpow.pop %v5953
    %v5955 = vmul.f32 %v5857, 1.442695
    %v5956 = vpow.pop %v5955
    %v5957 = vmul.f32 %v5858, 1.442695
    %v5958 = vpow.pop %v5957
    %v5959 = vmul.f32 %v5859, 1.442695
    %v5960 = vpow.pop %v5959
    %v5961 = vmul.f32 %v5860, 1.442695
    %v5962 = vpow.pop %v5961
    %v5963 = vmul.f32 %v5861, 1.442695
    %v5964 = vpow.pop %v5963
    %v5965 = vmul.f32 %v5862, 1.442695
    %v5966 = vpow.pop %v5965
    %v5967 = vmul.f32 %v5759, %v5864
    %v5968 = vmul.f32 %v5760, %v5866
    %v5969 = vmul.f32 %v5761, %v5868
    %v5970 = vmul.f32 %v5762, %v5870
    %v5971 = vmul.f32 %v5763, %v5872
    %v5972 = vmul.f32 %v5764, %v5874
    %v5973 = vmul.f32 %v5765, %v5876
    %v5974 = vmul.f32 %v5766, %v5878
    %v5975 = vmul.f32 %v5767, %v5880
    %v5976 = vmul.f32 %v5768, %v5882
    %v5977 = vmul.f32 %v5769, %v5884
    %v5978 = vmul.f32 %v5770, %v5886
    %v5979 = vmul.f32 %v5771, %v5888
    %v5980 = vmul.f32 %v5772, %v5890
    %v5981 = vmul.f32 %v5773, %v5892
    %v5982 = vmul.f32 %v5774, %v5894
    %v5983 = vmul.f32 %v5775, %v5896
    %v5984 = vmul.f32 %v5776, %v5898
    %v5985 = vmul.f32 %v5777, %v5900
    %v5986 = vmul.f32 %v5778, %v5902
    %v5987 = vmul.f32 %v5779, %v5904
    %v5988 = vmul.f32 %v5780, %v5906
    %v5989 = vmul.f32 %v5781, %v5908
    %v5990 = vmul.f32 %v5782, %v5910
    %v5991 = vmul.f32 %v5783, %v5912
    %v5992 = vmul.f32 %v5784, %v5914
    %v5993 = vmul.f32 %v5785, %v5916
    %v5994 = vmul.f32 %v5786, %v5918
    %v5995 = vmul.f32 %v5787, %v5920
    %v5996 = vmul.f32 %v5788, %v5922
    %v5997 = vmul.f32 %v5789, %v5924
    %v5998 = vmul.f32 %v5790, %v5926
    %v5999 = vmul.f32 %v5791, %v5928
    %v6000 = vmul.f32 %v5792, %v5930
    %v6001 = vmul.f32 %v5793, %v5932
    %v6002 = vmul.f32 %v5794, %v5934
    %v6003 = vmul.f32 %v5795, %v5936
    %v6004 = vmul.f32 %v5796, %v5938
    %v6005 = vmul.f32 %v5797, %v5940
    %v6006 = vmul.f32 %v5798, %v5942
    %v6007 = vmul.f32 %v5799, %v5944
    %v6008 = vmul.f32 %v5800, %v5946
    %v6009 = vmul.f32 %v5801, %v5948
    %v6010 = vmul.f32 %v5802, %v5950
    %v6011 = vmul.f32 %v5803, %v5952
    %v6012 = vmul.f32 %v5804, %v5954
    %v6013 = vmul.f32 %v5805, %v5956
    %v6014 = vmul.f32 %v5806, %v5958
    %v6015 = vmul.f32 %v5807, %v5960
    %v6016 = vmul.f32 %v5808, %v5962
    %v6017 = vmul.f32 %v5809, %v5964
    %v6018 = vmul.f32 %v5810, %v5966
    %v6019 = vadd.f32 %v5655, %v5967
    %v6020 = vadd.f32 %v5656, %v5968
    %v6021 = vadd.f32 %v5659, %v5969
    %v6022 = vadd.f32 %v5660, %v5970
    %v6023 = vadd.f32 %v5663, %v5971
    %v6024 = vadd.f32 %v5664, %v5972
    %v6025 = vadd.f32 %v5667, %v5973
    %v6026 = vadd.f32 %v5668, %v5974
    %v6027 = vadd.f32 %v5671, %v5975
    %v6028 = vadd.f32 %v5672, %v5976
    %v6029 = vadd.f32 %v5675, %v5977
    %v6030 = vadd.f32 %v5676, %v5978
    %v6031 = vadd.f32 %v5679, %v5979
    %v6032 = vadd.f32 %v5680, %v5980
    %v6033 = vadd.f32 %v5683, %v5981
    %v6034 = vadd.f32 %v5684, %v5982
    %v6035 = vadd.f32 %v5687, %v5983
    %v6036 = vadd.f32 %v5688, %v5984
    %v6037 = vadd.f32 %v5691, %v5985
    %v6038 = vadd.f32 %v5692, %v5986
    %v6039 = vadd.f32 %v5695, %v5987
    %v6040 = vadd.f32 %v5696, %v5988
    %v6041 = vadd.f32 %v5699, %v5989
    %v6042 = vadd.f32 %v5700, %v5990
    %v6043 = vadd.f32 %v5703, %v5991
    %v6044 = vadd.f32 %v5704, %v5992
    %v6045 = vadd.f32 %v5707, %v5993
    %v6046 = vadd.f32 %v5708, %v5994
    %v6047 = vadd.f32 %v5711, %v5995
    %v6048 = vadd.f32 %v5712, %v5996
    %v6049 = vadd.f32 %v5715, %v5997
    %v6050 = vadd.f32 %v5716, %v5998
    %v6051 = vadd.f32 %v5719, %v5999
    %v6052 = vadd.f32 %v5720, %v6000
    %v6053 = vadd.f32 %v5723, %v6001
    %v6054 = vadd.f32 %v5724, %v6002
    %v6055 = vadd.f32 %v5727, %v6003
    %v6056 = vadd.f32 %v5728, %v6004
    %v6057 = vadd.f32 %v5731, %v6005
    %v6058 = vadd.f32 %v5732, %v6006
    %v6059 = vadd.f32 %v5735, %v6007
    %v6060 = vadd.f32 %v5736, %v6008
    %v6061 = vadd.f32 %v5739, %v6009
    %v6062 = vadd.f32 %v5740, %v6010
    %v6063 = vadd.f32 %v5743, %v6011
    %v6064 = vadd.f32 %v5744, %v6012
    %v6065 = vadd.f32 %v5747, %v6013
    %v6066 = vadd.f32 %v5748, %v6014
    %v6067 = vadd.f32 %v5751, %v6015
    %v6068 = vadd.f32 %v5752, %v6016
    %v6069 = vadd.f32 %v5755, %v6017
    %v6070 = vadd.f32 %v5756, %v6018
    %v6071 = vsel %vm145, 1, 0
    %v6072 = vsel %vm146, 1, 0
    %v6073 = vsel %vm147, 1, 0
    %v6074 = vsel %vm148, 1, 0
    %v6075 = vsel %vm149, 1, 0
    %v6076 = vsel %vm150, 1, 0
    %v6077 = vsel %vm151, 1, 0
    %v6078 = vsel %vm152, 1, 0
    %v6079 = vsel %vm153, 1, 0
    %v6080 = vsel %vm154, 1, 0
    %v6081 = vsel %vm155, 1, 0
    %v6082 = vsel %vm156, 1, 0
    %v6083 = vsel %vm157, 1, 0
    %vm6084 = vcmp.eq.s32.totalorder %v6071, 1
    %vm6085 = vcmp.eq.s32.totalorder %v6072, 1
    %vm6086 = vcmp.eq.s32.totalorder %v6073, 1
    %vm6087 = vcmp.eq.s32.totalorder %v6074, 1
    %vm6088 = vcmp.eq.s32.totalorder %v6075, 1
    %vm6089 = vcmp.eq.s32.totalorder %v6076, 1
    %vm6090 = vcmp.eq.s32.totalorder %v6077, 1
    %vm6091 = vcmp.eq.s32.totalorder %v6078, 1
    %vm6092 = vcmp.eq.s32.totalorder %v6079, 1
    %vm6093 = vcmp.eq.s32.totalorder %v6080, 1
    %vm6094 = vcmp.eq.s32.totalorder %v6081, 1
    %vm6095 = vcmp.eq.s32.totalorder %v6082, 1
    %vm6096 = vcmp.eq.s32.totalorder %v6083, 1
    %v6097 = vsel %vm6084, %v6019, 1e+30
    %v6098 = vsel %vm6084, %v6020, 1e+30
    %v6099 = vsel %vm6085, %v6021, 1e+30
    %v6100 = vsel %vm6085, %v6022, 1e+30
    %v6101 = vsel %vm6086, %v6023, 1e+30
    %v6102 = vsel %vm6086, %v6024, 1e+30
    %v6103 = vsel %vm6087, %v6025, 1e+30
    %v6104 = vsel %vm6087, %v6026, 1e+30
    %v6105 = vsel %vm6088, %v6027, 1e+30
    %v6106 = vsel %vm6088, %v6028, 1e+30
    %v6107 = vsel %vm6089, %v6029, 1e+30
    %v6108 = vsel %vm6089, %v6030, 1e+30
    %v6109 = vsel %vm6090, %v6031, 1e+30
    %v6110 = vsel %vm6090, %v6032, 1e+30
    %v6111 = vsel %vm6091, %v6033, 1e+30
    %v6112 = vsel %vm6091, %v6034, 1e+30
    %v6113 = vsel %vm6092, %v6035, 1e+30
    %v6114 = vsel %vm6092, %v6036, 1e+30
    %v6115 = vsel %vm6093, %v6037, 1e+30
    %v6116 = vsel %vm6093, %v6038, 1e+30
    %v6117 = vsel %vm6094, %v6039, 1e+30
    %v6118 = vsel %vm6094, %v6040, 1e+30
    %v6119 = vsel %vm6095, %v6041, 1e+30
    %v6120 = vsel %vm6095, %v6042, 1e+30
    %v6121 = vsel %vm6096, %v6043, 1e+30
    %v6122 = vsel %vm6096, %v6044, 1e+30
    %v6123 = vmin.f32 %v6097, %v6101
    %v6124 = vmin.f32 %v6098, %v6102
    %v6125 = vmin.f32 %v6099, %v6103
    %v6126 = vmin.f32 %v6100, %v6104
    %v6127 = vmin.f32 %v6123, %v6105
    %v6128 = vmin.f32 %v6124, %v6106
    %v6129 = vmin.f32 %v6125, %v6107
    %v6130 = vmin.f32 %v6126, %v6108
    %v6131 = vmin.f32 %v6127, %v6109
    %v6132 = vmin.f32 %v6128, %v6110
    %v6133 = vmin.f32 %v6129, %v6111
    %v6134 = vmin.f32 %v6130, %v6112
    %v6135 = vmin.f32 %v6131, %v6113
    %v6136 = vmin.f32 %v6132, %v6114
    %v6137 = vmin.f32 %v6133, %v6115
    %v6138 = vmin.f32 %v6134, %v6116
    %v6139 = vmin.f32 %v6135, %v6117
    %v6140 = vmin.f32 %v6136, %v6118
    %v6141 = vmin.f32 %v6137, %v6119
    %v6142 = vmin.f32 %v6138, %v6120
    %v6143 = vmin.f32 %v6139, %v6121
    %v6144 = vmin.f32 %v6140, %v6122
    %v6145 = vmin.f32 %v6143, %v6144
    %v6146 = vmin.f32 %v6141, %v6142
    %v6147 = vmin.f32 %v6145, %v6146
    %6148 = vmin.xlane.f32.xlu0 %v6147
    %v6149 = vpop.xlane.xlu0 %6148
    %v6150 = vrot.slane %v6149, 4
    %v6151 = vmin.f32 %v6149, %v6150
    %v6152 = vrot.slane %v6151, 2
    %v6153 = vmin.f32 %v6151, %v6152
    %v6154 = vrot.slane %v6153, 1
    %v6155 = vmin.f32 %v6153, %v6154
    %s6156 = vtos %v6155
    %v6157 = vstv %s6156
    %v6158 = vsub.f32 %v6019, %v6157
    %v6159 = vsub.f32 %v6020, %v6157
    %v6160 = vsub.f32 %v6021, %v6157
    %v6161 = vsub.f32 %v6022, %v6157
    %v6162 = vsub.f32 %v6023, %v6157
    %v6163 = vsub.f32 %v6024, %v6157
    %v6164 = vsub.f32 %v6025, %v6157
    %v6165 = vsub.f32 %v6026, %v6157
    %v6166 = vsub.f32 %v6027, %v6157
    %v6167 = vsub.f32 %v6028, %v6157
    %v6168 = vsub.f32 %v6029, %v6157
    %v6169 = vsub.f32 %v6030, %v6157
    %v6170 = vsub.f32 %v6031, %v6157
    %v6171 = vsub.f32 %v6032, %v6157
    %v6172 = vsub.f32 %v6033, %v6157
    %v6173 = vsub.f32 %v6034, %v6157
    %v6174 = vsub.f32 %v6035, %v6157
    %v6175 = vsub.f32 %v6036, %v6157
    %v6176 = vsub.f32 %v6037, %v6157
    %v6177 = vsub.f32 %v6038, %v6157
    %v6178 = vsub.f32 %v6039, %v6157
    %v6179 = vsub.f32 %v6040, %v6157
    %v6180 = vsub.f32 %v6041, %v6157
    %v6181 = vsub.f32 %v6042, %v6157
    %v6182 = vsub.f32 %v6043, %v6157
    %v6183 = vsub.f32 %v6044, %v6157
    %v6184 = vsel %vm6084, %v6158, -1e+30
    %v6185 = vsel %vm6084, %v6159, -1e+30
    %v6186 = vsel %vm6085, %v6160, -1e+30
    %v6187 = vsel %vm6085, %v6161, -1e+30
    %v6188 = vsel %vm6086, %v6162, -1e+30
    %v6189 = vsel %vm6086, %v6163, -1e+30
    %v6190 = vsel %vm6087, %v6164, -1e+30
    %v6191 = vsel %vm6087, %v6165, -1e+30
    %v6192 = vsel %vm6088, %v6166, -1e+30
    %v6193 = vsel %vm6088, %v6167, -1e+30
    %v6194 = vsel %vm6089, %v6168, -1e+30
    %v6195 = vsel %vm6089, %v6169, -1e+30
    %v6196 = vsel %vm6090, %v6170, -1e+30
    %v6197 = vsel %vm6090, %v6171, -1e+30
    %v6198 = vsel %vm6091, %v6172, -1e+30
    %v6199 = vsel %vm6091, %v6173, -1e+30
    %v6200 = vsel %vm6092, %v6174, -1e+30
    %v6201 = vsel %vm6092, %v6175, -1e+30
    %v6202 = vsel %vm6093, %v6176, -1e+30
    %v6203 = vsel %vm6093, %v6177, -1e+30
    %v6204 = vsel %vm6094, %v6178, -1e+30
    %v6205 = vsel %vm6094, %v6179, -1e+30
    %v6206 = vsel %vm6095, %v6180, -1e+30
    %v6207 = vsel %vm6095, %v6181, -1e+30
    %v6208 = vsel %vm6096, %v6182, -1e+30
    %v6209 = vsel %vm6096, %v6183, -1e+30
    %v6210 = vmax.f32 %v6184, %v6188
    %v6211 = vmax.f32 %v6185, %v6189
    %v6212 = vmax.f32 %v6186, %v6190
    %v6213 = vmax.f32 %v6187, %v6191
    %v6214 = vmax.f32 %v6210, %v6192
    %v6215 = vmax.f32 %v6211, %v6193
    %v6216 = vmax.f32 %v6212, %v6194
    %v6217 = vmax.f32 %v6213, %v6195
    %v6218 = vmax.f32 %v6214, %v6196
    %v6219 = vmax.f32 %v6215, %v6197
    %v6220 = vmax.f32 %v6216, %v6198
    %v6221 = vmax.f32 %v6217, %v6199
    %v6222 = vmax.f32 %v6218, %v6200
    %v6223 = vmax.f32 %v6219, %v6201
    %v6224 = vmax.f32 %v6220, %v6202
    %v6225 = vmax.f32 %v6221, %v6203
    %v6226 = vmax.f32 %v6222, %v6204
    %v6227 = vmax.f32 %v6223, %v6205
    %v6228 = vmax.f32 %v6224, %v6206
    %v6229 = vmax.f32 %v6225, %v6207
    %v6230 = vmax.f32 %v6226, %v6208
    %v6231 = vmax.f32 %v6227, %v6209
    %v6232 = vmax.f32 %v6230, %v6231
    %v6233 = vmax.f32 %v6228, %v6229
    %v6234 = vmax.f32 %v6232, %v6233
    %6235 = vmax.xlane.f32.xlu0 %v6234
    %v6236 = vpop.xlane.xlu0 %6235
    %v6237 = vrot.slane %v6236, 4
    %v6238 = vmax.f32 %v6236, %v6237
    %v6239 = vrot.slane %v6238, 2
    %v6240 = vmax.f32 %v6238, %v6239
    %v6241 = vrot.slane %v6240, 1
    %v6242 = vmax.f32 %v6240, %v6241
    %s6243 = vtos %v6242
    %v6244 = vstv %s6243
    %v6245 = vrcp.pop %v6244
    %s6246 = vtos %v6245
    %v6247 = vstv %s6246
    %v6248 = vmul.f32 %v6158, %v6247
    %v6249 = vmul.f32 %v6159, %v6247
    %v6250 = vmul.f32 %v6160, %v6247
    %v6251 = vmul.f32 %v6161, %v6247
    %v6252 = vmul.f32 %v6162, %v6247
    %v6253 = vmul.f32 %v6163, %v6247
    %v6254 = vmul.f32 %v6164, %v6247
    %v6255 = vmul.f32 %v6165, %v6247
    %v6256 = vmul.f32 %v6166, %v6247
    %v6257 = vmul.f32 %v6167, %v6247
    %v6258 = vmul.f32 %v6168, %v6247
    %v6259 = vmul.f32 %v6169, %v6247
    %v6260 = vmul.f32 %v6170, %v6247
    %v6261 = vmul.f32 %v6171, %v6247
    %v6262 = vmul.f32 %v6172, %v6247
    %v6263 = vmul.f32 %v6173, %v6247
    %v6264 = vmul.f32 %v6174, %v6247
    %v6265 = vmul.f32 %v6175, %v6247
    %v6266 = vmul.f32 %v6176, %v6247
    %v6267 = vmul.f32 %v6177, %v6247
    %v6268 = vmul.f32 %v6178, %v6247
    %v6269 = vmul.f32 %v6179, %v6247
    %v6270 = vmul.f32 %v6180, %v6247
    %v6271 = vmul.f32 %v6181, %v6247
    %v6272 = vmul.f32 %v6182, %v6247
    %v6273 = vmul.f32 %v6183, %v6247
    %6274 = vst [vmem:[%s10] sm:$0xff] %v6248
    %6275 = vst [vmem:[%s10 + $0x8] sm:$0xff] %v6249
    %6276 = vst [vmem:[%s10 + $0x10] sm:$0xff] %v6250
    %6277 = vst [vmem:[%s10 + $0x18] sm:$0xff] %v6251
    %6278 = vst [vmem:[%s10 + $0x20] sm:$0xff] %v6252
    %6279 = vst [vmem:[%s10 + $0x28] sm:$0xff] %v6253
    %6280 = vst [vmem:[%s10 + $0x30] sm:$0xff] %v6254
    %6281 = vst [vmem:[%s10 + $0x38] sm:$0xff] %v6255
    %6282 = vst [vmem:[%s10 + $0x40] sm:$0xff] %v6256
    %6283 = vst [vmem:[%s10 + $0x48] sm:$0xff] %v6257
    %6284 = vst [vmem:[%s10 + $0x50] sm:$0xff] %v6258
    %6285 = vst [vmem:[%s10 + $0x58] sm:$0xff] %v6259
    %6286 = vst [vmem:[%s10 + $0x60] sm:$0xff] %v6260
    %6287 = vst [vmem:[%s10 + $0x68] sm:$0xff] %v6261
    %6288 = vst [vmem:[%s10 + $0x70] sm:$0xff] %v6262
    %6289 = vst [vmem:[%s10 + $0x78] sm:$0xff] %v6263
    %6290 = vst [vmem:[%s10 + $0x80] sm:$0xff] %v6264
    %6291 = vst [vmem:[%s10 + $0x88] sm:$0xff] %v6265
    %6292 = vst [vmem:[%s10 + $0x90] sm:$0xff] %v6266
    %6293 = vst [vmem:[%s10 + $0x98] sm:$0xff] %v6267
    %6294 = vst [vmem:[%s10 + $0xa0] sm:$0xff] %v6268
    %6295 = vst [vmem:[%s10 + $0xa8] sm:$0xff] %v6269
    %6296 = vst [vmem:[%s10 + $0xb0] sm:$0xff] %v6270
    %6297 = vst [vmem:[%s10 + $0xb8] sm:$0xff] %v6271
    %6298 = vst [vmem:[%s10 + $0xc0] sm:$0xf] %v6272
    %6299 = vst [vmem:[%s10 + $0xc8] sm:$0xf] %v6273
    %v6300 = vsel %vm6084, %v6045, 1e+30
    %v6301 = vsel %vm6084, %v6046, 1e+30
    %v6302 = vsel %vm6085, %v6047, 1e+30
    %v6303 = vsel %vm6085, %v6048, 1e+30
    %v6304 = vsel %vm6086, %v6049, 1e+30
    %v6305 = vsel %vm6086, %v6050, 1e+30
    %v6306 = vsel %vm6087, %v6051, 1e+30
    %v6307 = vsel %vm6087, %v6052, 1e+30
    %v6308 = vsel %vm6088, %v6053, 1e+30
    %v6309 = vsel %vm6088, %v6054, 1e+30
    %v6310 = vsel %vm6089, %v6055, 1e+30
    %v6311 = vsel %vm6089, %v6056, 1e+30
    %v6312 = vsel %vm6090, %v6057, 1e+30
    %v6313 = vsel %vm6090, %v6058, 1e+30
    %v6314 = vsel %vm6091, %v6059, 1e+30
    %v6315 = vsel %vm6091, %v6060, 1e+30
    %v6316 = vsel %vm6092, %v6061, 1e+30
    %v6317 = vsel %vm6092, %v6062, 1e+30
    %v6318 = vsel %vm6093, %v6063, 1e+30
    %v6319 = vsel %vm6093, %v6064, 1e+30
    %v6320 = vsel %vm6094, %v6065, 1e+30
    %v6321 = vsel %vm6094, %v6066, 1e+30
    %v6322 = vsel %vm6095, %v6067, 1e+30
    %v6323 = vsel %vm6095, %v6068, 1e+30
    %v6324 = vsel %vm6096, %v6069, 1e+30
    %v6325 = vsel %vm6096, %v6070, 1e+30
    %v6326 = vmin.f32 %v6300, %v6304
    %v6327 = vmin.f32 %v6301, %v6305
    %v6328 = vmin.f32 %v6302, %v6306
    %v6329 = vmin.f32 %v6303, %v6307
    %v6330 = vmin.f32 %v6326, %v6308
    %v6331 = vmin.f32 %v6327, %v6309
    %v6332 = vmin.f32 %v6328, %v6310
    %v6333 = vmin.f32 %v6329, %v6311
    %v6334 = vmin.f32 %v6330, %v6312
    %v6335 = vmin.f32 %v6331, %v6313
    %v6336 = vmin.f32 %v6332, %v6314
    %v6337 = vmin.f32 %v6333, %v6315
    %v6338 = vmin.f32 %v6334, %v6316
    %v6339 = vmin.f32 %v6335, %v6317
    %v6340 = vmin.f32 %v6336, %v6318
    %v6341 = vmin.f32 %v6337, %v6319
    %v6342 = vmin.f32 %v6338, %v6320
    %v6343 = vmin.f32 %v6339, %v6321
    %v6344 = vmin.f32 %v6340, %v6322
    %v6345 = vmin.f32 %v6341, %v6323
    %v6346 = vmin.f32 %v6342, %v6324
    %v6347 = vmin.f32 %v6343, %v6325
    %v6348 = vmin.f32 %v6346, %v6347
    %v6349 = vmin.f32 %v6344, %v6345
    %v6350 = vmin.f32 %v6348, %v6349
    %6351 = vmin.xlane.f32.xlu0 %v6350
    %v6352 = vpop.xlane.xlu0 %6351
    %v6353 = vrot.slane %v6352, 4
    %v6354 = vmin.f32 %v6352, %v6353
    %v6355 = vrot.slane %v6354, 2
    %v6356 = vmin.f32 %v6354, %v6355
    %v6357 = vrot.slane %v6356, 1
    %v6358 = vmin.f32 %v6356, %v6357
    %s6359 = vtos %v6358
    %v6360 = vstv %s6359
    %v6361 = vsub.f32 %v6045, %v6360
    %v6362 = vsub.f32 %v6046, %v6360
    %v6363 = vsub.f32 %v6047, %v6360
    %v6364 = vsub.f32 %v6048, %v6360
    %v6365 = vsub.f32 %v6049, %v6360
    %v6366 = vsub.f32 %v6050, %v6360
    %v6367 = vsub.f32 %v6051, %v6360
    %v6368 = vsub.f32 %v6052, %v6360
    %v6369 = vsub.f32 %v6053, %v6360
    %v6370 = vsub.f32 %v6054, %v6360
    %v6371 = vsub.f32 %v6055, %v6360
    %v6372 = vsub.f32 %v6056, %v6360
    %v6373 = vsub.f32 %v6057, %v6360
    %v6374 = vsub.f32 %v6058, %v6360
    %v6375 = vsub.f32 %v6059, %v6360
    %v6376 = vsub.f32 %v6060, %v6360
    %v6377 = vsub.f32 %v6061, %v6360
    %v6378 = vsub.f32 %v6062, %v6360
    %v6379 = vsub.f32 %v6063, %v6360
    %v6380 = vsub.f32 %v6064, %v6360
    %v6381 = vsub.f32 %v6065, %v6360
    %v6382 = vsub.f32 %v6066, %v6360
    %v6383 = vsub.f32 %v6067, %v6360
    %v6384 = vsub.f32 %v6068, %v6360
    %v6385 = vsub.f32 %v6069, %v6360
    %v6386 = vsub.f32 %v6070, %v6360
    %v6387 = vsel %vm6084, %v6361, -1e+30
    %v6388 = vsel %vm6084, %v6362, -1e+30
    %v6389 = vsel %vm6085, %v6363, -1e+30
    %v6390 = vsel %vm6085, %v6364, -1e+30
    %v6391 = vsel %vm6086, %v6365, -1e+30
    %v6392 = vsel %vm6086, %v6366, -1e+30
    %v6393 = vsel %vm6087, %v6367, -1e+30
    %v6394 = vsel %vm6087, %v6368, -1e+30
    %v6395 = vsel %vm6088, %v6369, -1e+30
    %v6396 = vsel %vm6088, %v6370, -1e+30
    %v6397 = vsel %vm6089, %v6371, -1e+30
    %v6398 = vsel %vm6089, %v6372, -1e+30
    %v6399 = vsel %vm6090, %v6373, -1e+30
    %v6400 = vsel %vm6090, %v6374, -1e+30
    %v6401 = vsel %vm6091, %v6375, -1e+30
    %v6402 = vsel %vm6091, %v6376, -1e+30
    %v6403 = vsel %vm6092, %v6377, -1e+30
    %v6404 = vsel %vm6092, %v6378, -1e+30
    %v6405 = vsel %vm6093, %v6379, -1e+30
    %v6406 = vsel %vm6093, %v6380, -1e+30
    %v6407 = vsel %vm6094, %v6381, -1e+30
    %v6408 = vsel %vm6094, %v6382, -1e+30
    %v6409 = vsel %vm6095, %v6383, -1e+30
    %v6410 = vsel %vm6095, %v6384, -1e+30
    %v6411 = vsel %vm6096, %v6385, -1e+30
    %v6412 = vsel %vm6096, %v6386, -1e+30
    %v6413 = vmax.f32 %v6387, %v6391
    %v6414 = vmax.f32 %v6388, %v6392
    %v6415 = vmax.f32 %v6389, %v6393
    %v6416 = vmax.f32 %v6390, %v6394
    %v6417 = vmax.f32 %v6413, %v6395
    %v6418 = vmax.f32 %v6414, %v6396
    %v6419 = vmax.f32 %v6415, %v6397
    %v6420 = vmax.f32 %v6416, %v6398
    %v6421 = vmax.f32 %v6417, %v6399
    %v6422 = vmax.f32 %v6418, %v6400
    %v6423 = vmax.f32 %v6419, %v6401
    %v6424 = vmax.f32 %v6420, %v6402
    %v6425 = vmax.f32 %v6421, %v6403
    %v6426 = vmax.f32 %v6422, %v6404
    %v6427 = vmax.f32 %v6423, %v6405
    %v6428 = vmax.f32 %v6424, %v6406
    %v6429 = vmax.f32 %v6425, %v6407
    %v6430 = vmax.f32 %v6426, %v6408
    %v6431 = vmax.f32 %v6427, %v6409
    %v6432 = vmax.f32 %v6428, %v6410
    %v6433 = vmax.f32 %v6429, %v6411
    %v6434 = vmax.f32 %v6430, %v6412
    %v6435 = vmax.f32 %v6433, %v6434
    %v6436 = vmax.f32 %v6431, %v6432
    %v6437 = vmax.f32 %v6435, %v6436
    %6438 = vmax.xlane.f32.xlu0 %v6437
    %v6439 = vpop.xlane.xlu0 %6438
    %v6440 = vrot.slane %v6439, 4
    %v6441 = vmax.f32 %v6439, %v6440
    %v6442 = vrot.slane %v6441, 2
    %v6443 = vmax.f32 %v6441, %v6442
    %v6444 = vrot.slane %v6443, 1
    %v6445 = vmax.f32 %v6443, %v6444
    %s6446 = vtos %v6445
    %v6447 = vstv %s6446
    %v6448 = vrcp.pop %v6447
    %s6449 = vtos %v6448
    %v6450 = vstv %s6449
    %v6451 = vmul.f32 %v6361, %v6450
    %v6452 = vmul.f32 %v6362, %v6450
    %v6453 = vmul.f32 %v6363, %v6450
    %v6454 = vmul.f32 %v6364, %v6450
    %v6455 = vmul.f32 %v6365, %v6450
    %v6456 = vmul.f32 %v6366, %v6450
    %v6457 = vmul.f32 %v6367, %v6450
    %v6458 = vmul.f32 %v6368, %v6450
    %v6459 = vmul.f32 %v6369, %v6450
    %v6460 = vmul.f32 %v6370, %v6450
    %v6461 = vmul.f32 %v6371, %v6450
    %v6462 = vmul.f32 %v6372, %v6450
    %v6463 = vmul.f32 %v6373, %v6450
    %v6464 = vmul.f32 %v6374, %v6450
    %v6465 = vmul.f32 %v6375, %v6450
    %v6466 = vmul.f32 %v6376, %v6450
    %v6467 = vmul.f32 %v6377, %v6450
    %v6468 = vmul.f32 %v6378, %v6450
    %v6469 = vmul.f32 %v6379, %v6450
    %v6470 = vmul.f32 %v6380, %v6450
    %v6471 = vmul.f32 %v6381, %v6450
    %v6472 = vmul.f32 %v6382, %v6450
    %v6473 = vmul.f32 %v6383, %v6450
    %v6474 = vmul.f32 %v6384, %v6450
    %v6475 = vmul.f32 %v6385, %v6450
    %v6476 = vmul.f32 %v6386, %v6450
    %s6477 = scalar_lea.vmem %s10, 208
    %6478 = vst [vmem:[%s6477] sm:$0xff] %v6451
    %6479 = vst [vmem:[%s6477 + $0x8] sm:$0xff] %v6452
    %6480 = vst [vmem:[%s6477 + $0x10] sm:$0xff] %v6453
    %6481 = vst [vmem:[%s6477 + $0x18] sm:$0xff] %v6454
    %6482 = vst [vmem:[%s6477 + $0x20] sm:$0xff] %v6455
    %6483 = vst [vmem:[%s6477 + $0x28] sm:$0xff] %v6456
    %6484 = vst [vmem:[%s6477 + $0x30] sm:$0xff] %v6457
    %6485 = vst [vmem:[%s6477 + $0x38] sm:$0xff] %v6458
    %6486 = vst [vmem:[%s6477 + $0x40] sm:$0xff] %v6459
    %6487 = vst [vmem:[%s6477 + $0x48] sm:$0xff] %v6460
    %6488 = vst [vmem:[%s6477 + $0x50] sm:$0xff] %v6461
    %6489 = vst [vmem:[%s6477 + $0x58] sm:$0xff] %v6462
    %6490 = vst [vmem:[%s6477 + $0x60] sm:$0xff] %v6463
    %6491 = vst [vmem:[%s6477 + $0x68] sm:$0xff] %v6464
    %6492 = vst [vmem:[%s6477 + $0x70] sm:$0xff] %v6465
    %6493 = vst [vmem:[%s6477 + $0x78] sm:$0xff] %v6466
    %6494 = vst [vmem:[%s6477 + $0x80] sm:$0xff] %v6467
    %6495 = vst [vmem:[%s6477 + $0x88] sm:$0xff] %v6468
    %6496 = vst [vmem:[%s6477 + $0x90] sm:$0xff] %v6469
    %6497 = vst [vmem:[%s6477 + $0x98] sm:$0xff] %v6470
    %6498 = vst [vmem:[%s6477 + $0xa0] sm:$0xff] %v6471
    %6499 = vst [vmem:[%s6477 + $0xa8] sm:$0xff] %v6472
    %6500 = vst [vmem:[%s6477 + $0xb0] sm:$0xff] %v6473
    %6501 = vst [vmem:[%s6477 + $0xb8] sm:$0xff] %v6474
    %6502 = vst [vmem:[%s6477 + $0xc0] sm:$0xf] %v6475
    %6503 = vst [vmem:[%s6477 + $0xc8] sm:$0xf] %v6476
    // Predicated region
    $region66: #{tpu_custom_call.1} parent=1 // pred_check
      _
    $region67: #{tpu_custom_call.1} parent=1 // pred_check_branch
      %6505 = sbr.rel (0) target = $region69
    $region68: #{tpu_custom_call.1} parent=1 // pred_region
      _
    $region69: #{tpu_custom_call.1} parent=1 // pred_fallthru
      _
    // Predicated region
    $region70: #{tpu_custom_call.1} parent=1 // pred_check
      _
    $region71: #{tpu_custom_call.1} parent=1 // pred_check_branch
      %6507 = sbr.rel (0) target = $region73
    $region72: #{tpu_custom_call.1} parent=1 // pred_region
      _
    $region73: #{tpu_custom_call.1} parent=1 // pred_fallthru
      _
    %6508 = vsyncpa [#allocation3], 1
    %6509 = vsyncpa [#allocation5], 1
    %6510 = vsyncpa [#allocation8], 1
    %6511 = vsyncpa [#allocation11], 1

</llo_original>
